<compile_context>
chip_gen: v7x
topology: tpu7x:2x2x1
jax: 0.10.0
libtpu: 0.0.40
codegen_flags: <defaults>
</compile_context>

<pallas_src>
import functools

import jax
import jax.numpy as jnp
from jax.experimental import pallas as pl
from jax.experimental.pallas import tpu as pltpu

LN_EPS = 1e-5
NEG_INF = -1e30                   # finite mask value: exp underflows to 0, no inf-inf NaN
VMEM_LIMIT = 32 * 1024 * 1024     # safe scoped-VMEM budget on v5e/v6e/v7x (params ~1.5 MB)
# EUP vrcp for the attention-softmax denominator (~1e-3 rel. error vs exact divide; fine
# for inference). Set False for closer agreement with a strict PyTorch reference.
APPROX_SOFTMAX_RECIP = True


# ----------------------------------------------------------------------------
# in-kernel helpers (traced inside the Pallas kernel)
# ----------------------------------------------------------------------------
def _layernorm(x, g, b):
    mu = jnp.mean(x, axis=-1, keepdims=True)
    var = jnp.mean((x - mu) ** 2, axis=-1, keepdims=True)
    return (x - mu) * jax.lax.rsqrt(var + LN_EPS) * g + b


def _rope(t, cos_f, sin_lo, sin_hi, rotary_dim):
    # rope(t)[j] = t[j]*cos[j] + rotate_half(t)[j]*sin[j] on lanes j < rotary_dim,
    # identity beyond. Implemented with two full-width lane rolls (XLU slot, no MXU)
    # against range/sign-masked sin tables:
    #   sin_lo active on [0, h) and carries the minus sign, pairs with t[j+h]
    #   sin_hi active on [h, r),                           pairs with t[j-h]
    # pltpu.roll follows jnp.roll semantics: roll(t, s)[j] = t[(j - s) mod D].
    d = t.shape[-1]
    half = rotary_dim // 2
    t_up = pltpu.roll(t, d - half, 1)   # lane j <- t[(j + half) mod d]
    t_dn = pltpu.roll(t, half, 1)       # lane j <- t[(j - half) mod d]
    return t * cos_f + t_up * sin_lo + t_dn * sin_hi


def _attention_core(x, rope_tab, vec, wqkv_ref, wo_ref, rotary_dim):
    """Pre-LN single-head causal attention with partial rotary + residual.

    x: (S, D) f32; rope_tab: (3, S, D) f32 [cos, sin_lo, sin_hi];
    vec rows: 0 ln_g, 1 ln_b, 2 bq, 3 bk, 4 bv, 5 bo; wqkv_ref: (D, 3D) bf16 ref;
    wo_ref: (D, D) bf16 ref. Returns (x + attn_out, k, v) in f32.
    NOTE: K is cached post-RoPE and V is the value projection (pre attention / pre
    output projection); this must match the reference module's cache convention.
    """
    s_len, d = x.shape
    cos_f, sin_lo, sin_hi = rope_tab[0], rope_tab[1], rope_tab[2]

    h = _layernorm(x, vec[0:1], vec[1:2])
    qkv = jnp.dot(h.astype(jnp.bfloat16), wqkv_ref[...],
                  preferred_element_type=jnp.float32)            # (S, 3D) f32
    q = qkv[:, :d] + vec[2:3]
    k = qkv[:, d:2 * d] + vec[3:4]
    v = qkv[:, 2 * d:] + vec[4:5]

    q = _rope(q, cos_f, sin_lo, sin_hi, rotary_dim) * (d ** -0.5)  # 1/sqrt(D) folded into q
    k = _rope(k, cos_f, sin_lo, sin_hi, rotary_dim)

    scores = jax.lax.dot_general(q.astype(jnp.bfloat16), k.astype(jnp.bfloat16),
                                 (((1,), (1,)), ((), ())),
                                 preferred_element_type=jnp.float32)   # (S, S)
    row = jax.lax.broadcasted_iota(jnp.int32, (s_len, s_len), 0)
    col = jax.lax.broadcasted_iota(jnp.int32, (s_len, s_len), 1)
    scores = jnp.where(col <= row, scores, NEG_INF)
    scores = scores - jnp.max(scores, axis=-1, keepdims=True)
    p = jnp.exp(scores)
    p = p * pl.reciprocal(jnp.sum(p, axis=-1, keepdims=True),
                          approx=APPROX_SOFTMAX_RECIP)

    o = jnp.dot(p.astype(jnp.bfloat16), v.astype(jnp.bfloat16),
                preferred_element_type=jnp.float32)
    o = jnp.dot(o.astype(jnp.bfloat16), wo_ref[...],
                preferred_element_type=jnp.float32) + vec[5:6]
    return x + o, k, v


def _dense_ffn(x1, vec, w1_ref, b1, w2_ref):
    # vec rows: 6 ln2_g, 7 ln2_b, 8 b2
    h = _layernorm(x1, vec[6:7], vec[7:8])
    y = jnp.dot(h.astype(jnp.bfloat16), w1_ref[...],
                preferred_element_type=jnp.float32) + b1
    y = jax.nn.gelu(y)
    y = jnp.dot(y.astype(jnp.bfloat16), w2_ref[...],
                preferred_element_type=jnp.float32) + vec[8:9]
    return x1 + y


def _moe_ffn(x1, vec, wr, w1_ref, b1_ref, w2_ref, b2_ref, top_k):
    # vec rows: 6 ln_g, 7 ln_b. wr: (D, E) f32 value; w1_ref: (E, D, L) bf16 ref;
    # b1_ref: (E, 1, L) f32; w2_ref: (E, L, D) bf16; b2_ref: (E, 1, D) f32.
    n_experts = w1_ref.shape[0]
    h = _layernorm(x1, vec[6:7], vec[7:8])
    h_bf = h.astype(jnp.bfloat16)

    # Router as a bf16 MXU matmul (single-pass; tiny E wastes output lanes, see TODO).
    logits = jnp.dot(h_bf, wr.astype(jnp.bfloat16),
                     preferred_element_type=jnp.float32)          # (S, E)
    logits = logits - jnp.max(logits, axis=-1, keepdims=True)
    gates = jnp.exp(logits)
    gates = gates / jnp.sum(gates, axis=-1, keepdims=True)

    # Static top-k selection (unrolled); ties broken by smallest expert index.
    col = jax.lax.broadcasted_iota(jnp.int32, gates.shape, 1)
    remaining = gates
    mask = jnp.zeros_like(gates)
    for _ in range(top_k):
        m = jnp.max(remaining, axis=-1, keepdims=True)
        is_max = remaining == m
        idx_min = jnp.min(jnp.where(is_max, col, n_experts), axis=-1, keepdims=True)
        first = (col == idx_min).astype(jnp.float32)
        mask = mask + first
        remaining = jnp.where(first > 0, NEG_INF, remaining)
    gsel = gates * mask
    # NOTE: assumes the reference MoE renormalizes the selected gate weights.
    gsel = gsel / jnp.sum(gsel, axis=-1, keepdims=True)

    # Dense compute over all experts, gated accumulate in f32.
    # TODO(synk): skip experts with no routed tokens (pl.when / scalar-prefetched routing
    #   metadata) -- (E - top_k)/E of this MXU work is currently discarded.
    moe_out = jnp.zeros_like(h)
    for e in range(n_experts):
        ye = jnp.dot(h_bf, w1_ref[e], preferred_element_type=jnp.float32) + b1_ref[e]
        ye = jax.nn.gelu(ye)
        ye = jnp.dot(ye.astype(jnp.bfloat16), w2_ref[e],
                     preferred_element_type=jnp.float32) + b2_ref[e]
        moe_out = moe_out + gsel[:, e:e + 1] * ye
    return x1 + moe_out


# ----------------------------------------------------------------------------
# The single fused kernel: all running layers + final LayerNorm, one batch row
# per grid step ("parallel" -> both TCs on v7x; ~0.35 us/step overhead elsewhere).
# ----------------------------------------------------------------------------
def _fused_forward_kernel(*refs, layer_meta, rotary_dim, top_k):
    # refs layout: x, rope, norm_vec, <per-layer params...>, x_out[, k_all, v_all]
    n_in = 3 + sum(cnt for _, cnt in layer_meta)
    x_ref, rope_ref, norm_ref = refs[0], refs[1], refs[2]
    layer_refs = refs[3:n_in]
    outs = refs[n_in:]
    xout_ref = outs[0]
    kout_ref = outs[1] if len(outs) > 1 else None
    vout_ref = outs[2] if len(outs) > 2 else None

    x = x_ref[0].astype(jnp.float32)          # (S, D)
    rope_tab = rope_ref[...]                  # (3, S, D)

    off = 0
    for li, (ltype, cnt) in enumerate(layer_meta):
        p = layer_refs[off:off + cnt]
        off += cnt
        if ltype == 'dense':
            vec_ref, wqkv_ref, wo_ref, w1_ref, b1_ref, w2_ref = p
            vec = vec_ref[...]                # rows: ln1_g, ln1_b, bq, bk, bv, bo, ln2_g, ln2_b, b2
            x, k, v = _attention_core(x, rope_tab, vec, wqkv_ref, wo_ref, rotary_dim)
            x = _dense_ffn(x, vec, w1_ref, b1_ref[...], w2_ref)
        else:
            vec_ref, wqkv_ref, wo_ref, wr_ref, w1_ref, b1_ref, w2_ref, b2_ref = p
            vec = vec_ref[...]                # rows: ln1_g, ln1_b, bq, bk, bv, bo, moe_ln_g, moe_ln_b
            x, k, v = _attention_core(x, rope_tab, vec, wqkv_ref, wo_ref, rotary_dim)
            x = _moe_ffn(x, vec, wr_ref[...], w1_ref, b1_ref, w2_ref, b2_ref, top_k)
        kout_ref[li, 0] = k.astype(kout_ref.dtype)
        vout_ref[li, 0] = v.astype(vout_ref.dtype)

    # Final LayerNorm fused as the kernel epilogue (no extra launch / HBM round trip).
    norm_vec = norm_ref[...]
    xout_ref[0] = _layernorm(x, norm_vec[0:1], norm_vec[1:2]).astype(xout_ref.dtype)


def _const_spec(a):
    zeros = (0,) * a.ndim
    return pl.BlockSpec(a.shape, lambda b, _z=zeros: _z)


def _flatten_layer_params(layers):
    arrays, meta = [], []
    for lp in layers:
        if lp['type'] == 'dense':
            arrays += [lp['vec'], lp['wqkv'], lp['wo'], lp['w1'], lp['b1'], lp['w2']]
            meta.append(('dense', 6))
        else:
            arrays += [lp['vec'], lp['wqkv'], lp['wo'], lp['wr'],
                       lp['w1'], lp['b1'], lp['w2'], lp['b2']]
            meta.append(('moe', 8))
    return arrays, tuple(meta)


def fused_transformer_forward(x_emb, rope_tab, norm_vec, run_layers, cfg):
    B, S, D = x_emb.shape
    n_run = len(run_layers)
    arrays, meta = _flatten_layer_params(run_layers)
    kernel = functools.partial(_fused_forward_kernel, layer_meta=meta,
                               rotary_dim=cfg['rotary_dim'], top_k=cfg['top_moe_k'])

    xspec = pl.BlockSpec((1, S, D), lambda b: (b, 0, 0))
    in_specs = [xspec, _const_spec(rope_tab), _const_spec(norm_vec)]
    in_specs += [_const_spec(a) for a in arrays]

    out_shape = [jax.ShapeDtypeStruct((B, S, D), jnp.float32)]
    out_specs = [xspec]
    if n_run:
        cache_spec = pl.BlockSpec((n_run, 1, S, D), lambda b: (0, b, 0, 0))
        out_shape += [jax.ShapeDtypeStruct((n_run, B, S, D), x_emb.dtype)] * 2
        out_specs += [cache_spec, cache_spec]

    outs = pl.pallas_call(
        kernel,
        grid=(B,),
        in_specs=in_specs,
        out_specs=tuple(out_specs),
        out_shape=tuple(out_shape),
        compiler_params=pltpu.CompilerParams(
            dimension_semantics=("parallel",),
            vmem_limit_bytes=VMEM_LIMIT),
    )(x_emb, rope_tab, norm_vec, *arrays)

    if n_run == 0:
        x_out = outs[0] if isinstance(outs, (tuple, list)) else outs
        return x_out, [], []
    x_out, k_all, v_all = outs
    return x_out, [k_all[i] for i in range(n_run)], [v_all[i] for i in range(n_run)]


# ----------------------------------------------------------------------------
# Glue: rotary tables, parameter init, full forward
# ----------------------------------------------------------------------------
def rope_tables(seq_len, rotary_dim, hidden_dim, base=10000.0):
    half = rotary_dim // 2
    inv_freq = 1.0 / (base ** (jnp.arange(half, dtype=jnp.float32) / half))
    ang = jnp.outer(jnp.arange(seq_len, dtype=jnp.float32), inv_freq)   # (S, half)
    cos = jnp.cos(ang)
    sin = jnp.sin(ang)
    pad = hidden_dim - rotary_dim
    zh = jnp.zeros((seq_len, half), jnp.float32)
    zp = jnp.zeros((seq_len, pad), jnp.float32)
    op = jnp.ones((seq_len, pad), jnp.float32)
    cos_f = jnp.concatenate([cos, cos, op], axis=-1)     # lanes [0, r): cos, beyond: 1
    sin_lo = jnp.concatenate([-sin, zh, zp], axis=-1)    # lanes [0, h): -sin (pairs with t[j+h])
    sin_hi = jnp.concatenate([zh, sin, zp], axis=-1)     # lanes [h, r): +sin (pairs with t[j-h])
    return jnp.stack([cos_f, sin_lo, sin_hi], axis=0)    # (3, S, D)


def init_params(key, cfg):
    D = cfg['hidden_dim']
    L = cfg['latent_dim']
    V = cfg['vocab_size']
    E = cfg['moe_experts']
    n_layers = cfg['n_layers']

    keys = iter(jax.random.split(key, 8 * n_layers + 4))

    def nrm(shape, dtype=jnp.bfloat16, scale=0.02):
        return (scale * jax.random.normal(next(keys), shape, jnp.float32)).astype(dtype)

    ones = lambda s: jnp.ones(s, jnp.float32)
    zeros = lambda s: jnp.zeros(s, jnp.float32)
    ln_rows = jnp.concatenate([ones((1, D)), zeros((1, D))], axis=0)    # gamma=1, beta=0

    params = {
        'emb': nrm((V, D)),      # bf16 activations from the start
        'norm_vec': ln_rows,     # final LayerNorm gamma/beta
        'layers': [],
    }
    for i in range(n_layers):
        wqkv = nrm((D, 3 * D))
        wo = nrm((D, D))
        if i < 3 or E == 0:
            # packed slab rows: ln1_g, ln1_b, bq, bk, bv, bo, ln2_g, ln2_b, b2
            vec = jnp.concatenate([ln_rows, zeros((4, D)), ln_rows, zeros((1, D))], axis=0)
            layer = {'type': 'dense', 'vec': vec, 'wqkv': wqkv, 'wo': wo,
                     'w1': nrm((D, L)), 'b1': zeros((1, L)), 'w2': nrm((L, D))}
        else:
            # packed slab rows: ln1_g, ln1_b, bq, bk, bv, bo, moe_ln_g, moe_ln_b
            vec = jnp.concatenate([ln_rows, zeros((4, D)), ln_rows], axis=0)
            layer = {'type': 'moe', 'vec': vec, 'wqkv': wqkv, 'wo': wo,
                     'wr': nrm((D, E), dtype=jnp.float32),
                     'w1': nrm((E, D, L)), 'b1': zeros((E, 1, L)),
                     'w2': nrm((E, L, D)), 'b2': zeros((E, 1, D))}
        params['layers'].append(layer)
    return params


def r1_transformer_forward(params, input_ids, cfg, key_cache=None,
                           value_cache=None, labels=None):
    # Embeddings: token lookup (plain-JAX gather glue) + rotary tables.
    # dropout_rate: inference no-op.
    x = params['emb'][input_ids]                           # (B, S, D) bf16
    S = input_ids.shape[1]
    rope_tab = rope_tables(S, cfg['rotary_dim'], cfg['hidden_dim'])

    # Mirrors PyTorch `zip(self.layers, key_cache or [], value_cache or [])`:
    # only as many blocks run as cache entries are provided.
    n_run = min(len(params['layers']), len(key_cache or []), len(value_cache or []))
    run_layers = params['layers'][:n_run]

    x_out, new_key_cache, new_value_cache = fused_transformer_forward(
        x, rope_tab, params['norm_vec'], run_layers, cfg)

    if labels is None:
        return x_out, new_key_cache, new_value_cache
    return x_out


if __name__ == "__main__":
    cfg = dict(
        n_layers=4, moe_experts=2, top_moe_k=1, vocab_size=64,
        hidden_dim=128, latent_dim=256, rotary_dim=64,
        base_seq_len=8, stage1_seq_len=8, max_seq_len=16, dropout_rate=0.1,
    )
    root = jax.random.PRNGKey(0)
    pkey, dkey = jax.random.split(root)
    params = init_params(pkey, cfg)

    B, S = 2, 8
    input_ids = jax.random.randint(dkey, (B, S), 0, cfg['vocab_size'], dtype=jnp.int32)

    # Explicit cache lists so every transformer block actually executes
    # (matching the PyTorch zip-over-cache semantics).
    key_cache = [None] * cfg['n_layers']
    value_cache = [None] * cfg['n_layers']

    x, new_k, new_v = r1_transformer_forward(params, input_ids, cfg,
                                             key_cache=key_cache,
                                             value_cache=value_cache)
    jax.block_until_ready(x)
    for t in new_k + new_v:
        jax.block_until_ready(t)

    assert x.shape == (B, S, cfg['hidden_dim'])
    assert len(new_k) == cfg['n_layers'] and len(new_v) == cfg['n_layers']
    assert all(t.shape == (B, S, cfg['hidden_dim']) for t in new_k + new_v)
    print("KERNEL_OK")
</pallas_src>

<mosaic_0001>
module attributes {stable_mosaic.version = 11 : i64} {
  func.func @_fused_forward_kernel(%arg0: i32, %arg1: memref<1x8x128xbf16, #tpu.memory_space<vmem>>, %arg2: memref<3x8x128xf32, #tpu.memory_space<vmem>>, %arg3: memref<2x128xf32, #tpu.memory_space<vmem>>, %arg4: memref<9x128xf32, #tpu.memory_space<vmem>>, %arg5: memref<128x384xbf16, #tpu.memory_space<vmem>>, %arg6: memref<128x128xbf16, #tpu.memory_space<vmem>>, %arg7: memref<128x256xbf16, #tpu.memory_space<vmem>>, %arg8: memref<1x256xf32, #tpu.memory_space<vmem>>, %arg9: memref<256x128xbf16, #tpu.memory_space<vmem>>, %arg10: memref<9x128xf32, #tpu.memory_space<vmem>>, %arg11: memref<128x384xbf16, #tpu.memory_space<vmem>>, %arg12: memref<128x128xbf16, #tpu.memory_space<vmem>>, %arg13: memref<128x256xbf16, #tpu.memory_space<vmem>>, %arg14: memref<1x256xf32, #tpu.memory_space<vmem>>, %arg15: memref<256x128xbf16, #tpu.memory_space<vmem>>, %arg16: memref<9x128xf32, #tpu.memory_space<vmem>>, %arg17: memref<128x384xbf16, #tpu.memory_space<vmem>>, %arg18: memref<128x128xbf16, #tpu.memory_space<vmem>>, %arg19: memref<128x256xbf16, #tpu.memory_space<vmem>>, %arg20: memref<1x256xf32, #tpu.memory_space<vmem>>, %arg21: memref<256x128xbf16, #tpu.memory_space<vmem>>, %arg22: memref<8x128xf32, #tpu.memory_space<vmem>>, %arg23: memref<128x384xbf16, #tpu.memory_space<vmem>>, %arg24: memref<128x128xbf16, #tpu.memory_space<vmem>>, %arg25: memref<128x2xf32, #tpu.memory_space<vmem>>, %arg26: memref<2x128x256xbf16, #tpu.memory_space<vmem>>, %arg27: memref<2x1x256xf32, #tpu.memory_space<vmem>>, %arg28: memref<2x256x128xbf16, #tpu.memory_space<vmem>>, %arg29: memref<2x1x128xf32, #tpu.memory_space<vmem>>, %arg30: memref<1x8x128xf32, #tpu.memory_space<vmem>>, %arg31: memref<4x1x8x128xbf16, #tpu.memory_space<vmem>>, %arg32: memref<4x1x8x128xbf16, #tpu.memory_space<vmem>>) attributes {dimension_semantics = [#tpu.dimension_semantics<parallel>], iteration_bounds = array<i64: 2>, scalar_prefetch = 0 : i64, scratch_operands = 0 : i64, tpu.core_type = #tpu.core_type<tc>, window_params = [{transform_indices = @transform_0, window_bounds = array<i64: 1, 8, 128>}, {pipeline_mode = #tpu.pipeline_mode<synchronous>, transform_indices = @transform_1, window_bounds = array<i64: 3, 8, 128>}, {pipeline_mode = #tpu.pipeline_mode<synchronous>, transform_indices = @transform_2, window_bounds = array<i64: 2, 128>}, {pipeline_mode = #tpu.pipeline_mode<synchronous>, transform_indices = @transform_3, window_bounds = array<i64: 9, 128>}, {pipeline_mode = #tpu.pipeline_mode<synchronous>, transform_indices = @transform_4, window_bounds = array<i64: 128, 384>}, {pipeline_mode = #tpu.pipeline_mode<synchronous>, transform_indices = @transform_5, window_bounds = array<i64: 128, 128>}, {pipeline_mode = #tpu.pipeline_mode<synchronous>, transform_indices = @transform_6, window_bounds = array<i64: 128, 256>}, {pipeline_mode = #tpu.pipeline_mode<synchronous>, transform_indices = @transform_7, window_bounds = array<i64: 1, 256>}, {pipeline_mode = #tpu.pipeline_mode<synchronous>, transform_indices = @transform_8, window_bounds = array<i64: 256, 128>}, {pipeline_mode = #tpu.pipeline_mode<synchronous>, transform_indices = @transform_9, window_bounds = array<i64: 9, 128>}, {pipeline_mode = #tpu.pipeline_mode<synchronous>, transform_indices = @transform_10, window_bounds = array<i64: 128, 384>}, {pipeline_mode = #tpu.pipeline_mode<synchronous>, transform_indices = @transform_11, window_bounds = array<i64: 128, 128>}, {pipeline_mode = #tpu.pipeline_mode<synchronous>, transform_indices = @transform_12, window_bounds = array<i64: 128, 256>}, {pipeline_mode = #tpu.pipeline_mode<synchronous>, transform_indices = @transform_13, window_bounds = array<i64: 1, 256>}, {pipeline_mode = #tpu.pipeline_mode<synchronous>, transform_indices = @transform_14, window_bounds = array<i64: 256, 128>}, {pipeline_mode = #tpu.pipeline_mode<synchronous>, transform_indices = @transform_15, window_bounds = array<i64: 9, 128>}, {pipeline_mode = #tpu.pipeline_mode<synchronous>, transform_indices = @transform_16, window_bounds = array<i64: 128, 384>}, {pipeline_mode = #tpu.pipeline_mode<synchronous>, transform_indices = @transform_17, window_bounds = array<i64: 128, 128>}, {pipeline_mode = #tpu.pipeline_mode<synchronous>, transform_indices = @transform_18, window_bounds = array<i64: 128, 256>}, {pipeline_mode = #tpu.pipeline_mode<synchronous>, transform_indices = @transform_19, window_bounds = array<i64: 1, 256>}, {pipeline_mode = #tpu.pipeline_mode<synchronous>, transform_indices = @transform_20, window_bounds = array<i64: 256, 128>}, {pipeline_mode = #tpu.pipeline_mode<synchronous>, transform_indices = @transform_21, window_bounds = array<i64: 8, 128>}, {pipeline_mode = #tpu.pipeline_mode<synchronous>, transform_indices = @transform_22, window_bounds = array<i64: 128, 384>}, {pipeline_mode = #tpu.pipeline_mode<synchronous>, transform_indices = @transform_23, window_bounds = array<i64: 128, 128>}, {pipeline_mode = #tpu.pipeline_mode<synchronous>, transform_indices = @transform_24, window_bounds = array<i64: 128, 2>}, {pipeline_mode = #tpu.pipeline_mode<synchronous>, transform_indices = @transform_25, window_bounds = array<i64: 2, 128, 256>}, {pipeline_mode = #tpu.pipeline_mode<synchronous>, transform_indices = @transform_26, window_bounds = array<i64: 2, 1, 256>}, {pipeline_mode = #tpu.pipeline_mode<synchronous>, transform_indices = @transform_27, window_bounds = array<i64: 2, 256, 128>}, {pipeline_mode = #tpu.pipeline_mode<synchronous>, transform_indices = @transform_28, window_bounds = array<i64: 2, 1, 128>}, {transform_indices = @transform_29, window_bounds = array<i64: 1, 8, 128>}, {transform_indices = @transform_30, window_bounds = array<i64: 4, 1, 8, 128>}, {transform_indices = @transform_31, window_bounds = array<i64: 4, 1, 8, 128>}]} {
    %c0 = arith.constant 0 : index
    %c0_0 = arith.constant 0 : index
    %c0_1 = arith.constant 0 : index
    %0 = vector.load %arg1[%c0, %c0_0, %c0_1] : memref<1x8x128xbf16, #tpu.memory_space<vmem>>, vector<1x8x128xbf16>
    %1 = vector.shape_cast %0 : vector<1x8x128xbf16> to vector<8x128xbf16>
    %2 = arith.extf %1 : vector<8x128xbf16> to vector<8x128xf32>
    %c0_2 = arith.constant 0 : index
    %c0_3 = arith.constant 0 : index
    %c0_4 = arith.constant 0 : index
    %3 = vector.load %arg2[%c0_2, %c0_3, %c0_4] : memref<3x8x128xf32, #tpu.memory_space<vmem>>, vector<3x8x128xf32>
    %c0_5 = arith.constant 0 : index
    %c0_6 = arith.constant 0 : index
    %4 = vector.load %arg4[%c0_5, %c0_6] : memref<9x128xf32, #tpu.memory_space<vmem>>, vector<9x128xf32>
    %5 = vector.extract_strided_slice %3 {offsets = [0, 0, 0], sizes = [1, 8, 128], strides = [1, 1, 1]} : vector<3x8x128xf32> to vector<1x8x128xf32>
    %6 = vector.shape_cast %5 : vector<1x8x128xf32> to vector<8x128xf32>
    %7 = vector.extract_strided_slice %3 {offsets = [1, 0, 0], sizes = [1, 8, 128], strides = [1, 1, 1]} : vector<3x8x128xf32> to vector<1x8x128xf32>
    %8 = vector.shape_cast %7 : vector<1x8x128xf32> to vector<8x128xf32>
    %9 = vector.extract_strided_slice %3 {offsets = [2, 0, 0], sizes = [1, 8, 128], strides = [1, 1, 1]} : vector<3x8x128xf32> to vector<1x8x128xf32>
    %10 = vector.shape_cast %9 : vector<1x8x128xf32> to vector<8x128xf32>
    %11 = vector.extract_strided_slice %4 {offsets = [0, 0], sizes = [1, 128], strides = [1, 1]} : vector<9x128xf32> to vector<1x128xf32>
    %12 = vector.extract_strided_slice %4 {offsets = [1, 0], sizes = [1, 128], strides = [1, 1]} : vector<9x128xf32> to vector<1x128xf32>
    %cst = arith.constant dense<0.000000e+00> : vector<8xf32>
    %13 = vector.multi_reduction <add>, %2, %cst [1] : vector<8x128xf32> to vector<8xf32>
    %14 = vector.shape_cast %13 : vector<8xf32> to vector<8x1xf32>
    %cst_7 = arith.constant 1.280000e+02 : f32
    %15 = vector.broadcast %cst_7 : f32 to vector<8x1xf32>
    %16 = arith.divf %14, %15 : vector<8x1xf32>
    %17 = vector.broadcast %16 : vector<8x1xf32> to vector<8x128xf32>
    %18 = arith.subf %2, %17 : vector<8x128xf32>
    %19 = arith.mulf %18, %18 : vector<8x128xf32>
    %cst_8 = arith.constant dense<0.000000e+00> : vector<8xf32>
    %20 = vector.multi_reduction <add>, %19, %cst_8 [1] : vector<8x128xf32> to vector<8xf32>
    %21 = vector.shape_cast %20 : vector<8xf32> to vector<8x1xf32>
    %cst_9 = arith.constant 1.280000e+02 : f32
    %22 = vector.broadcast %cst_9 : f32 to vector<8x1xf32>
    %23 = arith.divf %21, %22 : vector<8x1xf32>
    %24 = vector.broadcast %16 : vector<8x1xf32> to vector<8x128xf32>
    %25 = arith.subf %2, %24 : vector<8x128xf32>
    %cst_10 = arith.constant 9.99999974E-6 : f32
    %26 = vector.broadcast %cst_10 : f32 to vector<8x1xf32>
    %27 = arith.addf %23, %26 : vector<8x1xf32>
    %28 = math.rsqrt %27 : vector<8x1xf32>
    %29 = vector.broadcast %28 : vector<8x1xf32> to vector<8x128xf32>
    %30 = arith.mulf %25, %29 : vector<8x128xf32>
    %31 = vector.broadcast %11 : vector<1x128xf32> to vector<8x128xf32>
    %32 = arith.mulf %30, %31 : vector<8x128xf32>
    %33 = vector.broadcast %12 : vector<1x128xf32> to vector<8x128xf32>
    %34 = arith.addf %32, %33 : vector<8x128xf32>
    %35 = arith.truncf %34 : vector<8x128xf32> to vector<8x128xbf16>
    %c0_11 = arith.constant 0 : index
    %c0_12 = arith.constant 0 : index
    %36 = vector.load %arg5[%c0_11, %c0_12] : memref<128x384xbf16, #tpu.memory_space<vmem>>, vector<128x384xbf16>
    %cst_13 = arith.constant dense<0.000000e+00> : vector<8x384xf32>
    %37 = tpu.matmul %35, %36, %cst_13 {dimension_numbers = #tpu.dot_dimension_numbers<[1], [0], [0], [1], [0, 0, 1, 1], [], []>} : vector<8x128xbf16>, vector<128x384xbf16>, vector<8x384xf32> -> vector<8x384xf32>
    %38 = vector.extract_strided_slice %37 {offsets = [0, 0], sizes = [8, 128], strides = [1, 1]} : vector<8x384xf32> to vector<8x128xf32>
    %39 = vector.extract_strided_slice %4 {offsets = [2, 0], sizes = [1, 128], strides = [1, 1]} : vector<9x128xf32> to vector<1x128xf32>
    %40 = vector.broadcast %39 : vector<1x128xf32> to vector<8x128xf32>
    %41 = arith.addf %38, %40 : vector<8x128xf32>
    %42 = vector.extract_strided_slice %37 {offsets = [0, 128], sizes = [8, 128], strides = [1, 1]} : vector<8x384xf32> to vector<8x128xf32>
    %43 = vector.extract_strided_slice %4 {offsets = [3, 0], sizes = [1, 128], strides = [1, 1]} : vector<9x128xf32> to vector<1x128xf32>
    %44 = vector.broadcast %43 : vector<1x128xf32> to vector<8x128xf32>
    %45 = arith.addf %42, %44 : vector<8x128xf32>
    %46 = vector.extract_strided_slice %37 {offsets = [0, 256], sizes = [8, 128], strides = [1, 1]} : vector<8x384xf32> to vector<8x128xf32>
    %47 = vector.extract_strided_slice %4 {offsets = [4, 0], sizes = [1, 128], strides = [1, 1]} : vector<9x128xf32> to vector<1x128xf32>
    %48 = vector.broadcast %47 : vector<1x128xf32> to vector<8x128xf32>
    %49 = arith.addf %46, %48 : vector<8x128xf32>
    %c96_i32 = arith.constant 96 : i32
    %50 = tpu.dynamic_rotate %41 by %c96_i32 dim 1 : vector<8x128xf32>, i32 -> vector<8x128xf32>
    %c32_i32 = arith.constant 32 : i32
    %51 = tpu.dynamic_rotate %41 by %c32_i32 dim 1 : vector<8x128xf32>, i32 -> vector<8x128xf32>
    %52 = arith.mulf %41, %6 : vector<8x128xf32>
    %53 = arith.mulf %50, %8 : vector<8x128xf32>
    %54 = arith.addf %52, %53 : vector<8x128xf32>
    %55 = arith.mulf %51, %10 : vector<8x128xf32>
    %56 = arith.addf %54, %55 : vector<8x128xf32>
    %cst_14 = arith.constant 0.0883883461 : f32
    %57 = vector.broadcast %cst_14 : f32 to vector<8x128xf32>
    %58 = arith.mulf %56, %57 : vector<8x128xf32>
    %c96_i32_15 = arith.constant 96 : i32
    %59 = tpu.dynamic_rotate %45 by %c96_i32_15 dim 1 : vector<8x128xf32>, i32 -> vector<8x128xf32>
    %c32_i32_16 = arith.constant 32 : i32
    %60 = tpu.dynamic_rotate %45 by %c32_i32_16 dim 1 : vector<8x128xf32>, i32 -> vector<8x128xf32>
    %61 = arith.mulf %45, %6 : vector<8x128xf32>
    %62 = arith.mulf %59, %8 : vector<8x128xf32>
    %63 = arith.addf %61, %62 : vector<8x128xf32>
    %64 = arith.mulf %60, %10 : vector<8x128xf32>
    %65 = arith.addf %63, %64 : vector<8x128xf32>
    %66 = arith.truncf %58 : vector<8x128xf32> to vector<8x128xbf16>
    %67 = arith.truncf %65 : vector<8x128xf32> to vector<8x128xbf16>
    %cst_17 = arith.constant dense<0.000000e+00> : vector<8x8xf32>
    %68 = tpu.matmul %66, %67, %cst_17 {dimension_numbers = #tpu.dot_dimension_numbers<[1], [1], [0], [0], [0, 0, 1, 0], [], []>} : vector<8x128xbf16>, vector<8x128xbf16>, vector<8x8xf32> -> vector<8x8xf32>
    %69 = tpu.iota {dimensions = array<i32: 0>} : vector<8x8xi32>
    %70 = tpu.iota {dimensions = array<i32: 1>} : vector<8x8xi32>
    %71 = arith.cmpi sle, %70, %69 : vector<8x8xi32>
    %cst_18 = arith.constant -1.000000e+30 : f32
    %72 = vector.broadcast %cst_18 : f32 to vector<8x8xf32>
    %73 = arith.select %71, %68, %72 : vector<8x8xi1>, vector<8x8xf32>
    %cst_19 = arith.constant dense<0xFF800000> : vector<8xf32>
    %74 = vector.multi_reduction <maximumf>, %73, %cst_19 [1] : vector<8x8xf32> to vector<8xf32>
    %75 = vector.shape_cast %74 : vector<8xf32> to vector<8x1xf32>
    %76 = vector.broadcast %75 : vector<8x1xf32> to vector<8x8xf32>
    %77 = arith.subf %73, %76 : vector<8x8xf32>
    %78 = math.exp %77 : vector<8x8xf32>
    %cst_20 = arith.constant dense<0.000000e+00> : vector<8xf32>
    %79 = vector.multi_reduction <add>, %78, %cst_20 [1] : vector<8x8xf32> to vector<8xf32>
    %80 = vector.shape_cast %79 : vector<8xf32> to vector<8x1xf32>
    %81 = tpu.reciprocal %80 {approx = true} : vector<8x1xf32> -> vector<8x1xf32>
    %82 = vector.broadcast %81 : vector<8x1xf32> to vector<8x8xf32>
    %83 = arith.mulf %78, %82 : vector<8x8xf32>
    %84 = arith.truncf %83 : vector<8x8xf32> to vector<8x8xbf16>
    %85 = arith.truncf %49 : vector<8x128xf32> to vector<8x128xbf16>
    %cst_21 = arith.constant dense<0.000000e+00> : vector<8x128xf32>
    %86 = tpu.matmul %84, %85, %cst_21 {dimension_numbers = #tpu.dot_dimension_numbers<[1], [0], [0], [1], [0, 0, 1, 1], [], []>} : vector<8x8xbf16>, vector<8x128xbf16>, vector<8x128xf32> -> vector<8x128xf32>
    %87 = arith.truncf %86 : vector<8x128xf32> to vector<8x128xbf16>
    %c0_22 = arith.constant 0 : index
    %c0_23 = arith.constant 0 : index
    %88 = vector.load %arg6[%c0_22, %c0_23] : memref<128x128xbf16, #tpu.memory_space<vmem>>, vector<128x128xbf16>
    %cst_24 = arith.constant dense<0.000000e+00> : vector<8x128xf32>
    %89 = tpu.matmul %87, %88, %cst_24 {dimension_numbers = #tpu.dot_dimension_numbers<[1], [0], [0], [1], [0, 0, 1, 1], [], []>} : vector<8x128xbf16>, vector<128x128xbf16>, vector<8x128xf32> -> vector<8x128xf32>
    %90 = vector.extract_strided_slice %4 {offsets = [5, 0], sizes = [1, 128], strides = [1, 1]} : vector<9x128xf32> to vector<1x128xf32>
    %91 = vector.broadcast %90 : vector<1x128xf32> to vector<8x128xf32>
    %92 = arith.addf %89, %91 : vector<8x128xf32>
    %93 = arith.addf %2, %92 : vector<8x128xf32>
    %c0_25 = arith.constant 0 : index
    %c0_26 = arith.constant 0 : index
    %94 = vector.load %arg8[%c0_25, %c0_26] : memref<1x256xf32, #tpu.memory_space<vmem>>, vector<1x256xf32>
    %95 = vector.extract_strided_slice %4 {offsets = [6, 0], sizes = [1, 128], strides = [1, 1]} : vector<9x128xf32> to vector<1x128xf32>
    %96 = vector.extract_strided_slice %4 {offsets = [7, 0], sizes = [1, 128], strides = [1, 1]} : vector<9x128xf32> to vector<1x128xf32>
    %cst_27 = arith.constant dense<0.000000e+00> : vector<8xf32>
    %97 = vector.multi_reduction <add>, %93, %cst_27 [1] : vector<8x128xf32> to vector<8xf32>
    %98 = vector.shape_cast %97 : vector<8xf32> to vector<8x1xf32>
    %cst_28 = arith.constant 1.280000e+02 : f32
    %99 = vector.broadcast %cst_28 : f32 to vector<8x1xf32>
    %100 = arith.divf %98, %99 : vector<8x1xf32>
    %101 = vector.broadcast %100 : vector<8x1xf32> to vector<8x128xf32>
    %102 = arith.subf %93, %101 : vector<8x128xf32>
    %103 = arith.mulf %102, %102 : vector<8x128xf32>
    %cst_29 = arith.constant dense<0.000000e+00> : vector<8xf32>
    %104 = vector.multi_reduction <add>, %103, %cst_29 [1] : vector<8x128xf32> to vector<8xf32>
    %105 = vector.shape_cast %104 : vector<8xf32> to vector<8x1xf32>
    %cst_30 = arith.constant 1.280000e+02 : f32
    %106 = vector.broadcast %cst_30 : f32 to vector<8x1xf32>
    %107 = arith.divf %105, %106 : vector<8x1xf32>
    %108 = vector.broadcast %100 : vector<8x1xf32> to vector<8x128xf32>
    %109 = arith.subf %93, %108 : vector<8x128xf32>
    %cst_31 = arith.constant 9.99999974E-6 : f32
    %110 = vector.broadcast %cst_31 : f32 to vector<8x1xf32>
    %111 = arith.addf %107, %110 : vector<8x1xf32>
    %112 = math.rsqrt %111 : vector<8x1xf32>
    %113 = vector.broadcast %112 : vector<8x1xf32> to vector<8x128xf32>
    %114 = arith.mulf %109, %113 : vector<8x128xf32>
    %115 = vector.broadcast %95 : vector<1x128xf32> to vector<8x128xf32>
    %116 = arith.mulf %114, %115 : vector<8x128xf32>
    %117 = vector.broadcast %96 : vector<1x128xf32> to vector<8x128xf32>
    %118 = arith.addf %116, %117 : vector<8x128xf32>
    %119 = arith.truncf %118 : vector<8x128xf32> to vector<8x128xbf16>
    %c0_32 = arith.constant 0 : index
    %c0_33 = arith.constant 0 : index
    %120 = vector.load %arg7[%c0_32, %c0_33] : memref<128x256xbf16, #tpu.memory_space<vmem>>, vector<128x256xbf16>
    %cst_34 = arith.constant dense<0.000000e+00> : vector<8x256xf32>
    %121 = tpu.matmul %119, %120, %cst_34 {dimension_numbers = #tpu.dot_dimension_numbers<[1], [0], [0], [1], [0, 0, 1, 1], [], []>} : vector<8x128xbf16>, vector<128x256xbf16>, vector<8x256xf32> -> vector<8x256xf32>
    %122 = vector.broadcast %94 : vector<1x256xf32> to vector<8x256xf32>
    %123 = arith.addf %121, %122 : vector<8x256xf32>
    %124 = arith.mulf %123, %123 : vector<8x256xf32>
    %125 = arith.mulf %123, %124 : vector<8x256xf32>
    %cst_35 = arith.constant 4.471500e-02 : f32
    %126 = vector.broadcast %cst_35 : f32 to vector<8x256xf32>
    %127 = arith.mulf %126, %125 : vector<8x256xf32>
    %128 = arith.addf %123, %127 : vector<8x256xf32>
    %cst_36 = arith.constant 0.797884583 : f32
    %129 = vector.broadcast %cst_36 : f32 to vector<8x256xf32>
    %130 = arith.mulf %129, %128 : vector<8x256xf32>
    %131 = math.tanh %130 : vector<8x256xf32>
    %cst_37 = arith.constant 1.000000e+00 : f32
    %132 = vector.broadcast %cst_37 : f32 to vector<8x256xf32>
    %133 = arith.addf %132, %131 : vector<8x256xf32>
    %cst_38 = arith.constant 5.000000e-01 : f32
    %134 = vector.broadcast %cst_38 : f32 to vector<8x256xf32>
    %135 = arith.mulf %134, %133 : vector<8x256xf32>
    %136 = arith.mulf %123, %135 : vector<8x256xf32>
    %137 = arith.truncf %136 : vector<8x256xf32> to vector<8x256xbf16>
    %c0_39 = arith.constant 0 : index
    %c0_40 = arith.constant 0 : index
    %138 = vector.load %arg9[%c0_39, %c0_40] : memref<256x128xbf16, #tpu.memory_space<vmem>>, vector<256x128xbf16>
    %cst_41 = arith.constant dense<0.000000e+00> : vector<8x128xf32>
    %139 = tpu.matmul %137, %138, %cst_41 {dimension_numbers = #tpu.dot_dimension_numbers<[1], [0], [0], [1], [0, 0, 1, 1], [], []>} : vector<8x256xbf16>, vector<256x128xbf16>, vector<8x128xf32> -> vector<8x128xf32>
    %140 = vector.extract_strided_slice %4 {offsets = [8, 0], sizes = [1, 128], strides = [1, 1]} : vector<9x128xf32> to vector<1x128xf32>
    %141 = vector.broadcast %140 : vector<1x128xf32> to vector<8x128xf32>
    %142 = arith.addf %139, %141 : vector<8x128xf32>
    %143 = arith.addf %93, %142 : vector<8x128xf32>
    %144 = arith.truncf %65 : vector<8x128xf32> to vector<8x128xbf16>
    %c0_42 = arith.constant 0 : index
    %c0_43 = arith.constant 0 : index
    %c0_44 = arith.constant 0 : index
    %c0_45 = arith.constant 0 : index
    %145 = vector.load %arg31[%c0_42, %c0_43, %c0_44, %c0_45] : memref<4x1x8x128xbf16, #tpu.memory_space<vmem>>, vector<1x1x8x128xbf16>
    %146 = vector.shape_cast %145 : vector<1x1x8x128xbf16> to vector<8x128xbf16>
    %147 = vector.shape_cast %144 : vector<8x128xbf16> to vector<1x1x8x128xbf16>
    tpu.vector_store %arg31[%c0_42, %c0_43, %c0_44, %c0_45], %147 {strides = array<i32>} : memref<4x1x8x128xbf16, #tpu.memory_space<vmem>>, vector<1x1x8x128xbf16>,
    %148 = arith.truncf %49 : vector<8x128xf32> to vector<8x128xbf16>
    %c0_46 = arith.constant 0 : index
    %c0_47 = arith.constant 0 : index
    %c0_48 = arith.constant 0 : index
    %c0_49 = arith.constant 0 : index
    %149 = vector.load %arg32[%c0_46, %c0_47, %c0_48, %c0_49] : memref<4x1x8x128xbf16, #tpu.memory_space<vmem>>, vector<1x1x8x128xbf16>
    %150 = vector.shape_cast %149 : vector<1x1x8x128xbf16> to vector<8x128xbf16>
    %151 = vector.shape_cast %148 : vector<8x128xbf16> to vector<1x1x8x128xbf16>
    tpu.vector_store %arg32[%c0_46, %c0_47, %c0_48, %c0_49], %151 {strides = array<i32>} : memref<4x1x8x128xbf16, #tpu.memory_space<vmem>>, vector<1x1x8x128xbf16>,
    %c0_50 = arith.constant 0 : index
    %c0_51 = arith.constant 0 : index
    %152 = vector.load %arg10[%c0_50, %c0_51] : memref<9x128xf32, #tpu.memory_space<vmem>>, vector<9x128xf32>
    %153 = vector.extract_strided_slice %3 {offsets = [0, 0, 0], sizes = [1, 8, 128], strides = [1, 1, 1]} : vector<3x8x128xf32> to vector<1x8x128xf32>
    %154 = vector.shape_cast %153 : vector<1x8x128xf32> to vector<8x128xf32>
    %155 = vector.extract_strided_slice %3 {offsets = [1, 0, 0], sizes = [1, 8, 128], strides = [1, 1, 1]} : vector<3x8x128xf32> to vector<1x8x128xf32>
    %156 = vector.shape_cast %155 : vector<1x8x128xf32> to vector<8x128xf32>
    %157 = vector.extract_strided_slice %3 {offsets = [2, 0, 0], sizes = [1, 8, 128], strides = [1, 1, 1]} : vector<3x8x128xf32> to vector<1x8x128xf32>
    %158 = vector.shape_cast %157 : vector<1x8x128xf32> to vector<8x128xf32>
    %159 = vector.extract_strided_slice %152 {offsets = [0, 0], sizes = [1, 128], strides = [1, 1]} : vector<9x128xf32> to vector<1x128xf32>
    %160 = vector.extract_strided_slice %152 {offsets = [1, 0], sizes = [1, 128], strides = [1, 1]} : vector<9x128xf32> to vector<1x128xf32>
    %cst_52 = arith.constant dense<0.000000e+00> : vector<8xf32>
    %161 = vector.multi_reduction <add>, %143, %cst_52 [1] : vector<8x128xf32> to vector<8xf32>
    %162 = vector.shape_cast %161 : vector<8xf32> to vector<8x1xf32>
    %cst_53 = arith.constant 1.280000e+02 : f32
    %163 = vector.broadcast %cst_53 : f32 to vector<8x1xf32>
    %164 = arith.divf %162, %163 : vector<8x1xf32>
    %165 = vector.broadcast %164 : vector<8x1xf32> to vector<8x128xf32>
    %166 = arith.subf %143, %165 : vector<8x128xf32>
    %167 = arith.mulf %166, %166 : vector<8x128xf32>
    %cst_54 = arith.constant dense<0.000000e+00> : vector<8xf32>
    %168 = vector.multi_reduction <add>, %167, %cst_54 [1] : vector<8x128xf32> to vector<8xf32>
    %169 = vector.shape_cast %168 : vector<8xf32> to vector<8x1xf32>
    %cst_55 = arith.constant 1.280000e+02 : f32
    %170 = vector.broadcast %cst_55 : f32 to vector<8x1xf32>
    %171 = arith.divf %169, %170 : vector<8x1xf32>
    %172 = vector.broadcast %164 : vector<8x1xf32> to vector<8x128xf32>
    %173 = arith.subf %143, %172 : vector<8x128xf32>
    %cst_56 = arith.constant 9.99999974E-6 : f32
    %174 = vector.broadcast %cst_56 : f32 to vector<8x1xf32>
    %175 = arith.addf %171, %174 : vector<8x1xf32>
    %176 = math.rsqrt %175 : vector<8x1xf32>
    %177 = vector.broadcast %176 : vector<8x1xf32> to vector<8x128xf32>
    %178 = arith.mulf %173, %177 : vector<8x128xf32>
    %179 = vector.broadcast %159 : vector<1x128xf32> to vector<8x128xf32>
    %180 = arith.mulf %178, %179 : vector<8x128xf32>
    %181 = vector.broadcast %160 : vector<1x128xf32> to vector<8x128xf32>
    %182 = arith.addf %180, %181 : vector<8x128xf32>
    %183 = arith.truncf %182 : vector<8x128xf32> to vector<8x128xbf16>
    %c0_57 = arith.constant 0 : index
    %c0_58 = arith.constant 0 : index
    %184 = vector.load %arg11[%c0_57, %c0_58] : memref<128x384xbf16, #tpu.memory_space<vmem>>, vector<128x384xbf16>
    %cst_59 = arith.constant dense<0.000000e+00> : vector<8x384xf32>
    %185 = tpu.matmul %183, %184, %cst_59 {dimension_numbers = #tpu.dot_dimension_numbers<[1], [0], [0], [1], [0, 0, 1, 1], [], []>} : vector<8x128xbf16>, vector<128x384xbf16>, vector<8x384xf32> -> vector<8x384xf32>
    %186 = vector.extract_strided_slice %185 {offsets = [0, 0], sizes = [8, 128], strides = [1, 1]} : vector<8x384xf32> to vector<8x128xf32>
    %187 = vector.extract_strided_slice %152 {offsets = [2, 0], sizes = [1, 128], strides = [1, 1]} : vector<9x128xf32> to vector<1x128xf32>
    %188 = vector.broadcast %187 : vector<1x128xf32> to vector<8x128xf32>
    %189 = arith.addf %186, %188 : vector<8x128xf32>
    %190 = vector.extract_strided_slice %185 {offsets = [0, 128], sizes = [8, 128], strides = [1, 1]} : vector<8x384xf32> to vector<8x128xf32>
    %191 = vector.extract_strided_slice %152 {offsets = [3, 0], sizes = [1, 128], strides = [1, 1]} : vector<9x128xf32> to vector<1x128xf32>
    %192 = vector.broadcast %191 : vector<1x128xf32> to vector<8x128xf32>
    %193 = arith.addf %190, %192 : vector<8x128xf32>
    %194 = vector.extract_strided_slice %185 {offsets = [0, 256], sizes = [8, 128], strides = [1, 1]} : vector<8x384xf32> to vector<8x128xf32>
    %195 = vector.extract_strided_slice %152 {offsets = [4, 0], sizes = [1, 128], strides = [1, 1]} : vector<9x128xf32> to vector<1x128xf32>
    %196 = vector.broadcast %195 : vector<1x128xf32> to vector<8x128xf32>
    %197 = arith.addf %194, %196 : vector<8x128xf32>
    %c96_i32_60 = arith.constant 96 : i32
    %198 = tpu.dynamic_rotate %189 by %c96_i32_60 dim 1 : vector<8x128xf32>, i32 -> vector<8x128xf32>
    %c32_i32_61 = arith.constant 32 : i32
    %199 = tpu.dynamic_rotate %189 by %c32_i32_61 dim 1 : vector<8x128xf32>, i32 -> vector<8x128xf32>
    %200 = arith.mulf %189, %154 : vector<8x128xf32>
    %201 = arith.mulf %198, %156 : vector<8x128xf32>
    %202 = arith.addf %200, %201 : vector<8x128xf32>
    %203 = arith.mulf %199, %158 : vector<8x128xf32>
    %204 = arith.addf %202, %203 : vector<8x128xf32>
    %cst_62 = arith.constant 0.0883883461 : f32
    %205 = vector.broadcast %cst_62 : f32 to vector<8x128xf32>
    %206 = arith.mulf %204, %205 : vector<8x128xf32>
    %c96_i32_63 = arith.constant 96 : i32
    %207 = tpu.dynamic_rotate %193 by %c96_i32_63 dim 1 : vector<8x128xf32>, i32 -> vector<8x128xf32>
    %c32_i32_64 = arith.constant 32 : i32
    %208 = tpu.dynamic_rotate %193 by %c32_i32_64 dim 1 : vector<8x128xf32>, i32 -> vector<8x128xf32>
    %209 = arith.mulf %193, %154 : vector<8x128xf32>
    %210 = arith.mulf %207, %156 : vector<8x128xf32>
    %211 = arith.addf %209, %210 : vector<8x128xf32>
    %212 = arith.mulf %208, %158 : vector<8x128xf32>
    %213 = arith.addf %211, %212 : vector<8x128xf32>
    %214 = arith.truncf %206 : vector<8x128xf32> to vector<8x128xbf16>
    %215 = arith.truncf %213 : vector<8x128xf32> to vector<8x128xbf16>
    %cst_65 = arith.constant dense<0.000000e+00> : vector<8x8xf32>
    %216 = tpu.matmul %214, %215, %cst_65 {dimension_numbers = #tpu.dot_dimension_numbers<[1], [1], [0], [0], [0, 0, 1, 0], [], []>} : vector<8x128xbf16>, vector<8x128xbf16>, vector<8x8xf32> -> vector<8x8xf32>
    %217 = tpu.iota {dimensions = array<i32: 0>} : vector<8x8xi32>
    %218 = tpu.iota {dimensions = array<i32: 1>} : vector<8x8xi32>
    %219 = arith.cmpi sle, %218, %217 : vector<8x8xi32>
    %cst_66 = arith.constant -1.000000e+30 : f32
    %220 = vector.broadcast %cst_66 : f32 to vector<8x8xf32>
    %221 = arith.select %219, %216, %220 : vector<8x8xi1>, vector<8x8xf32>
    %cst_67 = arith.constant dense<0xFF800000> : vector<8xf32>
    %222 = vector.multi_reduction <maximumf>, %221, %cst_67 [1] : vector<8x8xf32> to vector<8xf32>
    %223 = vector.shape_cast %222 : vector<8xf32> to vector<8x1xf32>
    %224 = vector.broadcast %223 : vector<8x1xf32> to vector<8x8xf32>
    %225 = arith.subf %221, %224 : vector<8x8xf32>
    %226 = math.exp %225 : vector<8x8xf32>
    %cst_68 = arith.constant dense<0.000000e+00> : vector<8xf32>
    %227 = vector.multi_reduction <add>, %226, %cst_68 [1] : vector<8x8xf32> to vector<8xf32>
    %228 = vector.shape_cast %227 : vector<8xf32> to vector<8x1xf32>
    %229 = tpu.reciprocal %228 {approx = true} : vector<8x1xf32> -> vector<8x1xf32>
    %230 = vector.broadcast %229 : vector<8x1xf32> to vector<8x8xf32>
    %231 = arith.mulf %226, %230 : vector<8x8xf32>
    %232 = arith.truncf %231 : vector<8x8xf32> to vector<8x8xbf16>
    %233 = arith.truncf %197 : vector<8x128xf32> to vector<8x128xbf16>
    %cst_69 = arith.constant dense<0.000000e+00> : vector<8x128xf32>
    %234 = tpu.matmul %232, %233, %cst_69 {dimension_numbers = #tpu.dot_dimension_numbers<[1], [0], [0], [1], [0, 0, 1, 1], [], []>} : vector<8x8xbf16>, vector<8x128xbf16>, vector<8x128xf32> -> vector<8x128xf32>
    %235 = arith.truncf %234 : vector<8x128xf32> to vector<8x128xbf16>
    %c0_70 = arith.constant 0 : index
    %c0_71 = arith.constant 0 : index
    %236 = vector.load %arg12[%c0_70, %c0_71] : memref<128x128xbf16, #tpu.memory_space<vmem>>, vector<128x128xbf16>
    %cst_72 = arith.constant dense<0.000000e+00> : vector<8x128xf32>
    %237 = tpu.matmul %235, %236, %cst_72 {dimension_numbers = #tpu.dot_dimension_numbers<[1], [0], [0], [1], [0, 0, 1, 1], [], []>} : vector<8x128xbf16>, vector<128x128xbf16>, vector<8x128xf32> -> vector<8x128xf32>
    %238 = vector.extract_strided_slice %152 {offsets = [5, 0], sizes = [1, 128], strides = [1, 1]} : vector<9x128xf32> to vector<1x128xf32>
    %239 = vector.broadcast %238 : vector<1x128xf32> to vector<8x128xf32>
    %240 = arith.addf %237, %239 : vector<8x128xf32>
    %241 = arith.addf %143, %240 : vector<8x128xf32>
    %c0_73 = arith.constant 0 : index
    %c0_74 = arith.constant 0 : index
    %242 = vector.load %arg14[%c0_73, %c0_74] : memref<1x256xf32, #tpu.memory_space<vmem>>, vector<1x256xf32>
    %243 = vector.extract_strided_slice %152 {offsets = [6, 0], sizes = [1, 128], strides = [1, 1]} : vector<9x128xf32> to vector<1x128xf32>
    %244 = vector.extract_strided_slice %152 {offsets = [7, 0], sizes = [1, 128], strides = [1, 1]} : vector<9x128xf32> to vector<1x128xf32>
    %cst_75 = arith.constant dense<0.000000e+00> : vector<8xf32>
    %245 = vector.multi_reduction <add>, %241, %cst_75 [1] : vector<8x128xf32> to vector<8xf32>
    %246 = vector.shape_cast %245 : vector<8xf32> to vector<8x1xf32>
    %cst_76 = arith.constant 1.280000e+02 : f32
    %247 = vector.broadcast %cst_76 : f32 to vector<8x1xf32>
    %248 = arith.divf %246, %247 : vector<8x1xf32>
    %249 = vector.broadcast %248 : vector<8x1xf32> to vector<8x128xf32>
    %250 = arith.subf %241, %249 : vector<8x128xf32>
    %251 = arith.mulf %250, %250 : vector<8x128xf32>
    %cst_77 = arith.constant dense<0.000000e+00> : vector<8xf32>
    %252 = vector.multi_reduction <add>, %251, %cst_77 [1] : vector<8x128xf32> to vector<8xf32>
    %253 = vector.shape_cast %252 : vector<8xf32> to vector<8x1xf32>
    %cst_78 = arith.constant 1.280000e+02 : f32
    %254 = vector.broadcast %cst_78 : f32 to vector<8x1xf32>
    %255 = arith.divf %253, %254 : vector<8x1xf32>
    %256 = vector.broadcast %248 : vector<8x1xf32> to vector<8x128xf32>
    %257 = arith.subf %241, %256 : vector<8x128xf32>
    %cst_79 = arith.constant 9.99999974E-6 : f32
    %258 = vector.broadcast %cst_79 : f32 to vector<8x1xf32>
    %259 = arith.addf %255, %258 : vector<8x1xf32>
    %260 = math.rsqrt %259 : vector<8x1xf32>
    %261 = vector.broadcast %260 : vector<8x1xf32> to vector<8x128xf32>
    %262 = arith.mulf %257, %261 : vector<8x128xf32>
    %263 = vector.broadcast %243 : vector<1x128xf32> to vector<8x128xf32>
    %264 = arith.mulf %262, %263 : vector<8x128xf32>
    %265 = vector.broadcast %244 : vector<1x128xf32> to vector<8x128xf32>
    %266 = arith.addf %264, %265 : vector<8x128xf32>
    %267 = arith.truncf %266 : vector<8x128xf32> to vector<8x128xbf16>
    %c0_80 = arith.constant 0 : index
    %c0_81 = arith.constant 0 : index
    %268 = vector.load %arg13[%c0_80, %c0_81] : memref<128x256xbf16, #tpu.memory_space<vmem>>, vector<128x256xbf16>
    %cst_82 = arith.constant dense<0.000000e+00> : vector<8x256xf32>
    %269 = tpu.matmul %267, %268, %cst_82 {dimension_numbers = #tpu.dot_dimension_numbers<[1], [0], [0], [1], [0, 0, 1, 1], [], []>} : vector<8x128xbf16>, vector<128x256xbf16>, vector<8x256xf32> -> vector<8x256xf32>
    %270 = vector.broadcast %242 : vector<1x256xf32> to vector<8x256xf32>
    %271 = arith.addf %269, %270 : vector<8x256xf32>
    %272 = arith.mulf %271, %271 : vector<8x256xf32>
    %273 = arith.mulf %271, %272 : vector<8x256xf32>
    %cst_83 = arith.constant 4.471500e-02 : f32
    %274 = vector.broadcast %cst_83 : f32 to vector<8x256xf32>
    %275 = arith.mulf %274, %273 : vector<8x256xf32>
    %276 = arith.addf %271, %275 : vector<8x256xf32>
    %cst_84 = arith.constant 0.797884583 : f32
    %277 = vector.broadcast %cst_84 : f32 to vector<8x256xf32>
    %278 = arith.mulf %277, %276 : vector<8x256xf32>
    %279 = math.tanh %278 : vector<8x256xf32>
    %cst_85 = arith.constant 1.000000e+00 : f32
    %280 = vector.broadcast %cst_85 : f32 to vector<8x256xf32>
    %281 = arith.addf %280, %279 : vector<8x256xf32>
    %cst_86 = arith.constant 5.000000e-01 : f32
    %282 = vector.broadcast %cst_86 : f32 to vector<8x256xf32>
    %283 = arith.mulf %282, %281 : vector<8x256xf32>
    %284 = arith.mulf %271, %283 : vector<8x256xf32>
    %285 = arith.truncf %284 : vector<8x256xf32> to vector<8x256xbf16>
    %c0_87 = arith.constant 0 : index
    %c0_88 = arith.constant 0 : index
    %286 = vector.load %arg15[%c0_87, %c0_88] : memref<256x128xbf16, #tpu.memory_space<vmem>>, vector<256x128xbf16>
    %cst_89 = arith.constant dense<0.000000e+00> : vector<8x128xf32>
    %287 = tpu.matmul %285, %286, %cst_89 {dimension_numbers = #tpu.dot_dimension_numbers<[1], [0], [0], [1], [0, 0, 1, 1], [], []>} : vector<8x256xbf16>, vector<256x128xbf16>, vector<8x128xf32> -> vector<8x128xf32>
    %288 = vector.extract_strided_slice %152 {offsets = [8, 0], sizes = [1, 128], strides = [1, 1]} : vector<9x128xf32> to vector<1x128xf32>
    %289 = vector.broadcast %288 : vector<1x128xf32> to vector<8x128xf32>
    %290 = arith.addf %287, %289 : vector<8x128xf32>
    %291 = arith.addf %241, %290 : vector<8x128xf32>
    %292 = arith.truncf %213 : vector<8x128xf32> to vector<8x128xbf16>
    %c1 = arith.constant 1 : index
    %c0_90 = arith.constant 0 : index
    %c0_91 = arith.constant 0 : index
    %c0_92 = arith.constant 0 : index
    %293 = vector.load %arg31[%c1, %c0_90, %c0_91, %c0_92] : memref<4x1x8x128xbf16, #tpu.memory_space<vmem>>, vector<1x1x8x128xbf16>
    %294 = vector.shape_cast %293 : vector<1x1x8x128xbf16> to vector<8x128xbf16>
    %295 = vector.shape_cast %292 : vector<8x128xbf16> to vector<1x1x8x128xbf16>
    tpu.vector_store %arg31[%c1, %c0_90, %c0_91, %c0_92], %295 {strides = array<i32>} : memref<4x1x8x128xbf16, #tpu.memory_space<vmem>>, vector<1x1x8x128xbf16>,
    %296 = arith.truncf %197 : vector<8x128xf32> to vector<8x128xbf16>
    %c1_93 = arith.constant 1 : index
    %c0_94 = arith.constant 0 : index
    %c0_95 = arith.constant 0 : index
    %c0_96 = arith.constant 0 : index
    %297 = vector.load %arg32[%c1_93, %c0_94, %c0_95, %c0_96] : memref<4x1x8x128xbf16, #tpu.memory_space<vmem>>, vector<1x1x8x128xbf16>
    %298 = vector.shape_cast %297 : vector<1x1x8x128xbf16> to vector<8x128xbf16>
    %299 = vector.shape_cast %296 : vector<8x128xbf16> to vector<1x1x8x128xbf16>
    tpu.vector_store %arg32[%c1_93, %c0_94, %c0_95, %c0_96], %299 {strides = array<i32>} : memref<4x1x8x128xbf16, #tpu.memory_space<vmem>>, vector<1x1x8x128xbf16>,
    %c0_97 = arith.constant 0 : index
    %c0_98 = arith.constant 0 : index
    %300 = vector.load %arg16[%c0_97, %c0_98] : memref<9x128xf32, #tpu.memory_space<vmem>>, vector<9x128xf32>
    %301 = vector.extract_strided_slice %3 {offsets = [0, 0, 0], sizes = [1, 8, 128], strides = [1, 1, 1]} : vector<3x8x128xf32> to vector<1x8x128xf32>
    %302 = vector.shape_cast %301 : vector<1x8x128xf32> to vector<8x128xf32>
    %303 = vector.extract_strided_slice %3 {offsets = [1, 0, 0], sizes = [1, 8, 128], strides = [1, 1, 1]} : vector<3x8x128xf32> to vector<1x8x128xf32>
    %304 = vector.shape_cast %303 : vector<1x8x128xf32> to vector<8x128xf32>
    %305 = vector.extract_strided_slice %3 {offsets = [2, 0, 0], sizes = [1, 8, 128], strides = [1, 1, 1]} : vector<3x8x128xf32> to vector<1x8x128xf32>
    %306 = vector.shape_cast %305 : vector<1x8x128xf32> to vector<8x128xf32>
    %307 = vector.extract_strided_slice %300 {offsets = [0, 0], sizes = [1, 128], strides = [1, 1]} : vector<9x128xf32> to vector<1x128xf32>
    %308 = vector.extract_strided_slice %300 {offsets = [1, 0], sizes = [1, 128], strides = [1, 1]} : vector<9x128xf32> to vector<1x128xf32>
    %cst_99 = arith.constant dense<0.000000e+00> : vector<8xf32>
    %309 = vector.multi_reduction <add>, %291, %cst_99 [1] : vector<8x128xf32> to vector<8xf32>
    %310 = vector.shape_cast %309 : vector<8xf32> to vector<8x1xf32>
    %cst_100 = arith.constant 1.280000e+02 : f32
    %311 = vector.broadcast %cst_100 : f32 to vector<8x1xf32>
    %312 = arith.divf %310, %311 : vector<8x1xf32>
    %313 = vector.broadcast %312 : vector<8x1xf32> to vector<8x128xf32>
    %314 = arith.subf %291, %313 : vector<8x128xf32>
    %315 = arith.mulf %314, %314 : vector<8x128xf32>
    %cst_101 = arith.constant dense<0.000000e+00> : vector<8xf32>
    %316 = vector.multi_reduction <add>, %315, %cst_101 [1] : vector<8x128xf32> to vector<8xf32>
    %317 = vector.shape_cast %316 : vector<8xf32> to vector<8x1xf32>
    %cst_102 = arith.constant 1.280000e+02 : f32
    %318 = vector.broadcast %cst_102 : f32 to vector<8x1xf32>
    %319 = arith.divf %317, %318 : vector<8x1xf32>
    %320 = vector.broadcast %312 : vector<8x1xf32> to vector<8x128xf32>
    %321 = arith.subf %291, %320 : vector<8x128xf32>
    %cst_103 = arith.constant 9.99999974E-6 : f32
    %322 = vector.broadcast %cst_103 : f32 to vector<8x1xf32>
    %323 = arith.addf %319, %322 : vector<8x1xf32>
    %324 = math.rsqrt %323 : vector<8x1xf32>
    %325 = vector.broadcast %324 : vector<8x1xf32> to vector<8x128xf32>
    %326 = arith.mulf %321, %325 : vector<8x128xf32>
    %327 = vector.broadcast %307 : vector<1x128xf32> to vector<8x128xf32>
    %328 = arith.mulf %326, %327 : vector<8x128xf32>
    %329 = vector.broadcast %308 : vector<1x128xf32> to vector<8x128xf32>
    %330 = arith.addf %328, %329 : vector<8x128xf32>
    %331 = arith.truncf %330 : vector<8x128xf32> to vector<8x128xbf16>
    %c0_104 = arith.constant 0 : index
    %c0_105 = arith.constant 0 : index
    %332 = vector.load %arg17[%c0_104, %c0_105] : memref<128x384xbf16, #tpu.memory_space<vmem>>, vector<128x384xbf16>
    %cst_106 = arith.constant dense<0.000000e+00> : vector<8x384xf32>
    %333 = tpu.matmul %331, %332, %cst_106 {dimension_numbers = #tpu.dot_dimension_numbers<[1], [0], [0], [1], [0, 0, 1, 1], [], []>} : vector<8x128xbf16>, vector<128x384xbf16>, vector<8x384xf32> -> vector<8x384xf32>
    %334 = vector.extract_strided_slice %333 {offsets = [0, 0], sizes = [8, 128], strides = [1, 1]} : vector<8x384xf32> to vector<8x128xf32>
    %335 = vector.extract_strided_slice %300 {offsets = [2, 0], sizes = [1, 128], strides = [1, 1]} : vector<9x128xf32> to vector<1x128xf32>
    %336 = vector.broadcast %335 : vector<1x128xf32> to vector<8x128xf32>
    %337 = arith.addf %334, %336 : vector<8x128xf32>
    %338 = vector.extract_strided_slice %333 {offsets = [0, 128], sizes = [8, 128], strides = [1, 1]} : vector<8x384xf32> to vector<8x128xf32>
    %339 = vector.extract_strided_slice %300 {offsets = [3, 0], sizes = [1, 128], strides = [1, 1]} : vector<9x128xf32> to vector<1x128xf32>
    %340 = vector.broadcast %339 : vector<1x128xf32> to vector<8x128xf32>
    %341 = arith.addf %338, %340 : vector<8x128xf32>
    %342 = vector.extract_strided_slice %333 {offsets = [0, 256], sizes = [8, 128], strides = [1, 1]} : vector<8x384xf32> to vector<8x128xf32>
    %343 = vector.extract_strided_slice %300 {offsets = [4, 0], sizes = [1, 128], strides = [1, 1]} : vector<9x128xf32> to vector<1x128xf32>
    %344 = vector.broadcast %343 : vector<1x128xf32> to vector<8x128xf32>
    %345 = arith.addf %342, %344 : vector<8x128xf32>
    %c96_i32_107 = arith.constant 96 : i32
    %346 = tpu.dynamic_rotate %337 by %c96_i32_107 dim 1 : vector<8x128xf32>, i32 -> vector<8x128xf32>
    %c32_i32_108 = arith.constant 32 : i32
    %347 = tpu.dynamic_rotate %337 by %c32_i32_108 dim 1 : vector<8x128xf32>, i32 -> vector<8x128xf32>
    %348 = arith.mulf %337, %302 : vector<8x128xf32>
    %349 = arith.mulf %346, %304 : vector<8x128xf32>
    %350 = arith.addf %348, %349 : vector<8x128xf32>
    %351 = arith.mulf %347, %306 : vector<8x128xf32>
    %352 = arith.addf %350, %351 : vector<8x128xf32>
    %cst_109 = arith.constant 0.0883883461 : f32
    %353 = vector.broadcast %cst_109 : f32 to vector<8x128xf32>
    %354 = arith.mulf %352, %353 : vector<8x128xf32>
    %c96_i32_110 = arith.constant 96 : i32
    %355 = tpu.dynamic_rotate %341 by %c96_i32_110 dim 1 : vector<8x128xf32>, i32 -> vector<8x128xf32>
    %c32_i32_111 = arith.constant 32 : i32
    %356 = tpu.dynamic_rotate %341 by %c32_i32_111 dim 1 : vector<8x128xf32>, i32 -> vector<8x128xf32>
    %357 = arith.mulf %341, %302 : vector<8x128xf32>
    %358 = arith.mulf %355, %304 : vector<8x128xf32>
    %359 = arith.addf %357, %358 : vector<8x128xf32>
    %360 = arith.mulf %356, %306 : vector<8x128xf32>
    %361 = arith.addf %359, %360 : vector<8x128xf32>
    %362 = arith.truncf %354 : vector<8x128xf32> to vector<8x128xbf16>
    %363 = arith.truncf %361 : vector<8x128xf32> to vector<8x128xbf16>
    %cst_112 = arith.constant dense<0.000000e+00> : vector<8x8xf32>
    %364 = tpu.matmul %362, %363, %cst_112 {dimension_numbers = #tpu.dot_dimension_numbers<[1], [1], [0], [0], [0, 0, 1, 0], [], []>} : vector<8x128xbf16>, vector<8x128xbf16>, vector<8x8xf32> -> vector<8x8xf32>
    %365 = tpu.iota {dimensions = array<i32: 0>} : vector<8x8xi32>
    %366 = tpu.iota {dimensions = array<i32: 1>} : vector<8x8xi32>
    %367 = arith.cmpi sle, %366, %365 : vector<8x8xi32>
    %cst_113 = arith.constant -1.000000e+30 : f32
    %368 = vector.broadcast %cst_113 : f32 to vector<8x8xf32>
    %369 = arith.select %367, %364, %368 : vector<8x8xi1>, vector<8x8xf32>
    %cst_114 = arith.constant dense<0xFF800000> : vector<8xf32>
    %370 = vector.multi_reduction <maximumf>, %369, %cst_114 [1] : vector<8x8xf32> to vector<8xf32>
    %371 = vector.shape_cast %370 : vector<8xf32> to vector<8x1xf32>
    %372 = vector.broadcast %371 : vector<8x1xf32> to vector<8x8xf32>
    %373 = arith.subf %369, %372 : vector<8x8xf32>
    %374 = math.exp %373 : vector<8x8xf32>
    %cst_115 = arith.constant dense<0.000000e+00> : vector<8xf32>
    %375 = vector.multi_reduction <add>, %374, %cst_115 [1] : vector<8x8xf32> to vector<8xf32>
    %376 = vector.shape_cast %375 : vector<8xf32> to vector<8x1xf32>
    %377 = tpu.reciprocal %376 {approx = true} : vector<8x1xf32> -> vector<8x1xf32>
    %378 = vector.broadcast %377 : vector<8x1xf32> to vector<8x8xf32>
    %379 = arith.mulf %374, %378 : vector<8x8xf32>
    %380 = arith.truncf %379 : vector<8x8xf32> to vector<8x8xbf16>
    %381 = arith.truncf %345 : vector<8x128xf32> to vector<8x128xbf16>
    %cst_116 = arith.constant dense<0.000000e+00> : vector<8x128xf32>
    %382 = tpu.matmul %380, %381, %cst_116 {dimension_numbers = #tpu.dot_dimension_numbers<[1], [0], [0], [1], [0, 0, 1, 1], [], []>} : vector<8x8xbf16>, vector<8x128xbf16>, vector<8x128xf32> -> vector<8x128xf32>
    %383 = arith.truncf %382 : vector<8x128xf32> to vector<8x128xbf16>
    %c0_117 = arith.constant 0 : index
    %c0_118 = arith.constant 0 : index
    %384 = vector.load %arg18[%c0_117, %c0_118] : memref<128x128xbf16, #tpu.memory_space<vmem>>, vector<128x128xbf16>
    %cst_119 = arith.constant dense<0.000000e+00> : vector<8x128xf32>
    %385 = tpu.matmul %383, %384, %cst_119 {dimension_numbers = #tpu.dot_dimension_numbers<[1], [0], [0], [1], [0, 0, 1, 1], [], []>} : vector<8x128xbf16>, vector<128x128xbf16>, vector<8x128xf32> -> vector<8x128xf32>
    %386 = vector.extract_strided_slice %300 {offsets = [5, 0], sizes = [1, 128], strides = [1, 1]} : vector<9x128xf32> to vector<1x128xf32>
    %387 = vector.broadcast %386 : vector<1x128xf32> to vector<8x128xf32>
    %388 = arith.addf %385, %387 : vector<8x128xf32>
    %389 = arith.addf %291, %388 : vector<8x128xf32>
    %c0_120 = arith.constant 0 : index
    %c0_121 = arith.constant 0 : index
    %390 = vector.load %arg20[%c0_120, %c0_121] : memref<1x256xf32, #tpu.memory_space<vmem>>, vector<1x256xf32>
    %391 = vector.extract_strided_slice %300 {offsets = [6, 0], sizes = [1, 128], strides = [1, 1]} : vector<9x128xf32> to vector<1x128xf32>
    %392 = vector.extract_strided_slice %300 {offsets = [7, 0], sizes = [1, 128], strides = [1, 1]} : vector<9x128xf32> to vector<1x128xf32>
    %cst_122 = arith.constant dense<0.000000e+00> : vector<8xf32>
    %393 = vector.multi_reduction <add>, %389, %cst_122 [1] : vector<8x128xf32> to vector<8xf32>
    %394 = vector.shape_cast %393 : vector<8xf32> to vector<8x1xf32>
    %cst_123 = arith.constant 1.280000e+02 : f32
    %395 = vector.broadcast %cst_123 : f32 to vector<8x1xf32>
    %396 = arith.divf %394, %395 : vector<8x1xf32>
    %397 = vector.broadcast %396 : vector<8x1xf32> to vector<8x128xf32>
    %398 = arith.subf %389, %397 : vector<8x128xf32>
    %399 = arith.mulf %398, %398 : vector<8x128xf32>
    %cst_124 = arith.constant dense<0.000000e+00> : vector<8xf32>
    %400 = vector.multi_reduction <add>, %399, %cst_124 [1] : vector<8x128xf32> to vector<8xf32>
    %401 = vector.shape_cast %400 : vector<8xf32> to vector<8x1xf32>
    %cst_125 = arith.constant 1.280000e+02 : f32
    %402 = vector.broadcast %cst_125 : f32 to vector<8x1xf32>
    %403 = arith.divf %401, %402 : vector<8x1xf32>
    %404 = vector.broadcast %396 : vector<8x1xf32> to vector<8x128xf32>
    %405 = arith.subf %389, %404 : vector<8x128xf32>
    %cst_126 = arith.constant 9.99999974E-6 : f32
    %406 = vector.broadcast %cst_126 : f32 to vector<8x1xf32>
    %407 = arith.addf %403, %406 : vector<8x1xf32>
    %408 = math.rsqrt %407 : vector<8x1xf32>
    %409 = vector.broadcast %408 : vector<8x1xf32> to vector<8x128xf32>
    %410 = arith.mulf %405, %409 : vector<8x128xf32>
    %411 = vector.broadcast %391 : vector<1x128xf32> to vector<8x128xf32>
    %412 = arith.mulf %410, %411 : vector<8x128xf32>
    %413 = vector.broadcast %392 : vector<1x128xf32> to vector<8x128xf32>
    %414 = arith.addf %412, %413 : vector<8x128xf32>
    %415 = arith.truncf %414 : vector<8x128xf32> to vector<8x128xbf16>
    %c0_127 = arith.constant 0 : index
    %c0_128 = arith.constant 0 : index
    %416 = vector.load %arg19[%c0_127, %c0_128] : memref<128x256xbf16, #tpu.memory_space<vmem>>, vector<128x256xbf16>
    %cst_129 = arith.constant dense<0.000000e+00> : vector<8x256xf32>
    %417 = tpu.matmul %415, %416, %cst_129 {dimension_numbers = #tpu.dot_dimension_numbers<[1], [0], [0], [1], [0, 0, 1, 1], [], []>} : vector<8x128xbf16>, vector<128x256xbf16>, vector<8x256xf32> -> vector<8x256xf32>
    %418 = vector.broadcast %390 : vector<1x256xf32> to vector<8x256xf32>
    %419 = arith.addf %417, %418 : vector<8x256xf32>
    %420 = arith.mulf %419, %419 : vector<8x256xf32>
    %421 = arith.mulf %419, %420 : vector<8x256xf32>
    %cst_130 = arith.constant 4.471500e-02 : f32
    %422 = vector.broadcast %cst_130 : f32 to vector<8x256xf32>
    %423 = arith.mulf %422, %421 : vector<8x256xf32>
    %424 = arith.addf %419, %423 : vector<8x256xf32>
    %cst_131 = arith.constant 0.797884583 : f32
    %425 = vector.broadcast %cst_131 : f32 to vector<8x256xf32>
    %426 = arith.mulf %425, %424 : vector<8x256xf32>
    %427 = math.tanh %426 : vector<8x256xf32>
    %cst_132 = arith.constant 1.000000e+00 : f32
    %428 = vector.broadcast %cst_132 : f32 to vector<8x256xf32>
    %429 = arith.addf %428, %427 : vector<8x256xf32>
    %cst_133 = arith.constant 5.000000e-01 : f32
    %430 = vector.broadcast %cst_133 : f32 to vector<8x256xf32>
    %431 = arith.mulf %430, %429 : vector<8x256xf32>
    %432 = arith.mulf %419, %431 : vector<8x256xf32>
    %433 = arith.truncf %432 : vector<8x256xf32> to vector<8x256xbf16>
    %c0_134 = arith.constant 0 : index
    %c0_135 = arith.constant 0 : index
    %434 = vector.load %arg21[%c0_134, %c0_135] : memref<256x128xbf16, #tpu.memory_space<vmem>>, vector<256x128xbf16>
    %cst_136 = arith.constant dense<0.000000e+00> : vector<8x128xf32>
    %435 = tpu.matmul %433, %434, %cst_136 {dimension_numbers = #tpu.dot_dimension_numbers<[1], [0], [0], [1], [0, 0, 1, 1], [], []>} : vector<8x256xbf16>, vector<256x128xbf16>, vector<8x128xf32> -> vector<8x128xf32>
    %436 = vector.extract_strided_slice %300 {offsets = [8, 0], sizes = [1, 128], strides = [1, 1]} : vector<9x128xf32> to vector<1x128xf32>
    %437 = vector.broadcast %436 : vector<1x128xf32> to vector<8x128xf32>
    %438 = arith.addf %435, %437 : vector<8x128xf32>
    %439 = arith.addf %389, %438 : vector<8x128xf32>
    %440 = arith.truncf %361 : vector<8x128xf32> to vector<8x128xbf16>
    %c2 = arith.constant 2 : index
    %c0_137 = arith.constant 0 : index
    %c0_138 = arith.constant 0 : index
    %c0_139 = arith.constant 0 : index
    %441 = vector.load %arg31[%c2, %c0_137, %c0_138, %c0_139] : memref<4x1x8x128xbf16, #tpu.memory_space<vmem>>, vector<1x1x8x128xbf16>
    %442 = vector.shape_cast %441 : vector<1x1x8x128xbf16> to vector<8x128xbf16>
    %443 = vector.shape_cast %440 : vector<8x128xbf16> to vector<1x1x8x128xbf16>
    tpu.vector_store %arg31[%c2, %c0_137, %c0_138, %c0_139], %443 {strides = array<i32>} : memref<4x1x8x128xbf16, #tpu.memory_space<vmem>>, vector<1x1x8x128xbf16>,
    %444 = arith.truncf %345 : vector<8x128xf32> to vector<8x128xbf16>
    %c2_140 = arith.constant 2 : index
    %c0_141 = arith.constant 0 : index
    %c0_142 = arith.constant 0 : index
    %c0_143 = arith.constant 0 : index
    %445 = vector.load %arg32[%c2_140, %c0_141, %c0_142, %c0_143] : memref<4x1x8x128xbf16, #tpu.memory_space<vmem>>, vector<1x1x8x128xbf16>
    %446 = vector.shape_cast %445 : vector<1x1x8x128xbf16> to vector<8x128xbf16>
    %447 = vector.shape_cast %444 : vector<8x128xbf16> to vector<1x1x8x128xbf16>
    tpu.vector_store %arg32[%c2_140, %c0_141, %c0_142, %c0_143], %447 {strides = array<i32>} : memref<4x1x8x128xbf16, #tpu.memory_space<vmem>>, vector<1x1x8x128xbf16>,
    %c0_144 = arith.constant 0 : index
    %c0_145 = arith.constant 0 : index
    %448 = vector.load %arg22[%c0_144, %c0_145] : memref<8x128xf32, #tpu.memory_space<vmem>>, vector<8x128xf32>
    %449 = vector.extract_strided_slice %3 {offsets = [0, 0, 0], sizes = [1, 8, 128], strides = [1, 1, 1]} : vector<3x8x128xf32> to vector<1x8x128xf32>
    %450 = vector.shape_cast %449 : vector<1x8x128xf32> to vector<8x128xf32>
    %451 = vector.extract_strided_slice %3 {offsets = [1, 0, 0], sizes = [1, 8, 128], strides = [1, 1, 1]} : vector<3x8x128xf32> to vector<1x8x128xf32>
    %452 = vector.shape_cast %451 : vector<1x8x128xf32> to vector<8x128xf32>
    %453 = vector.extract_strided_slice %3 {offsets = [2, 0, 0], sizes = [1, 8, 128], strides = [1, 1, 1]} : vector<3x8x128xf32> to vector<1x8x128xf32>
    %454 = vector.shape_cast %453 : vector<1x8x128xf32> to vector<8x128xf32>
    %455 = vector.extract_strided_slice %448 {offsets = [0, 0], sizes = [1, 128], strides = [1, 1]} : vector<8x128xf32> to vector<1x128xf32>
    %456 = vector.extract_strided_slice %448 {offsets = [1, 0], sizes = [1, 128], strides = [1, 1]} : vector<8x128xf32> to vector<1x128xf32>
    %cst_146 = arith.constant dense<0.000000e+00> : vector<8xf32>
    %457 = vector.multi_reduction <add>, %439, %cst_146 [1] : vector<8x128xf32> to vector<8xf32>
    %458 = vector.shape_cast %457 : vector<8xf32> to vector<8x1xf32>
    %cst_147 = arith.constant 1.280000e+02 : f32
    %459 = vector.broadcast %cst_147 : f32 to vector<8x1xf32>
    %460 = arith.divf %458, %459 : vector<8x1xf32>
    %461 = vector.broadcast %460 : vector<8x1xf32> to vector<8x128xf32>
    %462 = arith.subf %439, %461 : vector<8x128xf32>
    %463 = arith.mulf %462, %462 : vector<8x128xf32>
    %cst_148 = arith.constant dense<0.000000e+00> : vector<8xf32>
    %464 = vector.multi_reduction <add>, %463, %cst_148 [1] : vector<8x128xf32> to vector<8xf32>
    %465 = vector.shape_cast %464 : vector<8xf32> to vector<8x1xf32>
    %cst_149 = arith.constant 1.280000e+02 : f32
    %466 = vector.broadcast %cst_149 : f32 to vector<8x1xf32>
    %467 = arith.divf %465, %466 : vector<8x1xf32>
    %468 = vector.broadcast %460 : vector<8x1xf32> to vector<8x128xf32>
    %469 = arith.subf %439, %468 : vector<8x128xf32>
    %cst_150 = arith.constant 9.99999974E-6 : f32
    %470 = vector.broadcast %cst_150 : f32 to vector<8x1xf32>
    %471 = arith.addf %467, %470 : vector<8x1xf32>
    %472 = math.rsqrt %471 : vector<8x1xf32>
    %473 = vector.broadcast %472 : vector<8x1xf32> to vector<8x128xf32>
    %474 = arith.mulf %469, %473 : vector<8x128xf32>
    %475 = vector.broadcast %455 : vector<1x128xf32> to vector<8x128xf32>
    %476 = arith.mulf %474, %475 : vector<8x128xf32>
    %477 = vector.broadcast %456 : vector<1x128xf32> to vector<8x128xf32>
    %478 = arith.addf %476, %477 : vector<8x128xf32>
    %479 = arith.truncf %478 : vector<8x128xf32> to vector<8x128xbf16>
    %c0_151 = arith.constant 0 : index
    %c0_152 = arith.constant 0 : index
    %480 = vector.load %arg23[%c0_151, %c0_152] : memref<128x384xbf16, #tpu.memory_space<vmem>>, vector<128x384xbf16>
    %cst_153 = arith.constant dense<0.000000e+00> : vector<8x384xf32>
    %481 = tpu.matmul %479, %480, %cst_153 {dimension_numbers = #tpu.dot_dimension_numbers<[1], [0], [0], [1], [0, 0, 1, 1], [], []>} : vector<8x128xbf16>, vector<128x384xbf16>, vector<8x384xf32> -> vector<8x384xf32>
    %482 = vector.extract_strided_slice %481 {offsets = [0, 0], sizes = [8, 128], strides = [1, 1]} : vector<8x384xf32> to vector<8x128xf32>
    %483 = vector.extract_strided_slice %448 {offsets = [2, 0], sizes = [1, 128], strides = [1, 1]} : vector<8x128xf32> to vector<1x128xf32>
    %484 = vector.broadcast %483 : vector<1x128xf32> to vector<8x128xf32>
    %485 = arith.addf %482, %484 : vector<8x128xf32>
    %486 = vector.extract_strided_slice %481 {offsets = [0, 128], sizes = [8, 128], strides = [1, 1]} : vector<8x384xf32> to vector<8x128xf32>
    %487 = vector.extract_strided_slice %448 {offsets = [3, 0], sizes = [1, 128], strides = [1, 1]} : vector<8x128xf32> to vector<1x128xf32>
    %488 = vector.broadcast %487 : vector<1x128xf32> to vector<8x128xf32>
    %489 = arith.addf %486, %488 : vector<8x128xf32>
    %490 = vector.extract_strided_slice %481 {offsets = [0, 256], sizes = [8, 128], strides = [1, 1]} : vector<8x384xf32> to vector<8x128xf32>
    %491 = vector.extract_strided_slice %448 {offsets = [4, 0], sizes = [1, 128], strides = [1, 1]} : vector<8x128xf32> to vector<1x128xf32>
    %492 = vector.broadcast %491 : vector<1x128xf32> to vector<8x128xf32>
    %493 = arith.addf %490, %492 : vector<8x128xf32>
    %c96_i32_154 = arith.constant 96 : i32
    %494 = tpu.dynamic_rotate %485 by %c96_i32_154 dim 1 : vector<8x128xf32>, i32 -> vector<8x128xf32>
    %c32_i32_155 = arith.constant 32 : i32
    %495 = tpu.dynamic_rotate %485 by %c32_i32_155 dim 1 : vector<8x128xf32>, i32 -> vector<8x128xf32>
    %496 = arith.mulf %485, %450 : vector<8x128xf32>
    %497 = arith.mulf %494, %452 : vector<8x128xf32>
    %498 = arith.addf %496, %497 : vector<8x128xf32>
    %499 = arith.mulf %495, %454 : vector<8x128xf32>
    %500 = arith.addf %498, %499 : vector<8x128xf32>
    %cst_156 = arith.constant 0.0883883461 : f32
    %501 = vector.broadcast %cst_156 : f32 to vector<8x128xf32>
    %502 = arith.mulf %500, %501 : vector<8x128xf32>
    %c96_i32_157 = arith.constant 96 : i32
    %503 = tpu.dynamic_rotate %489 by %c96_i32_157 dim 1 : vector<8x128xf32>, i32 -> vector<8x128xf32>
    %c32_i32_158 = arith.constant 32 : i32
    %504 = tpu.dynamic_rotate %489 by %c32_i32_158 dim 1 : vector<8x128xf32>, i32 -> vector<8x128xf32>
    %505 = arith.mulf %489, %450 : vector<8x128xf32>
    %506 = arith.mulf %503, %452 : vector<8x128xf32>
    %507 = arith.addf %505, %506 : vector<8x128xf32>
    %508 = arith.mulf %504, %454 : vector<8x128xf32>
    %509 = arith.addf %507, %508 : vector<8x128xf32>
    %510 = arith.truncf %502 : vector<8x128xf32> to vector<8x128xbf16>
    %511 = arith.truncf %509 : vector<8x128xf32> to vector<8x128xbf16>
    %cst_159 = arith.constant dense<0.000000e+00> : vector<8x8xf32>
    %512 = tpu.matmul %510, %511, %cst_159 {dimension_numbers = #tpu.dot_dimension_numbers<[1], [1], [0], [0], [0, 0, 1, 0], [], []>} : vector<8x128xbf16>, vector<8x128xbf16>, vector<8x8xf32> -> vector<8x8xf32>
    %513 = tpu.iota {dimensions = array<i32: 0>} : vector<8x8xi32>
    %514 = tpu.iota {dimensions = array<i32: 1>} : vector<8x8xi32>
    %515 = arith.cmpi sle, %514, %513 : vector<8x8xi32>
    %cst_160 = arith.constant -1.000000e+30 : f32
    %516 = vector.broadcast %cst_160 : f32 to vector<8x8xf32>
    %517 = arith.select %515, %512, %516 : vector<8x8xi1>, vector<8x8xf32>
    %cst_161 = arith.constant dense<0xFF800000> : vector<8xf32>
    %518 = vector.multi_reduction <maximumf>, %517, %cst_161 [1] : vector<8x8xf32> to vector<8xf32>
    %519 = vector.shape_cast %518 : vector<8xf32> to vector<8x1xf32>
    %520 = vector.broadcast %519 : vector<8x1xf32> to vector<8x8xf32>
    %521 = arith.subf %517, %520 : vector<8x8xf32>
    %522 = math.exp %521 : vector<8x8xf32>
    %cst_162 = arith.constant dense<0.000000e+00> : vector<8xf32>
    %523 = vector.multi_reduction <add>, %522, %cst_162 [1] : vector<8x8xf32> to vector<8xf32>
    %524 = vector.shape_cast %523 : vector<8xf32> to vector<8x1xf32>
    %525 = tpu.reciprocal %524 {approx = true} : vector<8x1xf32> -> vector<8x1xf32>
    %526 = vector.broadcast %525 : vector<8x1xf32> to vector<8x8xf32>
    %527 = arith.mulf %522, %526 : vector<8x8xf32>
    %528 = arith.truncf %527 : vector<8x8xf32> to vector<8x8xbf16>
    %529 = arith.truncf %493 : vector<8x128xf32> to vector<8x128xbf16>
    %cst_163 = arith.constant dense<0.000000e+00> : vector<8x128xf32>
    %530 = tpu.matmul %528, %529, %cst_163 {dimension_numbers = #tpu.dot_dimension_numbers<[1], [0], [0], [1], [0, 0, 1, 1], [], []>} : vector<8x8xbf16>, vector<8x128xbf16>, vector<8x128xf32> -> vector<8x128xf32>
    %531 = arith.truncf %530 : vector<8x128xf32> to vector<8x128xbf16>
    %c0_164 = arith.constant 0 : index
    %c0_165 = arith.constant 0 : index
    %532 = vector.load %arg24[%c0_164, %c0_165] : memref<128x128xbf16, #tpu.memory_space<vmem>>, vector<128x128xbf16>
    %cst_166 = arith.constant dense<0.000000e+00> : vector<8x128xf32>
    %533 = tpu.matmul %531, %532, %cst_166 {dimension_numbers = #tpu.dot_dimension_numbers<[1], [0], [0], [1], [0, 0, 1, 1], [], []>} : vector<8x128xbf16>, vector<128x128xbf16>, vector<8x128xf32> -> vector<8x128xf32>
    %534 = vector.extract_strided_slice %448 {offsets = [5, 0], sizes = [1, 128], strides = [1, 1]} : vector<8x128xf32> to vector<1x128xf32>
    %535 = vector.broadcast %534 : vector<1x128xf32> to vector<8x128xf32>
    %536 = arith.addf %533, %535 : vector<8x128xf32>
    %537 = arith.addf %439, %536 : vector<8x128xf32>
    %c0_167 = arith.constant 0 : index
    %c0_168 = arith.constant 0 : index
    %538 = vector.load %arg25[%c0_167, %c0_168] : memref<128x2xf32, #tpu.memory_space<vmem>>, vector<128x2xf32>
    %539 = vector.extract_strided_slice %448 {offsets = [6, 0], sizes = [1, 128], strides = [1, 1]} : vector<8x128xf32> to vector<1x128xf32>
    %540 = vector.extract_strided_slice %448 {offsets = [7, 0], sizes = [1, 128], strides = [1, 1]} : vector<8x128xf32> to vector<1x128xf32>
    %cst_169 = arith.constant dense<0.000000e+00> : vector<8xf32>
    %541 = vector.multi_reduction <add>, %537, %cst_169 [1] : vector<8x128xf32> to vector<8xf32>
    %542 = vector.shape_cast %541 : vector<8xf32> to vector<8x1xf32>
    %cst_170 = arith.constant 1.280000e+02 : f32
    %543 = vector.broadcast %cst_170 : f32 to vector<8x1xf32>
    %544 = arith.divf %542, %543 : vector<8x1xf32>
    %545 = vector.broadcast %544 : vector<8x1xf32> to vector<8x128xf32>
    %546 = arith.subf %537, %545 : vector<8x128xf32>
    %547 = arith.mulf %546, %546 : vector<8x128xf32>
    %cst_171 = arith.constant dense<0.000000e+00> : vector<8xf32>
    %548 = vector.multi_reduction <add>, %547, %cst_171 [1] : vector<8x128xf32> to vector<8xf32>
    %549 = vector.shape_cast %548 : vector<8xf32> to vector<8x1xf32>
    %cst_172 = arith.constant 1.280000e+02 : f32
    %550 = vector.broadcast %cst_172 : f32 to vector<8x1xf32>
    %551 = arith.divf %549, %550 : vector<8x1xf32>
    %552 = vector.broadcast %544 : vector<8x1xf32> to vector<8x128xf32>
    %553 = arith.subf %537, %552 : vector<8x128xf32>
    %cst_173 = arith.constant 9.99999974E-6 : f32
    %554 = vector.broadcast %cst_173 : f32 to vector<8x1xf32>
    %555 = arith.addf %551, %554 : vector<8x1xf32>
    %556 = math.rsqrt %555 : vector<8x1xf32>
    %557 = vector.broadcast %556 : vector<8x1xf32> to vector<8x128xf32>
    %558 = arith.mulf %553, %557 : vector<8x128xf32>
    %559 = vector.broadcast %539 : vector<1x128xf32> to vector<8x128xf32>
    %560 = arith.mulf %558, %559 : vector<8x128xf32>
    %561 = vector.broadcast %540 : vector<1x128xf32> to vector<8x128xf32>
    %562 = arith.addf %560, %561 : vector<8x128xf32>
    %563 = arith.truncf %562 : vector<8x128xf32> to vector<8x128xbf16>
    %564 = arith.truncf %538 : vector<128x2xf32> to vector<128x2xbf16>
    %cst_174 = arith.constant dense<0.000000e+00> : vector<8x2xf32>
    %565 = tpu.matmul %563, %564, %cst_174 {dimension_numbers = #tpu.dot_dimension_numbers<[1], [0], [0], [1], [0, 0, 1, 1], [], []>} : vector<8x128xbf16>, vector<128x2xbf16>, vector<8x2xf32> -> vector<8x2xf32>
    %cst_175 = arith.constant dense<0xFF800000> : vector<8xf32>
    %566 = vector.multi_reduction <maximumf>, %565, %cst_175 [1] : vector<8x2xf32> to vector<8xf32>
    %567 = vector.shape_cast %566 : vector<8xf32> to vector<8x1xf32>
    %568 = vector.broadcast %567 : vector<8x1xf32> to vector<8x2xf32>
    %569 = arith.subf %565, %568 : vector<8x2xf32>
    %570 = math.exp %569 : vector<8x2xf32>
    %cst_176 = arith.constant dense<0.000000e+00> : vector<8xf32>
    %571 = vector.multi_reduction <add>, %570, %cst_176 [1] : vector<8x2xf32> to vector<8xf32>
    %572 = vector.shape_cast %571 : vector<8xf32> to vector<8x1xf32>
    %573 = vector.broadcast %572 : vector<8x1xf32> to vector<8x2xf32>
    %574 = arith.divf %570, %573 : vector<8x2xf32>
    %575 = tpu.iota {dimensions = array<i32: 1>} : vector<8x2xi32>
    %cst_177 = arith.constant 0.000000e+00 : f32
    %576 = vector.broadcast %cst_177 : f32 to vector<8x2xf32>
    %cst_178 = arith.constant dense<0xFF800000> : vector<8xf32>
    %577 = vector.multi_reduction <maximumf>, %574, %cst_178 [1] : vector<8x2xf32> to vector<8xf32>
    %578 = vector.shape_cast %577 : vector<8xf32> to vector<8x1xf32>
    %579 = vector.broadcast %578 : vector<8x1xf32> to vector<8x2xf32>
    %580 = arith.cmpf oeq, %574, %579 : vector<8x2xf32>
    %c2_i32 = arith.constant 2 : i32
    %581 = vector.broadcast %c2_i32 : i32 to vector<8x2xi32>
    %582 = arith.select %580, %575, %581 : vector<8x2xi1>, vector<8x2xi32>
    %cst_179 = arith.constant dense<2147483647> : vector<8xi32>
    %583 = vector.multi_reduction <minsi>, %582, %cst_179 [1] : vector<8x2xi32> to vector<8xi32>
    %584 = vector.shape_cast %583 : vector<8xi32> to vector<8x1xi32>
    %585 = vector.broadcast %584 : vector<8x1xi32> to vector<8x2xi32>
    %586 = arith.cmpi eq, %575, %585 : vector<8x2xi32>
    %587 = arith.extui %586 : vector<8x2xi1> to vector<8x2xi32>
    %588 = arith.sitofp %587 : vector<8x2xi32> to vector<8x2xf32>
    %589 = arith.addf %576, %588 : vector<8x2xf32>
    %590 = arith.mulf %574, %589 : vector<8x2xf32>
    %cst_180 = arith.constant dense<0.000000e+00> : vector<8xf32>
    %591 = vector.multi_reduction <add>, %590, %cst_180 [1] : vector<8x2xf32> to vector<8xf32>
    %592 = vector.shape_cast %591 : vector<8xf32> to vector<8x1xf32>
    %593 = vector.broadcast %592 : vector<8x1xf32> to vector<8x2xf32>
    %594 = arith.divf %590, %593 : vector<8x2xf32>
    %cst_181 = arith.constant 0.000000e+00 : f32
    %595 = vector.broadcast %cst_181 : f32 to vector<8x128xf32>
    %c0_182 = arith.constant 0 : index
    %c0_183 = arith.constant 0 : index
    %c0_184 = arith.constant 0 : index
    %596 = vector.load %arg26[%c0_182, %c0_183, %c0_184] : memref<2x128x256xbf16, #tpu.memory_space<vmem>>, vector<1x128x256xbf16>
    %597 = vector.shape_cast %596 : vector<1x128x256xbf16> to vector<128x256xbf16>
    %cst_185 = arith.constant dense<0.000000e+00> : vector<8x256xf32>
    %598 = tpu.matmul %563, %597, %cst_185 {dimension_numbers = #tpu.dot_dimension_numbers<[1], [0], [0], [1], [0, 0, 1, 1], [], []>} : vector<8x128xbf16>, vector<128x256xbf16>, vector<8x256xf32> -> vector<8x256xf32>
    %c0_186 = arith.constant 0 : index
    %c0_187 = arith.constant 0 : index
    %c0_188 = arith.constant 0 : index
    %599 = vector.load %arg27[%c0_186, %c0_187, %c0_188] : memref<2x1x256xf32, #tpu.memory_space<vmem>>, vector<1x1x256xf32>
    %600 = vector.shape_cast %599 : vector<1x1x256xf32> to vector<1x256xf32>
    %601 = vector.broadcast %600 : vector<1x256xf32> to vector<8x256xf32>
    %602 = arith.addf %598, %601 : vector<8x256xf32>
    %603 = arith.mulf %602, %602 : vector<8x256xf32>
    %604 = arith.mulf %602, %603 : vector<8x256xf32>
    %cst_189 = arith.constant 4.471500e-02 : f32
    %605 = vector.broadcast %cst_189 : f32 to vector<8x256xf32>
    %606 = arith.mulf %605, %604 : vector<8x256xf32>
    %607 = arith.addf %602, %606 : vector<8x256xf32>
    %cst_190 = arith.constant 0.797884583 : f32
    %608 = vector.broadcast %cst_190 : f32 to vector<8x256xf32>
    %609 = arith.mulf %608, %607 : vector<8x256xf32>
    %610 = math.tanh %609 : vector<8x256xf32>
    %cst_191 = arith.constant 1.000000e+00 : f32
    %611 = vector.broadcast %cst_191 : f32 to vector<8x256xf32>
    %612 = arith.addf %611, %610 : vector<8x256xf32>
    %cst_192 = arith.constant 5.000000e-01 : f32
    %613 = vector.broadcast %cst_192 : f32 to vector<8x256xf32>
    %614 = arith.mulf %613, %612 : vector<8x256xf32>
    %615 = arith.mulf %602, %614 : vector<8x256xf32>
    %616 = arith.truncf %615 : vector<8x256xf32> to vector<8x256xbf16>
    %c0_193 = arith.constant 0 : index
    %c0_194 = arith.constant 0 : index
    %c0_195 = arith.constant 0 : index
    %617 = vector.load %arg28[%c0_193, %c0_194, %c0_195] : memref<2x256x128xbf16, #tpu.memory_space<vmem>>, vector<1x256x128xbf16>
    %618 = vector.shape_cast %617 : vector<1x256x128xbf16> to vector<256x128xbf16>
    %cst_196 = arith.constant dense<0.000000e+00> : vector<8x128xf32>
    %619 = tpu.matmul %616, %618, %cst_196 {dimension_numbers = #tpu.dot_dimension_numbers<[1], [0], [0], [1], [0, 0, 1, 1], [], []>} : vector<8x256xbf16>, vector<256x128xbf16>, vector<8x128xf32> -> vector<8x128xf32>
    %c0_197 = arith.constant 0 : index
    %c0_198 = arith.constant 0 : index
    %c0_199 = arith.constant 0 : index
    %620 = vector.load %arg29[%c0_197, %c0_198, %c0_199] : memref<2x1x128xf32, #tpu.memory_space<vmem>>, vector<1x1x128xf32>
    %621 = vector.shape_cast %620 : vector<1x1x128xf32> to vector<1x128xf32>
    %622 = vector.broadcast %621 : vector<1x128xf32> to vector<8x128xf32>
    %623 = arith.addf %619, %622 : vector<8x128xf32>
    %624 = vector.extract_strided_slice %594 {offsets = [0, 0], sizes = [8, 1], strides = [1, 1]} : vector<8x2xf32> to vector<8x1xf32>
    %625 = vector.broadcast %624 : vector<8x1xf32> to vector<8x128xf32>
    %626 = arith.mulf %625, %623 : vector<8x128xf32>
    %627 = arith.addf %595, %626 : vector<8x128xf32>
    %c1_200 = arith.constant 1 : index
    %c0_201 = arith.constant 0 : index
    %c0_202 = arith.constant 0 : index
    %628 = vector.load %arg26[%c1_200, %c0_201, %c0_202] : memref<2x128x256xbf16, #tpu.memory_space<vmem>>, vector<1x128x256xbf16>
    %629 = vector.shape_cast %628 : vector<1x128x256xbf16> to vector<128x256xbf16>
    %cst_203 = arith.constant dense<0.000000e+00> : vector<8x256xf32>
    %630 = tpu.matmul %563, %629, %cst_203 {dimension_numbers = #tpu.dot_dimension_numbers<[1], [0], [0], [1], [0, 0, 1, 1], [], []>} : vector<8x128xbf16>, vector<128x256xbf16>, vector<8x256xf32> -> vector<8x256xf32>
    %c1_204 = arith.constant 1 : index
    %c0_205 = arith.constant 0 : index
    %c0_206 = arith.constant 0 : index
    %631 = vector.load %arg27[%c1_204, %c0_205, %c0_206] : memref<2x1x256xf32, #tpu.memory_space<vmem>>, vector<1x1x256xf32>
    %632 = vector.shape_cast %631 : vector<1x1x256xf32> to vector<1x256xf32>
    %633 = vector.broadcast %632 : vector<1x256xf32> to vector<8x256xf32>
    %634 = arith.addf %630, %633 : vector<8x256xf32>
    %635 = arith.mulf %634, %634 : vector<8x256xf32>
    %636 = arith.mulf %634, %635 : vector<8x256xf32>
    %cst_207 = arith.constant 4.471500e-02 : f32
    %637 = vector.broadcast %cst_207 : f32 to vector<8x256xf32>
    %638 = arith.mulf %637, %636 : vector<8x256xf32>
    %639 = arith.addf %634, %638 : vector<8x256xf32>
    %cst_208 = arith.constant 0.797884583 : f32
    %640 = vector.broadcast %cst_208 : f32 to vector<8x256xf32>
    %641 = arith.mulf %640, %639 : vector<8x256xf32>
    %642 = math.tanh %641 : vector<8x256xf32>
    %cst_209 = arith.constant 1.000000e+00 : f32
    %643 = vector.broadcast %cst_209 : f32 to vector<8x256xf32>
    %644 = arith.addf %643, %642 : vector<8x256xf32>
    %cst_210 = arith.constant 5.000000e-01 : f32
    %645 = vector.broadcast %cst_210 : f32 to vector<8x256xf32>
    %646 = arith.mulf %645, %644 : vector<8x256xf32>
    %647 = arith.mulf %634, %646 : vector<8x256xf32>
    %648 = arith.truncf %647 : vector<8x256xf32> to vector<8x256xbf16>
    %c1_211 = arith.constant 1 : index
    %c0_212 = arith.constant 0 : index
    %c0_213 = arith.constant 0 : index
    %649 = vector.load %arg28[%c1_211, %c0_212, %c0_213] : memref<2x256x128xbf16, #tpu.memory_space<vmem>>, vector<1x256x128xbf16>
    %650 = vector.shape_cast %649 : vector<1x256x128xbf16> to vector<256x128xbf16>
    %cst_214 = arith.constant dense<0.000000e+00> : vector<8x128xf32>
    %651 = tpu.matmul %648, %650, %cst_214 {dimension_numbers = #tpu.dot_dimension_numbers<[1], [0], [0], [1], [0, 0, 1, 1], [], []>} : vector<8x256xbf16>, vector<256x128xbf16>, vector<8x128xf32> -> vector<8x128xf32>
    %c1_215 = arith.constant 1 : index
    %c0_216 = arith.constant 0 : index
    %c0_217 = arith.constant 0 : index
    %652 = vector.load %arg29[%c1_215, %c0_216, %c0_217] : memref<2x1x128xf32, #tpu.memory_space<vmem>>, vector<1x1x128xf32>
    %653 = vector.shape_cast %652 : vector<1x1x128xf32> to vector<1x128xf32>
    %654 = vector.broadcast %653 : vector<1x128xf32> to vector<8x128xf32>
    %655 = arith.addf %651, %654 : vector<8x128xf32>
    %656 = vector.extract_strided_slice %594 {offsets = [0, 1], sizes = [8, 1], strides = [1, 1]} : vector<8x2xf32> to vector<8x1xf32>
    %657 = vector.broadcast %656 : vector<8x1xf32> to vector<8x128xf32>
    %658 = arith.mulf %657, %655 : vector<8x128xf32>
    %659 = arith.addf %627, %658 : vector<8x128xf32>
    %660 = arith.addf %537, %659 : vector<8x128xf32>
    %661 = arith.truncf %509 : vector<8x128xf32> to vector<8x128xbf16>
    %c3 = arith.constant 3 : index
    %c0_218 = arith.constant 0 : index
    %c0_219 = arith.constant 0 : index
    %c0_220 = arith.constant 0 : index
    %662 = vector.load %arg31[%c3, %c0_218, %c0_219, %c0_220] : memref<4x1x8x128xbf16, #tpu.memory_space<vmem>>, vector<1x1x8x128xbf16>
    %663 = vector.shape_cast %662 : vector<1x1x8x128xbf16> to vector<8x128xbf16>
    %664 = vector.shape_cast %661 : vector<8x128xbf16> to vector<1x1x8x128xbf16>
    tpu.vector_store %arg31[%c3, %c0_218, %c0_219, %c0_220], %664 {strides = array<i32>} : memref<4x1x8x128xbf16, #tpu.memory_space<vmem>>, vector<1x1x8x128xbf16>,
    %665 = arith.truncf %493 : vector<8x128xf32> to vector<8x128xbf16>
    %c3_221 = arith.constant 3 : index
    %c0_222 = arith.constant 0 : index
    %c0_223 = arith.constant 0 : index
    %c0_224 = arith.constant 0 : index
    %666 = vector.load %arg32[%c3_221, %c0_222, %c0_223, %c0_224] : memref<4x1x8x128xbf16, #tpu.memory_space<vmem>>, vector<1x1x8x128xbf16>
    %667 = vector.shape_cast %666 : vector<1x1x8x128xbf16> to vector<8x128xbf16>
    %668 = vector.shape_cast %665 : vector<8x128xbf16> to vector<1x1x8x128xbf16>
    tpu.vector_store %arg32[%c3_221, %c0_222, %c0_223, %c0_224], %668 {strides = array<i32>} : memref<4x1x8x128xbf16, #tpu.memory_space<vmem>>, vector<1x1x8x128xbf16>,
    %c0_225 = arith.constant 0 : index
    %c0_226 = arith.constant 0 : index
    %669 = vector.load %arg3[%c0_225, %c0_226] : memref<2x128xf32, #tpu.memory_space<vmem>>, vector<2x128xf32>
    %670 = vector.extract_strided_slice %669 {offsets = [0, 0], sizes = [1, 128], strides = [1, 1]} : vector<2x128xf32> to vector<1x128xf32>
    %671 = vector.extract_strided_slice %669 {offsets = [1, 0], sizes = [1, 128], strides = [1, 1]} : vector<2x128xf32> to vector<1x128xf32>
    %cst_227 = arith.constant dense<0.000000e+00> : vector<8xf32>
    %672 = vector.multi_reduction <add>, %660, %cst_227 [1] : vector<8x128xf32> to vector<8xf32>
    %673 = vector.shape_cast %672 : vector<8xf32> to vector<8x1xf32>
    %cst_228 = arith.constant 1.280000e+02 : f32
    %674 = vector.broadcast %cst_228 : f32 to vector<8x1xf32>
    %675 = arith.divf %673, %674 : vector<8x1xf32>
    %676 = vector.broadcast %675 : vector<8x1xf32> to vector<8x128xf32>
    %677 = arith.subf %660, %676 : vector<8x128xf32>
    %678 = arith.mulf %677, %677 : vector<8x128xf32>
    %cst_229 = arith.constant dense<0.000000e+00> : vector<8xf32>
    %679 = vector.multi_reduction <add>, %678, %cst_229 [1] : vector<8x128xf32> to vector<8xf32>
    %680 = vector.shape_cast %679 : vector<8xf32> to vector<8x1xf32>
    %cst_230 = arith.constant 1.280000e+02 : f32
    %681 = vector.broadcast %cst_230 : f32 to vector<8x1xf32>
    %682 = arith.divf %680, %681 : vector<8x1xf32>
    %683 = vector.broadcast %675 : vector<8x1xf32> to vector<8x128xf32>
    %684 = arith.subf %660, %683 : vector<8x128xf32>
    %cst_231 = arith.constant 9.99999974E-6 : f32
    %685 = vector.broadcast %cst_231 : f32 to vector<8x1xf32>
    %686 = arith.addf %682, %685 : vector<8x1xf32>
    %687 = math.rsqrt %686 : vector<8x1xf32>
    %688 = vector.broadcast %687 : vector<8x1xf32> to vector<8x128xf32>
    %689 = arith.mulf %684, %688 : vector<8x128xf32>
    %690 = vector.broadcast %670 : vector<1x128xf32> to vector<8x128xf32>
    %691 = arith.mulf %689, %690 : vector<8x128xf32>
    %692 = vector.broadcast %671 : vector<1x128xf32> to vector<8x128xf32>
    %693 = arith.addf %691, %692 : vector<8x128xf32>
    %c0_232 = arith.constant 0 : index
    %c0_233 = arith.constant 0 : index
    %c0_234 = arith.constant 0 : index
    %694 = vector.load %arg30[%c0_232, %c0_233, %c0_234] : memref<1x8x128xf32, #tpu.memory_space<vmem>>, vector<1x8x128xf32>
    %695 = vector.shape_cast %694 : vector<1x8x128xf32> to vector<8x128xf32>
    %696 = vector.shape_cast %693 : vector<8x128xf32> to vector<1x8x128xf32>
    tpu.vector_store %arg30[%c0_232, %c0_233, %c0_234], %696 {strides = array<i32>} : memref<1x8x128xf32, #tpu.memory_space<vmem>>, vector<1x8x128xf32>,
    return
  }
  func.func @transform_0(%arg0: i32) -> (i32, i32, i32) {
    %c0_i32 = arith.constant 0 : i32
    %c0_i32_0 = arith.constant 0 : i32
    %c0_i32_1 = arith.constant 0 : i32
    return %arg0, %c0_i32, %c0_i32_0 : i32, i32, i32
  }
  func.func @transform_1(%arg0: i32) -> (i32, i32, i32) {
    %c0_i32 = arith.constant 0 : i32
    %c0_i32_0 = arith.constant 0 : i32
    %c0_i32_1 = arith.constant 0 : i32
    %c0_i32_2 = arith.constant 0 : i32
    return %c0_i32, %c0_i32_0, %c0_i32_1 : i32, i32, i32
  }
  func.func @transform_2(%arg0: i32) -> (i32, i32) {
    %c0_i32 = arith.constant 0 : i32
    %c0_i32_0 = arith.constant 0 : i32
    %c0_i32_1 = arith.constant 0 : i32
    return %c0_i32, %c0_i32_0 : i32, i32
  }
  func.func @transform_3(%arg0: i32) -> (i32, i32) {
    %c0_i32 = arith.constant 0 : i32
    %c0_i32_0 = arith.constant 0 : i32
    %c0_i32_1 = arith.constant 0 : i32
    return %c0_i32, %c0_i32_0 : i32, i32
  }
  func.func @transform_4(%arg0: i32) -> (i32, i32) {
    %c0_i32 = arith.constant 0 : i32
    %c0_i32_0 = arith.constant 0 : i32
    %c0_i32_1 = arith.constant 0 : i32
    return %c0_i32, %c0_i32_0 : i32, i32
  }
  func.func @transform_5(%arg0: i32) -> (i32, i32) {
    %c0_i32 = arith.constant 0 : i32
    %c0_i32_0 = arith.constant 0 : i32
    %c0_i32_1 = arith.constant 0 : i32
    return %c0_i32, %c0_i32_0 : i32, i32
  }
  func.func @transform_6(%arg0: i32) -> (i32, i32) {
    %c0_i32 = arith.constant 0 : i32
    %c0_i32_0 = arith.constant 0 : i32
    %c0_i32_1 = arith.constant 0 : i32
    return %c0_i32, %c0_i32_0 : i32, i32
  }
  func.func @transform_7(%arg0: i32) -> (i32, i32) {
    %c0_i32 = arith.constant 0 : i32
    %c0_i32_0 = arith.constant 0 : i32
    %c0_i32_1 = arith.constant 0 : i32
    return %c0_i32, %c0_i32_0 : i32, i32
  }
  func.func @transform_8(%arg0: i32) -> (i32, i32) {
    %c0_i32 = arith.constant 0 : i32
    %c0_i32_0 = arith.constant 0 : i32
    %c0_i32_1 = arith.constant 0 : i32
    return %c0_i32, %c0_i32_0 : i32, i32
  }
  func.func @transform_9(%arg0: i32) -> (i32, i32) {
    %c0_i32 = arith.constant 0 : i32
    %c0_i32_0 = arith.constant 0 : i32
    %c0_i32_1 = arith.constant 0 : i32
    return %c0_i32, %c0_i32_0 : i32, i32
  }
  func.func @transform_10(%arg0: i32) -> (i32, i32) {
    %c0_i32 = arith.constant 0 : i32
    %c0_i32_0 = arith.constant 0 : i32
    %c0_i32_1 = arith.constant 0 : i32
    return %c0_i32, %c0_i32_0 : i32, i32
  }
  func.func @transform_11(%arg0: i32) -> (i32, i32) {
    %c0_i32 = arith.constant 0 : i32
    %c0_i32_0 = arith.constant 0 : i32
    %c0_i32_1 = arith.constant 0 : i32
    return %c0_i32, %c0_i32_0 : i32, i32
  }
  func.func @transform_12(%arg0: i32) -> (i32, i32) {
    %c0_i32 = arith.constant 0 : i32
    %c0_i32_0 = arith.constant 0 : i32
    %c0_i32_1 = arith.constant 0 : i32
    return %c0_i32, %c0_i32_0 : i32, i32
  }
  func.func @transform_13(%arg0: i32) -> (i32, i32) {
    %c0_i32 = arith.constant 0 : i32
    %c0_i32_0 = arith.constant 0 : i32
    %c0_i32_1 = arith.constant 0 : i32
    return %c0_i32, %c0_i32_0 : i32, i32
  }
  func.func @transform_14(%arg0: i32) -> (i32, i32) {
    %c0_i32 = arith.constant 0 : i32
    %c0_i32_0 = arith.constant 0 : i32
    %c0_i32_1 = arith.constant 0 : i32
    return %c0_i32, %c0_i32_0 : i32, i32
  }
  func.func @transform_15(%arg0: i32) -> (i32, i32) {
    %c0_i32 = arith.constant 0 : i32
    %c0_i32_0 = arith.constant 0 : i32
    %c0_i32_1 = arith.constant 0 : i32
    return %c0_i32, %c0_i32_0 : i32, i32
  }
  func.func @transform_16(%arg0: i32) -> (i32, i32) {
    %c0_i32 = arith.constant 0 : i32
    %c0_i32_0 = arith.constant 0 : i32
    %c0_i32_1 = arith.constant 0 : i32
    return %c0_i32, %c0_i32_0 : i32, i32
  }
  func.func @transform_17(%arg0: i32) -> (i32, i32) {
    %c0_i32 = arith.constant 0 : i32
    %c0_i32_0 = arith.constant 0 : i32
    %c0_i32_1 = arith.constant 0 : i32
    return %c0_i32, %c0_i32_0 : i32, i32
  }
  func.func @transform_18(%arg0: i32) -> (i32, i32) {
    %c0_i32 = arith.constant 0 : i32
    %c0_i32_0 = arith.constant 0 : i32
    %c0_i32_1 = arith.constant 0 : i32
    return %c0_i32, %c0_i32_0 : i32, i32
  }
  func.func @transform_19(%arg0: i32) -> (i32, i32) {
    %c0_i32 = arith.constant 0 : i32
    %c0_i32_0 = arith.constant 0 : i32
    %c0_i32_1 = arith.constant 0 : i32
    return %c0_i32, %c0_i32_0 : i32, i32
  }
  func.func @transform_20(%arg0: i32) -> (i32, i32) {
    %c0_i32 = arith.constant 0 : i32
    %c0_i32_0 = arith.constant 0 : i32
    %c0_i32_1 = arith.constant 0 : i32
    return %c0_i32, %c0_i32_0 : i32, i32
  }
  func.func @transform_21(%arg0: i32) -> (i32, i32) {
    %c0_i32 = arith.constant 0 : i32
    %c0_i32_0 = arith.constant 0 : i32
    %c0_i32_1 = arith.constant 0 : i32
    return %c0_i32, %c0_i32_0 : i32, i32
  }
  func.func @transform_22(%arg0: i32) -> (i32, i32) {
    %c0_i32 = arith.constant 0 : i32
    %c0_i32_0 = arith.constant 0 : i32
    %c0_i32_1 = arith.constant 0 : i32
    return %c0_i32, %c0_i32_0 : i32, i32
  }
  func.func @transform_23(%arg0: i32) -> (i32, i32) {
    %c0_i32 = arith.constant 0 : i32
    %c0_i32_0 = arith.constant 0 : i32
    %c0_i32_1 = arith.constant 0 : i32
    return %c0_i32, %c0_i32_0 : i32, i32
  }
  func.func @transform_24(%arg0: i32) -> (i32, i32) {
    %c0_i32 = arith.constant 0 : i32
    %c0_i32_0 = arith.constant 0 : i32
    %c0_i32_1 = arith.constant 0 : i32
    return %c0_i32, %c0_i32_0 : i32, i32
  }
  func.func @transform_25(%arg0: i32) -> (i32, i32, i32) {
    %c0_i32 = arith.constant 0 : i32
    %c0_i32_0 = arith.constant 0 : i32
    %c0_i32_1 = arith.constant 0 : i32
    %c0_i32_2 = arith.constant 0 : i32
    return %c0_i32, %c0_i32_0, %c0_i32_1 : i32, i32, i32
  }
  func.func @transform_26(%arg0: i32) -> (i32, i32, i32) {
    %c0_i32 = arith.constant 0 : i32
    %c0_i32_0 = arith.constant 0 : i32
    %c0_i32_1 = arith.constant 0 : i32
    %c0_i32_2 = arith.constant 0 : i32
    return %c0_i32, %c0_i32_0, %c0_i32_1 : i32, i32, i32
  }
  func.func @transform_27(%arg0: i32) -> (i32, i32, i32) {
    %c0_i32 = arith.constant 0 : i32
    %c0_i32_0 = arith.constant 0 : i32
    %c0_i32_1 = arith.constant 0 : i32
    %c0_i32_2 = arith.constant 0 : i32
    return %c0_i32, %c0_i32_0, %c0_i32_1 : i32, i32, i32
  }
  func.func @transform_28(%arg0: i32) -> (i32, i32, i32) {
    %c0_i32 = arith.constant 0 : i32
    %c0_i32_0 = arith.constant 0 : i32
    %c0_i32_1 = arith.constant 0 : i32
    %c0_i32_2 = arith.constant 0 : i32
    return %c0_i32, %c0_i32_0, %c0_i32_1 : i32, i32, i32
  }
  func.func @transform_29(%arg0: i32) -> (i32, i32, i32) {
    %c0_i32 = arith.constant 0 : i32
    %c0_i32_0 = arith.constant 0 : i32
    %c0_i32_1 = arith.constant 0 : i32
    return %arg0, %c0_i32, %c0_i32_0 : i32, i32, i32
  }
  func.func @transform_30(%arg0: i32) -> (i32, i32, i32, i32) {
    %c0_i32 = arith.constant 0 : i32
    %c0_i32_0 = arith.constant 0 : i32
    %c0_i32_1 = arith.constant 0 : i32
    %c0_i32_2 = arith.constant 0 : i32
    return %c0_i32, %arg0, %c0_i32_0, %c0_i32_1 : i32, i32, i32, i32
  }
  func.func @transform_31(%arg0: i32) -> (i32, i32, i32, i32) {
    %c0_i32 = arith.constant 0 : i32
    %c0_i32_0 = arith.constant 0 : i32
    %c0_i32_1 = arith.constant 0 : i32
    %c0_i32_2 = arith.constant 0 : i32
    return %c0_i32, %arg0, %c0_i32_0, %c0_i32_1 : i32, i32, i32, i32
  }
}

</mosaic_0001>

<llo_original>
// kernel: tpu_custom_call.1
$region0: #{tpu_custom_call.1}
  #allocation0 [shape = 'u32[]', space=smem, size = 0x4, offset = 0x4, fixed_abs, tag = 'smem constant byte address 0x4 - core index']
  #allocation1 [shape = 'u32[144,128]{1,0:T(1,128)}', space=vmem, size = 0x12000, scoped, tag = 'internal scratch']
  %s0 = inlined_call_operand.smem [shape: u32[32], index: -1, kind: input, shape index: {}]
  %s1 = sld [smem:[%s0]]
  %s2 = scalar_lea.smem %s0, 1
  %s3 = sld [smem:[%s2]]
  %s4 = scalar_lea.smem %s0, 2
  %s5 = sld [smem:[%s4]]
  %s6 = scalar_lea.smem %s0, 3
  %s7 = sld [smem:[%s6]]
  %s8 = scalar_lea.smem %s0, 4
  %s9 = sld [smem:[%s8]]
  %s10 = scalar_lea.smem %s0, 5
  %s11 = sld [smem:[%s10]]
  %s12 = scalar_lea.smem %s0, 6
  %s13 = sld [smem:[%s12]]
  %s14 = scalar_lea.smem %s0, 7
  %s15 = sld [smem:[%s14]]
  %s16 = scalar_lea.smem %s0, 8
  %s17 = sld [smem:[%s16]]
  %s18 = scalar_lea.smem %s0, 9
  %s19 = sld [smem:[%s18]]
  %s20 = scalar_lea.smem %s0, 10
  %s21 = sld [smem:[%s20]]
  %s22 = scalar_lea.smem %s0, 11
  %s23 = sld [smem:[%s22]]
  %s24 = scalar_lea.smem %s0, 12
  %s25 = sld [smem:[%s24]]
  %s26 = scalar_lea.smem %s0, 13
  %s27 = sld [smem:[%s26]]
  %s28 = scalar_lea.smem %s0, 14
  %s29 = sld [smem:[%s28]]
  %s30 = scalar_lea.smem %s0, 15
  %s31 = sld [smem:[%s30]]
  %s32 = scalar_lea.smem %s0, 16
  %s33 = sld [smem:[%s32]]
  %s34 = scalar_lea.smem %s0, 17
  %s35 = sld [smem:[%s34]]
  %s36 = scalar_lea.smem %s0, 18
  %s37 = sld [smem:[%s36]]
  %s38 = scalar_lea.smem %s0, 19
  %s39 = sld [smem:[%s38]]
  %s40 = scalar_lea.smem %s0, 20
  %s41 = sld [smem:[%s40]]
  %s42 = scalar_lea.smem %s0, 21
  %s43 = sld [smem:[%s42]]
  %s44 = scalar_lea.smem %s0, 22
  %s45 = sld [smem:[%s44]]
  %s46 = scalar_lea.smem %s0, 23
  %s47 = sld [smem:[%s46]]
  %s48 = scalar_lea.smem %s0, 24
  %s49 = sld [smem:[%s48]]
  %s50 = scalar_lea.smem %s0, 25
  %s51 = sld [smem:[%s50]]
  %s52 = scalar_lea.smem %s0, 26
  %s53 = sld [smem:[%s52]]
  %s54 = scalar_lea.smem %s0, 27
  %s55 = sld [smem:[%s54]]
  %s56 = scalar_lea.smem %s0, 28
  %s57 = sld [smem:[%s56]]
  %s58 = scalar_lea.smem %s0, 29
  %s59 = sld [smem:[%s58]]
  %s60 = scalar_lea.smem %s0, 30
  %s61 = sld [smem:[%s60]]
  %s62 = scalar_lea.smem %s0, 31
  %s63 = sld [smem:[%s62]]
  %64 = xla_tuple %s59, %s61, %s63
  %s65 = sld [smem:[#allocation0]]
  $region261: #{tpu_custom_call.1} parent=0
    _
  %s67 = ssub.s32 1, %s65
  %s68 = scalar_select 0, %s67, %s65
  $region1: #{tpu_custom_call.1} parent=0
    #allocation2 [shape = 'u8[4096]{0}', space=vmem, size = 0x1000, scoped, tag = 'input window, operand 0']
    #allocation3 [shape = 's32[2]{0}', space=sflag, size = 0x8, scoped, tag = 'scoped memory for tpu_custom_call.1']
    #allocation4 [shape = 's32[2]{0}', space=sflag, size = 0x8, scoped, tag = 'scoped memory for tpu_custom_call.1']
    #allocation5 [shape = 'u8[12288]{0}', space=vmem, size = 0x3000, scoped, tag = 'input window, operand 1, single buffered']
    #allocation6 [shape = 's32[1]{0}', space=sflag, size = 0x4, scoped, tag = 'scoped memory for tpu_custom_call.1']
    #allocation7 [shape = 'u8[1024]{0}', space=vmem, size = 0x400, scoped, tag = 'input window, operand 2, single buffered']
    #allocation8 [shape = 'u8[98304]{0}', space=vmem, size = 0x18000, scoped, tag = 'input window, operand 4, single buffered']
    #allocation9 [shape = 's32[1]{0}', space=sflag, size = 0x4, scoped, tag = 'scoped memory for tpu_custom_call.1']
    #allocation10 [shape = 'u8[32768]{0}', space=vmem, size = 0x8000, scoped, tag = 'input window, operand 5, single buffered']
    #allocation11 [shape = 'u8[65536]{0}', space=vmem, size = 0x10000, scoped, tag = 'input window, operand 6, single buffered']
    #allocation12 [shape = 's32[1]{0}', space=sflag, size = 0x4, scoped, tag = 'scoped memory for tpu_custom_call.1']
    #allocation13 [shape = 'u8[1024]{0}', space=vmem, size = 0x400, scoped, tag = 'input window, operand 7, single buffered']
    #allocation14 [shape = 'u8[65536]{0}', space=vmem, size = 0x10000, scoped, tag = 'input window, operand 8, single buffered']
    #allocation15 [shape = 's32[1]{0}', space=sflag, size = 0x4, scoped, tag = 'scoped memory for tpu_custom_call.1']
    #allocation16 [shape = 'u8[8192]{0}', space=vmem, size = 0x2000, scoped, tag = 'input window, operand 9, single buffered']
    #allocation17 [shape = 'u8[98304]{0}', space=vmem, size = 0x18000, scoped, tag = 'input window, operand 10, single buffered']
    #allocation18 [shape = 's32[1]{0}', space=sflag, size = 0x4, scoped, tag = 'scoped memory for tpu_custom_call.1']
    #allocation19 [shape = 'u8[32768]{0}', space=vmem, size = 0x8000, scoped, tag = 'input window, operand 11, single buffered']
    #allocation20 [shape = 'u8[65536]{0}', space=vmem, size = 0x10000, scoped, tag = 'input window, operand 12, single buffered']
    #allocation21 [shape = 's32[1]{0}', space=sflag, size = 0x4, scoped, tag = 'scoped memory for tpu_custom_call.1']
    #allocation22 [shape = 'u8[1024]{0}', space=vmem, size = 0x400, scoped, tag = 'input window, operand 13, single buffered']
    #allocation23 [shape = 'u8[65536]{0}', space=vmem, size = 0x10000, scoped, tag = 'input window, operand 14, single buffered']
    #allocation24 [shape = 's32[1]{0}', space=sflag, size = 0x4, scoped, tag = 'scoped memory for tpu_custom_call.1']
    #allocation25 [shape = 'u8[8192]{0}', space=vmem, size = 0x2000, scoped, tag = 'input window, operand 15, single buffered']
    #allocation26 [shape = 'u8[98304]{0}', space=vmem, size = 0x18000, scoped, tag = 'input window, operand 16, single buffered']
    #allocation27 [shape = 's32[1]{0}', space=sflag, size = 0x4, scoped, tag = 'scoped memory for tpu_custom_call.1']
    #allocation28 [shape = 'u8[32768]{0}', space=vmem, size = 0x8000, scoped, tag = 'input window, operand 17, single buffered']
    #allocation29 [shape = 'u8[65536]{0}', space=vmem, size = 0x10000, scoped, tag = 'input window, operand 18, single buffered']
    #allocation30 [shape = 's32[1]{0}', space=sflag, size = 0x4, scoped, tag = 'scoped memory for tpu_custom_call.1']
    #allocation31 [shape = 'u8[1024]{0}', space=vmem, size = 0x400, scoped, tag = 'input window, operand 19, single buffered']
    #allocation32 [shape = 'u8[65536]{0}', space=vmem, size = 0x10000, scoped, tag = 'input window, operand 20, single buffered']
    #allocation33 [shape = 's32[1]{0}', space=sflag, size = 0x4, scoped, tag = 'scoped memory for tpu_custom_call.1']
    #allocation34 [shape = 'u8[4096]{0}', space=vmem, size = 0x1000, scoped, tag = 'input window, operand 21, single buffered']
    #allocation35 [shape = 'u8[32768]{0}', space=vmem, size = 0x8000, scoped, tag = 'input window, operand 23, single buffered']
    #allocation36 [shape = 's32[1]{0}', space=sflag, size = 0x4, scoped, tag = 'scoped memory for tpu_custom_call.1']
    #allocation37 [shape = 'u8[131072]{0}', space=vmem, size = 0x20000, scoped, tag = 'input window, operand 25, single buffered']
    #allocation38 [shape = 'u8[131072]{0}', space=vmem, size = 0x20000, scoped, tag = 'input window, operand 27, single buffered']
    #allocation39 [shape = 's32[1]{0}', space=sflag, size = 0x4, scoped, tag = 'scoped memory for tpu_custom_call.1']
    #allocation40 [shape = 'u8[8192]{0}', space=vmem, size = 0x2000, scoped, tag = 'output window, operand 0']
    #allocation41 [shape = 'u8[16384]{0}', space=vmem, size = 0x4000, scoped, tag = 'output window, operand 1']
    #allocation42 [shape = 's32[2]{0}', space=sflag, size = 0x8, scoped, tag = 'scoped memory for tpu_custom_call.1']
    #allocation43 [shape = 'u8[16384]{0}', space=vmem, size = 0x4000, scoped, tag = 'output window, operand 2']
    %69 = vsyncpa [#allocation3], 0
    %s70 = scalar_lea.sflag [#allocation3], 1
    %71 = vsyncpa %s70, 0
    %72 = vsyncpa [#allocation6], 0
    %73 = vsyncpa [#allocation9], 0
    %74 = vsyncpa [#allocation12], 0
    %75 = vsyncpa [#allocation15], 0
    %76 = vsyncpa [#allocation18], 0
    %77 = vsyncpa [#allocation21], 0
    %78 = vsyncpa [#allocation24], 0
    %79 = vsyncpa [#allocation27], 0
    %80 = vsyncpa [#allocation30], 0
    %81 = vsyncpa [#allocation33], 0
    %82 = vsyncpa [#allocation36], 0
    %83 = vsyncpa [#allocation39], 0
    %84 = vsyncpa [#allocation4], 0
    %s85 = scalar_lea.sflag [#allocation4], 1
    %86 = vsyncpa %s85, 0
    %87 = vsyncpa [#allocation42], 0
    %s88 = scalar_lea.sflag [#allocation42], 1
    %89 = vsyncpa %s88, 0
    loop: start=0, step=1, limit=4
    $region2: #{tpu_custom_call.1} parent=1 // loop_pre_header
      _
    $region3: #{tpu_custom_call.1} parent=1 // loop_header
      %s91 = sphi 0, %s95
      %p92 = scmp.ge.s32.totalorder %s91, 4
      %s101 = sphi 0, %s103
      %s104 = sphi 0, %s101
      %s105 = sphi 0, %s104
      %s121 = sphi 0, %s105
      %s125 = sphi 0, %s125
      %s127 = sphi 0, %s125
      %s128 = sphi 0, %s127
      %s142 = sphi 0, %s128
      %s146 = sphi 0, %s146
      %s148 = sphi 0, %s146
      %s149 = sphi 0, %s148
      %s163 = sphi 0, %s149
      %s167 = sphi 0, %s167
      %s169 = sphi 0, %s167
      %s170 = sphi 0, %s169
      %s184 = sphi 0, %s170
      %s188 = sphi 0, %s188
      %s190 = sphi 0, %s188
      %s191 = sphi 0, %s190
      %s205 = sphi 0, %s191
      %s209 = sphi 0, %s209
      %s211 = sphi 0, %s209
      %s212 = sphi 0, %s211
      %s226 = sphi 0, %s212
      %s230 = sphi 0, %s230
      %s232 = sphi 0, %s230
      %s233 = sphi 0, %s232
      %s247 = sphi 0, %s233
      %s251 = sphi 0, %s251
      %s253 = sphi 0, %s251
      %s254 = sphi 0, %s253
      %s268 = sphi 0, %s254
      %s272 = sphi 0, %s272
      %s274 = sphi 0, %s272
      %s275 = sphi 0, %s274
      %s289 = sphi 0, %s275
      %s293 = sphi 0, %s293
      %s295 = sphi 0, %s293
      %s296 = sphi 0, %s295
      %s310 = sphi 0, %s296
      %s314 = sphi 0, %s314
      %s316 = sphi 0, %s314
      %s317 = sphi 0, %s316
      %s331 = sphi 0, %s317
      %s335 = sphi 0, %s335
      %s337 = sphi 0, %s335
      %s338 = sphi 0, %s337
      %s352 = sphi 0, %s338
      %s356 = sphi 0, %s356
      %s358 = sphi 0, %s356
      %s359 = sphi 0, %s358
      %s373 = sphi 0, %s359
      %s377 = sphi 0, %s377
      %s379 = sphi 0, %s377
      %s380 = sphi 0, %s379
      %s394 = sphi 0, %s380
      %s398 = sphi 0, %s398
      %s400 = sphi 0, %s398
      %s401 = sphi 0, %s400
      %s415 = sphi 0, %s401
      %s419 = sphi 0, %s419
      %s421 = sphi 0, %s419
      %s422 = sphi 0, %s421
      %s436 = sphi 0, %s422
      %s440 = sphi 0, %s440
      %s442 = sphi 0, %s440
      %s443 = sphi 0, %s442
      %s457 = sphi 0, %s443
      %s461 = sphi 0, %s461
      %s463 = sphi 0, %s461
      %s464 = sphi 0, %s463
      %s478 = sphi 0, %s464
      %s482 = sphi 0, %s482
      %s484 = sphi 0, %s482
      %s485 = sphi 0, %s484
      %s499 = sphi 0, %s485
      %s503 = sphi 0, %s503
      %s505 = sphi 0, %s503
      %s506 = sphi 0, %s505
      %s520 = sphi 0, %s506
      %s524 = sphi 0, %s524
      %s526 = sphi 0, %s524
      %s527 = sphi 0, %s526
      %s541 = sphi 0, %s527
      %s545 = sphi 0, %s545
      %s547 = sphi 0, %s545
      %s548 = sphi 0, %s547
      %s562 = sphi 0, %s548
      %s566 = sphi 0, %s566
      %s568 = sphi 0, %s566
      %s569 = sphi 0, %s568
      %s583 = sphi 0, %s569
      %s587 = sphi 0, %s587
      %s589 = sphi 0, %s587
      %s590 = sphi 0, %s589
      %s604 = sphi 0, %s590
      %s608 = sphi 0, %s608
      %s610 = sphi 0, %s608
      %s611 = sphi 0, %s610
      %s625 = sphi 0, %s611
      %s629 = sphi 0, %s629
      %s631 = sphi 0, %s629
      %s632 = sphi 0, %s631
      %s646 = sphi 0, %s632
      %s650 = sphi 0, %s650
      %s652 = sphi 0, %s650
      %s653 = sphi 0, %s652
      %s667 = sphi 0, %s653
      %s671 = sphi 0, %s671
      %s673 = sphi 0, %s671
      %s674 = sphi 0, %s673
      %s688 = sphi 0, %s674
      %s692 = sphi 0, %s692
      %s694 = sphi 0, %s692
      %s695 = sphi 0, %s694
      %s709 = sphi 0, %s695
      %s715 = sphi 0, %s717
      %s718 = sphi 0, %s715
      %s719 = sphi 0, %s718
      %s735 = sphi 0, %s719
      %s741 = sphi 0, %s743
      %s744 = sphi 0, %s741
      %s745 = sphi 0, %s744
      %s761 = sphi 0, %s745
      %s767 = sphi 0, %s769
      %s770 = sphi 0, %s767
      %s771 = sphi 0, %s770
      %s787 = sphi 0, %s771
    $region4: #{tpu_custom_call.1} parent=1 // loop_header_branch
      %94 = sbr.rel (%p92) target = $region8
    $region5: #{tpu_custom_call.1} parent=1 // loop_body
      %s96 = ssub.s32 %s91, 1
      %s97 = ssub.s32 %s91, 2
      %s98 = sadd.s32 %s91, 1
      %s99 = ssub.s32 %s91, %s98
      %p100 = scmp.eq.s32.totalorder %s99, 0
      %s102 = sadd.s32 %s101, 1
      %s103 = scalar_select %p100, %s101, %s102
      %p106 = pneg %p100
      %p107 = scmp.eq.s32.totalorder %s91, 1
      %p108 = por %p106, %p107
      %p109 = scmp.ne.s32.totalorder %s101, %s104
      %p110 = scmp.eq.s32.totalorder %s91, 0
      %p111 = por %p109, %p110
      %p112 = scmp.ne.s32.totalorder %s101, %s104
      %p113 = scmp.eq.s32.totalorder %s96, 1
      %p114 = por %p112, %p113
      %p115 = scmp.ne.s32.totalorder %s104, %s105
      %p116 = scmp.eq.s32.totalorder %s96, 0
      %p117 = por %p115, %p116
      %p118 = scmp.ne.s32.totalorder %s104, %s105
      %p119 = scmp.eq.s32.totalorder %s97, 1
      %p120 = por %p118, %p119
      %p122 = scmp.ne.s32.totalorder %s105, %s121
      %p123 = scmp.eq.s32.totalorder %s97, 0
      %p124 = por %p122, %p123
      %s126 = sadd.s32 %s125, 1
      %p129 = scmp.eq.s32.totalorder %s91, 1
      %p130 = scmp.ne.s32.totalorder %s125, %s127
      %p131 = scmp.eq.s32.totalorder %s91, 0
      %p132 = por %p130, %p131
      %p133 = scmp.ne.s32.totalorder %s125, %s127
      %p134 = scmp.eq.s32.totalorder %s96, 1
      %p135 = por %p133, %p134
      %p136 = scmp.ne.s32.totalorder %s127, %s128
      %p137 = scmp.eq.s32.totalorder %s96, 0
      %p138 = por %p136, %p137
      %p139 = scmp.ne.s32.totalorder %s127, %s128
      %p140 = scmp.eq.s32.totalorder %s97, 1
      %p141 = por %p139, %p140
      %p143 = scmp.ne.s32.totalorder %s128, %s142
      %p144 = scmp.eq.s32.totalorder %s97, 0
      %p145 = por %p143, %p144
      %s147 = sadd.s32 %s146, 1
      %p150 = scmp.eq.s32.totalorder %s91, 1
      %p151 = scmp.ne.s32.totalorder %s146, %s148
      %p152 = scmp.eq.s32.totalorder %s91, 0
      %p153 = por %p151, %p152
      %p154 = scmp.ne.s32.totalorder %s146, %s148
      %p155 = scmp.eq.s32.totalorder %s96, 1
      %p156 = por %p154, %p155
      %p157 = scmp.ne.s32.totalorder %s148, %s149
      %p158 = scmp.eq.s32.totalorder %s96, 0
      %p159 = por %p157, %p158
      %p160 = scmp.ne.s32.totalorder %s148, %s149
      %p161 = scmp.eq.s32.totalorder %s97, 1
      %p162 = por %p160, %p161
      %p164 = scmp.ne.s32.totalorder %s149, %s163
      %p165 = scmp.eq.s32.totalorder %s97, 0
      %p166 = por %p164, %p165
      %s168 = sadd.s32 %s167, 1
      %p171 = scmp.eq.s32.totalorder %s91, 1
      %p172 = scmp.ne.s32.totalorder %s167, %s169
      %p173 = scmp.eq.s32.totalorder %s91, 0
      %p174 = por %p172, %p173
      %p175 = scmp.ne.s32.totalorder %s167, %s169
      %p176 = scmp.eq.s32.totalorder %s96, 1
      %p177 = por %p175, %p176
      %p178 = scmp.ne.s32.totalorder %s169, %s170
      %p179 = scmp.eq.s32.totalorder %s96, 0
      %p180 = por %p178, %p179
      %p181 = scmp.ne.s32.totalorder %s169, %s170
      %p182 = scmp.eq.s32.totalorder %s97, 1
      %p183 = por %p181, %p182
      %p185 = scmp.ne.s32.totalorder %s170, %s184
      %p186 = scmp.eq.s32.totalorder %s97, 0
      %p187 = por %p185, %p186
      %s189 = sadd.s32 %s188, 1
      %p192 = scmp.eq.s32.totalorder %s91, 1
      %p193 = scmp.ne.s32.totalorder %s188, %s190
      %p194 = scmp.eq.s32.totalorder %s91, 0
      %p195 = por %p193, %p194
      %p196 = scmp.ne.s32.totalorder %s188, %s190
      %p197 = scmp.eq.s32.totalorder %s96, 1
      %p198 = por %p196, %p197
      %p199 = scmp.ne.s32.totalorder %s190, %s191
      %p200 = scmp.eq.s32.totalorder %s96, 0
      %p201 = por %p199, %p200
      %p202 = scmp.ne.s32.totalorder %s190, %s191
      %p203 = scmp.eq.s32.totalorder %s97, 1
      %p204 = por %p202, %p203
      %p206 = scmp.ne.s32.totalorder %s191, %s205
      %p207 = scmp.eq.s32.totalorder %s97, 0
      %p208 = por %p206, %p207
      %s210 = sadd.s32 %s209, 1
      %p213 = scmp.eq.s32.totalorder %s91, 1
      %p214 = scmp.ne.s32.totalorder %s209, %s211
      %p215 = scmp.eq.s32.totalorder %s91, 0
      %p216 = por %p214, %p215
      %p217 = scmp.ne.s32.totalorder %s209, %s211
      %p218 = scmp.eq.s32.totalorder %s96, 1
      %p219 = por %p217, %p218
      %p220 = scmp.ne.s32.totalorder %s211, %s212
      %p221 = scmp.eq.s32.totalorder %s96, 0
      %p222 = por %p220, %p221
      %p223 = scmp.ne.s32.totalorder %s211, %s212
      %p224 = scmp.eq.s32.totalorder %s97, 1
      %p225 = por %p223, %p224
      %p227 = scmp.ne.s32.totalorder %s212, %s226
      %p228 = scmp.eq.s32.totalorder %s97, 0
      %p229 = por %p227, %p228
      %s231 = sadd.s32 %s230, 1
      %p234 = scmp.eq.s32.totalorder %s91, 1
      %p235 = scmp.ne.s32.totalorder %s230, %s232
      %p236 = scmp.eq.s32.totalorder %s91, 0
      %p237 = por %p235, %p236
      %p238 = scmp.ne.s32.totalorder %s230, %s232
      %p239 = scmp.eq.s32.totalorder %s96, 1
      %p240 = por %p238, %p239
      %p241 = scmp.ne.s32.totalorder %s232, %s233
      %p242 = scmp.eq.s32.totalorder %s96, 0
      %p243 = por %p241, %p242
      %p244 = scmp.ne.s32.totalorder %s232, %s233
      %p245 = scmp.eq.s32.totalorder %s97, 1
      %p246 = por %p244, %p245
      %p248 = scmp.ne.s32.totalorder %s233, %s247
      %p249 = scmp.eq.s32.totalorder %s97, 0
      %p250 = por %p248, %p249
      %s252 = sadd.s32 %s251, 1
      %p255 = scmp.eq.s32.totalorder %s91, 1
      %p256 = scmp.ne.s32.totalorder %s251, %s253
      %p257 = scmp.eq.s32.totalorder %s91, 0
      %p258 = por %p256, %p257
      %p259 = scmp.ne.s32.totalorder %s251, %s253
      %p260 = scmp.eq.s32.totalorder %s96, 1
      %p261 = por %p259, %p260
      %p262 = scmp.ne.s32.totalorder %s253, %s254
      %p263 = scmp.eq.s32.totalorder %s96, 0
      %p264 = por %p262, %p263
      %p265 = scmp.ne.s32.totalorder %s253, %s254
      %p266 = scmp.eq.s32.totalorder %s97, 1
      %p267 = por %p265, %p266
      %p269 = scmp.ne.s32.totalorder %s254, %s268
      %p270 = scmp.eq.s32.totalorder %s97, 0
      %p271 = por %p269, %p270
      %s273 = sadd.s32 %s272, 1
      %p276 = scmp.eq.s32.totalorder %s91, 1
      %p277 = scmp.ne.s32.totalorder %s272, %s274
      %p278 = scmp.eq.s32.totalorder %s91, 0
      %p279 = por %p277, %p278
      %p280 = scmp.ne.s32.totalorder %s272, %s274
      %p281 = scmp.eq.s32.totalorder %s96, 1
      %p282 = por %p280, %p281
      %p283 = scmp.ne.s32.totalorder %s274, %s275
      %p284 = scmp.eq.s32.totalorder %s96, 0
      %p285 = por %p283, %p284
      %p286 = scmp.ne.s32.totalorder %s274, %s275
      %p287 = scmp.eq.s32.totalorder %s97, 1
      %p288 = por %p286, %p287
      %p290 = scmp.ne.s32.totalorder %s275, %s289
      %p291 = scmp.eq.s32.totalorder %s97, 0
      %p292 = por %p290, %p291
      %s294 = sadd.s32 %s293, 1
      %p297 = scmp.eq.s32.totalorder %s91, 1
      %p298 = scmp.ne.s32.totalorder %s293, %s295
      %p299 = scmp.eq.s32.totalorder %s91, 0
      %p300 = por %p298, %p299
      %p301 = scmp.ne.s32.totalorder %s293, %s295
      %p302 = scmp.eq.s32.totalorder %s96, 1
      %p303 = por %p301, %p302
      %p304 = scmp.ne.s32.totalorder %s295, %s296
      %p305 = scmp.eq.s32.totalorder %s96, 0
      %p306 = por %p304, %p305
      %p307 = scmp.ne.s32.totalorder %s295, %s296
      %p308 = scmp.eq.s32.totalorder %s97, 1
      %p309 = por %p307, %p308
      %p311 = scmp.ne.s32.totalorder %s296, %s310
      %p312 = scmp.eq.s32.totalorder %s97, 0
      %p313 = por %p311, %p312
      %s315 = sadd.s32 %s314, 1
      %p318 = scmp.eq.s32.totalorder %s91, 1
      %p319 = scmp.ne.s32.totalorder %s314, %s316
      %p320 = scmp.eq.s32.totalorder %s91, 0
      %p321 = por %p319, %p320
      %p322 = scmp.ne.s32.totalorder %s314, %s316
      %p323 = scmp.eq.s32.totalorder %s96, 1
      %p324 = por %p322, %p323
      %p325 = scmp.ne.s32.totalorder %s316, %s317
      %p326 = scmp.eq.s32.totalorder %s96, 0
      %p327 = por %p325, %p326
      %p328 = scmp.ne.s32.totalorder %s316, %s317
      %p329 = scmp.eq.s32.totalorder %s97, 1
      %p330 = por %p328, %p329
      %p332 = scmp.ne.s32.totalorder %s317, %s331
      %p333 = scmp.eq.s32.totalorder %s97, 0
      %p334 = por %p332, %p333
      %s336 = sadd.s32 %s335, 1
      %p339 = scmp.eq.s32.totalorder %s91, 1
      %p340 = scmp.ne.s32.totalorder %s335, %s337
      %p341 = scmp.eq.s32.totalorder %s91, 0
      %p342 = por %p340, %p341
      %p343 = scmp.ne.s32.totalorder %s335, %s337
      %p344 = scmp.eq.s32.totalorder %s96, 1
      %p345 = por %p343, %p344
      %p346 = scmp.ne.s32.totalorder %s337, %s338
      %p347 = scmp.eq.s32.totalorder %s96, 0
      %p348 = por %p346, %p347
      %p349 = scmp.ne.s32.totalorder %s337, %s338
      %p350 = scmp.eq.s32.totalorder %s97, 1
      %p351 = por %p349, %p350
      %p353 = scmp.ne.s32.totalorder %s338, %s352
      %p354 = scmp.eq.s32.totalorder %s97, 0
      %p355 = por %p353, %p354
      %s357 = sadd.s32 %s356, 1
      %p360 = scmp.eq.s32.totalorder %s91, 1
      %p361 = scmp.ne.s32.totalorder %s356, %s358
      %p362 = scmp.eq.s32.totalorder %s91, 0
      %p363 = por %p361, %p362
      %p364 = scmp.ne.s32.totalorder %s356, %s358
      %p365 = scmp.eq.s32.totalorder %s96, 1
      %p366 = por %p364, %p365
      %p367 = scmp.ne.s32.totalorder %s358, %s359
      %p368 = scmp.eq.s32.totalorder %s96, 0
      %p369 = por %p367, %p368
      %p370 = scmp.ne.s32.totalorder %s358, %s359
      %p371 = scmp.eq.s32.totalorder %s97, 1
      %p372 = por %p370, %p371
      %p374 = scmp.ne.s32.totalorder %s359, %s373
      %p375 = scmp.eq.s32.totalorder %s97, 0
      %p376 = por %p374, %p375
      %s378 = sadd.s32 %s377, 1
      %p381 = scmp.eq.s32.totalorder %s91, 1
      %p382 = scmp.ne.s32.totalorder %s377, %s379
      %p383 = scmp.eq.s32.totalorder %s91, 0
      %p384 = por %p382, %p383
      %p385 = scmp.ne.s32.totalorder %s377, %s379
      %p386 = scmp.eq.s32.totalorder %s96, 1
      %p387 = por %p385, %p386
      %p388 = scmp.ne.s32.totalorder %s379, %s380
      %p389 = scmp.eq.s32.totalorder %s96, 0
      %p390 = por %p388, %p389
      %p391 = scmp.ne.s32.totalorder %s379, %s380
      %p392 = scmp.eq.s32.totalorder %s97, 1
      %p393 = por %p391, %p392
      %p395 = scmp.ne.s32.totalorder %s380, %s394
      %p396 = scmp.eq.s32.totalorder %s97, 0
      %p397 = por %p395, %p396
      %s399 = sadd.s32 %s398, 1
      %p402 = scmp.eq.s32.totalorder %s91, 1
      %p403 = scmp.ne.s32.totalorder %s398, %s400
      %p404 = scmp.eq.s32.totalorder %s91, 0
      %p405 = por %p403, %p404
      %p406 = scmp.ne.s32.totalorder %s398, %s400
      %p407 = scmp.eq.s32.totalorder %s96, 1
      %p408 = por %p406, %p407
      %p409 = scmp.ne.s32.totalorder %s400, %s401
      %p410 = scmp.eq.s32.totalorder %s96, 0
      %p411 = por %p409, %p410
      %p412 = scmp.ne.s32.totalorder %s400, %s401
      %p413 = scmp.eq.s32.totalorder %s97, 1
      %p414 = por %p412, %p413
      %p416 = scmp.ne.s32.totalorder %s401, %s415
      %p417 = scmp.eq.s32.totalorder %s97, 0
      %p418 = por %p416, %p417
      %s420 = sadd.s32 %s419, 1
      %p423 = scmp.eq.s32.totalorder %s91, 1
      %p424 = scmp.ne.s32.totalorder %s419, %s421
      %p425 = scmp.eq.s32.totalorder %s91, 0
      %p426 = por %p424, %p425
      %p427 = scmp.ne.s32.totalorder %s419, %s421
      %p428 = scmp.eq.s32.totalorder %s96, 1
      %p429 = por %p427, %p428
      %p430 = scmp.ne.s32.totalorder %s421, %s422
      %p431 = scmp.eq.s32.totalorder %s96, 0
      %p432 = por %p430, %p431
      %p433 = scmp.ne.s32.totalorder %s421, %s422
      %p434 = scmp.eq.s32.totalorder %s97, 1
      %p435 = por %p433, %p434
      %p437 = scmp.ne.s32.totalorder %s422, %s436
      %p438 = scmp.eq.s32.totalorder %s97, 0
      %p439 = por %p437, %p438
      %s441 = sadd.s32 %s440, 1
      %p444 = scmp.eq.s32.totalorder %s91, 1
      %p445 = scmp.ne.s32.totalorder %s440, %s442
      %p446 = scmp.eq.s32.totalorder %s91, 0
      %p447 = por %p445, %p446
      %p448 = scmp.ne.s32.totalorder %s440, %s442
      %p449 = scmp.eq.s32.totalorder %s96, 1
      %p450 = por %p448, %p449
      %p451 = scmp.ne.s32.totalorder %s442, %s443
      %p452 = scmp.eq.s32.totalorder %s96, 0
      %p453 = por %p451, %p452
      %p454 = scmp.ne.s32.totalorder %s442, %s443
      %p455 = scmp.eq.s32.totalorder %s97, 1
      %p456 = por %p454, %p455
      %p458 = scmp.ne.s32.totalorder %s443, %s457
      %p459 = scmp.eq.s32.totalorder %s97, 0
      %p460 = por %p458, %p459
      %s462 = sadd.s32 %s461, 1
      %p465 = scmp.eq.s32.totalorder %s91, 1
      %p466 = scmp.ne.s32.totalorder %s461, %s463
      %p467 = scmp.eq.s32.totalorder %s91, 0
      %p468 = por %p466, %p467
      %p469 = scmp.ne.s32.totalorder %s461, %s463
      %p470 = scmp.eq.s32.totalorder %s96, 1
      %p471 = por %p469, %p470
      %p472 = scmp.ne.s32.totalorder %s463, %s464
      %p473 = scmp.eq.s32.totalorder %s96, 0
      %p474 = por %p472, %p473
      %p475 = scmp.ne.s32.totalorder %s463, %s464
      %p476 = scmp.eq.s32.totalorder %s97, 1
      %p477 = por %p475, %p476
      %p479 = scmp.ne.s32.totalorder %s464, %s478
      %p480 = scmp.eq.s32.totalorder %s97, 0
      %p481 = por %p479, %p480
      %s483 = sadd.s32 %s482, 1
      %p486 = scmp.eq.s32.totalorder %s91, 1
      %p487 = scmp.ne.s32.totalorder %s482, %s484
      %p488 = scmp.eq.s32.totalorder %s91, 0
      %p489 = por %p487, %p488
      %p490 = scmp.ne.s32.totalorder %s482, %s484
      %p491 = scmp.eq.s32.totalorder %s96, 1
      %p492 = por %p490, %p491
      %p493 = scmp.ne.s32.totalorder %s484, %s485
      %p494 = scmp.eq.s32.totalorder %s96, 0
      %p495 = por %p493, %p494
      %p496 = scmp.ne.s32.totalorder %s484, %s485
      %p497 = scmp.eq.s32.totalorder %s97, 1
      %p498 = por %p496, %p497
      %p500 = scmp.ne.s32.totalorder %s485, %s499
      %p501 = scmp.eq.s32.totalorder %s97, 0
      %p502 = por %p500, %p501
      %s504 = sadd.s32 %s503, 1
      %p507 = scmp.eq.s32.totalorder %s91, 1
      %p508 = scmp.ne.s32.totalorder %s503, %s505
      %p509 = scmp.eq.s32.totalorder %s91, 0
      %p510 = por %p508, %p509
      %p511 = scmp.ne.s32.totalorder %s503, %s505
      %p512 = scmp.eq.s32.totalorder %s96, 1
      %p513 = por %p511, %p512
      %p514 = scmp.ne.s32.totalorder %s505, %s506
      %p515 = scmp.eq.s32.totalorder %s96, 0
      %p516 = por %p514, %p515
      %p517 = scmp.ne.s32.totalorder %s505, %s506
      %p518 = scmp.eq.s32.totalorder %s97, 1
      %p519 = por %p517, %p518
      %p521 = scmp.ne.s32.totalorder %s506, %s520
      %p522 = scmp.eq.s32.totalorder %s97, 0
      %p523 = por %p521, %p522
      %s525 = sadd.s32 %s524, 1
      %p528 = scmp.eq.s32.totalorder %s91, 1
      %p529 = scmp.ne.s32.totalorder %s524, %s526
      %p530 = scmp.eq.s32.totalorder %s91, 0
      %p531 = por %p529, %p530
      %p532 = scmp.ne.s32.totalorder %s524, %s526
      %p533 = scmp.eq.s32.totalorder %s96, 1
      %p534 = por %p532, %p533
      %p535 = scmp.ne.s32.totalorder %s526, %s527
      %p536 = scmp.eq.s32.totalorder %s96, 0
      %p537 = por %p535, %p536
      %p538 = scmp.ne.s32.totalorder %s526, %s527
      %p539 = scmp.eq.s32.totalorder %s97, 1
      %p540 = por %p538, %p539
      %p542 = scmp.ne.s32.totalorder %s527, %s541
      %p543 = scmp.eq.s32.totalorder %s97, 0
      %p544 = por %p542, %p543
      %s546 = sadd.s32 %s545, 1
      %p549 = scmp.eq.s32.totalorder %s91, 1
      %p550 = scmp.ne.s32.totalorder %s545, %s547
      %p551 = scmp.eq.s32.totalorder %s91, 0
      %p552 = por %p550, %p551
      %p553 = scmp.ne.s32.totalorder %s545, %s547
      %p554 = scmp.eq.s32.totalorder %s96, 1
      %p555 = por %p553, %p554
      %p556 = scmp.ne.s32.totalorder %s547, %s548
      %p557 = scmp.eq.s32.totalorder %s96, 0
      %p558 = por %p556, %p557
      %p559 = scmp.ne.s32.totalorder %s547, %s548
      %p560 = scmp.eq.s32.totalorder %s97, 1
      %p561 = por %p559, %p560
      %p563 = scmp.ne.s32.totalorder %s548, %s562
      %p564 = scmp.eq.s32.totalorder %s97, 0
      %p565 = por %p563, %p564
      %s567 = sadd.s32 %s566, 1
      %p570 = scmp.eq.s32.totalorder %s91, 1
      %p571 = scmp.ne.s32.totalorder %s566, %s568
      %p572 = scmp.eq.s32.totalorder %s91, 0
      %p573 = por %p571, %p572
      %p574 = scmp.ne.s32.totalorder %s566, %s568
      %p575 = scmp.eq.s32.totalorder %s96, 1
      %p576 = por %p574, %p575
      %p577 = scmp.ne.s32.totalorder %s568, %s569
      %p578 = scmp.eq.s32.totalorder %s96, 0
      %p579 = por %p577, %p578
      %p580 = scmp.ne.s32.totalorder %s568, %s569
      %p581 = scmp.eq.s32.totalorder %s97, 1
      %p582 = por %p580, %p581
      %p584 = scmp.ne.s32.totalorder %s569, %s583
      %p585 = scmp.eq.s32.totalorder %s97, 0
      %p586 = por %p584, %p585
      %s588 = sadd.s32 %s587, 1
      %p591 = scmp.eq.s32.totalorder %s91, 1
      %p592 = scmp.ne.s32.totalorder %s587, %s589
      %p593 = scmp.eq.s32.totalorder %s91, 0
      %p594 = por %p592, %p593
      %p595 = scmp.ne.s32.totalorder %s587, %s589
      %p596 = scmp.eq.s32.totalorder %s96, 1
      %p597 = por %p595, %p596
      %p598 = scmp.ne.s32.totalorder %s589, %s590
      %p599 = scmp.eq.s32.totalorder %s96, 0
      %p600 = por %p598, %p599
      %p601 = scmp.ne.s32.totalorder %s589, %s590
      %p602 = scmp.eq.s32.totalorder %s97, 1
      %p603 = por %p601, %p602
      %p605 = scmp.ne.s32.totalorder %s590, %s604
      %p606 = scmp.eq.s32.totalorder %s97, 0
      %p607 = por %p605, %p606
      %s609 = sadd.s32 %s608, 1
      %p612 = scmp.eq.s32.totalorder %s91, 1
      %p613 = scmp.ne.s32.totalorder %s608, %s610
      %p614 = scmp.eq.s32.totalorder %s91, 0
      %p615 = por %p613, %p614
      %p616 = scmp.ne.s32.totalorder %s608, %s610
      %p617 = scmp.eq.s32.totalorder %s96, 1
      %p618 = por %p616, %p617
      %p619 = scmp.ne.s32.totalorder %s610, %s611
      %p620 = scmp.eq.s32.totalorder %s96, 0
      %p621 = por %p619, %p620
      %p622 = scmp.ne.s32.totalorder %s610, %s611
      %p623 = scmp.eq.s32.totalorder %s97, 1
      %p624 = por %p622, %p623
      %p626 = scmp.ne.s32.totalorder %s611, %s625
      %p627 = scmp.eq.s32.totalorder %s97, 0
      %p628 = por %p626, %p627
      %s630 = sadd.s32 %s629, 1
      %p633 = scmp.eq.s32.totalorder %s91, 1
      %p634 = scmp.ne.s32.totalorder %s629, %s631
      %p635 = scmp.eq.s32.totalorder %s91, 0
      %p636 = por %p634, %p635
      %p637 = scmp.ne.s32.totalorder %s629, %s631
      %p638 = scmp.eq.s32.totalorder %s96, 1
      %p639 = por %p637, %p638
      %p640 = scmp.ne.s32.totalorder %s631, %s632
      %p641 = scmp.eq.s32.totalorder %s96, 0
      %p642 = por %p640, %p641
      %p643 = scmp.ne.s32.totalorder %s631, %s632
      %p644 = scmp.eq.s32.totalorder %s97, 1
      %p645 = por %p643, %p644
      %p647 = scmp.ne.s32.totalorder %s632, %s646
      %p648 = scmp.eq.s32.totalorder %s97, 0
      %p649 = por %p647, %p648
      %s651 = sadd.s32 %s650, 1
      %p654 = scmp.eq.s32.totalorder %s91, 1
      %p655 = scmp.ne.s32.totalorder %s650, %s652
      %p656 = scmp.eq.s32.totalorder %s91, 0
      %p657 = por %p655, %p656
      %p658 = scmp.ne.s32.totalorder %s650, %s652
      %p659 = scmp.eq.s32.totalorder %s96, 1
      %p660 = por %p658, %p659
      %p661 = scmp.ne.s32.totalorder %s652, %s653
      %p662 = scmp.eq.s32.totalorder %s96, 0
      %p663 = por %p661, %p662
      %p664 = scmp.ne.s32.totalorder %s652, %s653
      %p665 = scmp.eq.s32.totalorder %s97, 1
      %p666 = por %p664, %p665
      %p668 = scmp.ne.s32.totalorder %s653, %s667
      %p669 = scmp.eq.s32.totalorder %s97, 0
      %p670 = por %p668, %p669
      %s672 = sadd.s32 %s671, 1
      %p675 = scmp.eq.s32.totalorder %s91, 1
      %p676 = scmp.ne.s32.totalorder %s671, %s673
      %p677 = scmp.eq.s32.totalorder %s91, 0
      %p678 = por %p676, %p677
      %p679 = scmp.ne.s32.totalorder %s671, %s673
      %p680 = scmp.eq.s32.totalorder %s96, 1
      %p681 = por %p679, %p680
      %p682 = scmp.ne.s32.totalorder %s673, %s674
      %p683 = scmp.eq.s32.totalorder %s96, 0
      %p684 = por %p682, %p683
      %p685 = scmp.ne.s32.totalorder %s673, %s674
      %p686 = scmp.eq.s32.totalorder %s97, 1
      %p687 = por %p685, %p686
      %p689 = scmp.ne.s32.totalorder %s674, %s688
      %p690 = scmp.eq.s32.totalorder %s97, 0
      %p691 = por %p689, %p690
      %s693 = sadd.s32 %s692, 1
      %p696 = scmp.eq.s32.totalorder %s91, 1
      %p697 = scmp.ne.s32.totalorder %s692, %s694
      %p698 = scmp.eq.s32.totalorder %s91, 0
      %p699 = por %p697, %p698
      %p700 = scmp.ne.s32.totalorder %s692, %s694
      %p701 = scmp.eq.s32.totalorder %s96, 1
      %p702 = por %p700, %p701
      %p703 = scmp.ne.s32.totalorder %s694, %s695
      %p704 = scmp.eq.s32.totalorder %s96, 0
      %p705 = por %p703, %p704
      %p706 = scmp.ne.s32.totalorder %s694, %s695
      %p707 = scmp.eq.s32.totalorder %s97, 1
      %p708 = por %p706, %p707
      %p710 = scmp.ne.s32.totalorder %s695, %s709
      %p711 = scmp.eq.s32.totalorder %s97, 0
      %p712 = por %p710, %p711
      %s713 = ssub.s32 %s91, %s98
      %p714 = scmp.eq.s32.totalorder %s713, 0
      %s716 = sadd.s32 %s715, 1
      %s717 = scalar_select %p714, %s715, %s716
      %p720 = pneg %p714
      %p721 = scmp.eq.s32.totalorder %s91, 1
      %p722 = por %p720, %p721
      %p723 = scmp.ne.s32.totalorder %s715, %s718
      %p724 = scmp.eq.s32.totalorder %s91, 0
      %p725 = por %p723, %p724
      %p726 = scmp.ne.s32.totalorder %s715, %s718
      %p727 = scmp.eq.s32.totalorder %s96, 1
      %p728 = por %p726, %p727
      %p729 = scmp.ne.s32.totalorder %s718, %s719
      %p730 = scmp.eq.s32.totalorder %s96, 0
      %p731 = por %p729, %p730
      %p732 = scmp.ne.s32.totalorder %s718, %s719
      %p733 = scmp.eq.s32.totalorder %s97, 1
      %p734 = por %p732, %p733
      %p736 = scmp.ne.s32.totalorder %s719, %s735
      %p737 = scmp.eq.s32.totalorder %s97, 0
      %p738 = por %p736, %p737
      %s739 = ssub.s32 %s91, %s98
      %p740 = scmp.eq.s32.totalorder %s739, 0
      %s742 = sadd.s32 %s741, 1
      %s743 = scalar_select %p740, %s741, %s742
      %p746 = pneg %p740
      %p747 = scmp.eq.s32.totalorder %s91, 1
      %p748 = por %p746, %p747
      %p749 = scmp.ne.s32.totalorder %s741, %s744
      %p750 = scmp.eq.s32.totalorder %s91, 0
      %p751 = por %p749, %p750
      %p752 = scmp.ne.s32.totalorder %s741, %s744
      %p753 = scmp.eq.s32.totalorder %s96, 1
      %p754 = por %p752, %p753
      %p755 = scmp.ne.s32.totalorder %s744, %s745
      %p756 = scmp.eq.s32.totalorder %s96, 0
      %p757 = por %p755, %p756
      %p758 = scmp.ne.s32.totalorder %s744, %s745
      %p759 = scmp.eq.s32.totalorder %s97, 1
      %p760 = por %p758, %p759
      %p762 = scmp.ne.s32.totalorder %s745, %s761
      %p763 = scmp.eq.s32.totalorder %s97, 0
      %p764 = por %p762, %p763
      %s765 = ssub.s32 %s91, %s98
      %p766 = scmp.eq.s32.totalorder %s765, 0
      %s768 = sadd.s32 %s767, 1
      %s769 = scalar_select %p766, %s767, %s768
      %p772 = pneg %p766
      %p773 = scmp.eq.s32.totalorder %s91, 1
      %p774 = por %p772, %p773
      %p775 = scmp.ne.s32.totalorder %s767, %s770
      %p776 = scmp.eq.s32.totalorder %s91, 0
      %p777 = por %p775, %p776
      %p778 = scmp.ne.s32.totalorder %s767, %s770
      %p779 = scmp.eq.s32.totalorder %s96, 1
      %p780 = por %p778, %p779
      %p781 = scmp.ne.s32.totalorder %s770, %s771
      %p782 = scmp.eq.s32.totalorder %s96, 0
      %p783 = por %p781, %p782
      %p784 = scmp.ne.s32.totalorder %s770, %s771
      %p785 = scmp.eq.s32.totalorder %s97, 1
      %p786 = por %p784, %p785
      %p788 = scmp.ne.s32.totalorder %s771, %s787
      %p789 = scmp.eq.s32.totalorder %s97, 0
      %p790 = por %p788, %p789
      %p791 = scmp.le.s32.totalorder 1, %s91
      %p792 = scmp.lt.s32.totalorder %s91, 3
      %p793 = pnand %p791, %p792
      %p794 = pneg %p793
      // Predicated region
      $region9: #{tpu_custom_call.1} parent=5 // pred_check
        _
      $region10: #{tpu_custom_call.1} parent=5 // pred_check_branch
        %796 = sbr.rel (%p793) target = $region12
      $region11: #{tpu_custom_call.1} parent=5 // pred_region
        %s797 = ssub.s32 %s91, 1
        // Predicated region
        $region13: #{tpu_custom_call.1} parent=11 // pred_check
          %p798 = pneg %p138
        $region14: #{tpu_custom_call.1} parent=11 // pred_check_branch
          %800 = sbr.rel (%p798) target = $region16
        $region15: #{tpu_custom_call.1} parent=11 // pred_region
          %s802 = ssub.s32 384, 384
          %803 = vsyncadd [#allocation6], %s802
          %s804 = sshll.u32 [#allocation5], 4
          %s805 = int_to_ptr.vmem [resolvable:$true] %s804
          %810 = dma.hbm_to_vmem [thread:$0]  %s3, 384, %s805, [#allocation6], 128, 128, 8
        $region16: #{tpu_custom_call.1} parent=11 // pred_fallthru
          _
        // Predicated region
        $region17: #{tpu_custom_call.1} parent=11 // pred_check
          %p811 = pneg %p159
        $region18: #{tpu_custom_call.1} parent=11 // pred_check_branch
          %813 = sbr.rel (%p811) target = $region20
        $region19: #{tpu_custom_call.1} parent=11 // pred_region
          %s815 = ssub.s32 32, 32
          %816 = vsyncadd [#allocation6], %s815
          %s818 = sshll.u32 [#allocation7], 4
          %s819 = int_to_ptr.vmem [resolvable:$true] %s818
          %821 = dma.hbm_to_vmem [thread:$0]  %s5, 32, %s819, [#allocation6]
        $region20: #{tpu_custom_call.1} parent=11 // pred_fallthru
          _
        // Predicated region
        $region21: #{tpu_custom_call.1} parent=11 // pred_check
          %p822 = pneg %p180
        $region22: #{tpu_custom_call.1} parent=11 // pred_check_branch
          %824 = sbr.rel (%p822) target = $region24
        $region23: #{tpu_custom_call.1} parent=11 // pred_region
          _
        $region24: #{tpu_custom_call.1} parent=11 // pred_fallthru
          _
        // Predicated region
        $region25: #{tpu_custom_call.1} parent=11 // pred_check
          %p825 = pneg %p201
        $region26: #{tpu_custom_call.1} parent=11 // pred_check_branch
          %827 = sbr.rel (%p825) target = $region28
        $region27: #{tpu_custom_call.1} parent=11 // pred_region
          %s829 = ssub.s32 3072, 3072
          %830 = vsyncadd [#allocation9], %s829
          %s831 = sshll.u32 [#allocation8], 4
          %s832 = int_to_ptr.vmem [resolvable:$true] %s831
          %837 = dma.hbm_to_vmem [thread:$0]  %s9, 3072, %s832, [#allocation9], 192, 192, 12
        $region28: #{tpu_custom_call.1} parent=11 // pred_fallthru
          _
        // Predicated region
        $region29: #{tpu_custom_call.1} parent=11 // pred_check
          %p838 = pneg %p222
        $region30: #{tpu_custom_call.1} parent=11 // pred_check_branch
          %840 = sbr.rel (%p838) target = $region32
        $region31: #{tpu_custom_call.1} parent=11 // pred_region
          %s842 = ssub.s32 1024, 1024
          %843 = vsyncadd [#allocation9], %s842
          %s844 = sshll.u32 [#allocation10], 4
          %s845 = int_to_ptr.vmem [resolvable:$true] %s844
          %850 = dma.hbm_to_vmem [thread:$0]  %s11, 1024, %s845, [#allocation9], 64, 64, 4
        $region32: #{tpu_custom_call.1} parent=11 // pred_fallthru
          _
        // Predicated region
        $region33: #{tpu_custom_call.1} parent=11 // pred_check
          %p851 = pneg %p243
        $region34: #{tpu_custom_call.1} parent=11 // pred_check_branch
          %853 = sbr.rel (%p851) target = $region36
        $region35: #{tpu_custom_call.1} parent=11 // pred_region
          %s855 = ssub.s32 2048, 2048
          %856 = vsyncadd [#allocation12], %s855
          %s857 = sshll.u32 [#allocation11], 4
          %s858 = int_to_ptr.vmem [resolvable:$true] %s857
          %863 = dma.hbm_to_vmem [thread:$0]  %s13, 2048, %s858, [#allocation12], 128, 128, 8
        $region36: #{tpu_custom_call.1} parent=11 // pred_fallthru
          _
        // Predicated region
        $region37: #{tpu_custom_call.1} parent=11 // pred_check
          %p864 = pneg %p264
        $region38: #{tpu_custom_call.1} parent=11 // pred_check_branch
          %866 = sbr.rel (%p864) target = $region40
        $region39: #{tpu_custom_call.1} parent=11 // pred_region
          %s868 = ssub.s32 32, 32
          %869 = vsyncadd [#allocation12], %s868
          %s871 = sshll.u32 [#allocation13], 4
          %s872 = int_to_ptr.vmem [resolvable:$true] %s871
          %874 = dma.hbm_to_vmem [thread:$0]  %s15, 32, %s872, [#allocation12]
        $region40: #{tpu_custom_call.1} parent=11 // pred_fallthru
          _
        // Predicated region
        $region41: #{tpu_custom_call.1} parent=11 // pred_check
          %p875 = pneg %p285
        $region42: #{tpu_custom_call.1} parent=11 // pred_check_branch
          %877 = sbr.rel (%p875) target = $region44
        $region43: #{tpu_custom_call.1} parent=11 // pred_region
          %s879 = ssub.s32 2048, 2048
          %880 = vsyncadd [#allocation15], %s879
          %s881 = sshll.u32 [#allocation14], 4
          %s882 = int_to_ptr.vmem [resolvable:$true] %s881
          %887 = dma.hbm_to_vmem [thread:$0]  %s17, 2048, %s882, [#allocation15], 64, 64, 4
        $region44: #{tpu_custom_call.1} parent=11 // pred_fallthru
          _
        // Predicated region
        $region45: #{tpu_custom_call.1} parent=11 // pred_check
          %p888 = pneg %p306
        $region46: #{tpu_custom_call.1} parent=11 // pred_check_branch
          %890 = sbr.rel (%p888) target = $region48
        $region47: #{tpu_custom_call.1} parent=11 // pred_region
          %s892 = ssub.s32 256, 256
          %893 = vsyncadd [#allocation15], %s892
          %s894 = sshll.u32 [#allocation16], 4
          %s895 = int_to_ptr.vmem [resolvable:$true] %s894
          %900 = dma.hbm_to_vmem [thread:$0]  %s19, 256, %s895, [#allocation15], 128, 128, 8
        $region48: #{tpu_custom_call.1} parent=11 // pred_fallthru
          _
        // Predicated region
        $region49: #{tpu_custom_call.1} parent=11 // pred_check
          %p901 = pneg %p327
        $region50: #{tpu_custom_call.1} parent=11 // pred_check_branch
          %903 = sbr.rel (%p901) target = $region52
        $region51: #{tpu_custom_call.1} parent=11 // pred_region
          %s905 = ssub.s32 3072, 3072
          %906 = vsyncadd [#allocation18], %s905
          %s907 = sshll.u32 [#allocation17], 4
          %s908 = int_to_ptr.vmem [resolvable:$true] %s907
          %913 = dma.hbm_to_vmem [thread:$0]  %s21, 3072, %s908, [#allocation18], 192, 192, 12
        $region52: #{tpu_custom_call.1} parent=11 // pred_fallthru
          _
        // Predicated region
        $region53: #{tpu_custom_call.1} parent=11 // pred_check
          %p914 = pneg %p348
        $region54: #{tpu_custom_call.1} parent=11 // pred_check_branch
          %916 = sbr.rel (%p914) target = $region56
        $region55: #{tpu_custom_call.1} parent=11 // pred_region
          %s918 = ssub.s32 1024, 1024
          %919 = vsyncadd [#allocation18], %s918
          %s920 = sshll.u32 [#allocation19], 4
          %s921 = int_to_ptr.vmem [resolvable:$true] %s920
          %926 = dma.hbm_to_vmem [thread:$0]  %s23, 1024, %s921, [#allocation18], 64, 64, 4
        $region56: #{tpu_custom_call.1} parent=11 // pred_fallthru
          _
        // Predicated region
        $region57: #{tpu_custom_call.1} parent=11 // pred_check
          %p927 = pneg %p369
        $region58: #{tpu_custom_call.1} parent=11 // pred_check_branch
          %929 = sbr.rel (%p927) target = $region60
        $region59: #{tpu_custom_call.1} parent=11 // pred_region
          %s931 = ssub.s32 2048, 2048
          %932 = vsyncadd [#allocation21], %s931
          %s933 = sshll.u32 [#allocation20], 4
          %s934 = int_to_ptr.vmem [resolvable:$true] %s933
          %939 = dma.hbm_to_vmem [thread:$0]  %s25, 2048, %s934, [#allocation21], 128, 128, 8
        $region60: #{tpu_custom_call.1} parent=11 // pred_fallthru
          _
        // Predicated region
        $region61: #{tpu_custom_call.1} parent=11 // pred_check
          %p940 = pneg %p390
        $region62: #{tpu_custom_call.1} parent=11 // pred_check_branch
          %942 = sbr.rel (%p940) target = $region64
        $region63: #{tpu_custom_call.1} parent=11 // pred_region
          %s944 = ssub.s32 32, 32
          %945 = vsyncadd [#allocation21], %s944
          %s947 = sshll.u32 [#allocation22], 4
          %s948 = int_to_ptr.vmem [resolvable:$true] %s947
          %950 = dma.hbm_to_vmem [thread:$0]  %s27, 32, %s948, [#allocation21]
        $region64: #{tpu_custom_call.1} parent=11 // pred_fallthru
          _
        // Predicated region
        $region65: #{tpu_custom_call.1} parent=11 // pred_check
          %p951 = pneg %p411
        $region66: #{tpu_custom_call.1} parent=11 // pred_check_branch
          %953 = sbr.rel (%p951) target = $region68
        $region67: #{tpu_custom_call.1} parent=11 // pred_region
          %s955 = ssub.s32 2048, 2048
          %956 = vsyncadd [#allocation24], %s955
          %s957 = sshll.u32 [#allocation23], 4
          %s958 = int_to_ptr.vmem [resolvable:$true] %s957
          %963 = dma.hbm_to_vmem [thread:$0]  %s29, 2048, %s958, [#allocation24], 64, 64, 4
        $region68: #{tpu_custom_call.1} parent=11 // pred_fallthru
          _
        // Predicated region
        $region69: #{tpu_custom_call.1} parent=11 // pred_check
          %p964 = pneg %p432
        $region70: #{tpu_custom_call.1} parent=11 // pred_check_branch
          %966 = sbr.rel (%p964) target = $region72
        $region71: #{tpu_custom_call.1} parent=11 // pred_region
          %s968 = ssub.s32 256, 256
          %969 = vsyncadd [#allocation24], %s968
          %s970 = sshll.u32 [#allocation25], 4
          %s971 = int_to_ptr.vmem [resolvable:$true] %s970
          %976 = dma.hbm_to_vmem [thread:$0]  %s31, 256, %s971, [#allocation24], 128, 128, 8
        $region72: #{tpu_custom_call.1} parent=11 // pred_fallthru
          _
        // Predicated region
        $region73: #{tpu_custom_call.1} parent=11 // pred_check
          %p977 = pneg %p453
        $region74: #{tpu_custom_call.1} parent=11 // pred_check_branch
          %979 = sbr.rel (%p977) target = $region76
        $region75: #{tpu_custom_call.1} parent=11 // pred_region
          %s981 = ssub.s32 3072, 3072
          %982 = vsyncadd [#allocation27], %s981
          %s983 = sshll.u32 [#allocation26], 4
          %s984 = int_to_ptr.vmem [resolvable:$true] %s983
          %989 = dma.hbm_to_vmem [thread:$0]  %s33, 3072, %s984, [#allocation27], 192, 192, 12
        $region76: #{tpu_custom_call.1} parent=11 // pred_fallthru
          _
        // Predicated region
        $region77: #{tpu_custom_call.1} parent=11 // pred_check
          %p990 = pneg %p474
        $region78: #{tpu_custom_call.1} parent=11 // pred_check_branch
          %992 = sbr.rel (%p990) target = $region80
        $region79: #{tpu_custom_call.1} parent=11 // pred_region
          %s994 = ssub.s32 1024, 1024
          %995 = vsyncadd [#allocation27], %s994
          %s996 = sshll.u32 [#allocation28], 4
          %s997 = int_to_ptr.vmem [resolvable:$true] %s996
          %1002 = dma.hbm_to_vmem [thread:$0]  %s35, 1024, %s997, [#allocation27], 64, 64, 4
        $region80: #{tpu_custom_call.1} parent=11 // pred_fallthru
          _
        // Predicated region
        $region81: #{tpu_custom_call.1} parent=11 // pred_check
          %p1003 = pneg %p495
        $region82: #{tpu_custom_call.1} parent=11 // pred_check_branch
          %1005 = sbr.rel (%p1003) target = $region84
        $region83: #{tpu_custom_call.1} parent=11 // pred_region
          %s1007 = ssub.s32 2048, 2048
          %1008 = vsyncadd [#allocation30], %s1007
          %s1009 = sshll.u32 [#allocation29], 4
          %s1010 = int_to_ptr.vmem [resolvable:$true] %s1009
          %1015 = dma.hbm_to_vmem [thread:$0]  %s37, 2048, %s1010, [#allocation30], 128, 128, 8
        $region84: #{tpu_custom_call.1} parent=11 // pred_fallthru
          _
        // Predicated region
        $region85: #{tpu_custom_call.1} parent=11 // pred_check
          %p1016 = pneg %p516
        $region86: #{tpu_custom_call.1} parent=11 // pred_check_branch
          %1018 = sbr.rel (%p1016) target = $region88
        $region87: #{tpu_custom_call.1} parent=11 // pred_region
          %s1020 = ssub.s32 32, 32
          %1021 = vsyncadd [#allocation30], %s1020
          %s1023 = sshll.u32 [#allocation31], 4
          %s1024 = int_to_ptr.vmem [resolvable:$true] %s1023
          %1026 = dma.hbm_to_vmem [thread:$0]  %s39, 32, %s1024, [#allocation30]
        $region88: #{tpu_custom_call.1} parent=11 // pred_fallthru
          _
        // Predicated region
        $region89: #{tpu_custom_call.1} parent=11 // pred_check
          %p1027 = pneg %p537
        $region90: #{tpu_custom_call.1} parent=11 // pred_check_branch
          %1029 = sbr.rel (%p1027) target = $region92
        $region91: #{tpu_custom_call.1} parent=11 // pred_region
          %s1031 = ssub.s32 2048, 2048
          %1032 = vsyncadd [#allocation33], %s1031
          %s1033 = sshll.u32 [#allocation32], 4
          %s1034 = int_to_ptr.vmem [resolvable:$true] %s1033
          %1039 = dma.hbm_to_vmem [thread:$0]  %s41, 2048, %s1034, [#allocation33], 64, 64, 4
        $region92: #{tpu_custom_call.1} parent=11 // pred_fallthru
          _
        // Predicated region
        $region93: #{tpu_custom_call.1} parent=11 // pred_check
          %p1040 = pneg %p558
        $region94: #{tpu_custom_call.1} parent=11 // pred_check_branch
          %1042 = sbr.rel (%p1040) target = $region96
        $region95: #{tpu_custom_call.1} parent=11 // pred_region
          %s1044 = ssub.s32 128, 128
          %1045 = vsyncadd [#allocation33], %s1044
          %s1047 = sshll.u32 [#allocation34], 4
          %s1048 = int_to_ptr.vmem [resolvable:$true] %s1047
          %1050 = dma.hbm_to_vmem [thread:$0]  %s43, 128, %s1048, [#allocation33]
        $region96: #{tpu_custom_call.1} parent=11 // pred_fallthru
          _
        // Predicated region
        $region97: #{tpu_custom_call.1} parent=11 // pred_check
          %p1051 = pneg %p579
        $region98: #{tpu_custom_call.1} parent=11 // pred_check_branch
          %1053 = sbr.rel (%p1051) target = $region100
        $region99: #{tpu_custom_call.1} parent=11 // pred_region
          _
        $region100: #{tpu_custom_call.1} parent=11 // pred_fallthru
          _
        // Predicated region
        $region101: #{tpu_custom_call.1} parent=11 // pred_check
          %p1054 = pneg %p600
        $region102: #{tpu_custom_call.1} parent=11 // pred_check_branch
          %1056 = sbr.rel (%p1054) target = $region104
        $region103: #{tpu_custom_call.1} parent=11 // pred_region
          %s1058 = ssub.s32 1024, 1024
          %1059 = vsyncadd [#allocation36], %s1058
          %s1060 = sshll.u32 [#allocation35], 4
          %s1061 = int_to_ptr.vmem [resolvable:$true] %s1060
          %1066 = dma.hbm_to_vmem [thread:$0]  %s47, 1024, %s1061, [#allocation36], 64, 64, 4
        $region104: #{tpu_custom_call.1} parent=11 // pred_fallthru
          _
        // Predicated region
        $region105: #{tpu_custom_call.1} parent=11 // pred_check
          %p1067 = pneg %p621
        $region106: #{tpu_custom_call.1} parent=11 // pred_check_branch
          %1069 = sbr.rel (%p1067) target = $region108
        $region107: #{tpu_custom_call.1} parent=11 // pred_region
          _
        $region108: #{tpu_custom_call.1} parent=11 // pred_fallthru
          _
        // Predicated region
        $region109: #{tpu_custom_call.1} parent=11 // pred_check
          %p1070 = pneg %p642
        $region110: #{tpu_custom_call.1} parent=11 // pred_check_branch
          %1072 = sbr.rel (%p1070) target = $region112
        $region111: #{tpu_custom_call.1} parent=11 // pred_region
          %s1074 = ssub.s32 4096, 4096
          %1075 = vsyncadd [#allocation36], %s1074
          %s1076 = sshll.u32 [#allocation37], 4
          %s1077 = int_to_ptr.vmem [resolvable:$true] %s1076
          %1082 = dma.hbm_to_vmem [thread:$0]  %s51, 4096, %s1077, [#allocation36], 128, 128, 8
        $region112: #{tpu_custom_call.1} parent=11 // pred_fallthru
          _
        // Predicated region
        $region113: #{tpu_custom_call.1} parent=11 // pred_check
          %p1083 = pneg %p663
        $region114: #{tpu_custom_call.1} parent=11 // pred_check_branch
          %1085 = sbr.rel (%p1083) target = $region116
        $region115: #{tpu_custom_call.1} parent=11 // pred_region
          _
        $region116: #{tpu_custom_call.1} parent=11 // pred_fallthru
          _
        // Predicated region
        $region117: #{tpu_custom_call.1} parent=11 // pred_check
          %p1086 = pneg %p684
        $region118: #{tpu_custom_call.1} parent=11 // pred_check_branch
          %1088 = sbr.rel (%p1086) target = $region120
        $region119: #{tpu_custom_call.1} parent=11 // pred_region
          %s1090 = ssub.s32 4096, 4096
          %1091 = vsyncadd [#allocation39], %s1090
          %s1092 = sshll.u32 [#allocation38], 4
          %s1093 = int_to_ptr.vmem [resolvable:$true] %s1092
          %1098 = dma.hbm_to_vmem [thread:$0]  %s55, 4096, %s1093, [#allocation39], 64, 64, 4
        $region120: #{tpu_custom_call.1} parent=11 // pred_fallthru
          _
        // Predicated region
        $region121: #{tpu_custom_call.1} parent=11 // pred_check
          %p1099 = pneg %p705
        $region122: #{tpu_custom_call.1} parent=11 // pred_check_branch
          %1101 = sbr.rel (%p1099) target = $region124
        $region123: #{tpu_custom_call.1} parent=11 // pred_region
          _
        $region124: #{tpu_custom_call.1} parent=11 // pred_fallthru
          _
      $region12: #{tpu_custom_call.1} parent=5 // pred_fallthru
        _
      %p1102 = scmp.lt.s32.totalorder %s91, 2
      // Predicated region
      $region125: #{tpu_custom_call.1} parent=5 // pred_check
        %p1103 = pneg %p1102
      $region126: #{tpu_custom_call.1} parent=5 // pred_check_branch
        %1105 = sbr.rel (%p1103) target = $region128
      $region127: #{tpu_custom_call.1} parent=5 // pred_region
        // Predicated region
        $region129: #{tpu_custom_call.1} parent=127 // pred_check
          %p1106 = pneg %p111
        $region130: #{tpu_custom_call.1} parent=127 // pred_check_branch
          %1108 = sbr.rel (%p1106) target = $region132
        $region131: #{tpu_custom_call.1} parent=127 // pred_region
          %s1109 = sand.u32 %s101, 1
          %s1110 = scalar_lea.sflag [#allocation3], %s1109
          %s1111 = sand.u32 %s101, 1
          %s1112 = smul.addr %s1111, 4
          %s1113 = scalar_lea.vmem [#allocation2], %s1112
          %s1115 = ssub.s32 64, 64
          %1116 = vsyncadd %s1110, %s1115
          %s1117 = smul.addr %s91, 64
          %s1118 = scalar_lea.hbm %s1, %s1117
          %s1120 = sshll.u32 %s1113, 4
          %s1121 = int_to_ptr.vmem [resolvable:$true] %s1120
          %1123 = dma.hbm_to_vmem [thread:$0]  %s1118, 64, %s1121, %s1110
        $region132: #{tpu_custom_call.1} parent=127 // pred_fallthru
          _
      $region128: #{tpu_custom_call.1} parent=5 // pred_fallthru
        _
      %p1124 = scmp.le.s32.totalorder 1, %s91
      %p1125 = scmp.lt.s32.totalorder %s91, 3
      %p1126 = pnand %p1124, %p1125
      %p1127 = pneg %p1126
      // Predicated region
      $region133: #{tpu_custom_call.1} parent=5 // pred_check
        _
      $region134: #{tpu_custom_call.1} parent=5 // pred_check_branch
        %1129 = sbr.rel (%p1126) target = $region136
      $region135: #{tpu_custom_call.1} parent=5 // pred_region
        %s1130 = ssub.s32 %s91, 1
        %s1131 = sand.u32 %s104, 1
        %s1132 = scalar_lea.sflag [#allocation3], %s1131
        %s1133 = sand.u32 %s104, 1
        %s1134 = smul.addr %s1133, 4
        %s1135 = scalar_lea.vmem [#allocation2], %s1134
        // Predicated region
        $region137: #{tpu_custom_call.1} parent=135 // pred_check
          %p1136 = pneg %p117
        $region138: #{tpu_custom_call.1} parent=135 // pred_check_branch
          %1138 = sbr.rel (%p1136) target = $region140
        $region139: #{tpu_custom_call.1} parent=135 // pred_region
          %1139 = dma.done %s1132, 64
        $region140: #{tpu_custom_call.1} parent=135 // pred_fallthru
          _
        // Predicated region
        $region141: #{tpu_custom_call.1} parent=135 // pred_check
          %p1140 = pneg %p138
        $region142: #{tpu_custom_call.1} parent=135 // pred_check_branch
          %1142 = sbr.rel (%p1140) target = $region144
        $region143: #{tpu_custom_call.1} parent=135 // pred_region
          %1143 = dma.done [#allocation6], 384
        $region144: #{tpu_custom_call.1} parent=135 // pred_fallthru
          _
        // Predicated region
        $region145: #{tpu_custom_call.1} parent=135 // pred_check
          %p1144 = pneg %p159
        $region146: #{tpu_custom_call.1} parent=135 // pred_check_branch
          %1146 = sbr.rel (%p1144) target = $region148
        $region147: #{tpu_custom_call.1} parent=135 // pred_region
          %1147 = dma.done [#allocation6], 32
        $region148: #{tpu_custom_call.1} parent=135 // pred_fallthru
          _
        // Predicated region
        $region149: #{tpu_custom_call.1} parent=135 // pred_check
          %p1148 = pneg %p201
        $region150: #{tpu_custom_call.1} parent=135 // pred_check_branch
          %1150 = sbr.rel (%p1148) target = $region152
        $region151: #{tpu_custom_call.1} parent=135 // pred_region
          %1151 = dma.done [#allocation9], 3072
        $region152: #{tpu_custom_call.1} parent=135 // pred_fallthru
          _
        // Predicated region
        $region153: #{tpu_custom_call.1} parent=135 // pred_check
          %p1152 = pneg %p222
        $region154: #{tpu_custom_call.1} parent=135 // pred_check_branch
          %1154 = sbr.rel (%p1152) target = $region156
        $region155: #{tpu_custom_call.1} parent=135 // pred_region
          %1155 = dma.done [#allocation9], 1024
        $region156: #{tpu_custom_call.1} parent=135 // pred_fallthru
          _
        // Predicated region
        $region157: #{tpu_custom_call.1} parent=135 // pred_check
          %p1156 = pneg %p243
        $region158: #{tpu_custom_call.1} parent=135 // pred_check_branch
          %1158 = sbr.rel (%p1156) target = $region160
        $region159: #{tpu_custom_call.1} parent=135 // pred_region
          %1159 = dma.done [#allocation12], 2048
        $region160: #{tpu_custom_call.1} parent=135 // pred_fallthru
          _
        // Predicated region
        $region161: #{tpu_custom_call.1} parent=135 // pred_check
          %p1160 = pneg %p264
        $region162: #{tpu_custom_call.1} parent=135 // pred_check_branch
          %1162 = sbr.rel (%p1160) target = $region164
        $region163: #{tpu_custom_call.1} parent=135 // pred_region
          %1163 = dma.done [#allocation12], 32
        $region164: #{tpu_custom_call.1} parent=135 // pred_fallthru
          _
        // Predicated region
        $region165: #{tpu_custom_call.1} parent=135 // pred_check
          %p1164 = pneg %p285
        $region166: #{tpu_custom_call.1} parent=135 // pred_check_branch
          %1166 = sbr.rel (%p1164) target = $region168
        $region167: #{tpu_custom_call.1} parent=135 // pred_region
          %1167 = dma.done [#allocation15], 2048
        $region168: #{tpu_custom_call.1} parent=135 // pred_fallthru
          _
        // Predicated region
        $region169: #{tpu_custom_call.1} parent=135 // pred_check
          %p1168 = pneg %p306
        $region170: #{tpu_custom_call.1} parent=135 // pred_check_branch
          %1170 = sbr.rel (%p1168) target = $region172
        $region171: #{tpu_custom_call.1} parent=135 // pred_region
          %1171 = dma.done [#allocation15], 256
        $region172: #{tpu_custom_call.1} parent=135 // pred_fallthru
          _
        // Predicated region
        $region173: #{tpu_custom_call.1} parent=135 // pred_check
          %p1172 = pneg %p327
        $region174: #{tpu_custom_call.1} parent=135 // pred_check_branch
          %1174 = sbr.rel (%p1172) target = $region176
        $region175: #{tpu_custom_call.1} parent=135 // pred_region
          %1175 = dma.done [#allocation18], 3072
        $region176: #{tpu_custom_call.1} parent=135 // pred_fallthru
          _
        // Predicated region
        $region177: #{tpu_custom_call.1} parent=135 // pred_check
          %p1176 = pneg %p348
        $region178: #{tpu_custom_call.1} parent=135 // pred_check_branch
          %1178 = sbr.rel (%p1176) target = $region180
        $region179: #{tpu_custom_call.1} parent=135 // pred_region
          %1179 = dma.done [#allocation18], 1024
        $region180: #{tpu_custom_call.1} parent=135 // pred_fallthru
          _
        // Predicated region
        $region181: #{tpu_custom_call.1} parent=135 // pred_check
          %p1180 = pneg %p369
        $region182: #{tpu_custom_call.1} parent=135 // pred_check_branch
          %1182 = sbr.rel (%p1180) target = $region184
        $region183: #{tpu_custom_call.1} parent=135 // pred_region
          %1183 = dma.done [#allocation21], 2048
        $region184: #{tpu_custom_call.1} parent=135 // pred_fallthru
          _
        // Predicated region
        $region185: #{tpu_custom_call.1} parent=135 // pred_check
          %p1184 = pneg %p390
        $region186: #{tpu_custom_call.1} parent=135 // pred_check_branch
          %1186 = sbr.rel (%p1184) target = $region188
        $region187: #{tpu_custom_call.1} parent=135 // pred_region
          %1187 = dma.done [#allocation21], 32
        $region188: #{tpu_custom_call.1} parent=135 // pred_fallthru
          _
        // Predicated region
        $region189: #{tpu_custom_call.1} parent=135 // pred_check
          %p1188 = pneg %p411
        $region190: #{tpu_custom_call.1} parent=135 // pred_check_branch
          %1190 = sbr.rel (%p1188) target = $region192
        $region191: #{tpu_custom_call.1} parent=135 // pred_region
          %1191 = dma.done [#allocation24], 2048
        $region192: #{tpu_custom_call.1} parent=135 // pred_fallthru
          _
        // Predicated region
        $region193: #{tpu_custom_call.1} parent=135 // pred_check
          %p1192 = pneg %p432
        $region194: #{tpu_custom_call.1} parent=135 // pred_check_branch
          %1194 = sbr.rel (%p1192) target = $region196
        $region195: #{tpu_custom_call.1} parent=135 // pred_region
          %1195 = dma.done [#allocation24], 256
        $region196: #{tpu_custom_call.1} parent=135 // pred_fallthru
          _
        // Predicated region
        $region197: #{tpu_custom_call.1} parent=135 // pred_check
          %p1196 = pneg %p453
        $region198: #{tpu_custom_call.1} parent=135 // pred_check_branch
          %1198 = sbr.rel (%p1196) target = $region200
        $region199: #{tpu_custom_call.1} parent=135 // pred_region
          %1199 = dma.done [#allocation27], 3072
        $region200: #{tpu_custom_call.1} parent=135 // pred_fallthru
          _
        // Predicated region
        $region201: #{tpu_custom_call.1} parent=135 // pred_check
          %p1200 = pneg %p474
        $region202: #{tpu_custom_call.1} parent=135 // pred_check_branch
          %1202 = sbr.rel (%p1200) target = $region204
        $region203: #{tpu_custom_call.1} parent=135 // pred_region
          %1203 = dma.done [#allocation27], 1024
        $region204: #{tpu_custom_call.1} parent=135 // pred_fallthru
          _
        // Predicated region
        $region205: #{tpu_custom_call.1} parent=135 // pred_check
          %p1204 = pneg %p495
        $region206: #{tpu_custom_call.1} parent=135 // pred_check_branch
          %1206 = sbr.rel (%p1204) target = $region208
        $region207: #{tpu_custom_call.1} parent=135 // pred_region
          %1207 = dma.done [#allocation30], 2048
        $region208: #{tpu_custom_call.1} parent=135 // pred_fallthru
          _
        // Predicated region
        $region209: #{tpu_custom_call.1} parent=135 // pred_check
          %p1208 = pneg %p516
        $region210: #{tpu_custom_call.1} parent=135 // pred_check_branch
          %1210 = sbr.rel (%p1208) target = $region212
        $region211: #{tpu_custom_call.1} parent=135 // pred_region
          %1211 = dma.done [#allocation30], 32
        $region212: #{tpu_custom_call.1} parent=135 // pred_fallthru
          _
        // Predicated region
        $region213: #{tpu_custom_call.1} parent=135 // pred_check
          %p1212 = pneg %p537
        $region214: #{tpu_custom_call.1} parent=135 // pred_check_branch
          %1214 = sbr.rel (%p1212) target = $region216
        $region215: #{tpu_custom_call.1} parent=135 // pred_region
          %1215 = dma.done [#allocation33], 2048
        $region216: #{tpu_custom_call.1} parent=135 // pred_fallthru
          _
        // Predicated region
        $region217: #{tpu_custom_call.1} parent=135 // pred_check
          %p1216 = pneg %p558
        $region218: #{tpu_custom_call.1} parent=135 // pred_check_branch
          %1218 = sbr.rel (%p1216) target = $region220
        $region219: #{tpu_custom_call.1} parent=135 // pred_region
          %1219 = dma.done [#allocation33], 128
        $region220: #{tpu_custom_call.1} parent=135 // pred_fallthru
          _
        // Predicated region
        $region221: #{tpu_custom_call.1} parent=135 // pred_check
          %p1220 = pneg %p600
        $region222: #{tpu_custom_call.1} parent=135 // pred_check_branch
          %1222 = sbr.rel (%p1220) target = $region224
        $region223: #{tpu_custom_call.1} parent=135 // pred_region
          %1223 = dma.done [#allocation36], 1024
        $region224: #{tpu_custom_call.1} parent=135 // pred_fallthru
          _
        // Predicated region
        $region225: #{tpu_custom_call.1} parent=135 // pred_check
          %p1224 = pneg %p642
        $region226: #{tpu_custom_call.1} parent=135 // pred_check_branch
          %1226 = sbr.rel (%p1224) target = $region228
        $region227: #{tpu_custom_call.1} parent=135 // pred_region
          %1227 = dma.done [#allocation36], 4096
        $region228: #{tpu_custom_call.1} parent=135 // pred_fallthru
          _
        // Predicated region
        $region229: #{tpu_custom_call.1} parent=135 // pred_check
          %p1228 = pneg %p684
        $region230: #{tpu_custom_call.1} parent=135 // pred_check_branch
          %1230 = sbr.rel (%p1228) target = $region232
        $region231: #{tpu_custom_call.1} parent=135 // pred_region
          %1231 = dma.done [#allocation39], 4096
        $region232: #{tpu_custom_call.1} parent=135 // pred_fallthru
          _
        %s1232 = sand.u32 %s104, 1
        %s1233 = scalar_lea.sflag [#allocation3], %s1232
        %s1234 = sand.u32 %s104, 1
        %s1235 = smul.addr %s1234, 4
        %s1236 = scalar_lea.vmem [#allocation2], %s1235
        %p1237 = pneg %p117
        %p1238 = pneg %p114
        %p1239 = pneg %p138
        %p1240 = pneg %p135
        %p1241 = pneg %p159
        %p1242 = pneg %p156
        %p1243 = pneg %p180
        %p1244 = pneg %p177
        %p1245 = pneg %p201
        %p1246 = pneg %p198
        %p1247 = pneg %p222
        %p1248 = pneg %p219
        %p1249 = pneg %p243
        %p1250 = pneg %p240
        %p1251 = pneg %p264
        %p1252 = pneg %p261
        %p1253 = pneg %p285
        %p1254 = pneg %p282
        %p1255 = pneg %p306
        %p1256 = pneg %p303
        %p1257 = pneg %p327
        %p1258 = pneg %p324
        %p1259 = pneg %p348
        %p1260 = pneg %p345
        %p1261 = pneg %p369
        %p1262 = pneg %p366
        %p1263 = pneg %p390
        %p1264 = pneg %p387
        %p1265 = pneg %p411
        %p1266 = pneg %p408
        %p1267 = pneg %p432
        %p1268 = pneg %p429
        %p1269 = pneg %p453
        %p1270 = pneg %p450
        %p1271 = pneg %p474
        %p1272 = pneg %p471
        %p1273 = pneg %p495
        %p1274 = pneg %p492
        %p1275 = pneg %p516
        %p1276 = pneg %p513
        %p1277 = pneg %p537
        %p1278 = pneg %p534
        %p1279 = pneg %p558
        %p1280 = pneg %p555
        %p1281 = pneg %p579
        %p1282 = pneg %p576
        %p1283 = pneg %p600
        %p1284 = pneg %p597
        %p1285 = pneg %p621
        %p1286 = pneg %p618
        %p1287 = pneg %p642
        %p1288 = pneg %p639
        %p1289 = pneg %p663
        %p1290 = pneg %p660
        %p1291 = pneg %p684
        %p1292 = pneg %p681
        %p1293 = pneg %p705
        %p1294 = pneg %p702
        %p1295 = pneg %p731
        %p1296 = pneg %p728
        %s1297 = sand.u32 %s718, 1
        %s1298 = scalar_lea.sflag [#allocation4], %s1297
        %s1299 = sand.u32 %s718, 1
        %s1300 = smul.addr %s1299, 8
        %s1301 = scalar_lea.vmem [#allocation40], %s1300
        %p1302 = pneg %p757
        %p1303 = pneg %p754
        %s1304 = sand.u32 %s96, 1
        %s1305 = scalar_lea.sflag [#allocation42], %s1304
        %s1306 = sand.u32 %s744, 1
        %s1307 = smul.addr %s1306, 16
        %s1308 = scalar_lea.vmem [#allocation41], %s1307
        %p1309 = pneg %p783
        %p1310 = pneg %p780
        %s1311 = sand.u32 %s96, 1
        %s1312 = scalar_lea.sflag [#allocation42], %s1311
        %s1313 = sand.u32 %s770, 1
        %s1314 = smul.addr %s1313, 16
        %s1315 = scalar_lea.vmem [#allocation43], %s1314
        %v1317 = vld [vmem:[%s1135] sm:$0xf]
        %v1318 = vunpack.c.l.bf16 %v1317
        %v1319 = vld [vmem:[#allocation5] sm:$0xff]
        %v1320 = vld [vmem:[#allocation5 + $0x8] sm:$0xff]
        %v1321 = vld [vmem:[#allocation5 + $0x10] sm:$0xff]
        %v1322 = vld [vmem:[%s7] sm:$0xff]
        %v1323 = vld [vmem:[%s7 + $0x8] sm:$0x1]
        %1324 = vadd.xlane.f32.xlu0 %v1318
        %v1325 = vpop.xlane.xlu0 %1324
        %v1326 = vrcp.pop 128.0
        %v1327 = vmul.f32 %v1325, %v1326
        %v1328 = vsub.f32 %v1318, %v1327
        %v1329 = vmul.f32 %v1328, %v1328
        %1330 = vadd.xlane.f32.xlu0 %v1329
        %v1331 = vpop.xlane.xlu0 %1330
        %v1332 = vmul.f32 %v1331, %v1326
        %v1333 = vadd.f32 %v1332, 1e-05
        %v1334 = vrsqrt.pop %v1333
        %v1335 = vmul.f32 %v1328, %v1334
        %v1336 = vlaneseq
        %v1337 = vshrl.u32 %v1336, 7
        %v1338 = vsub.s32 0, %v1337
        %v1339 = vrot.slane %v1322, %v1338
        %v1340 = vmul.f32 %v1335, %v1339
        %v1341 = vlaneseq
        %v1342 = vshrl.u32 %v1341, 7
        %v1343 = vsub.s32 1, %v1342
        %v1344 = vrot.slane %v1322, %v1343
        %v1345 = vadd.f32 %v1340, %v1344
        %v1346 = vpack.c.bf16 %v1345, %v1345
        %v1347 = vld [vmem:[#allocation8] sm:$0xff]
        %v1348 = vld [vmem:[#allocation8 + $0x8] sm:$0xf]
        %v1349 = vld [vmem:[#allocation8 + $0xc] sm:$0xff]
        %v1350 = vld [vmem:[#allocation8 + $0x14] sm:$0xf]
        %v1351 = vld [vmem:[#allocation8 + $0x18] sm:$0xff]
        %v1352 = vld [vmem:[#allocation8 + $0x20] sm:$0xf]
        %v1353 = vld [vmem:[#allocation8 + $0x24] sm:$0xff]
        %v1354 = vld [vmem:[#allocation8 + $0x2c] sm:$0xf]
        %v1355 = vld [vmem:[#allocation8 + $0x30] sm:$0xff]
        %v1356 = vld [vmem:[#allocation8 + $0x38] sm:$0xf]
        %v1357 = vld [vmem:[#allocation8 + $0x3c] sm:$0xff]
        %v1358 = vld [vmem:[#allocation8 + $0x44] sm:$0xf]
        %v1359 = vld [vmem:[#allocation8 + $0x48] sm:$0xff]
        %v1360 = vld [vmem:[#allocation8 + $0x50] sm:$0xf]
        %v1361 = vld [vmem:[#allocation8 + $0x54] sm:$0xff]
        %v1362 = vld [vmem:[#allocation8 + $0x5c] sm:$0xf]
        %v1363 = vld [vmem:[#allocation8 + $0x60] sm:$0xff]
        %v1364 = vld [vmem:[#allocation8 + $0x68] sm:$0xf]
        %v1365 = vld [vmem:[#allocation8 + $0x6c] sm:$0xff]
        %v1366 = vld [vmem:[#allocation8 + $0x74] sm:$0xf]
        %v1367 = vld [vmem:[#allocation8 + $0x78] sm:$0xff]
        %v1368 = vld [vmem:[#allocation8 + $0x80] sm:$0xf]
        %v1369 = vld [vmem:[#allocation8 + $0x84] sm:$0xff]
        %v1370 = vld [vmem:[#allocation8 + $0x8c] sm:$0xf]
        %v1371 = vld [vmem:[#allocation8 + $0x90] sm:$0xff]
        %v1372 = vld [vmem:[#allocation8 + $0x98] sm:$0xf]
        %v1373 = vld [vmem:[#allocation8 + $0x9c] sm:$0xff]
        %v1374 = vld [vmem:[#allocation8 + $0xa4] sm:$0xf]
        %v1375 = vld [vmem:[#allocation8 + $0xa8] sm:$0xff]
        %v1376 = vld [vmem:[#allocation8 + $0xb0] sm:$0xf]
        %v1377 = vld [vmem:[#allocation8 + $0xb4] sm:$0xff]
        %v1378 = vld [vmem:[#allocation8 + $0xbc] sm:$0xf]
        %v1411 = vunpack.c.l.b16 %v1347
        %v1412 = vunpack.c.h.b16 %v1347
        %v1413 = vunpack.c.l.b16 %v1348
        %v1414 = vunpack.c.l.b16 %v1349
        %v1415 = vunpack.c.h.b16 %v1349
        %v1416 = vunpack.c.l.b16 %v1350
        %v1417 = vunpack.c.l.b16 %v1351
        %v1418 = vunpack.c.h.b16 %v1351
        %v1419 = vunpack.c.l.b16 %v1352
        %v1420 = vunpack.c.l.b16 %v1353
        %v1421 = vunpack.c.h.b16 %v1353
        %v1422 = vunpack.c.l.b16 %v1354
        %v1423 = vunpack.c.l.b16 %v1355
        %v1424 = vunpack.c.h.b16 %v1355
        %v1425 = vunpack.c.l.b16 %v1356
        %v1426 = vunpack.c.l.b16 %v1357
        %v1427 = vunpack.c.h.b16 %v1357
        %v1428 = vunpack.c.l.b16 %v1358
        %v1429 = vunpack.c.l.b16 %v1359
        %v1430 = vunpack.c.h.b16 %v1359
        %v1431 = vunpack.c.l.b16 %v1360
        %v1432 = vunpack.c.l.b16 %v1361
        %v1433 = vunpack.c.h.b16 %v1361
        %v1434 = vunpack.c.l.b16 %v1362
        %v1435 = vunpack.c.l.b16 %v1363
        %v1436 = vunpack.c.h.b16 %v1363
        %v1437 = vunpack.c.l.b16 %v1364
        %v1438 = vunpack.c.l.b16 %v1365
        %v1439 = vunpack.c.h.b16 %v1365
        %v1440 = vunpack.c.l.b16 %v1366
        %v1441 = vunpack.c.l.b16 %v1367
        %v1442 = vunpack.c.h.b16 %v1367
        %v1443 = vunpack.c.l.b16 %v1368
        %v1444 = vunpack.c.l.b16 %v1369
        %v1445 = vunpack.c.h.b16 %v1369
        %v1446 = vunpack.c.l.b16 %v1370
        %v1447 = vunpack.c.l.b16 %v1371
        %v1448 = vunpack.c.h.b16 %v1371
        %v1449 = vunpack.c.l.b16 %v1372
        %v1450 = vunpack.c.l.b16 %v1373
        %v1451 = vunpack.c.h.b16 %v1373
        %v1452 = vunpack.c.l.b16 %v1374
        %v1453 = vunpack.c.l.b16 %v1375
        %v1454 = vunpack.c.h.b16 %v1375
        %v1455 = vunpack.c.l.b16 %v1376
        %v1456 = vunpack.c.l.b16 %v1377
        %v1457 = vunpack.c.h.b16 %v1377
        %v1458 = vunpack.c.l.b16 %v1378
        %v1459 = vpack.c.b16 %v1414, %v1411
        %v1460 = vpack.c.b16 %v1415, %v1412
        %v1461 = vpack.c.b16 %v1416, %v1413
        %v1462 = vpack.c.b16 %v1420, %v1417
        %v1463 = vpack.c.b16 %v1421, %v1418
        %v1464 = vpack.c.b16 %v1422, %v1419
        %v1465 = vpack.c.b16 %v1426, %v1423
        %v1466 = vpack.c.b16 %v1427, %v1424
        %v1467 = vpack.c.b16 %v1428, %v1425
        %v1468 = vpack.c.b16 %v1432, %v1429
        %v1469 = vpack.c.b16 %v1433, %v1430
        %v1470 = vpack.c.b16 %v1434, %v1431
        %v1471 = vpack.c.b16 %v1438, %v1435
        %v1472 = vpack.c.b16 %v1439, %v1436
        %v1473 = vpack.c.b16 %v1440, %v1437
        %v1474 = vpack.c.b16 %v1444, %v1441
        %v1475 = vpack.c.b16 %v1445, %v1442
        %v1476 = vpack.c.b16 %v1446, %v1443
        %v1477 = vpack.c.b16 %v1450, %v1447
        %v1478 = vpack.c.b16 %v1451, %v1448
        %v1479 = vpack.c.b16 %v1452, %v1449
        %v1480 = vpack.c.b16 %v1456, %v1453
        %v1481 = vpack.c.b16 %v1457, %v1454
        %v1482 = vpack.c.b16 %v1458, %v1455
        %1507 = vmatprep.subr.bf16.mxu0 %v1460
        %1508 = vmatpush1.bf16.msra.mxu0 %v1459
        %1509 = vmatprep.subr.bf16.mxu0 %v1463
        %1510 = vmatpush1.bf16.msra.mxu0 %v1462
        %1511 = vmatprep.subr.bf16.mxu0 %v1466
        %1512 = vmatpush1.bf16.msra.mxu0 %v1465
        %1513 = vmatprep.subr.bf16.mxu0 %v1469
        %1514 = vmatpush1.bf16.msra.mxu0 %v1468
        %1515 = vmatprep.subr.bf16.mxu0 %v1472
        %1516 = vmatpush1.bf16.msra.mxu0 %v1471
        %1517 = vmatprep.subr.bf16.mxu0 %v1475
        %1518 = vmatpush1.bf16.msra.mxu0 %v1474
        %1519 = vmatprep.subr.bf16.mxu0 %v1478
        %1520 = vmatpush1.bf16.msra.mxu0 %v1477
        %1521 = vmatprep.subr.bf16.mxu0 %v1481
        %1522 = vmatpush1.bf16.msra.mxu0 %v1480
        %1523 = vmatprep.subr.bf16.mxu0 0
        %1524 = vmatpush1.bf16.msra.mxu0 0
        %1525 = vmatprep.subr.bf16.mxu0 0
        %1526 = vmatpush1.bf16.msra.mxu0 0
        %1527 = vmatprep.subr.bf16.mxu0 0
        %1528 = vmatpush1.bf16.msra.mxu0 0
        %1529 = vmatprep.subr.bf16.mxu0 0
        %1530 = vmatpush1.bf16.msra.mxu0 0
        %1531 = vmatprep.subr.bf16.mxu0 0
        %1532 = vmatpush1.bf16.msra.mxu0 0
        %1533 = vmatprep.subr.bf16.mxu0 0
        %1534 = vmatpush1.bf16.msra.mxu0 0
        %1535 = vmatprep.subr.bf16.mxu0 0
        %1536 = vmatpush1.bf16.msra.mxu0 0
        %1537 = vmatprep.subr.bf16.mxu0 0
        %1538 = vmatpush1.bf16.msra.mxu0 0
        %1539 = vmatprep.mubr.bf16.mxu0 0
        %1540 = vmatmul.mubr.bf16.gmra.mrb[0].mxu0 %v1346
        %v1541 = vpop.f32.mrb[0].mxu0
        %v1542 = vadd.f32 0.0, %v1541
        %v1543 = vpop.f32.mrb[0].mxu0
        %v1544 = vadd.f32 0.0, %v1543
        %v1545 = vpop.f32.mrb[0].mxu0
        %v1546 = vpop.f32.mrb[0].mxu0
        %1547 = vdwg.mxu0
        %1548 = vmatprep.subr.bf16.mxu0 0
        %1549 = vmatpush1.bf16.msra.mxu0 %v1461
        %1550 = vmatprep.subr.bf16.mxu0 0
        %1551 = vmatpush1.bf16.msra.mxu0 %v1464
        %1552 = vmatprep.subr.bf16.mxu0 0
        %1553 = vmatpush1.bf16.msra.mxu0 %v1467
        %1554 = vmatprep.subr.bf16.mxu0 0
        %1555 = vmatpush1.bf16.msra.mxu0 %v1470
        %1556 = vmatprep.subr.bf16.mxu0 0
        %1557 = vmatpush1.bf16.msra.mxu0 %v1473
        %1558 = vmatprep.subr.bf16.mxu0 0
        %1559 = vmatpush1.bf16.msra.mxu0 %v1476
        %1560 = vmatprep.subr.bf16.mxu0 0
        %1561 = vmatpush1.bf16.msra.mxu0 %v1479
        %1562 = vmatprep.subr.bf16.mxu0 0
        %1563 = vmatpush1.bf16.msra.mxu0 %v1482
        %1564 = vmatprep.subr.bf16.mxu0 0
        %1565 = vmatpush1.bf16.msra.mxu0 0
        %1566 = vmatprep.subr.bf16.mxu0 0
        %1567 = vmatpush1.bf16.msra.mxu0 0
        %1568 = vmatprep.subr.bf16.mxu0 0
        %1569 = vmatpush1.bf16.msra.mxu0 0
        %1570 = vmatprep.subr.bf16.mxu0 0
        %1571 = vmatpush1.bf16.msra.mxu0 0
        %1572 = vmatprep.subr.bf16.mxu0 0
        %1573 = vmatpush1.bf16.msra.mxu0 0
        %1574 = vmatprep.subr.bf16.mxu0 0
        %1575 = vmatpush1.bf16.msra.mxu0 0
        %1576 = vmatprep.subr.bf16.mxu0 0
        %1577 = vmatpush1.bf16.msra.mxu0 0
        %1578 = vmatprep.subr.bf16.mxu0 0
        %1579 = vmatpush1.bf16.msra.mxu0 0
        %1580 = vmatprep.mubr.bf16.mxu0 0
        %1581 = vmatmul.mubr.bf16.gmra.mrb[0].mxu0 %v1346
        %v1582 = vpop.f32.mrb[0].mxu0
        %v1583 = vadd.f32 0.0, %v1582
        %v1584 = vpop.f32.mrb[0].mxu0
        %v1585 = vpop.f32.mrb[0].mxu0
        %v1586 = vpop.f32.mrb[0].mxu0
        %1587 = vdwg.mxu0
        %v1588 = vlaneseq
        %v1589 = vshrl.u32 %v1588, 7
        %v1590 = vsub.s32 2, %v1589
        %v1591 = vrot.slane %v1322, %v1590
        %v1592 = vadd.f32 %v1542, %v1591
        %v1593 = vlaneseq
        %v1594 = vshrl.u32 %v1593, 7
        %v1595 = vsub.s32 3, %v1594
        %v1596 = vrot.slane %v1322, %v1595
        %v1597 = vadd.f32 %v1544, %v1596
        %v1598 = vlaneseq
        %v1599 = vshrl.u32 %v1598, 7
        %v1600 = vsub.s32 4, %v1599
        %v1601 = vrot.slane %v1322, %v1600
        %v1602 = vadd.f32 %v1583, %v1601
        %1603 = vrot.lane.b32.xlu0 %v1592, 96
        %v1604 = vpop.permute.xlu0 %1603
        %1605 = vrot.lane.b32.xlu0 %v1592, 32
        %v1606 = vpop.permute.xlu0 %1605
        %v1607 = vmul.f32 %v1592, %v1319
        %v1608 = vmul.f32 %v1604, %v1320
        %v1609 = vadd.f32 %v1607, %v1608
        %v1610 = vmul.f32 %v1606, %v1321
        %v1611 = vadd.f32 %v1609, %v1610
        %v1612 = vmul.f32 %v1611, 0.088388346
        %1613 = vrot.lane.b32.xlu0 %v1597, 96
        %v1614 = vpop.permute.xlu0 %1613
        %1615 = vrot.lane.b32.xlu0 %v1597, 32
        %v1616 = vpop.permute.xlu0 %1615
        %v1617 = vmul.f32 %v1597, %v1319
        %v1618 = vmul.f32 %v1614, %v1320
        %v1619 = vadd.f32 %v1617, %v1618
        %v1620 = vmul.f32 %v1616, %v1321
        %v1621 = vadd.f32 %v1619, %v1620
        %v1622 = vpack.c.bf16 %v1612, %v1612
        %v1623 = vpack.c.bf16 %v1621, %v1621
        %1624 = vmatprep.subr.bf16.mxu0 0
        %1625 = vmatpush1.bf16.xpose.msra.mxu0 %v1623
        %1626 = vmatprep.subr.bf16.mxu0 0
        %1627 = vmatpush1.bf16.xpose.msra.mxu0 0
        %1628 = vmatprep.subr.bf16.mxu0 0
        %1629 = vmatpush1.bf16.xpose.msra.mxu0 0
        %1630 = vmatprep.subr.bf16.mxu0 0
        %1631 = vmatpush1.bf16.xpose.msra.mxu0 0
        %1632 = vmatprep.subr.bf16.mxu0 0
        %1633 = vmatpush1.bf16.xpose.msra.mxu0 0
        %1634 = vmatprep.subr.bf16.mxu0 0
        %1635 = vmatpush1.bf16.xpose.msra.mxu0 0
        %1636 = vmatprep.subr.bf16.mxu0 0
        %1637 = vmatpush1.bf16.xpose.msra.mxu0 0
        %1638 = vmatprep.subr.bf16.mxu0 0
        %1639 = vmatpush1.bf16.xpose.msra.mxu0 0
        %1640 = vmatprep.subr.bf16.mxu0 0
        %1641 = vmatpush1.bf16.xpose.msra.mxu0 0
        %1642 = vmatprep.subr.bf16.mxu0 0
        %1643 = vmatpush1.bf16.xpose.msra.mxu0 0
        %1644 = vmatprep.subr.bf16.mxu0 0
        %1645 = vmatpush1.bf16.xpose.msra.mxu0 0
        %1646 = vmatprep.subr.bf16.mxu0 0
        %1647 = vmatpush1.bf16.xpose.msra.mxu0 0
        %1648 = vmatprep.subr.bf16.mxu0 0
        %1649 = vmatpush1.bf16.xpose.msra.mxu0 0
        %1650 = vmatprep.subr.bf16.mxu0 0
        %1651 = vmatpush1.bf16.xpose.msra.mxu0 0
        %1652 = vmatprep.subr.bf16.mxu0 0
        %1653 = vmatpush1.bf16.xpose.msra.mxu0 0
        %1654 = vmatprep.subr.bf16.mxu0 0
        %1655 = vmatpush1.bf16.xpose.msra.mxu0 0
        %1656 = vmatprep.mubr.bf16.mxu0 0
        %1657 = vmatmul.mubr.bf16.gmra.mrb[0].mxu0 %v1622
        %v1658 = vpop.f32.mrb[0].mxu0
        %v1659 = vadd.f32 0.0, %v1658
        %v1660 = vpop.f32.mrb[0].mxu0
        %v1661 = vpop.f32.mrb[0].mxu0
        %v1662 = vpop.f32.mrb[0].mxu0
        %1663 = vdwg.mxu0
        %v1664 = vlaneseq
        %v1665 = vshrl.u32 %v1664, 7
        %v1666 = vlaneseq
        %v1667 = vand.u32 %v1666, 127
        %vm1668 = vcmp.le.s32.totalorder %v1667, %v1665
        %v1669 = vsel %vm1668, %v1659, -1e+30
        %vm1670 = vcmask 64512
        %v1671 = vsel %vm1670, %v1669, -inf
        %1672 = vmax.xlane.f32.xlu0 %v1671
        %v1673 = vpop.xlane.xlu0 %1672
        %v1674 = vsub.f32 %v1669, %v1673
        %v1675 = vmul.f32 %v1674, 1.442695
        %v1676 = vpow.pop %v1675
        %v1677 = vsel %vm1670, %v1676, 0.0
        %1678 = vadd.xlane.f32.xlu0 %v1677
        %v1679 = vpop.xlane.xlu0 %1678
        %v1680 = vrcp.pop %v1679
        %v1681 = vmul.f32 %v1676, %v1680
        %v1682 = vpack.c.bf16 %v1681, %v1681
        %v1683 = vpack.c.bf16 %v1602, %v1602
        %v1685 = vsel %vm1670, %v1682, 0
        %vm1687 = vcmask 1043456
        %v1689 = vsel %vm1687, %v1683, 0
        %1691 = vmatprep.subr.bf16.mxu0 0
        %1692 = vmatpush1.bf16.msra.mxu0 %v1689
        %1693 = vmatprep.subr.bf16.mxu0 0
        %1694 = vmatpush1.bf16.msra.mxu0 0
        %1695 = vmatprep.subr.bf16.mxu0 0
        %1696 = vmatpush1.bf16.msra.mxu0 0
        %1697 = vmatprep.subr.bf16.mxu0 0
        %1698 = vmatpush1.bf16.msra.mxu0 0
        %1699 = vmatprep.subr.bf16.mxu0 0
        %1700 = vmatpush1.bf16.msra.mxu0 0
        %1701 = vmatprep.subr.bf16.mxu0 0
        %1702 = vmatpush1.bf16.msra.mxu0 0
        %1703 = vmatprep.subr.bf16.mxu0 0
        %1704 = vmatpush1.bf16.msra.mxu0 0
        %1705 = vmatprep.subr.bf16.mxu0 0
        %1706 = vmatpush1.bf16.msra.mxu0 0
        %1707 = vmatprep.subr.bf16.mxu0 0
        %1708 = vmatpush1.bf16.msra.mxu0 0
        %1709 = vmatprep.subr.bf16.mxu0 0
        %1710 = vmatpush1.bf16.msra.mxu0 0
        %1711 = vmatprep.subr.bf16.mxu0 0
        %1712 = vmatpush1.bf16.msra.mxu0 0
        %1713 = vmatprep.subr.bf16.mxu0 0
        %1714 = vmatpush1.bf16.msra.mxu0 0
        %1715 = vmatprep.subr.bf16.mxu0 0
        %1716 = vmatpush1.bf16.msra.mxu0 0
        %1717 = vmatprep.subr.bf16.mxu0 0
        %1718 = vmatpush1.bf16.msra.mxu0 0
        %1719 = vmatprep.subr.bf16.mxu0 0
        %1720 = vmatpush1.bf16.msra.mxu0 0
        %1721 = vmatprep.subr.bf16.mxu0 0
        %1722 = vmatpush1.bf16.msra.mxu0 0
        %1723 = vmatprep.mubr.bf16.mxu0 0
        %1724 = vmatmul.mubr.bf16.gmra.mrb[0].mxu0 %v1685
        %v1725 = vpop.f32.mrb[0].mxu0
        %v1726 = vadd.f32 0.0, %v1725
        %v1727 = vpop.f32.mrb[0].mxu0
        %v1728 = vpop.f32.mrb[0].mxu0
        %v1729 = vpop.f32.mrb[0].mxu0
        %1730 = vdwg.mxu0
        %v1731 = vpack.c.bf16 %v1726, %v1726
        %v1732 = vld [vmem:[#allocation10] sm:$0xf]
        %v1733 = vld [vmem:[#allocation10 + $0x4] sm:$0xf]
        %v1734 = vld [vmem:[#allocation10 + $0x8] sm:$0xf]
        %v1735 = vld [vmem:[#allocation10 + $0xc] sm:$0xf]
        %v1736 = vld [vmem:[#allocation10 + $0x10] sm:$0xf]
        %v1737 = vld [vmem:[#allocation10 + $0x14] sm:$0xf]
        %v1738 = vld [vmem:[#allocation10 + $0x18] sm:$0xf]
        %v1739 = vld [vmem:[#allocation10 + $0x1c] sm:$0xf]
        %v1740 = vld [vmem:[#allocation10 + $0x20] sm:$0xf]
        %v1741 = vld [vmem:[#allocation10 + $0x24] sm:$0xf]
        %v1742 = vld [vmem:[#allocation10 + $0x28] sm:$0xf]
        %v1743 = vld [vmem:[#allocation10 + $0x2c] sm:$0xf]
        %v1744 = vld [vmem:[#allocation10 + $0x30] sm:$0xf]
        %v1745 = vld [vmem:[#allocation10 + $0x34] sm:$0xf]
        %v1746 = vld [vmem:[#allocation10 + $0x38] sm:$0xf]
        %v1747 = vld [vmem:[#allocation10 + $0x3c] sm:$0xf]
        %v1748 = vlaneseq
        %v1749 = vshrl.u32 %v1748, 7
        %v1750 = vsub.s32 5, %v1749
        %v1751 = vrot.slane %v1322, %v1750
        %v1768 = vunpack.c.l.b16 %v1732
        %v1769 = vunpack.c.l.b16 %v1733
        %v1770 = vunpack.c.l.b16 %v1734
        %v1771 = vunpack.c.l.b16 %v1735
        %v1772 = vunpack.c.l.b16 %v1736
        %v1773 = vunpack.c.l.b16 %v1737
        %v1774 = vunpack.c.l.b16 %v1738
        %v1775 = vunpack.c.l.b16 %v1739
        %v1776 = vunpack.c.l.b16 %v1740
        %v1777 = vunpack.c.l.b16 %v1741
        %v1778 = vunpack.c.l.b16 %v1742
        %v1779 = vunpack.c.l.b16 %v1743
        %v1780 = vunpack.c.l.b16 %v1744
        %v1781 = vunpack.c.l.b16 %v1745
        %v1782 = vunpack.c.l.b16 %v1746
        %v1783 = vunpack.c.l.b16 %v1747
        %v1784 = vpack.c.b16 %v1769, %v1768
        %v1785 = vpack.c.b16 %v1771, %v1770
        %v1786 = vpack.c.b16 %v1773, %v1772
        %v1787 = vpack.c.b16 %v1775, %v1774
        %v1788 = vpack.c.b16 %v1777, %v1776
        %v1789 = vpack.c.b16 %v1779, %v1778
        %v1790 = vpack.c.b16 %v1781, %v1780
        %v1791 = vpack.c.b16 %v1783, %v1782
        %1800 = vmatprep.subr.bf16.mxu0 0
        %1801 = vmatpush1.bf16.msra.mxu0 %v1784
        %1802 = vmatprep.subr.bf16.mxu0 0
        %1803 = vmatpush1.bf16.msra.mxu0 %v1785
        %1804 = vmatprep.subr.bf16.mxu0 0
        %1805 = vmatpush1.bf16.msra.mxu0 %v1786
        %1806 = vmatprep.subr.bf16.mxu0 0
        %1807 = vmatpush1.bf16.msra.mxu0 %v1787
        %1808 = vmatprep.subr.bf16.mxu0 0
        %1809 = vmatpush1.bf16.msra.mxu0 %v1788
        %1810 = vmatprep.subr.bf16.mxu0 0
        %1811 = vmatpush1.bf16.msra.mxu0 %v1789
        %1812 = vmatprep.subr.bf16.mxu0 0
        %1813 = vmatpush1.bf16.msra.mxu0 %v1790
        %1814 = vmatprep.subr.bf16.mxu0 0
        %1815 = vmatpush1.bf16.msra.mxu0 %v1791
        %1816 = vmatprep.subr.bf16.mxu0 0
        %1817 = vmatpush1.bf16.msra.mxu0 0
        %1818 = vmatprep.subr.bf16.mxu0 0
        %1819 = vmatpush1.bf16.msra.mxu0 0
        %1820 = vmatprep.subr.bf16.mxu0 0
        %1821 = vmatpush1.bf16.msra.mxu0 0
        %1822 = vmatprep.subr.bf16.mxu0 0
        %1823 = vmatpush1.bf16.msra.mxu0 0
        %1824 = vmatprep.subr.bf16.mxu0 0
        %1825 = vmatpush1.bf16.msra.mxu0 0
        %1826 = vmatprep.subr.bf16.mxu0 0
        %1827 = vmatpush1.bf16.msra.mxu0 0
        %1828 = vmatprep.subr.bf16.mxu0 0
        %1829 = vmatpush1.bf16.msra.mxu0 0
        %1830 = vmatprep.subr.bf16.mxu0 0
        %1831 = vmatpush1.bf16.msra.mxu0 0
        %1832 = vmatprep.mubr.bf16.mxu0 0
        %1833 = vmatmul.mubr.bf16.gmra.mrb[0].mxu0 %v1731
        %v1834 = vpop.f32.mrb[0].mxu0
        %v1835 = vadd.f32 %v1751, %v1834
        %v1836 = vpop.f32.mrb[0].mxu0
        %v1837 = vpop.f32.mrb[0].mxu0
        %v1838 = vpop.f32.mrb[0].mxu0
        %1839 = vdwg.mxu0
        %v1840 = vadd.f32 %v1318, %v1835
        %v1841 = vld [vmem:[#allocation13] sm:$0x3]
        %1842 = vadd.xlane.f32.xlu0 %v1840
        %v1843 = vpop.xlane.xlu0 %1842
        %v1844 = vmul.f32 %v1843, %v1326
        %v1845 = vsub.f32 %v1840, %v1844
        %v1846 = vmul.f32 %v1845, %v1845
        %1847 = vadd.xlane.f32.xlu0 %v1846
        %v1848 = vpop.xlane.xlu0 %1847
        %v1849 = vmul.f32 %v1848, %v1326
        %v1850 = vadd.f32 %v1849, 1e-05
        %v1851 = vrsqrt.pop %v1850
        %v1852 = vmul.f32 %v1845, %v1851
        %v1853 = vlaneseq
        %v1854 = vshrl.u32 %v1853, 7
        %v1855 = vsub.s32 6, %v1854
        %v1856 = vrot.slane %v1322, %v1855
        %v1857 = vmul.f32 %v1852, %v1856
        %v1858 = vlaneseq
        %v1859 = vshrl.u32 %v1858, 7
        %v1860 = vsub.s32 7, %v1859
        %v1861 = vrot.slane %v1322, %v1860
        %v1862 = vadd.f32 %v1857, %v1861
        %v1863 = vpack.c.bf16 %v1862, %v1862
        %v1864 = vld [vmem:[#allocation11] sm:$0xff]
        %v1865 = vld [vmem:[#allocation11 + $0x8] sm:$0xff]
        %v1866 = vld [vmem:[#allocation11 + $0x10] sm:$0xff]
        %v1867 = vld [vmem:[#allocation11 + $0x18] sm:$0xff]
        %v1868 = vld [vmem:[#allocation11 + $0x20] sm:$0xff]
        %v1869 = vld [vmem:[#allocation11 + $0x28] sm:$0xff]
        %v1870 = vld [vmem:[#allocation11 + $0x30] sm:$0xff]
        %v1871 = vld [vmem:[#allocation11 + $0x38] sm:$0xff]
        %v1872 = vld [vmem:[#allocation11 + $0x40] sm:$0xff]
        %v1873 = vld [vmem:[#allocation11 + $0x48] sm:$0xff]
        %v1874 = vld [vmem:[#allocation11 + $0x50] sm:$0xff]
        %v1875 = vld [vmem:[#allocation11 + $0x58] sm:$0xff]
        %v1876 = vld [vmem:[#allocation11 + $0x60] sm:$0xff]
        %v1877 = vld [vmem:[#allocation11 + $0x68] sm:$0xff]
        %v1878 = vld [vmem:[#allocation11 + $0x70] sm:$0xff]
        %v1879 = vld [vmem:[#allocation11 + $0x78] sm:$0xff]
        %v1881 = vlaneseq
        %v1882 = vshrl.u32 %v1881, 7
        %v1883 = vsub.s32 0, %v1882
        %v1884 = vrot.slane %v1841, %v1883
        %v1885 = vlaneseq
        %v1886 = vshrl.u32 %v1885, 7
        %v1887 = vsub.s32 1, %v1886
        %v1888 = vrot.slane %v1841, %v1887
        %v1907 = vunpack.c.l.b16 %v1864
        %v1908 = vunpack.c.h.b16 %v1864
        %v1909 = vunpack.c.l.b16 %v1865
        %v1910 = vunpack.c.h.b16 %v1865
        %v1911 = vunpack.c.l.b16 %v1866
        %v1912 = vunpack.c.h.b16 %v1866
        %v1913 = vunpack.c.l.b16 %v1867
        %v1914 = vunpack.c.h.b16 %v1867
        %v1915 = vunpack.c.l.b16 %v1868
        %v1916 = vunpack.c.h.b16 %v1868
        %v1917 = vunpack.c.l.b16 %v1869
        %v1918 = vunpack.c.h.b16 %v1869
        %v1919 = vunpack.c.l.b16 %v1870
        %v1920 = vunpack.c.h.b16 %v1870
        %v1921 = vunpack.c.l.b16 %v1871
        %v1922 = vunpack.c.h.b16 %v1871
        %v1923 = vunpack.c.l.b16 %v1872
        %v1924 = vunpack.c.h.b16 %v1872
        %v1925 = vunpack.c.l.b16 %v1873
        %v1926 = vunpack.c.h.b16 %v1873
        %v1927 = vunpack.c.l.b16 %v1874
        %v1928 = vunpack.c.h.b16 %v1874
        %v1929 = vunpack.c.l.b16 %v1875
        %v1930 = vunpack.c.h.b16 %v1875
        %v1931 = vunpack.c.l.b16 %v1876
        %v1932 = vunpack.c.h.b16 %v1876
        %v1933 = vunpack.c.l.b16 %v1877
        %v1934 = vunpack.c.h.b16 %v1877
        %v1935 = vunpack.c.l.b16 %v1878
        %v1936 = vunpack.c.h.b16 %v1878
        %v1937 = vunpack.c.l.b16 %v1879
        %v1938 = vunpack.c.h.b16 %v1879
        %v1939 = vpack.c.b16 %v1909, %v1907
        %v1940 = vpack.c.b16 %v1910, %v1908
        %v1941 = vpack.c.b16 %v1913, %v1911
        %v1942 = vpack.c.b16 %v1914, %v1912
        %v1943 = vpack.c.b16 %v1917, %v1915
        %v1944 = vpack.c.b16 %v1918, %v1916
        %v1945 = vpack.c.b16 %v1921, %v1919
        %v1946 = vpack.c.b16 %v1922, %v1920
        %v1947 = vpack.c.b16 %v1925, %v1923
        %v1948 = vpack.c.b16 %v1926, %v1924
        %v1949 = vpack.c.b16 %v1929, %v1927
        %v1950 = vpack.c.b16 %v1930, %v1928
        %v1951 = vpack.c.b16 %v1933, %v1931
        %v1952 = vpack.c.b16 %v1934, %v1932
        %v1953 = vpack.c.b16 %v1937, %v1935
        %v1954 = vpack.c.b16 %v1938, %v1936
        %1971 = vmatprep.subr.bf16.mxu0 %v1940
        %1972 = vmatpush1.bf16.msra.mxu0 %v1939
        %1973 = vmatprep.subr.bf16.mxu0 %v1942
        %1974 = vmatpush1.bf16.msra.mxu0 %v1941
        %1975 = vmatprep.subr.bf16.mxu0 %v1944
        %1976 = vmatpush1.bf16.msra.mxu0 %v1943
        %1977 = vmatprep.subr.bf16.mxu0 %v1946
        %1978 = vmatpush1.bf16.msra.mxu0 %v1945
        %1979 = vmatprep.subr.bf16.mxu0 %v1948
        %1980 = vmatpush1.bf16.msra.mxu0 %v1947
        %1981 = vmatprep.subr.bf16.mxu0 %v1950
        %1982 = vmatpush1.bf16.msra.mxu0 %v1949
        %1983 = vmatprep.subr.bf16.mxu0 %v1952
        %1984 = vmatpush1.bf16.msra.mxu0 %v1951
        %1985 = vmatprep.subr.bf16.mxu0 %v1954
        %1986 = vmatpush1.bf16.msra.mxu0 %v1953
        %1987 = vmatprep.subr.bf16.mxu0 0
        %1988 = vmatpush1.bf16.msra.mxu0 0
        %1989 = vmatprep.subr.bf16.mxu0 0
        %1990 = vmatpush1.bf16.msra.mxu0 0
        %1991 = vmatprep.subr.bf16.mxu0 0
        %1992 = vmatpush1.bf16.msra.mxu0 0
        %1993 = vmatprep.subr.bf16.mxu0 0
        %1994 = vmatpush1.bf16.msra.mxu0 0
        %1995 = vmatprep.subr.bf16.mxu0 0
        %1996 = vmatpush1.bf16.msra.mxu0 0
        %1997 = vmatprep.subr.bf16.mxu0 0
        %1998 = vmatpush1.bf16.msra.mxu0 0
        %1999 = vmatprep.subr.bf16.mxu0 0
        %2000 = vmatpush1.bf16.msra.mxu0 0
        %2001 = vmatprep.subr.bf16.mxu0 0
        %2002 = vmatpush1.bf16.msra.mxu0 0
        %2003 = vmatprep.mubr.bf16.mxu0 0
        %2004 = vmatmul.mubr.bf16.gmra.mrb[0].mxu0 %v1863
        %v2005 = vpop.f32.mrb[0].mxu0
        %v2006 = vadd.f32 %v1884, %v2005
        %v2007 = vpop.f32.mrb[0].mxu0
        %v2008 = vadd.f32 %v1888, %v2007
        %v2009 = vpop.f32.mrb[0].mxu0
        %v2010 = vpop.f32.mrb[0].mxu0
        %2011 = vdwg.mxu0
        %v2012 = vmul.f32 %v2006, %v2006
        %v2013 = vmul.f32 %v2008, %v2008
        %v2014 = vmul.f32 %v2006, %v2012
        %v2015 = vmul.f32 %v2008, %v2013
        %v2016 = vmul.f32 %v2014, 0.044715
        %v2017 = vmul.f32 %v2015, 0.044715
        %v2018 = vadd.f32 %v2006, %v2016
        %v2019 = vadd.f32 %v2008, %v2017
        %v2020 = vmul.f32 %v2018, 0.7978846
        %v2021 = vmul.f32 %v2019, 0.7978846
        %v2022 = vtanh.pop %v2020
        %v2023 = vtanh.pop %v2021
        %v2024 = vadd.f32 %v2022, 1.0
        %v2025 = vadd.f32 %v2023, 1.0
        %v2026 = vmul.f32 %v2024, 0.5
        %v2027 = vmul.f32 %v2025, 0.5
        %v2028 = vmul.f32 %v2006, %v2026
        %v2029 = vmul.f32 %v2008, %v2027
        %v2030 = vpack.c.bf16 %v2028, %v2028
        %v2031 = vpack.c.bf16 %v2029, %v2029
        %v2032 = vld [vmem:[#allocation14] sm:$0xf]
        %v2033 = vld [vmem:[#allocation14 + $0x4] sm:$0xf]
        %v2034 = vld [vmem:[#allocation14 + $0x8] sm:$0xf]
        %v2035 = vld [vmem:[#allocation14 + $0xc] sm:$0xf]
        %v2036 = vld [vmem:[#allocation14 + $0x10] sm:$0xf]
        %v2037 = vld [vmem:[#allocation14 + $0x14] sm:$0xf]
        %v2038 = vld [vmem:[#allocation14 + $0x18] sm:$0xf]
        %v2039 = vld [vmem:[#allocation14 + $0x1c] sm:$0xf]
        %v2040 = vld [vmem:[#allocation14 + $0x20] sm:$0xf]
        %v2041 = vld [vmem:[#allocation14 + $0x24] sm:$0xf]
        %v2042 = vld [vmem:[#allocation14 + $0x28] sm:$0xf]
        %v2043 = vld [vmem:[#allocation14 + $0x2c] sm:$0xf]
        %v2044 = vld [vmem:[#allocation14 + $0x30] sm:$0xf]
        %v2045 = vld [vmem:[#allocation14 + $0x34] sm:$0xf]
        %v2046 = vld [vmem:[#allocation14 + $0x38] sm:$0xf]
        %v2047 = vld [vmem:[#allocation14 + $0x3c] sm:$0xf]
        %v2048 = vld [vmem:[#allocation14 + $0x40] sm:$0xf]
        %v2049 = vld [vmem:[#allocation14 + $0x44] sm:$0xf]
        %v2050 = vld [vmem:[#allocation14 + $0x48] sm:$0xf]
        %v2051 = vld [vmem:[#allocation14 + $0x4c] sm:$0xf]
        %v2052 = vld [vmem:[#allocation14 + $0x50] sm:$0xf]
        %v2053 = vld [vmem:[#allocation14 + $0x54] sm:$0xf]
        %v2054 = vld [vmem:[#allocation14 + $0x58] sm:$0xf]
        %v2055 = vld [vmem:[#allocation14 + $0x5c] sm:$0xf]
        %v2056 = vld [vmem:[#allocation14 + $0x60] sm:$0xf]
        %v2057 = vld [vmem:[#allocation14 + $0x64] sm:$0xf]
        %v2058 = vld [vmem:[#allocation14 + $0x68] sm:$0xf]
        %v2059 = vld [vmem:[#allocation14 + $0x6c] sm:$0xf]
        %v2060 = vld [vmem:[#allocation14 + $0x70] sm:$0xf]
        %v2061 = vld [vmem:[#allocation14 + $0x74] sm:$0xf]
        %v2062 = vld [vmem:[#allocation14 + $0x78] sm:$0xf]
        %v2063 = vld [vmem:[#allocation14 + $0x7c] sm:$0xf]
        %v2064 = vlaneseq
        %v2065 = vshrl.u32 %v2064, 7
        %v2066 = vsub.s32 0, %v2065
        %v2067 = vrot.slane %v1323, %v2066
        %v2100 = vunpack.c.l.b16 %v2032
        %v2101 = vunpack.c.l.b16 %v2033
        %v2102 = vunpack.c.l.b16 %v2034
        %v2103 = vunpack.c.l.b16 %v2035
        %v2104 = vunpack.c.l.b16 %v2036
        %v2105 = vunpack.c.l.b16 %v2037
        %v2106 = vunpack.c.l.b16 %v2038
        %v2107 = vunpack.c.l.b16 %v2039
        %v2108 = vunpack.c.l.b16 %v2040
        %v2109 = vunpack.c.l.b16 %v2041
        %v2110 = vunpack.c.l.b16 %v2042
        %v2111 = vunpack.c.l.b16 %v2043
        %v2112 = vunpack.c.l.b16 %v2044
        %v2113 = vunpack.c.l.b16 %v2045
        %v2114 = vunpack.c.l.b16 %v2046
        %v2115 = vunpack.c.l.b16 %v2047
        %v2116 = vunpack.c.l.b16 %v2048
        %v2117 = vunpack.c.l.b16 %v2049
        %v2118 = vunpack.c.l.b16 %v2050
        %v2119 = vunpack.c.l.b16 %v2051
        %v2120 = vunpack.c.l.b16 %v2052
        %v2121 = vunpack.c.l.b16 %v2053
        %v2122 = vunpack.c.l.b16 %v2054
        %v2123 = vunpack.c.l.b16 %v2055
        %v2124 = vunpack.c.l.b16 %v2056
        %v2125 = vunpack.c.l.b16 %v2057
        %v2126 = vunpack.c.l.b16 %v2058
        %v2127 = vunpack.c.l.b16 %v2059
        %v2128 = vunpack.c.l.b16 %v2060
        %v2129 = vunpack.c.l.b16 %v2061
        %v2130 = vunpack.c.l.b16 %v2062
        %v2131 = vunpack.c.l.b16 %v2063
        %v2132 = vpack.c.b16 %v2101, %v2100
        %v2133 = vpack.c.b16 %v2103, %v2102
        %v2134 = vpack.c.b16 %v2105, %v2104
        %v2135 = vpack.c.b16 %v2107, %v2106
        %v2136 = vpack.c.b16 %v2109, %v2108
        %v2137 = vpack.c.b16 %v2111, %v2110
        %v2138 = vpack.c.b16 %v2113, %v2112
        %v2139 = vpack.c.b16 %v2115, %v2114
        %v2140 = vpack.c.b16 %v2117, %v2116
        %v2141 = vpack.c.b16 %v2119, %v2118
        %v2142 = vpack.c.b16 %v2121, %v2120
        %v2143 = vpack.c.b16 %v2123, %v2122
        %v2144 = vpack.c.b16 %v2125, %v2124
        %v2145 = vpack.c.b16 %v2127, %v2126
        %v2146 = vpack.c.b16 %v2129, %v2128
        %v2147 = vpack.c.b16 %v2131, %v2130
        %2164 = vmatprep.subr.bf16.mxu0 0
        %2165 = vmatpush1.bf16.msra.mxu0 %v2132
        %2166 = vmatprep.subr.bf16.mxu0 0
        %2167 = vmatpush1.bf16.msra.mxu0 %v2133
        %2168 = vmatprep.subr.bf16.mxu0 0
        %2169 = vmatpush1.bf16.msra.mxu0 %v2134
        %2170 = vmatprep.subr.bf16.mxu0 0
        %2171 = vmatpush1.bf16.msra.mxu0 %v2135
        %2172 = vmatprep.subr.bf16.mxu0 0
        %2173 = vmatpush1.bf16.msra.mxu0 %v2136
        %2174 = vmatprep.subr.bf16.mxu0 0
        %2175 = vmatpush1.bf16.msra.mxu0 %v2137
        %2176 = vmatprep.subr.bf16.mxu0 0
        %2177 = vmatpush1.bf16.msra.mxu0 %v2138
        %2178 = vmatprep.subr.bf16.mxu0 0
        %2179 = vmatpush1.bf16.msra.mxu0 %v2139
        %2180 = vmatprep.subr.bf16.mxu0 0
        %2181 = vmatpush1.bf16.msra.mxu0 %v2140
        %2182 = vmatprep.subr.bf16.mxu0 0
        %2183 = vmatpush1.bf16.msra.mxu0 %v2141
        %2184 = vmatprep.subr.bf16.mxu0 0
        %2185 = vmatpush1.bf16.msra.mxu0 %v2142
        %2186 = vmatprep.subr.bf16.mxu0 0
        %2187 = vmatpush1.bf16.msra.mxu0 %v2143
        %2188 = vmatprep.subr.bf16.mxu0 0
        %2189 = vmatpush1.bf16.msra.mxu0 %v2144
        %2190 = vmatprep.subr.bf16.mxu0 0
        %2191 = vmatpush1.bf16.msra.mxu0 %v2145
        %2192 = vmatprep.subr.bf16.mxu0 0
        %2193 = vmatpush1.bf16.msra.mxu0 %v2146
        %2194 = vmatprep.subr.bf16.mxu0 0
        %2195 = vmatpush1.bf16.msra.mxu0 %v2147
        %2196 = vmatprep.mubr.bf16.mxu0 %v2031
        %2197 = vmatmul.mubr.bf16.gmra.mrb[0].mxu0 %v2030
        %v2198 = vpop.f32.mrb[0].mxu0
        %v2199 = vadd.f32 %v2067, %v2198
        %v2200 = vpop.f32.mrb[0].mxu0
        %v2201 = vpop.f32.mrb[0].mxu0
        %v2202 = vpop.f32.mrb[0].mxu0
        %2203 = vdwg.mxu0
        %v2204 = vadd.f32 %v1840, %v2199
        %2205 = vst [vmem:[%s1308] sm:$0xf] %v1623
        %2206 = vst [vmem:[%s1315] sm:$0xf] %v1683
        %v2207 = vld [vmem:[#allocation16] sm:$0xff]
        %v2208 = vld [vmem:[#allocation16 + $0x8] sm:$0x1]
        %2209 = vadd.xlane.f32.xlu0 %v2204
        %v2210 = vpop.xlane.xlu0 %2209
        %v2211 = vmul.f32 %v2210, %v1326
        %v2212 = vsub.f32 %v2204, %v2211
        %v2213 = vmul.f32 %v2212, %v2212
        %2214 = vadd.xlane.f32.xlu0 %v2213
        %v2215 = vpop.xlane.xlu0 %2214
        %v2216 = vmul.f32 %v2215, %v1326
        %v2217 = vadd.f32 %v2216, 1e-05
        %v2218 = vrsqrt.pop %v2217
        %v2219 = vmul.f32 %v2212, %v2218
        %v2220 = vlaneseq
        %v2221 = vshrl.u32 %v2220, 7
        %v2222 = vsub.s32 0, %v2221
        %v2223 = vrot.slane %v2207, %v2222
        %v2224 = vmul.f32 %v2219, %v2223
        %v2225 = vlaneseq
        %v2226 = vshrl.u32 %v2225, 7
        %v2227 = vsub.s32 1, %v2226
        %v2228 = vrot.slane %v2207, %v2227
        %v2229 = vadd.f32 %v2224, %v2228
        %v2230 = vpack.c.bf16 %v2229, %v2229
        %v2231 = vld [vmem:[#allocation17] sm:$0xff]
        %v2232 = vld [vmem:[#allocation17 + $0x8] sm:$0xf]
        %v2233 = vld [vmem:[#allocation17 + $0xc] sm:$0xff]
        %v2234 = vld [vmem:[#allocation17 + $0x14] sm:$0xf]
        %v2235 = vld [vmem:[#allocation17 + $0x18] sm:$0xff]
        %v2236 = vld [vmem:[#allocation17 + $0x20] sm:$0xf]
        %v2237 = vld [vmem:[#allocation17 + $0x24] sm:$0xff]
        %v2238 = vld [vmem:[#allocation17 + $0x2c] sm:$0xf]
        %v2239 = vld [vmem:[#allocation17 + $0x30] sm:$0xff]
        %v2240 = vld [vmem:[#allocation17 + $0x38] sm:$0xf]
        %v2241 = vld [vmem:[#allocation17 + $0x3c] sm:$0xff]
        %v2242 = vld [vmem:[#allocation17 + $0x44] sm:$0xf]
        %v2243 = vld [vmem:[#allocation17 + $0x48] sm:$0xff]
        %v2244 = vld [vmem:[#allocation17 + $0x50] sm:$0xf]
        %v2245 = vld [vmem:[#allocation17 + $0x54] sm:$0xff]
        %v2246 = vld [vmem:[#allocation17 + $0x5c] sm:$0xf]
        %v2247 = vld [vmem:[#allocation17 + $0x60] sm:$0xff]
        %v2248 = vld [vmem:[#allocation17 + $0x68] sm:$0xf]
        %v2249 = vld [vmem:[#allocation17 + $0x6c] sm:$0xff]
        %v2250 = vld [vmem:[#allocation17 + $0x74] sm:$0xf]
        %v2251 = vld [vmem:[#allocation17 + $0x78] sm:$0xff]
        %v2252 = vld [vmem:[#allocation17 + $0x80] sm:$0xf]
        %v2253 = vld [vmem:[#allocation17 + $0x84] sm:$0xff]
        %v2254 = vld [vmem:[#allocation17 + $0x8c] sm:$0xf]
        %v2255 = vld [vmem:[#allocation17 + $0x90] sm:$0xff]
        %v2256 = vld [vmem:[#allocation17 + $0x98] sm:$0xf]
        %v2257 = vld [vmem:[#allocation17 + $0x9c] sm:$0xff]
        %v2258 = vld [vmem:[#allocation17 + $0xa4] sm:$0xf]
        %v2259 = vld [vmem:[#allocation17 + $0xa8] sm:$0xff]
        %v2260 = vld [vmem:[#allocation17 + $0xb0] sm:$0xf]
        %v2261 = vld [vmem:[#allocation17 + $0xb4] sm:$0xff]
        %v2262 = vld [vmem:[#allocation17 + $0xbc] sm:$0xf]
        %v2295 = vunpack.c.l.b16 %v2231
        %v2296 = vunpack.c.h.b16 %v2231
        %v2297 = vunpack.c.l.b16 %v2232
        %v2298 = vunpack.c.l.b16 %v2233
        %v2299 = vunpack.c.h.b16 %v2233
        %v2300 = vunpack.c.l.b16 %v2234
        %v2301 = vunpack.c.l.b16 %v2235
        %v2302 = vunpack.c.h.b16 %v2235
        %v2303 = vunpack.c.l.b16 %v2236
        %v2304 = vunpack.c.l.b16 %v2237
        %v2305 = vunpack.c.h.b16 %v2237
        %v2306 = vunpack.c.l.b16 %v2238
        %v2307 = vunpack.c.l.b16 %v2239
        %v2308 = vunpack.c.h.b16 %v2239
        %v2309 = vunpack.c.l.b16 %v2240
        %v2310 = vunpack.c.l.b16 %v2241
        %v2311 = vunpack.c.h.b16 %v2241
        %v2312 = vunpack.c.l.b16 %v2242
        %v2313 = vunpack.c.l.b16 %v2243
        %v2314 = vunpack.c.h.b16 %v2243
        %v2315 = vunpack.c.l.b16 %v2244
        %v2316 = vunpack.c.l.b16 %v2245
        %v2317 = vunpack.c.h.b16 %v2245
        %v2318 = vunpack.c.l.b16 %v2246
        %v2319 = vunpack.c.l.b16 %v2247
        %v2320 = vunpack.c.h.b16 %v2247
        %v2321 = vunpack.c.l.b16 %v2248
        %v2322 = vunpack.c.l.b16 %v2249
        %v2323 = vunpack.c.h.b16 %v2249
        %v2324 = vunpack.c.l.b16 %v2250
        %v2325 = vunpack.c.l.b16 %v2251
        %v2326 = vunpack.c.h.b16 %v2251
        %v2327 = vunpack.c.l.b16 %v2252
        %v2328 = vunpack.c.l.b16 %v2253
        %v2329 = vunpack.c.h.b16 %v2253
        %v2330 = vunpack.c.l.b16 %v2254
        %v2331 = vunpack.c.l.b16 %v2255
        %v2332 = vunpack.c.h.b16 %v2255
        %v2333 = vunpack.c.l.b16 %v2256
        %v2334 = vunpack.c.l.b16 %v2257
        %v2335 = vunpack.c.h.b16 %v2257
        %v2336 = vunpack.c.l.b16 %v2258
        %v2337 = vunpack.c.l.b16 %v2259
        %v2338 = vunpack.c.h.b16 %v2259
        %v2339 = vunpack.c.l.b16 %v2260
        %v2340 = vunpack.c.l.b16 %v2261
        %v2341 = vunpack.c.h.b16 %v2261
        %v2342 = vunpack.c.l.b16 %v2262
        %v2343 = vpack.c.b16 %v2298, %v2295
        %v2344 = vpack.c.b16 %v2299, %v2296
        %v2345 = vpack.c.b16 %v2300, %v2297
        %v2346 = vpack.c.b16 %v2304, %v2301
        %v2347 = vpack.c.b16 %v2305, %v2302
        %v2348 = vpack.c.b16 %v2306, %v2303
        %v2349 = vpack.c.b16 %v2310, %v2307
        %v2350 = vpack.c.b16 %v2311, %v2308
        %v2351 = vpack.c.b16 %v2312, %v2309
        %v2352 = vpack.c.b16 %v2316, %v2313
        %v2353 = vpack.c.b16 %v2317, %v2314
        %v2354 = vpack.c.b16 %v2318, %v2315
        %v2355 = vpack.c.b16 %v2322, %v2319
        %v2356 = vpack.c.b16 %v2323, %v2320
        %v2357 = vpack.c.b16 %v2324, %v2321
        %v2358 = vpack.c.b16 %v2328, %v2325
        %v2359 = vpack.c.b16 %v2329, %v2326
        %v2360 = vpack.c.b16 %v2330, %v2327
        %v2361 = vpack.c.b16 %v2334, %v2331
        %v2362 = vpack.c.b16 %v2335, %v2332
        %v2363 = vpack.c.b16 %v2336, %v2333
        %v2364 = vpack.c.b16 %v2340, %v2337
        %v2365 = vpack.c.b16 %v2341, %v2338
        %v2366 = vpack.c.b16 %v2342, %v2339
        %2391 = vmatprep.subr.bf16.mxu0 %v2344
        %2392 = vmatpush1.bf16.msra.mxu0 %v2343
        %2393 = vmatprep.subr.bf16.mxu0 %v2347
        %2394 = vmatpush1.bf16.msra.mxu0 %v2346
        %2395 = vmatprep.subr.bf16.mxu0 %v2350
        %2396 = vmatpush1.bf16.msra.mxu0 %v2349
        %2397 = vmatprep.subr.bf16.mxu0 %v2353
        %2398 = vmatpush1.bf16.msra.mxu0 %v2352
        %2399 = vmatprep.subr.bf16.mxu0 %v2356
        %2400 = vmatpush1.bf16.msra.mxu0 %v2355
        %2401 = vmatprep.subr.bf16.mxu0 %v2359
        %2402 = vmatpush1.bf16.msra.mxu0 %v2358
        %2403 = vmatprep.subr.bf16.mxu0 %v2362
        %2404 = vmatpush1.bf16.msra.mxu0 %v2361
        %2405 = vmatprep.subr.bf16.mxu0 %v2365
        %2406 = vmatpush1.bf16.msra.mxu0 %v2364
        %2407 = vmatprep.subr.bf16.mxu0 0
        %2408 = vmatpush1.bf16.msra.mxu0 0
        %2409 = vmatprep.subr.bf16.mxu0 0
        %2410 = vmatpush1.bf16.msra.mxu0 0
        %2411 = vmatprep.subr.bf16.mxu0 0
        %2412 = vmatpush1.bf16.msra.mxu0 0
        %2413 = vmatprep.subr.bf16.mxu0 0
        %2414 = vmatpush1.bf16.msra.mxu0 0
        %2415 = vmatprep.subr.bf16.mxu0 0
        %2416 = vmatpush1.bf16.msra.mxu0 0
        %2417 = vmatprep.subr.bf16.mxu0 0
        %2418 = vmatpush1.bf16.msra.mxu0 0
        %2419 = vmatprep.subr.bf16.mxu0 0
        %2420 = vmatpush1.bf16.msra.mxu0 0
        %2421 = vmatprep.subr.bf16.mxu0 0
        %2422 = vmatpush1.bf16.msra.mxu0 0
        %2423 = vmatprep.mubr.bf16.mxu0 0
        %2424 = vmatmul.mubr.bf16.gmra.mrb[0].mxu0 %v2230
        %v2425 = vpop.f32.mrb[0].mxu0
        %v2426 = vadd.f32 0.0, %v2425
        %v2427 = vpop.f32.mrb[0].mxu0
        %v2428 = vadd.f32 0.0, %v2427
        %v2429 = vpop.f32.mrb[0].mxu0
        %v2430 = vpop.f32.mrb[0].mxu0
        %2431 = vdwg.mxu0
        %2432 = vmatprep.subr.bf16.mxu0 0
        %2433 = vmatpush1.bf16.msra.mxu0 %v2345
        %2434 = vmatprep.subr.bf16.mxu0 0
        %2435 = vmatpush1.bf16.msra.mxu0 %v2348
        %2436 = vmatprep.subr.bf16.mxu0 0
        %2437 = vmatpush1.bf16.msra.mxu0 %v2351
        %2438 = vmatprep.subr.bf16.mxu0 0
        %2439 = vmatpush1.bf16.msra.mxu0 %v2354
        %2440 = vmatprep.subr.bf16.mxu0 0
        %2441 = vmatpush1.bf16.msra.mxu0 %v2357
        %2442 = vmatprep.subr.bf16.mxu0 0
        %2443 = vmatpush1.bf16.msra.mxu0 %v2360
        %2444 = vmatprep.subr.bf16.mxu0 0
        %2445 = vmatpush1.bf16.msra.mxu0 %v2363
        %2446 = vmatprep.subr.bf16.mxu0 0
        %2447 = vmatpush1.bf16.msra.mxu0 %v2366
        %2448 = vmatprep.subr.bf16.mxu0 0
        %2449 = vmatpush1.bf16.msra.mxu0 0
        %2450 = vmatprep.subr.bf16.mxu0 0
        %2451 = vmatpush1.bf16.msra.mxu0 0
        %2452 = vmatprep.subr.bf16.mxu0 0
        %2453 = vmatpush1.bf16.msra.mxu0 0
        %2454 = vmatprep.subr.bf16.mxu0 0
        %2455 = vmatpush1.bf16.msra.mxu0 0
        %2456 = vmatprep.subr.bf16.mxu0 0
        %2457 = vmatpush1.bf16.msra.mxu0 0
        %2458 = vmatprep.subr.bf16.mxu0 0
        %2459 = vmatpush1.bf16.msra.mxu0 0
        %2460 = vmatprep.subr.bf16.mxu0 0
        %2461 = vmatpush1.bf16.msra.mxu0 0
        %2462 = vmatprep.subr.bf16.mxu0 0
        %2463 = vmatpush1.bf16.msra.mxu0 0
        %2464 = vmatprep.mubr.bf16.mxu0 0
        %2465 = vmatmul.mubr.bf16.gmra.mrb[0].mxu0 %v2230
        %v2466 = vpop.f32.mrb[0].mxu0
        %v2467 = vadd.f32 0.0, %v2466
        %v2468 = vpop.f32.mrb[0].mxu0
        %v2469 = vpop.f32.mrb[0].mxu0
        %v2470 = vpop.f32.mrb[0].mxu0
        %2471 = vdwg.mxu0
        %v2472 = vlaneseq
        %v2473 = vshrl.u32 %v2472, 7
        %v2474 = vsub.s32 2, %v2473
        %v2475 = vrot.slane %v2207, %v2474
        %v2476 = vadd.f32 %v2426, %v2475
        %v2477 = vlaneseq
        %v2478 = vshrl.u32 %v2477, 7
        %v2479 = vsub.s32 3, %v2478
        %v2480 = vrot.slane %v2207, %v2479
        %v2481 = vadd.f32 %v2428, %v2480
        %v2482 = vlaneseq
        %v2483 = vshrl.u32 %v2482, 7
        %v2484 = vsub.s32 4, %v2483
        %v2485 = vrot.slane %v2207, %v2484
        %v2486 = vadd.f32 %v2467, %v2485
        %2487 = vrot.lane.b32.xlu0 %v2476, 96
        %v2488 = vpop.permute.xlu0 %2487
        %2489 = vrot.lane.b32.xlu0 %v2476, 32
        %v2490 = vpop.permute.xlu0 %2489
        %v2491 = vmul.f32 %v2476, %v1319
        %v2492 = vmul.f32 %v2488, %v1320
        %v2493 = vadd.f32 %v2491, %v2492
        %v2494 = vmul.f32 %v2490, %v1321
        %v2495 = vadd.f32 %v2493, %v2494
        %v2496 = vmul.f32 %v2495, 0.088388346
        %2497 = vrot.lane.b32.xlu0 %v2481, 96
        %v2498 = vpop.permute.xlu0 %2497
        %2499 = vrot.lane.b32.xlu0 %v2481, 32
        %v2500 = vpop.permute.xlu0 %2499
        %v2501 = vmul.f32 %v2481, %v1319
        %v2502 = vmul.f32 %v2498, %v1320
        %v2503 = vadd.f32 %v2501, %v2502
        %v2504 = vmul.f32 %v2500, %v1321
        %v2505 = vadd.f32 %v2503, %v2504
        %v2506 = vpack.c.bf16 %v2496, %v2496
        %v2507 = vpack.c.bf16 %v2505, %v2505
        %2508 = vmatprep.subr.bf16.mxu0 0
        %2509 = vmatpush1.bf16.xpose.msra.mxu0 %v2507
        %2510 = vmatprep.subr.bf16.mxu0 0
        %2511 = vmatpush1.bf16.xpose.msra.mxu0 0
        %2512 = vmatprep.subr.bf16.mxu0 0
        %2513 = vmatpush1.bf16.xpose.msra.mxu0 0
        %2514 = vmatprep.subr.bf16.mxu0 0
        %2515 = vmatpush1.bf16.xpose.msra.mxu0 0
        %2516 = vmatprep.subr.bf16.mxu0 0
        %2517 = vmatpush1.bf16.xpose.msra.mxu0 0
        %2518 = vmatprep.subr.bf16.mxu0 0
        %2519 = vmatpush1.bf16.xpose.msra.mxu0 0
        %2520 = vmatprep.subr.bf16.mxu0 0
        %2521 = vmatpush1.bf16.xpose.msra.mxu0 0
        %2522 = vmatprep.subr.bf16.mxu0 0
        %2523 = vmatpush1.bf16.xpose.msra.mxu0 0
        %2524 = vmatprep.subr.bf16.mxu0 0
        %2525 = vmatpush1.bf16.xpose.msra.mxu0 0
        %2526 = vmatprep.subr.bf16.mxu0 0
        %2527 = vmatpush1.bf16.xpose.msra.mxu0 0
        %2528 = vmatprep.subr.bf16.mxu0 0
        %2529 = vmatpush1.bf16.xpose.msra.mxu0 0
        %2530 = vmatprep.subr.bf16.mxu0 0
        %2531 = vmatpush1.bf16.xpose.msra.mxu0 0
        %2532 = vmatprep.subr.bf16.mxu0 0
        %2533 = vmatpush1.bf16.xpose.msra.mxu0 0
        %2534 = vmatprep.subr.bf16.mxu0 0
        %2535 = vmatpush1.bf16.xpose.msra.mxu0 0
        %2536 = vmatprep.subr.bf16.mxu0 0
        %2537 = vmatpush1.bf16.xpose.msra.mxu0 0
        %2538 = vmatprep.subr.bf16.mxu0 0
        %2539 = vmatpush1.bf16.xpose.msra.mxu0 0
        %2540 = vmatprep.mubr.bf16.mxu0 0
        %2541 = vmatmul.mubr.bf16.gmra.mrb[0].mxu0 %v2506
        %v2542 = vpop.f32.mrb[0].mxu0
        %v2543 = vadd.f32 0.0, %v2542
        %v2544 = vpop.f32.mrb[0].mxu0
        %v2545 = vpop.f32.mrb[0].mxu0
        %v2546 = vpop.f32.mrb[0].mxu0
        %2547 = vdwg.mxu0
        %v2548 = vsel %vm1668, %v2543, -1e+30
        %v2549 = vsel %vm1670, %v2548, -inf
        %2550 = vmax.xlane.f32.xlu0 %v2549
        %v2551 = vpop.xlane.xlu0 %2550
        %v2552 = vsub.f32 %v2548, %v2551
        %v2553 = vmul.f32 %v2552, 1.442695
        %v2554 = vpow.pop %v2553
        %v2555 = vsel %vm1670, %v2554, 0.0
        %2556 = vadd.xlane.f32.xlu0 %v2555
        %v2557 = vpop.xlane.xlu0 %2556
        %v2558 = vrcp.pop %v2557
        %v2559 = vmul.f32 %v2554, %v2558
        %v2560 = vpack.c.bf16 %v2559, %v2559
        %v2561 = vpack.c.bf16 %v2486, %v2486
        %v2563 = vsel %vm1670, %v2560, 0
        %v2566 = vsel %vm1687, %v2561, 0
        %2568 = vmatprep.subr.bf16.mxu0 0
        %2569 = vmatpush1.bf16.msra.mxu0 %v2566
        %2570 = vmatprep.subr.bf16.mxu0 0
        %2571 = vmatpush1.bf16.msra.mxu0 0
        %2572 = vmatprep.subr.bf16.mxu0 0
        %2573 = vmatpush1.bf16.msra.mxu0 0
        %2574 = vmatprep.subr.bf16.mxu0 0
        %2575 = vmatpush1.bf16.msra.mxu0 0
        %2576 = vmatprep.subr.bf16.mxu0 0
        %2577 = vmatpush1.bf16.msra.mxu0 0
        %2578 = vmatprep.subr.bf16.mxu0 0
        %2579 = vmatpush1.bf16.msra.mxu0 0
        %2580 = vmatprep.subr.bf16.mxu0 0
        %2581 = vmatpush1.bf16.msra.mxu0 0
        %2582 = vmatprep.subr.bf16.mxu0 0
        %2583 = vmatpush1.bf16.msra.mxu0 0
        %2584 = vmatprep.subr.bf16.mxu0 0
        %2585 = vmatpush1.bf16.msra.mxu0 0
        %2586 = vmatprep.subr.bf16.mxu0 0
        %2587 = vmatpush1.bf16.msra.mxu0 0
        %2588 = vmatprep.subr.bf16.mxu0 0
        %2589 = vmatpush1.bf16.msra.mxu0 0
        %2590 = vmatprep.subr.bf16.mxu0 0
        %2591 = vmatpush1.bf16.msra.mxu0 0
        %2592 = vmatprep.subr.bf16.mxu0 0
        %2593 = vmatpush1.bf16.msra.mxu0 0
        %2594 = vmatprep.subr.bf16.mxu0 0
        %2595 = vmatpush1.bf16.msra.mxu0 0
        %2596 = vmatprep.subr.bf16.mxu0 0
        %2597 = vmatpush1.bf16.msra.mxu0 0
        %2598 = vmatprep.subr.bf16.mxu0 0
        %2599 = vmatpush1.bf16.msra.mxu0 0
        %2600 = vmatprep.mubr.bf16.mxu0 0
        %2601 = vmatmul.mubr.bf16.gmra.mrb[0].mxu0 %v2563
        %v2602 = vpop.f32.mrb[0].mxu0
        %v2603 = vadd.f32 0.0, %v2602
        %v2604 = vpop.f32.mrb[0].mxu0
        %v2605 = vpop.f32.mrb[0].mxu0
        %v2606 = vpop.f32.mrb[0].mxu0
        %2607 = vdwg.mxu0
        %v2608 = vpack.c.bf16 %v2603, %v2603
        %v2609 = vld [vmem:[#allocation19] sm:$0xf]
        %v2610 = vld [vmem:[#allocation19 + $0x4] sm:$0xf]
        %v2611 = vld [vmem:[#allocation19 + $0x8] sm:$0xf]
        %v2612 = vld [vmem:[#allocation19 + $0xc] sm:$0xf]
        %v2613 = vld [vmem:[#allocation19 + $0x10] sm:$0xf]
        %v2614 = vld [vmem:[#allocation19 + $0x14] sm:$0xf]
        %v2615 = vld [vmem:[#allocation19 + $0x18] sm:$0xf]
        %v2616 = vld [vmem:[#allocation19 + $0x1c] sm:$0xf]
        %v2617 = vld [vmem:[#allocation19 + $0x20] sm:$0xf]
        %v2618 = vld [vmem:[#allocation19 + $0x24] sm:$0xf]
        %v2619 = vld [vmem:[#allocation19 + $0x28] sm:$0xf]
        %v2620 = vld [vmem:[#allocation19 + $0x2c] sm:$0xf]
        %v2621 = vld [vmem:[#allocation19 + $0x30] sm:$0xf]
        %v2622 = vld [vmem:[#allocation19 + $0x34] sm:$0xf]
        %v2623 = vld [vmem:[#allocation19 + $0x38] sm:$0xf]
        %v2624 = vld [vmem:[#allocation19 + $0x3c] sm:$0xf]
        %v2625 = vlaneseq
        %v2626 = vshrl.u32 %v2625, 7
        %v2627 = vsub.s32 5, %v2626
        %v2628 = vrot.slane %v2207, %v2627
        %v2645 = vunpack.c.l.b16 %v2609
        %v2646 = vunpack.c.l.b16 %v2610
        %v2647 = vunpack.c.l.b16 %v2611
        %v2648 = vunpack.c.l.b16 %v2612
        %v2649 = vunpack.c.l.b16 %v2613
        %v2650 = vunpack.c.l.b16 %v2614
        %v2651 = vunpack.c.l.b16 %v2615
        %v2652 = vunpack.c.l.b16 %v2616
        %v2653 = vunpack.c.l.b16 %v2617
        %v2654 = vunpack.c.l.b16 %v2618
        %v2655 = vunpack.c.l.b16 %v2619
        %v2656 = vunpack.c.l.b16 %v2620
        %v2657 = vunpack.c.l.b16 %v2621
        %v2658 = vunpack.c.l.b16 %v2622
        %v2659 = vunpack.c.l.b16 %v2623
        %v2660 = vunpack.c.l.b16 %v2624
        %v2661 = vpack.c.b16 %v2646, %v2645
        %v2662 = vpack.c.b16 %v2648, %v2647
        %v2663 = vpack.c.b16 %v2650, %v2649
        %v2664 = vpack.c.b16 %v2652, %v2651
        %v2665 = vpack.c.b16 %v2654, %v2653
        %v2666 = vpack.c.b16 %v2656, %v2655
        %v2667 = vpack.c.b16 %v2658, %v2657
        %v2668 = vpack.c.b16 %v2660, %v2659
        %2677 = vmatprep.subr.bf16.mxu0 0
        %2678 = vmatpush1.bf16.msra.mxu0 %v2661
        %2679 = vmatprep.subr.bf16.mxu0 0
        %2680 = vmatpush1.bf16.msra.mxu0 %v2662
        %2681 = vmatprep.subr.bf16.mxu0 0
        %2682 = vmatpush1.bf16.msra.mxu0 %v2663
        %2683 = vmatprep.subr.bf16.mxu0 0
        %2684 = vmatpush1.bf16.msra.mxu0 %v2664
        %2685 = vmatprep.subr.bf16.mxu0 0
        %2686 = vmatpush1.bf16.msra.mxu0 %v2665
        %2687 = vmatprep.subr.bf16.mxu0 0
        %2688 = vmatpush1.bf16.msra.mxu0 %v2666
        %2689 = vmatprep.subr.bf16.mxu0 0
        %2690 = vmatpush1.bf16.msra.mxu0 %v2667
        %2691 = vmatprep.subr.bf16.mxu0 0
        %2692 = vmatpush1.bf16.msra.mxu0 %v2668
        %2693 = vmatprep.subr.bf16.mxu0 0
        %2694 = vmatpush1.bf16.msra.mxu0 0
        %2695 = vmatprep.subr.bf16.mxu0 0
        %2696 = vmatpush1.bf16.msra.mxu0 0
        %2697 = vmatprep.subr.bf16.mxu0 0
        %2698 = vmatpush1.bf16.msra.mxu0 0
        %2699 = vmatprep.subr.bf16.mxu0 0
        %2700 = vmatpush1.bf16.msra.mxu0 0
        %2701 = vmatprep.subr.bf16.mxu0 0
        %2702 = vmatpush1.bf16.msra.mxu0 0
        %2703 = vmatprep.subr.bf16.mxu0 0
        %2704 = vmatpush1.bf16.msra.mxu0 0
        %2705 = vmatprep.subr.bf16.mxu0 0
        %2706 = vmatpush1.bf16.msra.mxu0 0
        %2707 = vmatprep.subr.bf16.mxu0 0
        %2708 = vmatpush1.bf16.msra.mxu0 0
        %2709 = vmatprep.mubr.bf16.mxu0 0
        %2710 = vmatmul.mubr.bf16.gmra.mrb[0].mxu0 %v2608
        %v2711 = vpop.f32.mrb[0].mxu0
        %v2712 = vadd.f32 %v2628, %v2711
        %v2713 = vpop.f32.mrb[0].mxu0
        %v2714 = vpop.f32.mrb[0].mxu0
        %v2715 = vpop.f32.mrb[0].mxu0
        %2716 = vdwg.mxu0
        %v2717 = vadd.f32 %v2204, %v2712
        %v2718 = vld [vmem:[#allocation22] sm:$0x3]
        %2719 = vadd.xlane.f32.xlu0 %v2717
        %v2720 = vpop.xlane.xlu0 %2719
        %v2721 = vmul.f32 %v2720, %v1326
        %v2722 = vsub.f32 %v2717, %v2721
        %v2723 = vmul.f32 %v2722, %v2722
        %2724 = vadd.xlane.f32.xlu0 %v2723
        %v2725 = vpop.xlane.xlu0 %2724
        %v2726 = vmul.f32 %v2725, %v1326
        %v2727 = vadd.f32 %v2726, 1e-05
        %v2728 = vrsqrt.pop %v2727
        %v2729 = vmul.f32 %v2722, %v2728
        %v2730 = vlaneseq
        %v2731 = vshrl.u32 %v2730, 7
        %v2732 = vsub.s32 6, %v2731
        %v2733 = vrot.slane %v2207, %v2732
        %v2734 = vmul.f32 %v2729, %v2733
        %v2735 = vlaneseq
        %v2736 = vshrl.u32 %v2735, 7
        %v2737 = vsub.s32 7, %v2736
        %v2738 = vrot.slane %v2207, %v2737
        %v2739 = vadd.f32 %v2734, %v2738
        %v2740 = vpack.c.bf16 %v2739, %v2739
        %v2741 = vld [vmem:[#allocation20] sm:$0xff]
        %v2742 = vld [vmem:[#allocation20 + $0x8] sm:$0xff]
        %v2743 = vld [vmem:[#allocation20 + $0x10] sm:$0xff]
        %v2744 = vld [vmem:[#allocation20 + $0x18] sm:$0xff]
        %v2745 = vld [vmem:[#allocation20 + $0x20] sm:$0xff]
        %v2746 = vld [vmem:[#allocation20 + $0x28] sm:$0xff]
        %v2747 = vld [vmem:[#allocation20 + $0x30] sm:$0xff]
        %v2748 = vld [vmem:[#allocation20 + $0x38] sm:$0xff]
        %v2749 = vld [vmem:[#allocation20 + $0x40] sm:$0xff]
        %v2750 = vld [vmem:[#allocation20 + $0x48] sm:$0xff]
        %v2751 = vld [vmem:[#allocation20 + $0x50] sm:$0xff]
        %v2752 = vld [vmem:[#allocation20 + $0x58] sm:$0xff]
        %v2753 = vld [vmem:[#allocation20 + $0x60] sm:$0xff]
        %v2754 = vld [vmem:[#allocation20 + $0x68] sm:$0xff]
        %v2755 = vld [vmem:[#allocation20 + $0x70] sm:$0xff]
        %v2756 = vld [vmem:[#allocation20 + $0x78] sm:$0xff]
        %v2758 = vlaneseq
        %v2759 = vshrl.u32 %v2758, 7
        %v2760 = vsub.s32 0, %v2759
        %v2761 = vrot.slane %v2718, %v2760
        %v2762 = vlaneseq
        %v2763 = vshrl.u32 %v2762, 7
        %v2764 = vsub.s32 1, %v2763
        %v2765 = vrot.slane %v2718, %v2764
        %v2784 = vunpack.c.l.b16 %v2741
        %v2785 = vunpack.c.h.b16 %v2741
        %v2786 = vunpack.c.l.b16 %v2742
        %v2787 = vunpack.c.h.b16 %v2742
        %v2788 = vunpack.c.l.b16 %v2743
        %v2789 = vunpack.c.h.b16 %v2743
        %v2790 = vunpack.c.l.b16 %v2744
        %v2791 = vunpack.c.h.b16 %v2744
        %v2792 = vunpack.c.l.b16 %v2745
        %v2793 = vunpack.c.h.b16 %v2745
        %v2794 = vunpack.c.l.b16 %v2746
        %v2795 = vunpack.c.h.b16 %v2746
        %v2796 = vunpack.c.l.b16 %v2747
        %v2797 = vunpack.c.h.b16 %v2747
        %v2798 = vunpack.c.l.b16 %v2748
        %v2799 = vunpack.c.h.b16 %v2748
        %v2800 = vunpack.c.l.b16 %v2749
        %v2801 = vunpack.c.h.b16 %v2749
        %v2802 = vunpack.c.l.b16 %v2750
        %v2803 = vunpack.c.h.b16 %v2750
        %v2804 = vunpack.c.l.b16 %v2751
        %v2805 = vunpack.c.h.b16 %v2751
        %v2806 = vunpack.c.l.b16 %v2752
        %v2807 = vunpack.c.h.b16 %v2752
        %v2808 = vunpack.c.l.b16 %v2753
        %v2809 = vunpack.c.h.b16 %v2753
        %v2810 = vunpack.c.l.b16 %v2754
        %v2811 = vunpack.c.h.b16 %v2754
        %v2812 = vunpack.c.l.b16 %v2755
        %v2813 = vunpack.c.h.b16 %v2755
        %v2814 = vunpack.c.l.b16 %v2756
        %v2815 = vunpack.c.h.b16 %v2756
        %v2816 = vpack.c.b16 %v2786, %v2784
        %v2817 = vpack.c.b16 %v2787, %v2785
        %v2818 = vpack.c.b16 %v2790, %v2788
        %v2819 = vpack.c.b16 %v2791, %v2789
        %v2820 = vpack.c.b16 %v2794, %v2792
        %v2821 = vpack.c.b16 %v2795, %v2793
        %v2822 = vpack.c.b16 %v2798, %v2796
        %v2823 = vpack.c.b16 %v2799, %v2797
        %v2824 = vpack.c.b16 %v2802, %v2800
        %v2825 = vpack.c.b16 %v2803, %v2801
        %v2826 = vpack.c.b16 %v2806, %v2804
        %v2827 = vpack.c.b16 %v2807, %v2805
        %v2828 = vpack.c.b16 %v2810, %v2808
        %v2829 = vpack.c.b16 %v2811, %v2809
        %v2830 = vpack.c.b16 %v2814, %v2812
        %v2831 = vpack.c.b16 %v2815, %v2813
        %2848 = vmatprep.subr.bf16.mxu0 %v2817
        %2849 = vmatpush1.bf16.msra.mxu0 %v2816
        %2850 = vmatprep.subr.bf16.mxu0 %v2819
        %2851 = vmatpush1.bf16.msra.mxu0 %v2818
        %2852 = vmatprep.subr.bf16.mxu0 %v2821
        %2853 = vmatpush1.bf16.msra.mxu0 %v2820
        %2854 = vmatprep.subr.bf16.mxu0 %v2823
        %2855 = vmatpush1.bf16.msra.mxu0 %v2822
        %2856 = vmatprep.subr.bf16.mxu0 %v2825
        %2857 = vmatpush1.bf16.msra.mxu0 %v2824
        %2858 = vmatprep.subr.bf16.mxu0 %v2827
        %2859 = vmatpush1.bf16.msra.mxu0 %v2826
        %2860 = vmatprep.subr.bf16.mxu0 %v2829
        %2861 = vmatpush1.bf16.msra.mxu0 %v2828
        %2862 = vmatprep.subr.bf16.mxu0 %v2831
        %2863 = vmatpush1.bf16.msra.mxu0 %v2830
        %2864 = vmatprep.subr.bf16.mxu0 0
        %2865 = vmatpush1.bf16.msra.mxu0 0
        %2866 = vmatprep.subr.bf16.mxu0 0
        %2867 = vmatpush1.bf16.msra.mxu0 0
        %2868 = vmatprep.subr.bf16.mxu0 0
        %2869 = vmatpush1.bf16.msra.mxu0 0
        %2870 = vmatprep.subr.bf16.mxu0 0
        %2871 = vmatpush1.bf16.msra.mxu0 0
        %2872 = vmatprep.subr.bf16.mxu0 0
        %2873 = vmatpush1.bf16.msra.mxu0 0
        %2874 = vmatprep.subr.bf16.mxu0 0
        %2875 = vmatpush1.bf16.msra.mxu0 0
        %2876 = vmatprep.subr.bf16.mxu0 0
        %2877 = vmatpush1.bf16.msra.mxu0 0
        %2878 = vmatprep.subr.bf16.mxu0 0
        %2879 = vmatpush1.bf16.msra.mxu0 0
        %2880 = vmatprep.mubr.bf16.mxu0 0
        %2881 = vmatmul.mubr.bf16.gmra.mrb[0].mxu0 %v2740
        %v2882 = vpop.f32.mrb[0].mxu0
        %v2883 = vadd.f32 %v2761, %v2882
        %v2884 = vpop.f32.mrb[0].mxu0
        %v2885 = vadd.f32 %v2765, %v2884
        %v2886 = vpop.f32.mrb[0].mxu0
        %v2887 = vpop.f32.mrb[0].mxu0
        %2888 = vdwg.mxu0
        %v2889 = vmul.f32 %v2883, %v2883
        %v2890 = vmul.f32 %v2885, %v2885
        %v2891 = vmul.f32 %v2883, %v2889
        %v2892 = vmul.f32 %v2885, %v2890
        %v2893 = vmul.f32 %v2891, 0.044715
        %v2894 = vmul.f32 %v2892, 0.044715
        %v2895 = vadd.f32 %v2883, %v2893
        %v2896 = vadd.f32 %v2885, %v2894
        %v2897 = vmul.f32 %v2895, 0.7978846
        %v2898 = vmul.f32 %v2896, 0.7978846
        %v2899 = vtanh.pop %v2897
        %v2900 = vtanh.pop %v2898
        %v2901 = vadd.f32 %v2899, 1.0
        %v2902 = vadd.f32 %v2900, 1.0
        %v2903 = vmul.f32 %v2901, 0.5
        %v2904 = vmul.f32 %v2902, 0.5
        %v2905 = vmul.f32 %v2883, %v2903
        %v2906 = vmul.f32 %v2885, %v2904
        %v2907 = vpack.c.bf16 %v2905, %v2905
        %v2908 = vpack.c.bf16 %v2906, %v2906
        %v2909 = vld [vmem:[#allocation23] sm:$0xf]
        %v2910 = vld [vmem:[#allocation23 + $0x4] sm:$0xf]
        %v2911 = vld [vmem:[#allocation23 + $0x8] sm:$0xf]
        %v2912 = vld [vmem:[#allocation23 + $0xc] sm:$0xf]
        %v2913 = vld [vmem:[#allocation23 + $0x10] sm:$0xf]
        %v2914 = vld [vmem:[#allocation23 + $0x14] sm:$0xf]
        %v2915 = vld [vmem:[#allocation23 + $0x18] sm:$0xf]
        %v2916 = vld [vmem:[#allocation23 + $0x1c] sm:$0xf]
        %v2917 = vld [vmem:[#allocation23 + $0x20] sm:$0xf]
        %v2918 = vld [vmem:[#allocation23 + $0x24] sm:$0xf]
        %v2919 = vld [vmem:[#allocation23 + $0x28] sm:$0xf]
        %v2920 = vld [vmem:[#allocation23 + $0x2c] sm:$0xf]
        %v2921 = vld [vmem:[#allocation23 + $0x30] sm:$0xf]
        %v2922 = vld [vmem:[#allocation23 + $0x34] sm:$0xf]
        %v2923 = vld [vmem:[#allocation23 + $0x38] sm:$0xf]
        %v2924 = vld [vmem:[#allocation23 + $0x3c] sm:$0xf]
        %v2925 = vld [vmem:[#allocation23 + $0x40] sm:$0xf]
        %v2926 = vld [vmem:[#allocation23 + $0x44] sm:$0xf]
        %v2927 = vld [vmem:[#allocation23 + $0x48] sm:$0xf]
        %v2928 = vld [vmem:[#allocation23 + $0x4c] sm:$0xf]
        %v2929 = vld [vmem:[#allocation23 + $0x50] sm:$0xf]
        %v2930 = vld [vmem:[#allocation23 + $0x54] sm:$0xf]
        %v2931 = vld [vmem:[#allocation23 + $0x58] sm:$0xf]
        %v2932 = vld [vmem:[#allocation23 + $0x5c] sm:$0xf]
        %v2933 = vld [vmem:[#allocation23 + $0x60] sm:$0xf]
        %v2934 = vld [vmem:[#allocation23 + $0x64] sm:$0xf]
        %v2935 = vld [vmem:[#allocation23 + $0x68] sm:$0xf]
        %v2936 = vld [vmem:[#allocation23 + $0x6c] sm:$0xf]
        %v2937 = vld [vmem:[#allocation23 + $0x70] sm:$0xf]
        %v2938 = vld [vmem:[#allocation23 + $0x74] sm:$0xf]
        %v2939 = vld [vmem:[#allocation23 + $0x78] sm:$0xf]
        %v2940 = vld [vmem:[#allocation23 + $0x7c] sm:$0xf]
        %v2941 = vlaneseq
        %v2942 = vshrl.u32 %v2941, 7
        %v2943 = vsub.s32 0, %v2942
        %v2944 = vrot.slane %v2208, %v2943
        %v2977 = vunpack.c.l.b16 %v2909
        %v2978 = vunpack.c.l.b16 %v2910
        %v2979 = vunpack.c.l.b16 %v2911
        %v2980 = vunpack.c.l.b16 %v2912
        %v2981 = vunpack.c.l.b16 %v2913
        %v2982 = vunpack.c.l.b16 %v2914
        %v2983 = vunpack.c.l.b16 %v2915
        %v2984 = vunpack.c.l.b16 %v2916
        %v2985 = vunpack.c.l.b16 %v2917
        %v2986 = vunpack.c.l.b16 %v2918
        %v2987 = vunpack.c.l.b16 %v2919
        %v2988 = vunpack.c.l.b16 %v2920
        %v2989 = vunpack.c.l.b16 %v2921
        %v2990 = vunpack.c.l.b16 %v2922
        %v2991 = vunpack.c.l.b16 %v2923
        %v2992 = vunpack.c.l.b16 %v2924
        %v2993 = vunpack.c.l.b16 %v2925
        %v2994 = vunpack.c.l.b16 %v2926
        %v2995 = vunpack.c.l.b16 %v2927
        %v2996 = vunpack.c.l.b16 %v2928
        %v2997 = vunpack.c.l.b16 %v2929
        %v2998 = vunpack.c.l.b16 %v2930
        %v2999 = vunpack.c.l.b16 %v2931
        %v3000 = vunpack.c.l.b16 %v2932
        %v3001 = vunpack.c.l.b16 %v2933
        %v3002 = vunpack.c.l.b16 %v2934
        %v3003 = vunpack.c.l.b16 %v2935
        %v3004 = vunpack.c.l.b16 %v2936
        %v3005 = vunpack.c.l.b16 %v2937
        %v3006 = vunpack.c.l.b16 %v2938
        %v3007 = vunpack.c.l.b16 %v2939
        %v3008 = vunpack.c.l.b16 %v2940
        %v3009 = vpack.c.b16 %v2978, %v2977
        %v3010 = vpack.c.b16 %v2980, %v2979
        %v3011 = vpack.c.b16 %v2982, %v2981
        %v3012 = vpack.c.b16 %v2984, %v2983
        %v3013 = vpack.c.b16 %v2986, %v2985
        %v3014 = vpack.c.b16 %v2988, %v2987
        %v3015 = vpack.c.b16 %v2990, %v2989
        %v3016 = vpack.c.b16 %v2992, %v2991
        %v3017 = vpack.c.b16 %v2994, %v2993
        %v3018 = vpack.c.b16 %v2996, %v2995
        %v3019 = vpack.c.b16 %v2998, %v2997
        %v3020 = vpack.c.b16 %v3000, %v2999
        %v3021 = vpack.c.b16 %v3002, %v3001
        %v3022 = vpack.c.b16 %v3004, %v3003
        %v3023 = vpack.c.b16 %v3006, %v3005
        %v3024 = vpack.c.b16 %v3008, %v3007
        %3041 = vmatprep.subr.bf16.mxu0 0
        %3042 = vmatpush1.bf16.msra.mxu0 %v3009
        %3043 = vmatprep.subr.bf16.mxu0 0
        %3044 = vmatpush1.bf16.msra.mxu0 %v3010
        %3045 = vmatprep.subr.bf16.mxu0 0
        %3046 = vmatpush1.bf16.msra.mxu0 %v3011
        %3047 = vmatprep.subr.bf16.mxu0 0
        %3048 = vmatpush1.bf16.msra.mxu0 %v3012
        %3049 = vmatprep.subr.bf16.mxu0 0
        %3050 = vmatpush1.bf16.msra.mxu0 %v3013
        %3051 = vmatprep.subr.bf16.mxu0 0
        %3052 = vmatpush1.bf16.msra.mxu0 %v3014
        %3053 = vmatprep.subr.bf16.mxu0 0
        %3054 = vmatpush1.bf16.msra.mxu0 %v3015
        %3055 = vmatprep.subr.bf16.mxu0 0
        %3056 = vmatpush1.bf16.msra.mxu0 %v3016
        %3057 = vmatprep.subr.bf16.mxu0 0
        %3058 = vmatpush1.bf16.msra.mxu0 %v3017
        %3059 = vmatprep.subr.bf16.mxu0 0
        %3060 = vmatpush1.bf16.msra.mxu0 %v3018
        %3061 = vmatprep.subr.bf16.mxu0 0
        %3062 = vmatpush1.bf16.msra.mxu0 %v3019
        %3063 = vmatprep.subr.bf16.mxu0 0
        %3064 = vmatpush1.bf16.msra.mxu0 %v3020
        %3065 = vmatprep.subr.bf16.mxu0 0
        %3066 = vmatpush1.bf16.msra.mxu0 %v3021
        %3067 = vmatprep.subr.bf16.mxu0 0
        %3068 = vmatpush1.bf16.msra.mxu0 %v3022
        %3069 = vmatprep.subr.bf16.mxu0 0
        %3070 = vmatpush1.bf16.msra.mxu0 %v3023
        %3071 = vmatprep.subr.bf16.mxu0 0
        %3072 = vmatpush1.bf16.msra.mxu0 %v3024
        %3073 = vmatprep.mubr.bf16.mxu0 %v2908
        %3074 = vmatmul.mubr.bf16.gmra.mrb[0].mxu0 %v2907
        %v3075 = vpop.f32.mrb[0].mxu0
        %v3076 = vadd.f32 %v2944, %v3075
        %v3077 = vpop.f32.mrb[0].mxu0
        %v3078 = vpop.f32.mrb[0].mxu0
        %v3079 = vpop.f32.mrb[0].mxu0
        %3080 = vdwg.mxu0
        %v3081 = vadd.f32 %v2717, %v3076
        %s3082 = scalar_lea.vmem %s1308, 4 [#allocation41]
        %3083 = vst [vmem:[%s3082] sm:$0xf] %v2507
        %s3084 = scalar_lea.vmem %s1315, 4 [#allocation43]
        %3085 = vst [vmem:[%s3084] sm:$0xf] %v2561
        %v3086 = vld [vmem:[#allocation25] sm:$0xff]
        %v3087 = vld [vmem:[#allocation25 + $0x8] sm:$0x1]
        %3088 = vadd.xlane.f32.xlu0 %v3081
        %v3089 = vpop.xlane.xlu0 %3088
        %v3090 = vmul.f32 %v3089, %v1326
        %v3091 = vsub.f32 %v3081, %v3090
        %v3092 = vmul.f32 %v3091, %v3091
        %3093 = vadd.xlane.f32.xlu0 %v3092
        %v3094 = vpop.xlane.xlu0 %3093
        %v3095 = vmul.f32 %v3094, %v1326
        %v3096 = vadd.f32 %v3095, 1e-05
        %v3097 = vrsqrt.pop %v3096
        %v3098 = vmul.f32 %v3091, %v3097
        %v3099 = vlaneseq
        %v3100 = vshrl.u32 %v3099, 7
        %v3101 = vsub.s32 0, %v3100
        %v3102 = vrot.slane %v3086, %v3101
        %v3103 = vmul.f32 %v3098, %v3102
        %v3104 = vlaneseq
        %v3105 = vshrl.u32 %v3104, 7
        %v3106 = vsub.s32 1, %v3105
        %v3107 = vrot.slane %v3086, %v3106
        %v3108 = vadd.f32 %v3103, %v3107
        %v3109 = vpack.c.bf16 %v3108, %v3108
        %v3110 = vld [vmem:[#allocation26] sm:$0xff]
        %v3111 = vld [vmem:[#allocation26 + $0x8] sm:$0xf]
        %v3112 = vld [vmem:[#allocation26 + $0xc] sm:$0xff]
        %v3113 = vld [vmem:[#allocation26 + $0x14] sm:$0xf]
        %v3114 = vld [vmem:[#allocation26 + $0x18] sm:$0xff]
        %v3115 = vld [vmem:[#allocation26 + $0x20] sm:$0xf]
        %v3116 = vld [vmem:[#allocation26 + $0x24] sm:$0xff]
        %v3117 = vld [vmem:[#allocation26 + $0x2c] sm:$0xf]
        %v3118 = vld [vmem:[#allocation26 + $0x30] sm:$0xff]
        %v3119 = vld [vmem:[#allocation26 + $0x38] sm:$0xf]
        %v3120 = vld [vmem:[#allocation26 + $0x3c] sm:$0xff]
        %v3121 = vld [vmem:[#allocation26 + $0x44] sm:$0xf]
        %v3122 = vld [vmem:[#allocation26 + $0x48] sm:$0xff]
        %v3123 = vld [vmem:[#allocation26 + $0x50] sm:$0xf]
        %v3124 = vld [vmem:[#allocation26 + $0x54] sm:$0xff]
        %v3125 = vld [vmem:[#allocation26 + $0x5c] sm:$0xf]
        %v3126 = vld [vmem:[#allocation26 + $0x60] sm:$0xff]
        %v3127 = vld [vmem:[#allocation26 + $0x68] sm:$0xf]
        %v3128 = vld [vmem:[#allocation26 + $0x6c] sm:$0xff]
        %v3129 = vld [vmem:[#allocation26 + $0x74] sm:$0xf]
        %v3130 = vld [vmem:[#allocation26 + $0x78] sm:$0xff]
        %v3131 = vld [vmem:[#allocation26 + $0x80] sm:$0xf]
        %v3132 = vld [vmem:[#allocation26 + $0x84] sm:$0xff]
        %v3133 = vld [vmem:[#allocation26 + $0x8c] sm:$0xf]
        %v3134 = vld [vmem:[#allocation26 + $0x90] sm:$0xff]
        %v3135 = vld [vmem:[#allocation26 + $0x98] sm:$0xf]
        %v3136 = vld [vmem:[#allocation26 + $0x9c] sm:$0xff]
        %v3137 = vld [vmem:[#allocation26 + $0xa4] sm:$0xf]
        %v3138 = vld [vmem:[#allocation26 + $0xa8] sm:$0xff]
        %v3139 = vld [vmem:[#allocation26 + $0xb0] sm:$0xf]
        %v3140 = vld [vmem:[#allocation26 + $0xb4] sm:$0xff]
        %v3141 = vld [vmem:[#allocation26 + $0xbc] sm:$0xf]
        %v3174 = vunpack.c.l.b16 %v3110
        %v3175 = vunpack.c.h.b16 %v3110
        %v3176 = vunpack.c.l.b16 %v3111
        %v3177 = vunpack.c.l.b16 %v3112
        %v3178 = vunpack.c.h.b16 %v3112
        %v3179 = vunpack.c.l.b16 %v3113
        %v3180 = vunpack.c.l.b16 %v3114
        %v3181 = vunpack.c.h.b16 %v3114
        %v3182 = vunpack.c.l.b16 %v3115
        %v3183 = vunpack.c.l.b16 %v3116
        %v3184 = vunpack.c.h.b16 %v3116
        %v3185 = vunpack.c.l.b16 %v3117
        %v3186 = vunpack.c.l.b16 %v3118
        %v3187 = vunpack.c.h.b16 %v3118
        %v3188 = vunpack.c.l.b16 %v3119
        %v3189 = vunpack.c.l.b16 %v3120
        %v3190 = vunpack.c.h.b16 %v3120
        %v3191 = vunpack.c.l.b16 %v3121
        %v3192 = vunpack.c.l.b16 %v3122
        %v3193 = vunpack.c.h.b16 %v3122
        %v3194 = vunpack.c.l.b16 %v3123
        %v3195 = vunpack.c.l.b16 %v3124
        %v3196 = vunpack.c.h.b16 %v3124
        %v3197 = vunpack.c.l.b16 %v3125
        %v3198 = vunpack.c.l.b16 %v3126
        %v3199 = vunpack.c.h.b16 %v3126
        %v3200 = vunpack.c.l.b16 %v3127
        %v3201 = vunpack.c.l.b16 %v3128
        %v3202 = vunpack.c.h.b16 %v3128
        %v3203 = vunpack.c.l.b16 %v3129
        %v3204 = vunpack.c.l.b16 %v3130
        %v3205 = vunpack.c.h.b16 %v3130
        %v3206 = vunpack.c.l.b16 %v3131
        %v3207 = vunpack.c.l.b16 %v3132
        %v3208 = vunpack.c.h.b16 %v3132
        %v3209 = vunpack.c.l.b16 %v3133
        %v3210 = vunpack.c.l.b16 %v3134
        %v3211 = vunpack.c.h.b16 %v3134
        %v3212 = vunpack.c.l.b16 %v3135
        %v3213 = vunpack.c.l.b16 %v3136
        %v3214 = vunpack.c.h.b16 %v3136
        %v3215 = vunpack.c.l.b16 %v3137
        %v3216 = vunpack.c.l.b16 %v3138
        %v3217 = vunpack.c.h.b16 %v3138
        %v3218 = vunpack.c.l.b16 %v3139
        %v3219 = vunpack.c.l.b16 %v3140
        %v3220 = vunpack.c.h.b16 %v3140
        %v3221 = vunpack.c.l.b16 %v3141
        %v3222 = vpack.c.b16 %v3177, %v3174
        %v3223 = vpack.c.b16 %v3178, %v3175
        %v3224 = vpack.c.b16 %v3179, %v3176
        %v3225 = vpack.c.b16 %v3183, %v3180
        %v3226 = vpack.c.b16 %v3184, %v3181
        %v3227 = vpack.c.b16 %v3185, %v3182
        %v3228 = vpack.c.b16 %v3189, %v3186
        %v3229 = vpack.c.b16 %v3190, %v3187
        %v3230 = vpack.c.b16 %v3191, %v3188
        %v3231 = vpack.c.b16 %v3195, %v3192
        %v3232 = vpack.c.b16 %v3196, %v3193
        %v3233 = vpack.c.b16 %v3197, %v3194
        %v3234 = vpack.c.b16 %v3201, %v3198
        %v3235 = vpack.c.b16 %v3202, %v3199
        %v3236 = vpack.c.b16 %v3203, %v3200
        %v3237 = vpack.c.b16 %v3207, %v3204
        %v3238 = vpack.c.b16 %v3208, %v3205
        %v3239 = vpack.c.b16 %v3209, %v3206
        %v3240 = vpack.c.b16 %v3213, %v3210
        %v3241 = vpack.c.b16 %v3214, %v3211
        %v3242 = vpack.c.b16 %v3215, %v3212
        %v3243 = vpack.c.b16 %v3219, %v3216
        %v3244 = vpack.c.b16 %v3220, %v3217
        %v3245 = vpack.c.b16 %v3221, %v3218
        %3270 = vmatprep.subr.bf16.mxu0 %v3223
        %3271 = vmatpush1.bf16.msra.mxu0 %v3222
        %3272 = vmatprep.subr.bf16.mxu0 %v3226
        %3273 = vmatpush1.bf16.msra.mxu0 %v3225
        %3274 = vmatprep.subr.bf16.mxu0 %v3229
        %3275 = vmatpush1.bf16.msra.mxu0 %v3228
        %3276 = vmatprep.subr.bf16.mxu0 %v3232
        %3277 = vmatpush1.bf16.msra.mxu0 %v3231
        %3278 = vmatprep.subr.bf16.mxu0 %v3235
        %3279 = vmatpush1.bf16.msra.mxu0 %v3234
        %3280 = vmatprep.subr.bf16.mxu0 %v3238
        %3281 = vmatpush1.bf16.msra.mxu0 %v3237
        %3282 = vmatprep.subr.bf16.mxu0 %v3241
        %3283 = vmatpush1.bf16.msra.mxu0 %v3240
        %3284 = vmatprep.subr.bf16.mxu0 %v3244
        %3285 = vmatpush1.bf16.msra.mxu0 %v3243
        %3286 = vmatprep.subr.bf16.mxu0 0
        %3287 = vmatpush1.bf16.msra.mxu0 0
        %3288 = vmatprep.subr.bf16.mxu0 0
        %3289 = vmatpush1.bf16.msra.mxu0 0
        %3290 = vmatprep.subr.bf16.mxu0 0
        %3291 = vmatpush1.bf16.msra.mxu0 0
        %3292 = vmatprep.subr.bf16.mxu0 0
        %3293 = vmatpush1.bf16.msra.mxu0 0
        %3294 = vmatprep.subr.bf16.mxu0 0
        %3295 = vmatpush1.bf16.msra.mxu0 0
        %3296 = vmatprep.subr.bf16.mxu0 0
        %3297 = vmatpush1.bf16.msra.mxu0 0
        %3298 = vmatprep.subr.bf16.mxu0 0
        %3299 = vmatpush1.bf16.msra.mxu0 0
        %3300 = vmatprep.subr.bf16.mxu0 0
        %3301 = vmatpush1.bf16.msra.mxu0 0
        %3302 = vmatprep.mubr.bf16.mxu0 0
        %3303 = vmatmul.mubr.bf16.gmra.mrb[0].mxu0 %v3109
        %v3304 = vpop.f32.mrb[0].mxu0
        %v3305 = vadd.f32 0.0, %v3304
        %v3306 = vpop.f32.mrb[0].mxu0
        %v3307 = vadd.f32 0.0, %v3306
        %v3308 = vpop.f32.mrb[0].mxu0
        %v3309 = vpop.f32.mrb[0].mxu0
        %3310 = vdwg.mxu0
        %3311 = vmatprep.subr.bf16.mxu0 0
        %3312 = vmatpush1.bf16.msra.mxu0 %v3224
        %3313 = vmatprep.subr.bf16.mxu0 0
        %3314 = vmatpush1.bf16.msra.mxu0 %v3227
        %3315 = vmatprep.subr.bf16.mxu0 0
        %3316 = vmatpush1.bf16.msra.mxu0 %v3230
        %3317 = vmatprep.subr.bf16.mxu0 0
        %3318 = vmatpush1.bf16.msra.mxu0 %v3233
        %3319 = vmatprep.subr.bf16.mxu0 0
        %3320 = vmatpush1.bf16.msra.mxu0 %v3236
        %3321 = vmatprep.subr.bf16.mxu0 0
        %3322 = vmatpush1.bf16.msra.mxu0 %v3239
        %3323 = vmatprep.subr.bf16.mxu0 0
        %3324 = vmatpush1.bf16.msra.mxu0 %v3242
        %3325 = vmatprep.subr.bf16.mxu0 0
        %3326 = vmatpush1.bf16.msra.mxu0 %v3245
        %3327 = vmatprep.subr.bf16.mxu0 0
        %3328 = vmatpush1.bf16.msra.mxu0 0
        %3329 = vmatprep.subr.bf16.mxu0 0
        %3330 = vmatpush1.bf16.msra.mxu0 0
        %3331 = vmatprep.subr.bf16.mxu0 0
        %3332 = vmatpush1.bf16.msra.mxu0 0
        %3333 = vmatprep.subr.bf16.mxu0 0
        %3334 = vmatpush1.bf16.msra.mxu0 0
        %3335 = vmatprep.subr.bf16.mxu0 0
        %3336 = vmatpush1.bf16.msra.mxu0 0
        %3337 = vmatprep.subr.bf16.mxu0 0
        %3338 = vmatpush1.bf16.msra.mxu0 0
        %3339 = vmatprep.subr.bf16.mxu0 0
        %3340 = vmatpush1.bf16.msra.mxu0 0
        %3341 = vmatprep.subr.bf16.mxu0 0
        %3342 = vmatpush1.bf16.msra.mxu0 0
        %3343 = vmatprep.mubr.bf16.mxu0 0
        %3344 = vmatmul.mubr.bf16.gmra.mrb[0].mxu0 %v3109
        %v3345 = vpop.f32.mrb[0].mxu0
        %v3346 = vadd.f32 0.0, %v3345
        %v3347 = vpop.f32.mrb[0].mxu0
        %v3348 = vpop.f32.mrb[0].mxu0
        %v3349 = vpop.f32.mrb[0].mxu0
        %3350 = vdwg.mxu0
        %v3351 = vlaneseq
        %v3352 = vshrl.u32 %v3351, 7
        %v3353 = vsub.s32 2, %v3352
        %v3354 = vrot.slane %v3086, %v3353
        %v3355 = vadd.f32 %v3305, %v3354
        %v3356 = vlaneseq
        %v3357 = vshrl.u32 %v3356, 7
        %v3358 = vsub.s32 3, %v3357
        %v3359 = vrot.slane %v3086, %v3358
        %v3360 = vadd.f32 %v3307, %v3359
        %v3361 = vlaneseq
        %v3362 = vshrl.u32 %v3361, 7
        %v3363 = vsub.s32 4, %v3362
        %v3364 = vrot.slane %v3086, %v3363
        %v3365 = vadd.f32 %v3346, %v3364
        %3366 = vrot.lane.b32.xlu0 %v3355, 96
        %v3367 = vpop.permute.xlu0 %3366
        %3368 = vrot.lane.b32.xlu0 %v3355, 32
        %v3369 = vpop.permute.xlu0 %3368
        %v3370 = vmul.f32 %v3355, %v1319
        %v3371 = vmul.f32 %v3367, %v1320
        %v3372 = vadd.f32 %v3370, %v3371
        %v3373 = vmul.f32 %v3369, %v1321
        %v3374 = vadd.f32 %v3372, %v3373
        %v3375 = vmul.f32 %v3374, 0.088388346
        %3376 = vrot.lane.b32.xlu0 %v3360, 96
        %v3377 = vpop.permute.xlu0 %3376
        %3378 = vrot.lane.b32.xlu0 %v3360, 32
        %v3379 = vpop.permute.xlu0 %3378
        %v3380 = vmul.f32 %v3360, %v1319
        %v3381 = vmul.f32 %v3377, %v1320
        %v3382 = vadd.f32 %v3380, %v3381
        %v3383 = vmul.f32 %v3379, %v1321
        %v3384 = vadd.f32 %v3382, %v3383
        %v3385 = vpack.c.bf16 %v3375, %v3375
        %v3386 = vpack.c.bf16 %v3384, %v3384
        %3387 = vmatprep.subr.bf16.mxu0 0
        %3388 = vmatpush1.bf16.xpose.msra.mxu0 %v3386
        %3389 = vmatprep.subr.bf16.mxu0 0
        %3390 = vmatpush1.bf16.xpose.msra.mxu0 0
        %3391 = vmatprep.subr.bf16.mxu0 0
        %3392 = vmatpush1.bf16.xpose.msra.mxu0 0
        %3393 = vmatprep.subr.bf16.mxu0 0
        %3394 = vmatpush1.bf16.xpose.msra.mxu0 0
        %3395 = vmatprep.subr.bf16.mxu0 0
        %3396 = vmatpush1.bf16.xpose.msra.mxu0 0
        %3397 = vmatprep.subr.bf16.mxu0 0
        %3398 = vmatpush1.bf16.xpose.msra.mxu0 0
        %3399 = vmatprep.subr.bf16.mxu0 0
        %3400 = vmatpush1.bf16.xpose.msra.mxu0 0
        %3401 = vmatprep.subr.bf16.mxu0 0
        %3402 = vmatpush1.bf16.xpose.msra.mxu0 0
        %3403 = vmatprep.subr.bf16.mxu0 0
        %3404 = vmatpush1.bf16.xpose.msra.mxu0 0
        %3405 = vmatprep.subr.bf16.mxu0 0
        %3406 = vmatpush1.bf16.xpose.msra.mxu0 0
        %3407 = vmatprep.subr.bf16.mxu0 0
        %3408 = vmatpush1.bf16.xpose.msra.mxu0 0
        %3409 = vmatprep.subr.bf16.mxu0 0
        %3410 = vmatpush1.bf16.xpose.msra.mxu0 0
        %3411 = vmatprep.subr.bf16.mxu0 0
        %3412 = vmatpush1.bf16.xpose.msra.mxu0 0
        %3413 = vmatprep.subr.bf16.mxu0 0
        %3414 = vmatpush1.bf16.xpose.msra.mxu0 0
        %3415 = vmatprep.subr.bf16.mxu0 0
        %3416 = vmatpush1.bf16.xpose.msra.mxu0 0
        %3417 = vmatprep.subr.bf16.mxu0 0
        %3418 = vmatpush1.bf16.xpose.msra.mxu0 0
        %3419 = vmatprep.mubr.bf16.mxu0 0
        %3420 = vmatmul.mubr.bf16.gmra.mrb[0].mxu0 %v3385
        %v3421 = vpop.f32.mrb[0].mxu0
        %v3422 = vadd.f32 0.0, %v3421
        %v3423 = vpop.f32.mrb[0].mxu0
        %v3424 = vpop.f32.mrb[0].mxu0
        %v3425 = vpop.f32.mrb[0].mxu0
        %3426 = vdwg.mxu0
        %v3427 = vsel %vm1668, %v3422, -1e+30
        %v3428 = vsel %vm1670, %v3427, -inf
        %3429 = vmax.xlane.f32.xlu0 %v3428
        %v3430 = vpop.xlane.xlu0 %3429
        %v3431 = vsub.f32 %v3427, %v3430
        %v3432 = vmul.f32 %v3431, 1.442695
        %v3433 = vpow.pop %v3432
        %v3434 = vsel %vm1670, %v3433, 0.0
        %3435 = vadd.xlane.f32.xlu0 %v3434
        %v3436 = vpop.xlane.xlu0 %3435
        %v3437 = vrcp.pop %v3436
        %v3438 = vmul.f32 %v3433, %v3437
        %v3439 = vpack.c.bf16 %v3438, %v3438
        %v3440 = vpack.c.bf16 %v3365, %v3365
        %v3442 = vsel %vm1670, %v3439, 0
        %v3445 = vsel %vm1687, %v3440, 0
        %3447 = vmatprep.subr.bf16.mxu0 0
        %3448 = vmatpush1.bf16.msra.mxu0 %v3445
        %3449 = vmatprep.subr.bf16.mxu0 0
        %3450 = vmatpush1.bf16.msra.mxu0 0
        %3451 = vmatprep.subr.bf16.mxu0 0
        %3452 = vmatpush1.bf16.msra.mxu0 0
        %3453 = vmatprep.subr.bf16.mxu0 0
        %3454 = vmatpush1.bf16.msra.mxu0 0
        %3455 = vmatprep.subr.bf16.mxu0 0
        %3456 = vmatpush1.bf16.msra.mxu0 0
        %3457 = vmatprep.subr.bf16.mxu0 0
        %3458 = vmatpush1.bf16.msra.mxu0 0
        %3459 = vmatprep.subr.bf16.mxu0 0
        %3460 = vmatpush1.bf16.msra.mxu0 0
        %3461 = vmatprep.subr.bf16.mxu0 0
        %3462 = vmatpush1.bf16.msra.mxu0 0
        %3463 = vmatprep.subr.bf16.mxu0 0
        %3464 = vmatpush1.bf16.msra.mxu0 0
        %3465 = vmatprep.subr.bf16.mxu0 0
        %3466 = vmatpush1.bf16.msra.mxu0 0
        %3467 = vmatprep.subr.bf16.mxu0 0
        %3468 = vmatpush1.bf16.msra.mxu0 0
        %3469 = vmatprep.subr.bf16.mxu0 0
        %3470 = vmatpush1.bf16.msra.mxu0 0
        %3471 = vmatprep.subr.bf16.mxu0 0
        %3472 = vmatpush1.bf16.msra.mxu0 0
        %3473 = vmatprep.subr.bf16.mxu0 0
        %3474 = vmatpush1.bf16.msra.mxu0 0
        %3475 = vmatprep.subr.bf16.mxu0 0
        %3476 = vmatpush1.bf16.msra.mxu0 0
        %3477 = vmatprep.subr.bf16.mxu0 0
        %3478 = vmatpush1.bf16.msra.mxu0 0
        %3479 = vmatprep.mubr.bf16.mxu0 0
        %3480 = vmatmul.mubr.bf16.gmra.mrb[0].mxu0 %v3442
        %v3481 = vpop.f32.mrb[0].mxu0
        %v3482 = vadd.f32 0.0, %v3481
        %v3483 = vpop.f32.mrb[0].mxu0
        %v3484 = vpop.f32.mrb[0].mxu0
        %v3485 = vpop.f32.mrb[0].mxu0
        %3486 = vdwg.mxu0
        %v3487 = vpack.c.bf16 %v3482, %v3482
        %v3488 = vld [vmem:[#allocation28] sm:$0xf]
        %v3489 = vld [vmem:[#allocation28 + $0x4] sm:$0xf]
        %v3490 = vld [vmem:[#allocation28 + $0x8] sm:$0xf]
        %v3491 = vld [vmem:[#allocation28 + $0xc] sm:$0xf]
        %v3492 = vld [vmem:[#allocation28 + $0x10] sm:$0xf]
        %v3493 = vld [vmem:[#allocation28 + $0x14] sm:$0xf]
        %v3494 = vld [vmem:[#allocation28 + $0x18] sm:$0xf]
        %v3495 = vld [vmem:[#allocation28 + $0x1c] sm:$0xf]
        %v3496 = vld [vmem:[#allocation28 + $0x20] sm:$0xf]
        %v3497 = vld [vmem:[#allocation28 + $0x24] sm:$0xf]
        %v3498 = vld [vmem:[#allocation28 + $0x28] sm:$0xf]
        %v3499 = vld [vmem:[#allocation28 + $0x2c] sm:$0xf]
        %v3500 = vld [vmem:[#allocation28 + $0x30] sm:$0xf]
        %v3501 = vld [vmem:[#allocation28 + $0x34] sm:$0xf]
        %v3502 = vld [vmem:[#allocation28 + $0x38] sm:$0xf]
        %v3503 = vld [vmem:[#allocation28 + $0x3c] sm:$0xf]
        %v3504 = vlaneseq
        %v3505 = vshrl.u32 %v3504, 7
        %v3506 = vsub.s32 5, %v3505
        %v3507 = vrot.slane %v3086, %v3506
        %v3524 = vunpack.c.l.b16 %v3488
        %v3525 = vunpack.c.l.b16 %v3489
        %v3526 = vunpack.c.l.b16 %v3490
        %v3527 = vunpack.c.l.b16 %v3491
        %v3528 = vunpack.c.l.b16 %v3492
        %v3529 = vunpack.c.l.b16 %v3493
        %v3530 = vunpack.c.l.b16 %v3494
        %v3531 = vunpack.c.l.b16 %v3495
        %v3532 = vunpack.c.l.b16 %v3496
        %v3533 = vunpack.c.l.b16 %v3497
        %v3534 = vunpack.c.l.b16 %v3498
        %v3535 = vunpack.c.l.b16 %v3499
        %v3536 = vunpack.c.l.b16 %v3500
        %v3537 = vunpack.c.l.b16 %v3501
        %v3538 = vunpack.c.l.b16 %v3502
        %v3539 = vunpack.c.l.b16 %v3503
        %v3540 = vpack.c.b16 %v3525, %v3524
        %v3541 = vpack.c.b16 %v3527, %v3526
        %v3542 = vpack.c.b16 %v3529, %v3528
        %v3543 = vpack.c.b16 %v3531, %v3530
        %v3544 = vpack.c.b16 %v3533, %v3532
        %v3545 = vpack.c.b16 %v3535, %v3534
        %v3546 = vpack.c.b16 %v3537, %v3536
        %v3547 = vpack.c.b16 %v3539, %v3538
        %3556 = vmatprep.subr.bf16.mxu0 0
        %3557 = vmatpush1.bf16.msra.mxu0 %v3540
        %3558 = vmatprep.subr.bf16.mxu0 0
        %3559 = vmatpush1.bf16.msra.mxu0 %v3541
        %3560 = vmatprep.subr.bf16.mxu0 0
        %3561 = vmatpush1.bf16.msra.mxu0 %v3542
        %3562 = vmatprep.subr.bf16.mxu0 0
        %3563 = vmatpush1.bf16.msra.mxu0 %v3543
        %3564 = vmatprep.subr.bf16.mxu0 0
        %3565 = vmatpush1.bf16.msra.mxu0 %v3544
        %3566 = vmatprep.subr.bf16.mxu0 0
        %3567 = vmatpush1.bf16.msra.mxu0 %v3545
        %3568 = vmatprep.subr.bf16.mxu0 0
        %3569 = vmatpush1.bf16.msra.mxu0 %v3546
        %3570 = vmatprep.subr.bf16.mxu0 0
        %3571 = vmatpush1.bf16.msra.mxu0 %v3547
        %3572 = vmatprep.subr.bf16.mxu0 0
        %3573 = vmatpush1.bf16.msra.mxu0 0
        %3574 = vmatprep.subr.bf16.mxu0 0
        %3575 = vmatpush1.bf16.msra.mxu0 0
        %3576 = vmatprep.subr.bf16.mxu0 0
        %3577 = vmatpush1.bf16.msra.mxu0 0
        %3578 = vmatprep.subr.bf16.mxu0 0
        %3579 = vmatpush1.bf16.msra.mxu0 0
        %3580 = vmatprep.subr.bf16.mxu0 0
        %3581 = vmatpush1.bf16.msra.mxu0 0
        %3582 = vmatprep.subr.bf16.mxu0 0
        %3583 = vmatpush1.bf16.msra.mxu0 0
        %3584 = vmatprep.subr.bf16.mxu0 0
        %3585 = vmatpush1.bf16.msra.mxu0 0
        %3586 = vmatprep.subr.bf16.mxu0 0
        %3587 = vmatpush1.bf16.msra.mxu0 0
        %3588 = vmatprep.mubr.bf16.mxu0 0
        %3589 = vmatmul.mubr.bf16.gmra.mrb[0].mxu0 %v3487
        %v3590 = vpop.f32.mrb[0].mxu0
        %v3591 = vadd.f32 %v3507, %v3590
        %v3592 = vpop.f32.mrb[0].mxu0
        %v3593 = vpop.f32.mrb[0].mxu0
        %v3594 = vpop.f32.mrb[0].mxu0
        %3595 = vdwg.mxu0
        %v3596 = vadd.f32 %v3081, %v3591
        %v3597 = vld [vmem:[#allocation31] sm:$0x3]
        %3598 = vadd.xlane.f32.xlu0 %v3596
        %v3599 = vpop.xlane.xlu0 %3598
        %v3600 = vmul.f32 %v3599, %v1326
        %v3601 = vsub.f32 %v3596, %v3600
        %v3602 = vmul.f32 %v3601, %v3601
        %3603 = vadd.xlane.f32.xlu0 %v3602
        %v3604 = vpop.xlane.xlu0 %3603
        %v3605 = vmul.f32 %v3604, %v1326
        %v3606 = vadd.f32 %v3605, 1e-05
        %v3607 = vrsqrt.pop %v3606
        %v3608 = vmul.f32 %v3601, %v3607
        %v3609 = vlaneseq
        %v3610 = vshrl.u32 %v3609, 7
        %v3611 = vsub.s32 6, %v3610
        %v3612 = vrot.slane %v3086, %v3611
        %v3613 = vmul.f32 %v3608, %v3612
        %v3614 = vlaneseq
        %v3615 = vshrl.u32 %v3614, 7
        %v3616 = vsub.s32 7, %v3615
        %v3617 = vrot.slane %v3086, %v3616
        %v3618 = vadd.f32 %v3613, %v3617
        %v3619 = vpack.c.bf16 %v3618, %v3618
        %v3620 = vld [vmem:[#allocation29] sm:$0xff]
        %v3621 = vld [vmem:[#allocation29 + $0x8] sm:$0xff]
        %v3622 = vld [vmem:[#allocation29 + $0x10] sm:$0xff]
        %v3623 = vld [vmem:[#allocation29 + $0x18] sm:$0xff]
        %v3624 = vld [vmem:[#allocation29 + $0x20] sm:$0xff]
        %v3625 = vld [vmem:[#allocation29 + $0x28] sm:$0xff]
        %v3626 = vld [vmem:[#allocation29 + $0x30] sm:$0xff]
        %v3627 = vld [vmem:[#allocation29 + $0x38] sm:$0xff]
        %v3628 = vld [vmem:[#allocation29 + $0x40] sm:$0xff]
        %v3629 = vld [vmem:[#allocation29 + $0x48] sm:$0xff]
        %v3630 = vld [vmem:[#allocation29 + $0x50] sm:$0xff]
        %v3631 = vld [vmem:[#allocation29 + $0x58] sm:$0xff]
        %v3632 = vld [vmem:[#allocation29 + $0x60] sm:$0xff]
        %v3633 = vld [vmem:[#allocation29 + $0x68] sm:$0xff]
        %v3634 = vld [vmem:[#allocation29 + $0x70] sm:$0xff]
        %v3635 = vld [vmem:[#allocation29 + $0x78] sm:$0xff]
        %v3637 = vlaneseq
        %v3638 = vshrl.u32 %v3637, 7
        %v3639 = vsub.s32 0, %v3638
        %v3640 = vrot.slane %v3597, %v3639
        %v3641 = vlaneseq
        %v3642 = vshrl.u32 %v3641, 7
        %v3643 = vsub.s32 1, %v3642
        %v3644 = vrot.slane %v3597, %v3643
        %v3663 = vunpack.c.l.b16 %v3620
        %v3664 = vunpack.c.h.b16 %v3620
        %v3665 = vunpack.c.l.b16 %v3621
        %v3666 = vunpack.c.h.b16 %v3621
        %v3667 = vunpack.c.l.b16 %v3622
        %v3668 = vunpack.c.h.b16 %v3622
        %v3669 = vunpack.c.l.b16 %v3623
        %v3670 = vunpack.c.h.b16 %v3623
        %v3671 = vunpack.c.l.b16 %v3624
        %v3672 = vunpack.c.h.b16 %v3624
        %v3673 = vunpack.c.l.b16 %v3625
        %v3674 = vunpack.c.h.b16 %v3625
        %v3675 = vunpack.c.l.b16 %v3626
        %v3676 = vunpack.c.h.b16 %v3626
        %v3677 = vunpack.c.l.b16 %v3627
        %v3678 = vunpack.c.h.b16 %v3627
        %v3679 = vunpack.c.l.b16 %v3628
        %v3680 = vunpack.c.h.b16 %v3628
        %v3681 = vunpack.c.l.b16 %v3629
        %v3682 = vunpack.c.h.b16 %v3629
        %v3683 = vunpack.c.l.b16 %v3630
        %v3684 = vunpack.c.h.b16 %v3630
        %v3685 = vunpack.c.l.b16 %v3631
        %v3686 = vunpack.c.h.b16 %v3631
        %v3687 = vunpack.c.l.b16 %v3632
        %v3688 = vunpack.c.h.b16 %v3632
        %v3689 = vunpack.c.l.b16 %v3633
        %v3690 = vunpack.c.h.b16 %v3633
        %v3691 = vunpack.c.l.b16 %v3634
        %v3692 = vunpack.c.h.b16 %v3634
        %v3693 = vunpack.c.l.b16 %v3635
        %v3694 = vunpack.c.h.b16 %v3635
        %v3695 = vpack.c.b16 %v3665, %v3663
        %v3696 = vpack.c.b16 %v3666, %v3664
        %v3697 = vpack.c.b16 %v3669, %v3667
        %v3698 = vpack.c.b16 %v3670, %v3668
        %v3699 = vpack.c.b16 %v3673, %v3671
        %v3700 = vpack.c.b16 %v3674, %v3672
        %v3701 = vpack.c.b16 %v3677, %v3675
        %v3702 = vpack.c.b16 %v3678, %v3676
        %v3703 = vpack.c.b16 %v3681, %v3679
        %v3704 = vpack.c.b16 %v3682, %v3680
        %v3705 = vpack.c.b16 %v3685, %v3683
        %v3706 = vpack.c.b16 %v3686, %v3684
        %v3707 = vpack.c.b16 %v3689, %v3687
        %v3708 = vpack.c.b16 %v3690, %v3688
        %v3709 = vpack.c.b16 %v3693, %v3691
        %v3710 = vpack.c.b16 %v3694, %v3692
        %3727 = vmatprep.subr.bf16.mxu0 %v3696
        %3728 = vmatpush1.bf16.msra.mxu0 %v3695
        %3729 = vmatprep.subr.bf16.mxu0 %v3698
        %3730 = vmatpush1.bf16.msra.mxu0 %v3697
        %3731 = vmatprep.subr.bf16.mxu0 %v3700
        %3732 = vmatpush1.bf16.msra.mxu0 %v3699
        %3733 = vmatprep.subr.bf16.mxu0 %v3702
        %3734 = vmatpush1.bf16.msra.mxu0 %v3701
        %3735 = vmatprep.subr.bf16.mxu0 %v3704
        %3736 = vmatpush1.bf16.msra.mxu0 %v3703
        %3737 = vmatprep.subr.bf16.mxu0 %v3706
        %3738 = vmatpush1.bf16.msra.mxu0 %v3705
        %3739 = vmatprep.subr.bf16.mxu0 %v3708
        %3740 = vmatpush1.bf16.msra.mxu0 %v3707
        %3741 = vmatprep.subr.bf16.mxu0 %v3710
        %3742 = vmatpush1.bf16.msra.mxu0 %v3709
        %3743 = vmatprep.subr.bf16.mxu0 0
        %3744 = vmatpush1.bf16.msra.mxu0 0
        %3745 = vmatprep.subr.bf16.mxu0 0
        %3746 = vmatpush1.bf16.msra.mxu0 0
        %3747 = vmatprep.subr.bf16.mxu0 0
        %3748 = vmatpush1.bf16.msra.mxu0 0
        %3749 = vmatprep.subr.bf16.mxu0 0
        %3750 = vmatpush1.bf16.msra.mxu0 0
        %3751 = vmatprep.subr.bf16.mxu0 0
        %3752 = vmatpush1.bf16.msra.mxu0 0
        %3753 = vmatprep.subr.bf16.mxu0 0
        %3754 = vmatpush1.bf16.msra.mxu0 0
        %3755 = vmatprep.subr.bf16.mxu0 0
        %3756 = vmatpush1.bf16.msra.mxu0 0
        %3757 = vmatprep.subr.bf16.mxu0 0
        %3758 = vmatpush1.bf16.msra.mxu0 0
        %3759 = vmatprep.mubr.bf16.mxu0 0
        %3760 = vmatmul.mubr.bf16.gmra.mrb[0].mxu0 %v3619
        %v3761 = vpop.f32.mrb[0].mxu0
        %v3762 = vadd.f32 %v3640, %v3761
        %v3763 = vpop.f32.mrb[0].mxu0
        %v3764 = vadd.f32 %v3644, %v3763
        %v3765 = vpop.f32.mrb[0].mxu0
        %v3766 = vpop.f32.mrb[0].mxu0
        %3767 = vdwg.mxu0
        %v3768 = vmul.f32 %v3762, %v3762
        %v3769 = vmul.f32 %v3764, %v3764
        %v3770 = vmul.f32 %v3762, %v3768
        %v3771 = vmul.f32 %v3764, %v3769
        %v3772 = vmul.f32 %v3770, 0.044715
        %v3773 = vmul.f32 %v3771, 0.044715
        %v3774 = vadd.f32 %v3762, %v3772
        %v3775 = vadd.f32 %v3764, %v3773
        %v3776 = vmul.f32 %v3774, 0.7978846
        %v3777 = vmul.f32 %v3775, 0.7978846
        %v3778 = vtanh.pop %v3776
        %v3779 = vtanh.pop %v3777
        %v3780 = vadd.f32 %v3778, 1.0
        %v3781 = vadd.f32 %v3779, 1.0
        %v3782 = vmul.f32 %v3780, 0.5
        %v3783 = vmul.f32 %v3781, 0.5
        %v3784 = vmul.f32 %v3762, %v3782
        %v3785 = vmul.f32 %v3764, %v3783
        %v3786 = vpack.c.bf16 %v3784, %v3784
        %v3787 = vpack.c.bf16 %v3785, %v3785
        %v3788 = vld [vmem:[#allocation32] sm:$0xf]
        %v3789 = vld [vmem:[#allocation32 + $0x4] sm:$0xf]
        %v3790 = vld [vmem:[#allocation32 + $0x8] sm:$0xf]
        %v3791 = vld [vmem:[#allocation32 + $0xc] sm:$0xf]
        %v3792 = vld [vmem:[#allocation32 + $0x10] sm:$0xf]
        %v3793 = vld [vmem:[#allocation32 + $0x14] sm:$0xf]
        %v3794 = vld [vmem:[#allocation32 + $0x18] sm:$0xf]
        %v3795 = vld [vmem:[#allocation32 + $0x1c] sm:$0xf]
        %v3796 = vld [vmem:[#allocation32 + $0x20] sm:$0xf]
        %v3797 = vld [vmem:[#allocation32 + $0x24] sm:$0xf]
        %v3798 = vld [vmem:[#allocation32 + $0x28] sm:$0xf]
        %v3799 = vld [vmem:[#allocation32 + $0x2c] sm:$0xf]
        %v3800 = vld [vmem:[#allocation32 + $0x30] sm:$0xf]
        %v3801 = vld [vmem:[#allocation32 + $0x34] sm:$0xf]
        %v3802 = vld [vmem:[#allocation32 + $0x38] sm:$0xf]
        %v3803 = vld [vmem:[#allocation32 + $0x3c] sm:$0xf]
        %v3804 = vld [vmem:[#allocation32 + $0x40] sm:$0xf]
        %v3805 = vld [vmem:[#allocation32 + $0x44] sm:$0xf]
        %v3806 = vld [vmem:[#allocation32 + $0x48] sm:$0xf]
        %v3807 = vld [vmem:[#allocation32 + $0x4c] sm:$0xf]
        %v3808 = vld [vmem:[#allocation32 + $0x50] sm:$0xf]
        %v3809 = vld [vmem:[#allocation32 + $0x54] sm:$0xf]
        %v3810 = vld [vmem:[#allocation32 + $0x58] sm:$0xf]
        %v3811 = vld [vmem:[#allocation32 + $0x5c] sm:$0xf]
        %v3812 = vld [vmem:[#allocation32 + $0x60] sm:$0xf]
        %v3813 = vld [vmem:[#allocation32 + $0x64] sm:$0xf]
        %v3814 = vld [vmem:[#allocation32 + $0x68] sm:$0xf]
        %v3815 = vld [vmem:[#allocation32 + $0x6c] sm:$0xf]
        %v3816 = vld [vmem:[#allocation32 + $0x70] sm:$0xf]
        %v3817 = vld [vmem:[#allocation32 + $0x74] sm:$0xf]
        %v3818 = vld [vmem:[#allocation32 + $0x78] sm:$0xf]
        %v3819 = vld [vmem:[#allocation32 + $0x7c] sm:$0xf]
        %v3820 = vlaneseq
        %v3821 = vshrl.u32 %v3820, 7
        %v3822 = vsub.s32 0, %v3821
        %v3823 = vrot.slane %v3087, %v3822
        %v3856 = vunpack.c.l.b16 %v3788
        %v3857 = vunpack.c.l.b16 %v3789
        %v3858 = vunpack.c.l.b16 %v3790
        %v3859 = vunpack.c.l.b16 %v3791
        %v3860 = vunpack.c.l.b16 %v3792
        %v3861 = vunpack.c.l.b16 %v3793
        %v3862 = vunpack.c.l.b16 %v3794
        %v3863 = vunpack.c.l.b16 %v3795
        %v3864 = vunpack.c.l.b16 %v3796
        %v3865 = vunpack.c.l.b16 %v3797
        %v3866 = vunpack.c.l.b16 %v3798
        %v3867 = vunpack.c.l.b16 %v3799
        %v3868 = vunpack.c.l.b16 %v3800
        %v3869 = vunpack.c.l.b16 %v3801
        %v3870 = vunpack.c.l.b16 %v3802
        %v3871 = vunpack.c.l.b16 %v3803
        %v3872 = vunpack.c.l.b16 %v3804
        %v3873 = vunpack.c.l.b16 %v3805
        %v3874 = vunpack.c.l.b16 %v3806
        %v3875 = vunpack.c.l.b16 %v3807
        %v3876 = vunpack.c.l.b16 %v3808
        %v3877 = vunpack.c.l.b16 %v3809
        %v3878 = vunpack.c.l.b16 %v3810
        %v3879 = vunpack.c.l.b16 %v3811
        %v3880 = vunpack.c.l.b16 %v3812
        %v3881 = vunpack.c.l.b16 %v3813
        %v3882 = vunpack.c.l.b16 %v3814
        %v3883 = vunpack.c.l.b16 %v3815
        %v3884 = vunpack.c.l.b16 %v3816
        %v3885 = vunpack.c.l.b16 %v3817
        %v3886 = vunpack.c.l.b16 %v3818
        %v3887 = vunpack.c.l.b16 %v3819
        %v3888 = vpack.c.b16 %v3857, %v3856
        %v3889 = vpack.c.b16 %v3859, %v3858
        %v3890 = vpack.c.b16 %v3861, %v3860
        %v3891 = vpack.c.b16 %v3863, %v3862
        %v3892 = vpack.c.b16 %v3865, %v3864
        %v3893 = vpack.c.b16 %v3867, %v3866
        %v3894 = vpack.c.b16 %v3869, %v3868
        %v3895 = vpack.c.b16 %v3871, %v3870
        %v3896 = vpack.c.b16 %v3873, %v3872
        %v3897 = vpack.c.b16 %v3875, %v3874
        %v3898 = vpack.c.b16 %v3877, %v3876
        %v3899 = vpack.c.b16 %v3879, %v3878
        %v3900 = vpack.c.b16 %v3881, %v3880
        %v3901 = vpack.c.b16 %v3883, %v3882
        %v3902 = vpack.c.b16 %v3885, %v3884
        %v3903 = vpack.c.b16 %v3887, %v3886
        %3920 = vmatprep.subr.bf16.mxu0 0
        %3921 = vmatpush1.bf16.msra.mxu0 %v3888
        %3922 = vmatprep.subr.bf16.mxu0 0
        %3923 = vmatpush1.bf16.msra.mxu0 %v3889
        %3924 = vmatprep.subr.bf16.mxu0 0
        %3925 = vmatpush1.bf16.msra.mxu0 %v3890
        %3926 = vmatprep.subr.bf16.mxu0 0
        %3927 = vmatpush1.bf16.msra.mxu0 %v3891
        %3928 = vmatprep.subr.bf16.mxu0 0
        %3929 = vmatpush1.bf16.msra.mxu0 %v3892
        %3930 = vmatprep.subr.bf16.mxu0 0
        %3931 = vmatpush1.bf16.msra.mxu0 %v3893
        %3932 = vmatprep.subr.bf16.mxu0 0
        %3933 = vmatpush1.bf16.msra.mxu0 %v3894
        %3934 = vmatprep.subr.bf16.mxu0 0
        %3935 = vmatpush1.bf16.msra.mxu0 %v3895
        %3936 = vmatprep.subr.bf16.mxu0 0
        %3937 = vmatpush1.bf16.msra.mxu0 %v3896
        %3938 = vmatprep.subr.bf16.mxu0 0
        %3939 = vmatpush1.bf16.msra.mxu0 %v3897
        %3940 = vmatprep.subr.bf16.mxu0 0
        %3941 = vmatpush1.bf16.msra.mxu0 %v3898
        %3942 = vmatprep.subr.bf16.mxu0 0
        %3943 = vmatpush1.bf16.msra.mxu0 %v3899
        %3944 = vmatprep.subr.bf16.mxu0 0
        %3945 = vmatpush1.bf16.msra.mxu0 %v3900
        %3946 = vmatprep.subr.bf16.mxu0 0
        %3947 = vmatpush1.bf16.msra.mxu0 %v3901
        %3948 = vmatprep.subr.bf16.mxu0 0
        %3949 = vmatpush1.bf16.msra.mxu0 %v3902
        %3950 = vmatprep.subr.bf16.mxu0 0
        %3951 = vmatpush1.bf16.msra.mxu0 %v3903
        %3952 = vmatprep.mubr.bf16.mxu0 %v3787
        %3953 = vmatmul.mubr.bf16.gmra.mrb[0].mxu0 %v3786
        %v3954 = vpop.f32.mrb[0].mxu0
        %v3955 = vadd.f32 %v3823, %v3954
        %v3956 = vpop.f32.mrb[0].mxu0
        %v3957 = vpop.f32.mrb[0].mxu0
        %v3958 = vpop.f32.mrb[0].mxu0
        %3959 = vdwg.mxu0
        %v3960 = vadd.f32 %v3596, %v3955
        %s3961 = scalar_lea.vmem %s1308, 8 [#allocation41]
        %3962 = vst [vmem:[%s3961] sm:$0xf] %v3386
        %s3963 = scalar_lea.vmem %s1315, 8 [#allocation43]
        %3964 = vst [vmem:[%s3963] sm:$0xf] %v3440
        %v3965 = vld [vmem:[#allocation34] sm:$0xff]
        %3966 = vadd.xlane.f32.xlu0 %v3960
        %v3967 = vpop.xlane.xlu0 %3966
        %v3968 = vmul.f32 %v3967, %v1326
        %v3969 = vsub.f32 %v3960, %v3968
        %v3970 = vmul.f32 %v3969, %v3969
        %3971 = vadd.xlane.f32.xlu0 %v3970
        %v3972 = vpop.xlane.xlu0 %3971
        %v3973 = vmul.f32 %v3972, %v1326
        %v3974 = vadd.f32 %v3973, 1e-05
        %v3975 = vrsqrt.pop %v3974
        %v3976 = vmul.f32 %v3969, %v3975
        %v3977 = vlaneseq
        %v3978 = vshrl.u32 %v3977, 7
        %v3979 = vsub.s32 0, %v3978
        %v3980 = vrot.slane %v3965, %v3979
        %v3981 = vmul.f32 %v3976, %v3980
        %v3982 = vlaneseq
        %v3983 = vshrl.u32 %v3982, 7
        %v3984 = vsub.s32 1, %v3983
        %v3985 = vrot.slane %v3965, %v3984
        %v3986 = vadd.f32 %v3981, %v3985
        %v3987 = vpack.c.bf16 %v3986, %v3986
        %v3988 = vld [vmem:[%s45] sm:$0xff]
        %v3989 = vld [vmem:[%s45 + $0x8] sm:$0xf]
        %v3990 = vld [vmem:[%s45 + $0xc] sm:$0xff]
        %v3991 = vld [vmem:[%s45 + $0x14] sm:$0xf]
        %v3992 = vld [vmem:[%s45 + $0x18] sm:$0xff]
        %v3993 = vld [vmem:[%s45 + $0x20] sm:$0xf]
        %v3994 = vld [vmem:[%s45 + $0x24] sm:$0xff]
        %v3995 = vld [vmem:[%s45 + $0x2c] sm:$0xf]
        %v3996 = vld [vmem:[%s45 + $0x30] sm:$0xff]
        %v3997 = vld [vmem:[%s45 + $0x38] sm:$0xf]
        %v3998 = vld [vmem:[%s45 + $0x3c] sm:$0xff]
        %v3999 = vld [vmem:[%s45 + $0x44] sm:$0xf]
        %v4000 = vld [vmem:[%s45 + $0x48] sm:$0xff]
        %v4001 = vld [vmem:[%s45 + $0x50] sm:$0xf]
        %v4002 = vld [vmem:[%s45 + $0x54] sm:$0xff]
        %v4003 = vld [vmem:[%s45 + $0x5c] sm:$0xf]
        %v4004 = vld [vmem:[%s45 + $0x60] sm:$0xff]
        %v4005 = vld [vmem:[%s45 + $0x68] sm:$0xf]
        %v4006 = vld [vmem:[%s45 + $0x6c] sm:$0xff]
        %v4007 = vld [vmem:[%s45 + $0x74] sm:$0xf]
        %v4008 = vld [vmem:[%s45 + $0x78] sm:$0xff]
        %v4009 = vld [vmem:[%s45 + $0x80] sm:$0xf]
        %v4010 = vld [vmem:[%s45 + $0x84] sm:$0xff]
        %v4011 = vld [vmem:[%s45 + $0x8c] sm:$0xf]
        %v4012 = vld [vmem:[%s45 + $0x90] sm:$0xff]
        %v4013 = vld [vmem:[%s45 + $0x98] sm:$0xf]
        %v4014 = vld [vmem:[%s45 + $0x9c] sm:$0xff]
        %v4015 = vld [vmem:[%s45 + $0xa4] sm:$0xf]
        %v4016 = vld [vmem:[%s45 + $0xa8] sm:$0xff]
        %v4017 = vld [vmem:[%s45 + $0xb0] sm:$0xf]
        %v4018 = vld [vmem:[%s45 + $0xb4] sm:$0xff]
        %v4019 = vld [vmem:[%s45 + $0xbc] sm:$0xf]
        %v4052 = vunpack.c.l.b16 %v3988
        %v4053 = vunpack.c.h.b16 %v3988
        %v4054 = vunpack.c.l.b16 %v3989
        %v4055 = vunpack.c.l.b16 %v3990
        %v4056 = vunpack.c.h.b16 %v3990
        %v4057 = vunpack.c.l.b16 %v3991
        %v4058 = vunpack.c.l.b16 %v3992
        %v4059 = vunpack.c.h.b16 %v3992
        %v4060 = vunpack.c.l.b16 %v3993
        %v4061 = vunpack.c.l.b16 %v3994
        %v4062 = vunpack.c.h.b16 %v3994
        %v4063 = vunpack.c.l.b16 %v3995
        %v4064 = vunpack.c.l.b16 %v3996
        %v4065 = vunpack.c.h.b16 %v3996
        %v4066 = vunpack.c.l.b16 %v3997
        %v4067 = vunpack.c.l.b16 %v3998
        %v4068 = vunpack.c.h.b16 %v3998
        %v4069 = vunpack.c.l.b16 %v3999
        %v4070 = vunpack.c.l.b16 %v4000
        %v4071 = vunpack.c.h.b16 %v4000
        %v4072 = vunpack.c.l.b16 %v4001
        %v4073 = vunpack.c.l.b16 %v4002
        %v4074 = vunpack.c.h.b16 %v4002
        %v4075 = vunpack.c.l.b16 %v4003
        %v4076 = vunpack.c.l.b16 %v4004
        %v4077 = vunpack.c.h.b16 %v4004
        %v4078 = vunpack.c.l.b16 %v4005
        %v4079 = vunpack.c.l.b16 %v4006
        %v4080 = vunpack.c.h.b16 %v4006
        %v4081 = vunpack.c.l.b16 %v4007
        %v4082 = vunpack.c.l.b16 %v4008
        %v4083 = vunpack.c.h.b16 %v4008
        %v4084 = vunpack.c.l.b16 %v4009
        %v4085 = vunpack.c.l.b16 %v4010
        %v4086 = vunpack.c.h.b16 %v4010
        %v4087 = vunpack.c.l.b16 %v4011
        %v4088 = vunpack.c.l.b16 %v4012
        %v4089 = vunpack.c.h.b16 %v4012
        %v4090 = vunpack.c.l.b16 %v4013
        %v4091 = vunpack.c.l.b16 %v4014
        %v4092 = vunpack.c.h.b16 %v4014
        %v4093 = vunpack.c.l.b16 %v4015
        %v4094 = vunpack.c.l.b16 %v4016
        %v4095 = vunpack.c.h.b16 %v4016
        %v4096 = vunpack.c.l.b16 %v4017
        %v4097 = vunpack.c.l.b16 %v4018
        %v4098 = vunpack.c.h.b16 %v4018
        %v4099 = vunpack.c.l.b16 %v4019
        %v4100 = vpack.c.b16 %v4055, %v4052
        %v4101 = vpack.c.b16 %v4056, %v4053
        %v4102 = vpack.c.b16 %v4057, %v4054
        %v4103 = vpack.c.b16 %v4061, %v4058
        %v4104 = vpack.c.b16 %v4062, %v4059
        %v4105 = vpack.c.b16 %v4063, %v4060
        %v4106 = vpack.c.b16 %v4067, %v4064
        %v4107 = vpack.c.b16 %v4068, %v4065
        %v4108 = vpack.c.b16 %v4069, %v4066
        %v4109 = vpack.c.b16 %v4073, %v4070
        %v4110 = vpack.c.b16 %v4074, %v4071
        %v4111 = vpack.c.b16 %v4075, %v4072
        %v4112 = vpack.c.b16 %v4079, %v4076
        %v4113 = vpack.c.b16 %v4080, %v4077
        %v4114 = vpack.c.b16 %v4081, %v4078
        %v4115 = vpack.c.b16 %v4085, %v4082
        %v4116 = vpack.c.b16 %v4086, %v4083
        %v4117 = vpack.c.b16 %v4087, %v4084
        %v4118 = vpack.c.b16 %v4091, %v4088
        %v4119 = vpack.c.b16 %v4092, %v4089
        %v4120 = vpack.c.b16 %v4093, %v4090
        %v4121 = vpack.c.b16 %v4097, %v4094
        %v4122 = vpack.c.b16 %v4098, %v4095
        %v4123 = vpack.c.b16 %v4099, %v4096
        %4148 = vmatprep.subr.bf16.mxu0 %v4101
        %4149 = vmatpush1.bf16.msra.mxu0 %v4100
        %4150 = vmatprep.subr.bf16.mxu0 %v4104
        %4151 = vmatpush1.bf16.msra.mxu0 %v4103
        %4152 = vmatprep.subr.bf16.mxu0 %v4107
        %4153 = vmatpush1.bf16.msra.mxu0 %v4106
        %4154 = vmatprep.subr.bf16.mxu0 %v4110
        %4155 = vmatpush1.bf16.msra.mxu0 %v4109
        %4156 = vmatprep.subr.bf16.mxu0 %v4113
        %4157 = vmatpush1.bf16.msra.mxu0 %v4112
        %4158 = vmatprep.subr.bf16.mxu0 %v4116
        %4159 = vmatpush1.bf16.msra.mxu0 %v4115
        %4160 = vmatprep.subr.bf16.mxu0 %v4119
        %4161 = vmatpush1.bf16.msra.mxu0 %v4118
        %4162 = vmatprep.subr.bf16.mxu0 %v4122
        %4163 = vmatpush1.bf16.msra.mxu0 %v4121
        %4164 = vmatprep.subr.bf16.mxu0 0
        %4165 = vmatpush1.bf16.msra.mxu0 0
        %4166 = vmatprep.subr.bf16.mxu0 0
        %4167 = vmatpush1.bf16.msra.mxu0 0
        %4168 = vmatprep.subr.bf16.mxu0 0
        %4169 = vmatpush1.bf16.msra.mxu0 0
        %4170 = vmatprep.subr.bf16.mxu0 0
        %4171 = vmatpush1.bf16.msra.mxu0 0
        %4172 = vmatprep.subr.bf16.mxu0 0
        %4173 = vmatpush1.bf16.msra.mxu0 0
        %4174 = vmatprep.subr.bf16.mxu0 0
        %4175 = vmatpush1.bf16.msra.mxu0 0
        %4176 = vmatprep.subr.bf16.mxu0 0
        %4177 = vmatpush1.bf16.msra.mxu0 0
        %4178 = vmatprep.subr.bf16.mxu0 0
        %4179 = vmatpush1.bf16.msra.mxu0 0
        %4180 = vmatprep.mubr.bf16.mxu0 0
        %4181 = vmatmul.mubr.bf16.gmra.mrb[0].mxu0 %v3987
        %v4182 = vpop.f32.mrb[0].mxu0
        %v4183 = vadd.f32 0.0, %v4182
        %v4184 = vpop.f32.mrb[0].mxu0
        %v4185 = vadd.f32 0.0, %v4184
        %v4186 = vpop.f32.mrb[0].mxu0
        %v4187 = vpop.f32.mrb[0].mxu0
        %4188 = vdwg.mxu0
        %4189 = vmatprep.subr.bf16.mxu0 0
        %4190 = vmatpush1.bf16.msra.mxu0 %v4102
        %4191 = vmatprep.subr.bf16.mxu0 0
        %4192 = vmatpush1.bf16.msra.mxu0 %v4105
        %4193 = vmatprep.subr.bf16.mxu0 0
        %4194 = vmatpush1.bf16.msra.mxu0 %v4108
        %4195 = vmatprep.subr.bf16.mxu0 0
        %4196 = vmatpush1.bf16.msra.mxu0 %v4111
        %4197 = vmatprep.subr.bf16.mxu0 0
        %4198 = vmatpush1.bf16.msra.mxu0 %v4114
        %4199 = vmatprep.subr.bf16.mxu0 0
        %4200 = vmatpush1.bf16.msra.mxu0 %v4117
        %4201 = vmatprep.subr.bf16.mxu0 0
        %4202 = vmatpush1.bf16.msra.mxu0 %v4120
        %4203 = vmatprep.subr.bf16.mxu0 0
        %4204 = vmatpush1.bf16.msra.mxu0 %v4123
        %4205 = vmatprep.subr.bf16.mxu0 0
        %4206 = vmatpush1.bf16.msra.mxu0 0
        %4207 = vmatprep.subr.bf16.mxu0 0
        %4208 = vmatpush1.bf16.msra.mxu0 0
        %4209 = vmatprep.subr.bf16.mxu0 0
        %4210 = vmatpush1.bf16.msra.mxu0 0
        %4211 = vmatprep.subr.bf16.mxu0 0
        %4212 = vmatpush1.bf16.msra.mxu0 0
        %4213 = vmatprep.subr.bf16.mxu0 0
        %4214 = vmatpush1.bf16.msra.mxu0 0
        %4215 = vmatprep.subr.bf16.mxu0 0
        %4216 = vmatpush1.bf16.msra.mxu0 0
        %4217 = vmatprep.subr.bf16.mxu0 0
        %4218 = vmatpush1.bf16.msra.mxu0 0
        %4219 = vmatprep.subr.bf16.mxu0 0
        %4220 = vmatpush1.bf16.msra.mxu0 0
        %4221 = vmatprep.mubr.bf16.mxu0 0
        %4222 = vmatmul.mubr.bf16.gmra.mrb[0].mxu0 %v3987
        %v4223 = vpop.f32.mrb[0].mxu0
        %v4224 = vadd.f32 0.0, %v4223
        %v4225 = vpop.f32.mrb[0].mxu0
        %v4226 = vpop.f32.mrb[0].mxu0
        %v4227 = vpop.f32.mrb[0].mxu0
        %4228 = vdwg.mxu0
        %v4229 = vlaneseq
        %v4230 = vshrl.u32 %v4229, 7
        %v4231 = vsub.s32 2, %v4230
        %v4232 = vrot.slane %v3965, %v4231
        %v4233 = vadd.f32 %v4183, %v4232
        %v4234 = vlaneseq
        %v4235 = vshrl.u32 %v4234, 7
        %v4236 = vsub.s32 3, %v4235
        %v4237 = vrot.slane %v3965, %v4236
        %v4238 = vadd.f32 %v4185, %v4237
        %v4239 = vlaneseq
        %v4240 = vshrl.u32 %v4239, 7
        %v4241 = vsub.s32 4, %v4240
        %v4242 = vrot.slane %v3965, %v4241
        %v4243 = vadd.f32 %v4224, %v4242
        %4244 = vrot.lane.b32.xlu0 %v4233, 96
        %v4245 = vpop.permute.xlu0 %4244
        %4246 = vrot.lane.b32.xlu0 %v4233, 32
        %v4247 = vpop.permute.xlu0 %4246
        %v4248 = vmul.f32 %v4233, %v1319
        %v4249 = vmul.f32 %v4245, %v1320
        %v4250 = vadd.f32 %v4248, %v4249
        %v4251 = vmul.f32 %v4247, %v1321
        %v4252 = vadd.f32 %v4250, %v4251
        %v4253 = vmul.f32 %v4252, 0.088388346
        %4254 = vrot.lane.b32.xlu0 %v4238, 96
        %v4255 = vpop.permute.xlu0 %4254
        %4256 = vrot.lane.b32.xlu0 %v4238, 32
        %v4257 = vpop.permute.xlu0 %4256
        %v4258 = vmul.f32 %v4238, %v1319
        %v4259 = vmul.f32 %v4255, %v1320
        %v4260 = vadd.f32 %v4258, %v4259
        %v4261 = vmul.f32 %v4257, %v1321
        %v4262 = vadd.f32 %v4260, %v4261
        %v4263 = vpack.c.bf16 %v4253, %v4253
        %v4264 = vpack.c.bf16 %v4262, %v4262
        %4265 = vmatprep.subr.bf16.mxu0 0
        %4266 = vmatpush1.bf16.xpose.msra.mxu0 %v4264
        %4267 = vmatprep.subr.bf16.mxu0 0
        %4268 = vmatpush1.bf16.xpose.msra.mxu0 0
        %4269 = vmatprep.subr.bf16.mxu0 0
        %4270 = vmatpush1.bf16.xpose.msra.mxu0 0
        %4271 = vmatprep.subr.bf16.mxu0 0
        %4272 = vmatpush1.bf16.xpose.msra.mxu0 0
        %4273 = vmatprep.subr.bf16.mxu0 0
        %4274 = vmatpush1.bf16.xpose.msra.mxu0 0
        %4275 = vmatprep.subr.bf16.mxu0 0
        %4276 = vmatpush1.bf16.xpose.msra.mxu0 0
        %4277 = vmatprep.subr.bf16.mxu0 0
        %4278 = vmatpush1.bf16.xpose.msra.mxu0 0
        %4279 = vmatprep.subr.bf16.mxu0 0
        %4280 = vmatpush1.bf16.xpose.msra.mxu0 0
        %4281 = vmatprep.subr.bf16.mxu0 0
        %4282 = vmatpush1.bf16.xpose.msra.mxu0 0
        %4283 = vmatprep.subr.bf16.mxu0 0
        %4284 = vmatpush1.bf16.xpose.msra.mxu0 0
        %4285 = vmatprep.subr.bf16.mxu0 0
        %4286 = vmatpush1.bf16.xpose.msra.mxu0 0
        %4287 = vmatprep.subr.bf16.mxu0 0
        %4288 = vmatpush1.bf16.xpose.msra.mxu0 0
        %4289 = vmatprep.subr.bf16.mxu0 0
        %4290 = vmatpush1.bf16.xpose.msra.mxu0 0
        %4291 = vmatprep.subr.bf16.mxu0 0
        %4292 = vmatpush1.bf16.xpose.msra.mxu0 0
        %4293 = vmatprep.subr.bf16.mxu0 0
        %4294 = vmatpush1.bf16.xpose.msra.mxu0 0
        %4295 = vmatprep.subr.bf16.mxu0 0
        %4296 = vmatpush1.bf16.xpose.msra.mxu0 0
        %4297 = vmatprep.mubr.bf16.mxu0 0
        %4298 = vmatmul.mubr.bf16.gmra.mrb[0].mxu0 %v4263
        %v4299 = vpop.f32.mrb[0].mxu0
        %v4300 = vadd.f32 0.0, %v4299
        %v4301 = vpop.f32.mrb[0].mxu0
        %v4302 = vpop.f32.mrb[0].mxu0
        %v4303 = vpop.f32.mrb[0].mxu0
        %4304 = vdwg.mxu0
        %v4305 = vsel %vm1668, %v4300, -1e+30
        %v4306 = vsel %vm1670, %v4305, -inf
        %4307 = vmax.xlane.f32.xlu0 %v4306
        %v4308 = vpop.xlane.xlu0 %4307
        %v4309 = vsub.f32 %v4305, %v4308
        %v4310 = vmul.f32 %v4309, 1.442695
        %v4311 = vpow.pop %v4310
        %v4312 = vsel %vm1670, %v4311, 0.0
        %4313 = vadd.xlane.f32.xlu0 %v4312
        %v4314 = vpop.xlane.xlu0 %4313
        %v4315 = vrcp.pop %v4314
        %v4316 = vmul.f32 %v4311, %v4315
        %v4317 = vpack.c.bf16 %v4316, %v4316
        %v4318 = vpack.c.bf16 %v4243, %v4243
        %v4320 = vsel %vm1670, %v4317, 0
        %v4323 = vsel %vm1687, %v4318, 0
        %4325 = vmatprep.subr.bf16.mxu0 0
        %4326 = vmatpush1.bf16.msra.mxu0 %v4323
        %4327 = vmatprep.subr.bf16.mxu0 0
        %4328 = vmatpush1.bf16.msra.mxu0 0
        %4329 = vmatprep.subr.bf16.mxu0 0
        %4330 = vmatpush1.bf16.msra.mxu0 0
        %4331 = vmatprep.subr.bf16.mxu0 0
        %4332 = vmatpush1.bf16.msra.mxu0 0
        %4333 = vmatprep.subr.bf16.mxu0 0
        %4334 = vmatpush1.bf16.msra.mxu0 0
        %4335 = vmatprep.subr.bf16.mxu0 0
        %4336 = vmatpush1.bf16.msra.mxu0 0
        %4337 = vmatprep.subr.bf16.mxu0 0
        %4338 = vmatpush1.bf16.msra.mxu0 0
        %4339 = vmatprep.subr.bf16.mxu0 0
        %4340 = vmatpush1.bf16.msra.mxu0 0
        %4341 = vmatprep.subr.bf16.mxu0 0
        %4342 = vmatpush1.bf16.msra.mxu0 0
        %4343 = vmatprep.subr.bf16.mxu0 0
        %4344 = vmatpush1.bf16.msra.mxu0 0
        %4345 = vmatprep.subr.bf16.mxu0 0
        %4346 = vmatpush1.bf16.msra.mxu0 0
        %4347 = vmatprep.subr.bf16.mxu0 0
        %4348 = vmatpush1.bf16.msra.mxu0 0
        %4349 = vmatprep.subr.bf16.mxu0 0
        %4350 = vmatpush1.bf16.msra.mxu0 0
        %4351 = vmatprep.subr.bf16.mxu0 0
        %4352 = vmatpush1.bf16.msra.mxu0 0
        %4353 = vmatprep.subr.bf16.mxu0 0
        %4354 = vmatpush1.bf16.msra.mxu0 0
        %4355 = vmatprep.subr.bf16.mxu0 0
        %4356 = vmatpush1.bf16.msra.mxu0 0
        %4357 = vmatprep.mubr.bf16.mxu0 0
        %4358 = vmatmul.mubr.bf16.gmra.mrb[0].mxu0 %v4320
        %v4359 = vpop.f32.mrb[0].mxu0
        %v4360 = vadd.f32 0.0, %v4359
        %v4361 = vpop.f32.mrb[0].mxu0
        %v4362 = vpop.f32.mrb[0].mxu0
        %v4363 = vpop.f32.mrb[0].mxu0
        %4364 = vdwg.mxu0
        %v4365 = vpack.c.bf16 %v4360, %v4360
        %v4366 = vld [vmem:[#allocation35] sm:$0xf]
        %v4367 = vld [vmem:[#allocation35 + $0x4] sm:$0xf]
        %v4368 = vld [vmem:[#allocation35 + $0x8] sm:$0xf]
        %v4369 = vld [vmem:[#allocation35 + $0xc] sm:$0xf]
        %v4370 = vld [vmem:[#allocation35 + $0x10] sm:$0xf]
        %v4371 = vld [vmem:[#allocation35 + $0x14] sm:$0xf]
        %v4372 = vld [vmem:[#allocation35 + $0x18] sm:$0xf]
        %v4373 = vld [vmem:[#allocation35 + $0x1c] sm:$0xf]
        %v4374 = vld [vmem:[#allocation35 + $0x20] sm:$0xf]
        %v4375 = vld [vmem:[#allocation35 + $0x24] sm:$0xf]
        %v4376 = vld [vmem:[#allocation35 + $0x28] sm:$0xf]
        %v4377 = vld [vmem:[#allocation35 + $0x2c] sm:$0xf]
        %v4378 = vld [vmem:[#allocation35 + $0x30] sm:$0xf]
        %v4379 = vld [vmem:[#allocation35 + $0x34] sm:$0xf]
        %v4380 = vld [vmem:[#allocation35 + $0x38] sm:$0xf]
        %v4381 = vld [vmem:[#allocation35 + $0x3c] sm:$0xf]
        %v4382 = vlaneseq
        %v4383 = vshrl.u32 %v4382, 7
        %v4384 = vsub.s32 5, %v4383
        %v4385 = vrot.slane %v3965, %v4384
        %v4402 = vunpack.c.l.b16 %v4366
        %v4403 = vunpack.c.l.b16 %v4367
        %v4404 = vunpack.c.l.b16 %v4368
        %v4405 = vunpack.c.l.b16 %v4369
        %v4406 = vunpack.c.l.b16 %v4370
        %v4407 = vunpack.c.l.b16 %v4371
        %v4408 = vunpack.c.l.b16 %v4372
        %v4409 = vunpack.c.l.b16 %v4373
        %v4410 = vunpack.c.l.b16 %v4374
        %v4411 = vunpack.c.l.b16 %v4375
        %v4412 = vunpack.c.l.b16 %v4376
        %v4413 = vunpack.c.l.b16 %v4377
        %v4414 = vunpack.c.l.b16 %v4378
        %v4415 = vunpack.c.l.b16 %v4379
        %v4416 = vunpack.c.l.b16 %v4380
        %v4417 = vunpack.c.l.b16 %v4381
        %v4418 = vpack.c.b16 %v4403, %v4402
        %v4419 = vpack.c.b16 %v4405, %v4404
        %v4420 = vpack.c.b16 %v4407, %v4406
        %v4421 = vpack.c.b16 %v4409, %v4408
        %v4422 = vpack.c.b16 %v4411, %v4410
        %v4423 = vpack.c.b16 %v4413, %v4412
        %v4424 = vpack.c.b16 %v4415, %v4414
        %v4425 = vpack.c.b16 %v4417, %v4416
        %4434 = vmatprep.subr.bf16.mxu0 0
        %4435 = vmatpush1.bf16.msra.mxu0 %v4418
        %4436 = vmatprep.subr.bf16.mxu0 0
        %4437 = vmatpush1.bf16.msra.mxu0 %v4419
        %4438 = vmatprep.subr.bf16.mxu0 0
        %4439 = vmatpush1.bf16.msra.mxu0 %v4420
        %4440 = vmatprep.subr.bf16.mxu0 0
        %4441 = vmatpush1.bf16.msra.mxu0 %v4421
        %4442 = vmatprep.subr.bf16.mxu0 0
        %4443 = vmatpush1.bf16.msra.mxu0 %v4422
        %4444 = vmatprep.subr.bf16.mxu0 0
        %4445 = vmatpush1.bf16.msra.mxu0 %v4423
        %4446 = vmatprep.subr.bf16.mxu0 0
        %4447 = vmatpush1.bf16.msra.mxu0 %v4424
        %4448 = vmatprep.subr.bf16.mxu0 0
        %4449 = vmatpush1.bf16.msra.mxu0 %v4425
        %4450 = vmatprep.subr.bf16.mxu0 0
        %4451 = vmatpush1.bf16.msra.mxu0 0
        %4452 = vmatprep.subr.bf16.mxu0 0
        %4453 = vmatpush1.bf16.msra.mxu0 0
        %4454 = vmatprep.subr.bf16.mxu0 0
        %4455 = vmatpush1.bf16.msra.mxu0 0
        %4456 = vmatprep.subr.bf16.mxu0 0
        %4457 = vmatpush1.bf16.msra.mxu0 0
        %4458 = vmatprep.subr.bf16.mxu0 0
        %4459 = vmatpush1.bf16.msra.mxu0 0
        %4460 = vmatprep.subr.bf16.mxu0 0
        %4461 = vmatpush1.bf16.msra.mxu0 0
        %4462 = vmatprep.subr.bf16.mxu0 0
        %4463 = vmatpush1.bf16.msra.mxu0 0
        %4464 = vmatprep.subr.bf16.mxu0 0
        %4465 = vmatpush1.bf16.msra.mxu0 0
        %4466 = vmatprep.mubr.bf16.mxu0 0
        %4467 = vmatmul.mubr.bf16.gmra.mrb[0].mxu0 %v4365
        %v4468 = vpop.f32.mrb[0].mxu0
        %v4469 = vadd.f32 %v4385, %v4468
        %v4470 = vpop.f32.mrb[0].mxu0
        %v4471 = vpop.f32.mrb[0].mxu0
        %v4472 = vpop.f32.mrb[0].mxu0
        %4473 = vdwg.mxu0
        %v4474 = vadd.f32 %v3960, %v4469
        %v4475 = vld [vmem:[%s49] sm:$0xff]
        %v4476 = vld [vmem:[%s49 + $0x8] sm:$0xff]
        %v4477 = vld [vmem:[%s49 + $0x10] sm:$0xff]
        %v4478 = vld [vmem:[%s49 + $0x18] sm:$0xff]
        %v4479 = vld [vmem:[%s49 + $0x20] sm:$0xff]
        %v4480 = vld [vmem:[%s49 + $0x28] sm:$0xff]
        %v4481 = vld [vmem:[%s49 + $0x30] sm:$0xff]
        %v4482 = vld [vmem:[%s49 + $0x38] sm:$0xff]
        %v4483 = vld [vmem:[%s49 + $0x40] sm:$0xff]
        %v4484 = vld [vmem:[%s49 + $0x48] sm:$0xff]
        %v4485 = vld [vmem:[%s49 + $0x50] sm:$0xff]
        %v4486 = vld [vmem:[%s49 + $0x58] sm:$0xff]
        %v4487 = vld [vmem:[%s49 + $0x60] sm:$0xff]
        %v4488 = vld [vmem:[%s49 + $0x68] sm:$0xff]
        %v4489 = vld [vmem:[%s49 + $0x70] sm:$0xff]
        %v4490 = vld [vmem:[%s49 + $0x78] sm:$0xff]
        %4491 = vadd.xlane.f32.xlu0 %v4474
        %v4492 = vpop.xlane.xlu0 %4491
        %v4493 = vmul.f32 %v4492, %v1326
        %v4494 = vsub.f32 %v4474, %v4493
        %v4495 = vmul.f32 %v4494, %v4494
        %4496 = vadd.xlane.f32.xlu0 %v4495
        %v4497 = vpop.xlane.xlu0 %4496
        %v4498 = vmul.f32 %v4497, %v1326
        %v4499 = vadd.f32 %v4498, 1e-05
        %v4500 = vrsqrt.pop %v4499
        %v4501 = vmul.f32 %v4494, %v4500
        %v4502 = vlaneseq
        %v4503 = vshrl.u32 %v4502, 7
        %v4504 = vsub.s32 6, %v4503
        %v4505 = vrot.slane %v3965, %v4504
        %v4506 = vmul.f32 %v4501, %v4505
        %v4507 = vlaneseq
        %v4508 = vshrl.u32 %v4507, 7
        %v4509 = vsub.s32 7, %v4508
        %v4510 = vrot.slane %v3965, %v4509
        %v4511 = vadd.f32 %v4506, %v4510
        %v4512 = vpack.c.bf16 %v4511, %v4511
        %v4513 = vpack.c.bf16 %v4476, %v4475
        %v4514 = vpack.c.bf16 %v4478, %v4477
        %v4515 = vpack.c.bf16 %v4480, %v4479
        %v4516 = vpack.c.bf16 %v4482, %v4481
        %v4517 = vpack.c.bf16 %v4484, %v4483
        %v4518 = vpack.c.bf16 %v4486, %v4485
        %v4519 = vpack.c.bf16 %v4488, %v4487
        %v4520 = vpack.c.bf16 %v4490, %v4489
        %4521 = vmatprep.subr.bf16.mxu0 0
        %4522 = vmatpush1.bf16.msra.mxu0 %v4513
        %4523 = vmatprep.subr.bf16.mxu0 0
        %4524 = vmatpush1.bf16.msra.mxu0 %v4514
        %4525 = vmatprep.subr.bf16.mxu0 0
        %4526 = vmatpush1.bf16.msra.mxu0 %v4515
        %4527 = vmatprep.subr.bf16.mxu0 0
        %4528 = vmatpush1.bf16.msra.mxu0 %v4516
        %4529 = vmatprep.subr.bf16.mxu0 0
        %4530 = vmatpush1.bf16.msra.mxu0 %v4517
        %4531 = vmatprep.subr.bf16.mxu0 0
        %4532 = vmatpush1.bf16.msra.mxu0 %v4518
        %4533 = vmatprep.subr.bf16.mxu0 0
        %4534 = vmatpush1.bf16.msra.mxu0 %v4519
        %4535 = vmatprep.subr.bf16.mxu0 0
        %4536 = vmatpush1.bf16.msra.mxu0 %v4520
        %4537 = vmatprep.subr.bf16.mxu0 0
        %4538 = vmatpush1.bf16.msra.mxu0 0
        %4539 = vmatprep.subr.bf16.mxu0 0
        %4540 = vmatpush1.bf16.msra.mxu0 0
        %4541 = vmatprep.subr.bf16.mxu0 0
        %4542 = vmatpush1.bf16.msra.mxu0 0
        %4543 = vmatprep.subr.bf16.mxu0 0
        %4544 = vmatpush1.bf16.msra.mxu0 0
        %4545 = vmatprep.subr.bf16.mxu0 0
        %4546 = vmatpush1.bf16.msra.mxu0 0
        %4547 = vmatprep.subr.bf16.mxu0 0
        %4548 = vmatpush1.bf16.msra.mxu0 0
        %4549 = vmatprep.subr.bf16.mxu0 0
        %4550 = vmatpush1.bf16.msra.mxu0 0
        %4551 = vmatprep.subr.bf16.mxu0 0
        %4552 = vmatpush1.bf16.msra.mxu0 0
        %4553 = vmatprep.mubr.bf16.mxu0 0
        %4554 = vmatmul.mubr.bf16.gmra.mrb[0].mxu0 %v4512
        %v4555 = vpop.f32.mrb[0].mxu0
        %v4556 = vadd.f32 0.0, %v4555
        %v4557 = vpop.f32.mrb[0].mxu0
        %v4558 = vpop.f32.mrb[0].mxu0
        %v4559 = vpop.f32.mrb[0].mxu0
        %4560 = vdwg.mxu0
        %vm4561 = vcmask 15360
        %v4562 = vsel %vm4561, %v4556, -inf
        %4563 = vmax.xlane.f32.xlu0 %v4562
        %v4564 = vpop.xlane.xlu0 %4563
        %v4565 = vsub.f32 %v4556, %v4564
        %v4566 = vmul.f32 %v4565, 1.442695
        %v4567 = vpow.pop %v4566
        %v4568 = vsel %vm4561, %v4567, 0.0
        %4569 = vadd.xlane.f32.xlu0 %v4568
        %v4570 = vpop.xlane.xlu0 %4569
        %v4571 = vrcp.pop %v4570
        %v4572 = vmul.f32 %v4567, %v4571
        %v4573 = vsel %vm4561, %v4572, -inf
        %4574 = vmax.xlane.f32.xlu0 %v4573
        %v4575 = vpop.xlane.xlu0 %4574
        %vm4576 = vcmp.eq.f32.partialorder %v4572, %v4575
        %v4577 = vsel %vm4576, %v1667, 2
        %v4578 = vsel %vm4561, %v4577, 2147483647
        %v4579 = vand.u32 %v4578, 65535
        %v4580 = vshra.s32 %v4578, 16
        %v4581 = vcvt.s32.f32 %v4579
        %v4582 = vcvt.s32.f32 %v4580
        %4583 = vmin.xlane.f32.xlu0 %v4582
        %v4584 = vpop.xlane.xlu0 %4583
        %vm4585 = vcmp.eq.f32.partialorder %v4582, %v4584
        %v4586 = vsel %vm4585, %v4581, inf
        %4587 = vmin.xlane.f32.xlu0 %v4586
        %v4588 = vpop.xlane.xlu0 %4587
        %v4589 = vcvt.f32.s32 %v4588
        %v4590 = vcvt.f32.s32 %v4584
        %v4591 = vshll.u32 %v4590, 16
        %v4592 = vadd.s32 %v4591, %v4589
        %vm4593 = vcmp.eq.s32.totalorder %v1667, %v4592
        %v4594 = vsel %vm4593, 1, 0
        %v4595 = vcvt.s32.f32 %v4594
        %v4596 = vadd.f32 %v4595, 0.0
        %v4597 = vmul.f32 %v4572, %v4596
        %v4598 = vsel %vm4561, %v4597, 0.0
        %4599 = vadd.xlane.f32.xlu0 %v4598
        %v4600 = vpop.xlane.xlu0 %4599
        %v4601 = vrcp.pop %v4600
        %v4602 = vmul.f32 %v4597, %v4601
        %v4603 = vld [vmem:[#allocation37] sm:$0xff]
        %v4604 = vld [vmem:[#allocation37 + $0x8] sm:$0xff]
        %v4605 = vld [vmem:[#allocation37 + $0x10] sm:$0xff]
        %v4606 = vld [vmem:[#allocation37 + $0x18] sm:$0xff]
        %v4607 = vld [vmem:[#allocation37 + $0x20] sm:$0xff]
        %v4608 = vld [vmem:[#allocation37 + $0x28] sm:$0xff]
        %v4609 = vld [vmem:[#allocation37 + $0x30] sm:$0xff]
        %v4610 = vld [vmem:[#allocation37 + $0x38] sm:$0xff]
        %v4611 = vld [vmem:[#allocation37 + $0x40] sm:$0xff]
        %v4612 = vld [vmem:[#allocation37 + $0x48] sm:$0xff]
        %v4613 = vld [vmem:[#allocation37 + $0x50] sm:$0xff]
        %v4614 = vld [vmem:[#allocation37 + $0x58] sm:$0xff]
        %v4615 = vld [vmem:[#allocation37 + $0x60] sm:$0xff]
        %v4616 = vld [vmem:[#allocation37 + $0x68] sm:$0xff]
        %v4617 = vld [vmem:[#allocation37 + $0x70] sm:$0xff]
        %v4618 = vld [vmem:[#allocation37 + $0x78] sm:$0xff]
        %v4619 = vld [vmem:[%s53] sm:$0x3]
        %v4621 = vlaneseq
        %v4622 = vshrl.u32 %v4621, 7
        %v4623 = vsub.s32 0, %v4622
        %v4624 = vrot.slane %v4619, %v4623
        %v4625 = vlaneseq
        %v4626 = vshrl.u32 %v4625, 7
        %v4627 = vsub.s32 1, %v4626
        %v4628 = vrot.slane %v4619, %v4627
        %v4647 = vunpack.c.l.b16 %v4603
        %v4648 = vunpack.c.h.b16 %v4603
        %v4649 = vunpack.c.l.b16 %v4604
        %v4650 = vunpack.c.h.b16 %v4604
        %v4651 = vunpack.c.l.b16 %v4605
        %v4652 = vunpack.c.h.b16 %v4605
        %v4653 = vunpack.c.l.b16 %v4606
        %v4654 = vunpack.c.h.b16 %v4606
        %v4655 = vunpack.c.l.b16 %v4607
        %v4656 = vunpack.c.h.b16 %v4607
        %v4657 = vunpack.c.l.b16 %v4608
        %v4658 = vunpack.c.h.b16 %v4608
        %v4659 = vunpack.c.l.b16 %v4609
        %v4660 = vunpack.c.h.b16 %v4609
        %v4661 = vunpack.c.l.b16 %v4610
        %v4662 = vunpack.c.h.b16 %v4610
        %v4663 = vunpack.c.l.b16 %v4611
        %v4664 = vunpack.c.h.b16 %v4611
        %v4665 = vunpack.c.l.b16 %v4612
        %v4666 = vunpack.c.h.b16 %v4612
        %v4667 = vunpack.c.l.b16 %v4613
        %v4668 = vunpack.c.h.b16 %v4613
        %v4669 = vunpack.c.l.b16 %v4614
        %v4670 = vunpack.c.h.b16 %v4614
        %v4671 = vunpack.c.l.b16 %v4615
        %v4672 = vunpack.c.h.b16 %v4615
        %v4673 = vunpack.c.l.b16 %v4616
        %v4674 = vunpack.c.h.b16 %v4616
        %v4675 = vunpack.c.l.b16 %v4617
        %v4676 = vunpack.c.h.b16 %v4617
        %v4677 = vunpack.c.l.b16 %v4618
        %v4678 = vunpack.c.h.b16 %v4618
        %v4679 = vpack.c.b16 %v4649, %v4647
        %v4680 = vpack.c.b16 %v4650, %v4648
        %v4681 = vpack.c.b16 %v4653, %v4651
        %v4682 = vpack.c.b16 %v4654, %v4652
        %v4683 = vpack.c.b16 %v4657, %v4655
        %v4684 = vpack.c.b16 %v4658, %v4656
        %v4685 = vpack.c.b16 %v4661, %v4659
        %v4686 = vpack.c.b16 %v4662, %v4660
        %v4687 = vpack.c.b16 %v4665, %v4663
        %v4688 = vpack.c.b16 %v4666, %v4664
        %v4689 = vpack.c.b16 %v4669, %v4667
        %v4690 = vpack.c.b16 %v4670, %v4668
        %v4691 = vpack.c.b16 %v4673, %v4671
        %v4692 = vpack.c.b16 %v4674, %v4672
        %v4693 = vpack.c.b16 %v4677, %v4675
        %v4694 = vpack.c.b16 %v4678, %v4676
        %4711 = vmatprep.subr.bf16.mxu0 %v4680
        %4712 = vmatpush1.bf16.msra.mxu0 %v4679
        %4713 = vmatprep.subr.bf16.mxu0 %v4682
        %4714 = vmatpush1.bf16.msra.mxu0 %v4681
        %4715 = vmatprep.subr.bf16.mxu0 %v4684
        %4716 = vmatpush1.bf16.msra.mxu0 %v4683
        %4717 = vmatprep.subr.bf16.mxu0 %v4686
        %4718 = vmatpush1.bf16.msra.mxu0 %v4685
        %4719 = vmatprep.subr.bf16.mxu0 %v4688
        %4720 = vmatpush1.bf16.msra.mxu0 %v4687
        %4721 = vmatprep.subr.bf16.mxu0 %v4690
        %4722 = vmatpush1.bf16.msra.mxu0 %v4689
        %4723 = vmatprep.subr.bf16.mxu0 %v4692
        %4724 = vmatpush1.bf16.msra.mxu0 %v4691
        %4725 = vmatprep.subr.bf16.mxu0 %v4694
        %4726 = vmatpush1.bf16.msra.mxu0 %v4693
        %4727 = vmatprep.subr.bf16.mxu0 0
        %4728 = vmatpush1.bf16.msra.mxu0 0
        %4729 = vmatprep.subr.bf16.mxu0 0
        %4730 = vmatpush1.bf16.msra.mxu0 0
        %4731 = vmatprep.subr.bf16.mxu0 0
        %4732 = vmatpush1.bf16.msra.mxu0 0
        %4733 = vmatprep.subr.bf16.mxu0 0
        %4734 = vmatpush1.bf16.msra.mxu0 0
        %4735 = vmatprep.subr.bf16.mxu0 0
        %4736 = vmatpush1.bf16.msra.mxu0 0
        %4737 = vmatprep.subr.bf16.mxu0 0
        %4738 = vmatpush1.bf16.msra.mxu0 0
        %4739 = vmatprep.subr.bf16.mxu0 0
        %4740 = vmatpush1.bf16.msra.mxu0 0
        %4741 = vmatprep.subr.bf16.mxu0 0
        %4742 = vmatpush1.bf16.msra.mxu0 0
        %4743 = vmatprep.mubr.bf16.mxu0 0
        %4744 = vmatmul.mubr.bf16.gmra.mrb[0].mxu0 %v4512
        %v4745 = vpop.f32.mrb[0].mxu0
        %v4746 = vadd.f32 %v4624, %v4745
        %v4747 = vpop.f32.mrb[0].mxu0
        %v4748 = vadd.f32 %v4628, %v4747
        %v4749 = vpop.f32.mrb[0].mxu0
        %v4750 = vpop.f32.mrb[0].mxu0
        %4751 = vdwg.mxu0
        %v4752 = vmul.f32 %v4746, %v4746
        %v4753 = vmul.f32 %v4748, %v4748
        %v4754 = vmul.f32 %v4746, %v4752
        %v4755 = vmul.f32 %v4748, %v4753
        %v4756 = vmul.f32 %v4754, 0.044715
        %v4757 = vmul.f32 %v4755, 0.044715
        %v4758 = vadd.f32 %v4746, %v4756
        %v4759 = vadd.f32 %v4748, %v4757
        %v4760 = vmul.f32 %v4758, 0.7978846
        %v4761 = vmul.f32 %v4759, 0.7978846
        %v4762 = vtanh.pop %v4760
        %v4763 = vtanh.pop %v4761
        %v4764 = vadd.f32 %v4762, 1.0
        %v4765 = vadd.f32 %v4763, 1.0
        %v4766 = vmul.f32 %v4764, 0.5
        %v4767 = vmul.f32 %v4765, 0.5
        %v4768 = vmul.f32 %v4746, %v4766
        %v4769 = vmul.f32 %v4748, %v4767
        %v4770 = vpack.c.bf16 %v4768, %v4768
        %v4771 = vpack.c.bf16 %v4769, %v4769
        %v4772 = vld [vmem:[#allocation38] sm:$0xf]
        %v4773 = vld [vmem:[#allocation38 + $0x4] sm:$0xf]
        %v4774 = vld [vmem:[#allocation38 + $0x8] sm:$0xf]
        %v4775 = vld [vmem:[#allocation38 + $0xc] sm:$0xf]
        %v4776 = vld [vmem:[#allocation38 + $0x10] sm:$0xf]
        %v4777 = vld [vmem:[#allocation38 + $0x14] sm:$0xf]
        %v4778 = vld [vmem:[#allocation38 + $0x18] sm:$0xf]
        %v4779 = vld [vmem:[#allocation38 + $0x1c] sm:$0xf]
        %v4780 = vld [vmem:[#allocation38 + $0x20] sm:$0xf]
        %v4781 = vld [vmem:[#allocation38 + $0x24] sm:$0xf]
        %v4782 = vld [vmem:[#allocation38 + $0x28] sm:$0xf]
        %v4783 = vld [vmem:[#allocation38 + $0x2c] sm:$0xf]
        %v4784 = vld [vmem:[#allocation38 + $0x30] sm:$0xf]
        %v4785 = vld [vmem:[#allocation38 + $0x34] sm:$0xf]
        %v4786 = vld [vmem:[#allocation38 + $0x38] sm:$0xf]
        %v4787 = vld [vmem:[#allocation38 + $0x3c] sm:$0xf]
        %v4788 = vld [vmem:[#allocation38 + $0x40] sm:$0xf]
        %v4789 = vld [vmem:[#allocation38 + $0x44] sm:$0xf]
        %v4790 = vld [vmem:[#allocation38 + $0x48] sm:$0xf]
        %v4791 = vld [vmem:[#allocation38 + $0x4c] sm:$0xf]
        %v4792 = vld [vmem:[#allocation38 + $0x50] sm:$0xf]
        %v4793 = vld [vmem:[#allocation38 + $0x54] sm:$0xf]
        %v4794 = vld [vmem:[#allocation38 + $0x58] sm:$0xf]
        %v4795 = vld [vmem:[#allocation38 + $0x5c] sm:$0xf]
        %v4796 = vld [vmem:[#allocation38 + $0x60] sm:$0xf]
        %v4797 = vld [vmem:[#allocation38 + $0x64] sm:$0xf]
        %v4798 = vld [vmem:[#allocation38 + $0x68] sm:$0xf]
        %v4799 = vld [vmem:[#allocation38 + $0x6c] sm:$0xf]
        %v4800 = vld [vmem:[#allocation38 + $0x70] sm:$0xf]
        %v4801 = vld [vmem:[#allocation38 + $0x74] sm:$0xf]
        %v4802 = vld [vmem:[#allocation38 + $0x78] sm:$0xf]
        %v4803 = vld [vmem:[#allocation38 + $0x7c] sm:$0xf]
        %v4804 = vld [vmem:[%s57] sm:$0x1]
        %v4806 = vlaneseq
        %v4807 = vshrl.u32 %v4806, 7
        %v4808 = vsub.s32 0, %v4807
        %v4809 = vrot.slane %v4804, %v4808
        %v4843 = vunpack.c.l.b16 %v4772
        %v4844 = vunpack.c.l.b16 %v4773
        %v4845 = vunpack.c.l.b16 %v4774
        %v4846 = vunpack.c.l.b16 %v4775
        %v4847 = vunpack.c.l.b16 %v4776
        %v4848 = vunpack.c.l.b16 %v4777
        %v4849 = vunpack.c.l.b16 %v4778
        %v4850 = vunpack.c.l.b16 %v4779
        %v4851 = vunpack.c.l.b16 %v4780
        %v4852 = vunpack.c.l.b16 %v4781
        %v4853 = vunpack.c.l.b16 %v4782
        %v4854 = vunpack.c.l.b16 %v4783
        %v4855 = vunpack.c.l.b16 %v4784
        %v4856 = vunpack.c.l.b16 %v4785
        %v4857 = vunpack.c.l.b16 %v4786
        %v4858 = vunpack.c.l.b16 %v4787
        %v4859 = vunpack.c.l.b16 %v4788
        %v4860 = vunpack.c.l.b16 %v4789
        %v4861 = vunpack.c.l.b16 %v4790
        %v4862 = vunpack.c.l.b16 %v4791
        %v4863 = vunpack.c.l.b16 %v4792
        %v4864 = vunpack.c.l.b16 %v4793
        %v4865 = vunpack.c.l.b16 %v4794
        %v4866 = vunpack.c.l.b16 %v4795
        %v4867 = vunpack.c.l.b16 %v4796
        %v4868 = vunpack.c.l.b16 %v4797
        %v4869 = vunpack.c.l.b16 %v4798
        %v4870 = vunpack.c.l.b16 %v4799
        %v4871 = vunpack.c.l.b16 %v4800
        %v4872 = vunpack.c.l.b16 %v4801
        %v4873 = vunpack.c.l.b16 %v4802
        %v4874 = vunpack.c.l.b16 %v4803
        %v4875 = vpack.c.b16 %v4844, %v4843
        %v4876 = vpack.c.b16 %v4846, %v4845
        %v4877 = vpack.c.b16 %v4848, %v4847
        %v4878 = vpack.c.b16 %v4850, %v4849
        %v4879 = vpack.c.b16 %v4852, %v4851
        %v4880 = vpack.c.b16 %v4854, %v4853
        %v4881 = vpack.c.b16 %v4856, %v4855
        %v4882 = vpack.c.b16 %v4858, %v4857
        %v4883 = vpack.c.b16 %v4860, %v4859
        %v4884 = vpack.c.b16 %v4862, %v4861
        %v4885 = vpack.c.b16 %v4864, %v4863
        %v4886 = vpack.c.b16 %v4866, %v4865
        %v4887 = vpack.c.b16 %v4868, %v4867
        %v4888 = vpack.c.b16 %v4870, %v4869
        %v4889 = vpack.c.b16 %v4872, %v4871
        %v4890 = vpack.c.b16 %v4874, %v4873
        %4907 = vmatprep.subr.bf16.mxu0 0
        %4908 = vmatpush1.bf16.msra.mxu0 %v4875
        %4909 = vmatprep.subr.bf16.mxu0 0
        %4910 = vmatpush1.bf16.msra.mxu0 %v4876
        %4911 = vmatprep.subr.bf16.mxu0 0
        %4912 = vmatpush1.bf16.msra.mxu0 %v4877
        %4913 = vmatprep.subr.bf16.mxu0 0
        %4914 = vmatpush1.bf16.msra.mxu0 %v4878
        %4915 = vmatprep.subr.bf16.mxu0 0
        %4916 = vmatpush1.bf16.msra.mxu0 %v4879
        %4917 = vmatprep.subr.bf16.mxu0 0
        %4918 = vmatpush1.bf16.msra.mxu0 %v4880
        %4919 = vmatprep.subr.bf16.mxu0 0
        %4920 = vmatpush1.bf16.msra.mxu0 %v4881
        %4921 = vmatprep.subr.bf16.mxu0 0
        %4922 = vmatpush1.bf16.msra.mxu0 %v4882
        %4923 = vmatprep.subr.bf16.mxu0 0
        %4924 = vmatpush1.bf16.msra.mxu0 %v4883
        %4925 = vmatprep.subr.bf16.mxu0 0
        %4926 = vmatpush1.bf16.msra.mxu0 %v4884
        %4927 = vmatprep.subr.bf16.mxu0 0
        %4928 = vmatpush1.bf16.msra.mxu0 %v4885
        %4929 = vmatprep.subr.bf16.mxu0 0
        %4930 = vmatpush1.bf16.msra.mxu0 %v4886
        %4931 = vmatprep.subr.bf16.mxu0 0
        %4932 = vmatpush1.bf16.msra.mxu0 %v4887
        %4933 = vmatprep.subr.bf16.mxu0 0
        %4934 = vmatpush1.bf16.msra.mxu0 %v4888
        %4935 = vmatprep.subr.bf16.mxu0 0
        %4936 = vmatpush1.bf16.msra.mxu0 %v4889
        %4937 = vmatprep.subr.bf16.mxu0 0
        %4938 = vmatpush1.bf16.msra.mxu0 %v4890
        %4939 = vmatprep.mubr.bf16.mxu0 %v4771
        %4940 = vmatmul.mubr.bf16.gmra.mrb[0].mxu0 %v4770
        %v4941 = vpop.f32.mrb[0].mxu0
        %v4942 = vadd.f32 %v4809, %v4941
        %v4943 = vpop.f32.mrb[0].mxu0
        %v4944 = vpop.f32.mrb[0].mxu0
        %v4945 = vpop.f32.mrb[0].mxu0
        %4946 = vdwg.mxu0
        %4948 = vset.pattern.permute.xlu0 0
        %4949 = vperm.xlu0 %4948, %v4602
        %v4950 = vpop.permute.xlu0 %4949
        %v4952 = vmul.f32 %v4950, %v4942
        %v4953 = vadd.f32 %v4952, 0.0
        %s4954 = scalar_lea.vmem [#allocation37], 128
        %v4955 = vld [vmem:[%s4954] sm:$0xff]
        %v4956 = vld [vmem:[%s4954 + $0x8] sm:$0xff]
        %v4957 = vld [vmem:[%s4954 + $0x10] sm:$0xff]
        %v4958 = vld [vmem:[%s4954 + $0x18] sm:$0xff]
        %v4959 = vld [vmem:[%s4954 + $0x20] sm:$0xff]
        %v4960 = vld [vmem:[%s4954 + $0x28] sm:$0xff]
        %v4961 = vld [vmem:[%s4954 + $0x30] sm:$0xff]
        %v4962 = vld [vmem:[%s4954 + $0x38] sm:$0xff]
        %v4963 = vld [vmem:[%s4954 + $0x40] sm:$0xff]
        %v4964 = vld [vmem:[%s4954 + $0x48] sm:$0xff]
        %v4965 = vld [vmem:[%s4954 + $0x50] sm:$0xff]
        %v4966 = vld [vmem:[%s4954 + $0x58] sm:$0xff]
        %v4967 = vld [vmem:[%s4954 + $0x60] sm:$0xff]
        %v4968 = vld [vmem:[%s4954 + $0x68] sm:$0xff]
        %v4969 = vld [vmem:[%s4954 + $0x70] sm:$0xff]
        %v4970 = vld [vmem:[%s4954 + $0x78] sm:$0xff]
        %s4971 = scalar_lea.vmem %s53, 2
        %v4972 = vld [vmem:[%s4971] sm:$0x3]
        %v4974 = vlaneseq
        %v4975 = vshrl.u32 %v4974, 7
        %v4976 = vsub.s32 0, %v4975
        %v4977 = vrot.slane %v4972, %v4976
        %v4978 = vlaneseq
        %v4979 = vshrl.u32 %v4978, 7
        %v4980 = vsub.s32 1, %v4979
        %v4981 = vrot.slane %v4972, %v4980
        %v5000 = vunpack.c.l.b16 %v4955
        %v5001 = vunpack.c.h.b16 %v4955
        %v5002 = vunpack.c.l.b16 %v4956
        %v5003 = vunpack.c.h.b16 %v4956
        %v5004 = vunpack.c.l.b16 %v4957
        %v5005 = vunpack.c.h.b16 %v4957
        %v5006 = vunpack.c.l.b16 %v4958
        %v5007 = vunpack.c.h.b16 %v4958
        %v5008 = vunpack.c.l.b16 %v4959
        %v5009 = vunpack.c.h.b16 %v4959
        %v5010 = vunpack.c.l.b16 %v4960
        %v5011 = vunpack.c.h.b16 %v4960
        %v5012 = vunpack.c.l.b16 %v4961
        %v5013 = vunpack.c.h.b16 %v4961
        %v5014 = vunpack.c.l.b16 %v4962
        %v5015 = vunpack.c.h.b16 %v4962
        %v5016 = vunpack.c.l.b16 %v4963
        %v5017 = vunpack.c.h.b16 %v4963
        %v5018 = vunpack.c.l.b16 %v4964
        %v5019 = vunpack.c.h.b16 %v4964
        %v5020 = vunpack.c.l.b16 %v4965
        %v5021 = vunpack.c.h.b16 %v4965
        %v5022 = vunpack.c.l.b16 %v4966
        %v5023 = vunpack.c.h.b16 %v4966
        %v5024 = vunpack.c.l.b16 %v4967
        %v5025 = vunpack.c.h.b16 %v4967
        %v5026 = vunpack.c.l.b16 %v4968
        %v5027 = vunpack.c.h.b16 %v4968
        %v5028 = vunpack.c.l.b16 %v4969
        %v5029 = vunpack.c.h.b16 %v4969
        %v5030 = vunpack.c.l.b16 %v4970
        %v5031 = vunpack.c.h.b16 %v4970
        %v5032 = vpack.c.b16 %v5002, %v5000
        %v5033 = vpack.c.b16 %v5003, %v5001
        %v5034 = vpack.c.b16 %v5006, %v5004
        %v5035 = vpack.c.b16 %v5007, %v5005
        %v5036 = vpack.c.b16 %v5010, %v5008
        %v5037 = vpack.c.b16 %v5011, %v5009
        %v5038 = vpack.c.b16 %v5014, %v5012
        %v5039 = vpack.c.b16 %v5015, %v5013
        %v5040 = vpack.c.b16 %v5018, %v5016
        %v5041 = vpack.c.b16 %v5019, %v5017
        %v5042 = vpack.c.b16 %v5022, %v5020
        %v5043 = vpack.c.b16 %v5023, %v5021
        %v5044 = vpack.c.b16 %v5026, %v5024
        %v5045 = vpack.c.b16 %v5027, %v5025
        %v5046 = vpack.c.b16 %v5030, %v5028
        %v5047 = vpack.c.b16 %v5031, %v5029
        %5064 = vmatprep.subr.bf16.mxu0 %v5033
        %5065 = vmatpush1.bf16.msra.mxu0 %v5032
        %5066 = vmatprep.subr.bf16.mxu0 %v5035
        %5067 = vmatpush1.bf16.msra.mxu0 %v5034
        %5068 = vmatprep.subr.bf16.mxu0 %v5037
        %5069 = vmatpush1.bf16.msra.mxu0 %v5036
        %5070 = vmatprep.subr.bf16.mxu0 %v5039
        %5071 = vmatpush1.bf16.msra.mxu0 %v5038
        %5072 = vmatprep.subr.bf16.mxu0 %v5041
        %5073 = vmatpush1.bf16.msra.mxu0 %v5040
        %5074 = vmatprep.subr.bf16.mxu0 %v5043
        %5075 = vmatpush1.bf16.msra.mxu0 %v5042
        %5076 = vmatprep.subr.bf16.mxu0 %v5045
        %5077 = vmatpush1.bf16.msra.mxu0 %v5044
        %5078 = vmatprep.subr.bf16.mxu0 %v5047
        %5079 = vmatpush1.bf16.msra.mxu0 %v5046
        %5080 = vmatprep.subr.bf16.mxu0 0
        %5081 = vmatpush1.bf16.msra.mxu0 0
        %5082 = vmatprep.subr.bf16.mxu0 0
        %5083 = vmatpush1.bf16.msra.mxu0 0
        %5084 = vmatprep.subr.bf16.mxu0 0
        %5085 = vmatpush1.bf16.msra.mxu0 0
        %5086 = vmatprep.subr.bf16.mxu0 0
        %5087 = vmatpush1.bf16.msra.mxu0 0
        %5088 = vmatprep.subr.bf16.mxu0 0
        %5089 = vmatpush1.bf16.msra.mxu0 0
        %5090 = vmatprep.subr.bf16.mxu0 0
        %5091 = vmatpush1.bf16.msra.mxu0 0
        %5092 = vmatprep.subr.bf16.mxu0 0
        %5093 = vmatpush1.bf16.msra.mxu0 0
        %5094 = vmatprep.subr.bf16.mxu0 0
        %5095 = vmatpush1.bf16.msra.mxu0 0
        %5096 = vmatprep.mubr.bf16.mxu0 0
        %5097 = vmatmul.mubr.bf16.gmra.mrb[0].mxu0 %v4512
        %v5098 = vpop.f32.mrb[0].mxu0
        %v5099 = vadd.f32 %v4977, %v5098
        %v5100 = vpop.f32.mrb[0].mxu0
        %v5101 = vadd.f32 %v4981, %v5100
        %v5102 = vpop.f32.mrb[0].mxu0
        %v5103 = vpop.f32.mrb[0].mxu0
        %5104 = vdwg.mxu0
        %v5105 = vmul.f32 %v5099, %v5099
        %v5106 = vmul.f32 %v5101, %v5101
        %v5107 = vmul.f32 %v5099, %v5105
        %v5108 = vmul.f32 %v5101, %v5106
        %v5109 = vmul.f32 %v5107, 0.044715
        %v5110 = vmul.f32 %v5108, 0.044715
        %v5111 = vadd.f32 %v5099, %v5109
        %v5112 = vadd.f32 %v5101, %v5110
        %v5113 = vmul.f32 %v5111, 0.7978846
        %v5114 = vmul.f32 %v5112, 0.7978846
        %v5115 = vtanh.pop %v5113
        %v5116 = vtanh.pop %v5114
        %v5117 = vadd.f32 %v5115, 1.0
        %v5118 = vadd.f32 %v5116, 1.0
        %v5119 = vmul.f32 %v5117, 0.5
        %v5120 = vmul.f32 %v5118, 0.5
        %v5121 = vmul.f32 %v5099, %v5119
        %v5122 = vmul.f32 %v5101, %v5120
        %v5123 = vpack.c.bf16 %v5121, %v5121
        %v5124 = vpack.c.bf16 %v5122, %v5122
        %s5125 = scalar_lea.vmem [#allocation38], 128
        %v5126 = vld [vmem:[%s5125] sm:$0xf]
        %v5127 = vld [vmem:[%s5125 + $0x4] sm:$0xf]
        %v5128 = vld [vmem:[%s5125 + $0x8] sm:$0xf]
        %v5129 = vld [vmem:[%s5125 + $0xc] sm:$0xf]
        %v5130 = vld [vmem:[%s5125 + $0x10] sm:$0xf]
        %v5131 = vld [vmem:[%s5125 + $0x14] sm:$0xf]
        %v5132 = vld [vmem:[%s5125 + $0x18] sm:$0xf]
        %v5133 = vld [vmem:[%s5125 + $0x1c] sm:$0xf]
        %v5134 = vld [vmem:[%s5125 + $0x20] sm:$0xf]
        %v5135 = vld [vmem:[%s5125 + $0x24] sm:$0xf]
        %v5136 = vld [vmem:[%s5125 + $0x28] sm:$0xf]
        %v5137 = vld [vmem:[%s5125 + $0x2c] sm:$0xf]
        %v5138 = vld [vmem:[%s5125 + $0x30] sm:$0xf]
        %v5139 = vld [vmem:[%s5125 + $0x34] sm:$0xf]
        %v5140 = vld [vmem:[%s5125 + $0x38] sm:$0xf]
        %v5141 = vld [vmem:[%s5125 + $0x3c] sm:$0xf]
        %v5142 = vld [vmem:[%s5125 + $0x40] sm:$0xf]
        %v5143 = vld [vmem:[%s5125 + $0x44] sm:$0xf]
        %v5144 = vld [vmem:[%s5125 + $0x48] sm:$0xf]
        %v5145 = vld [vmem:[%s5125 + $0x4c] sm:$0xf]
        %v5146 = vld [vmem:[%s5125 + $0x50] sm:$0xf]
        %v5147 = vld [vmem:[%s5125 + $0x54] sm:$0xf]
        %v5148 = vld [vmem:[%s5125 + $0x58] sm:$0xf]
        %v5149 = vld [vmem:[%s5125 + $0x5c] sm:$0xf]
        %v5150 = vld [vmem:[%s5125 + $0x60] sm:$0xf]
        %v5151 = vld [vmem:[%s5125 + $0x64] sm:$0xf]
        %v5152 = vld [vmem:[%s5125 + $0x68] sm:$0xf]
        %v5153 = vld [vmem:[%s5125 + $0x6c] sm:$0xf]
        %v5154 = vld [vmem:[%s5125 + $0x70] sm:$0xf]
        %v5155 = vld [vmem:[%s5125 + $0x74] sm:$0xf]
        %v5156 = vld [vmem:[%s5125 + $0x78] sm:$0xf]
        %v5157 = vld [vmem:[%s5125 + $0x7c] sm:$0xf]
        %s5158 = scalar_lea.vmem %s57, 1
        %v5159 = vld [vmem:[%s5158] sm:$0x1]
        %v5161 = vlaneseq
        %v5162 = vshrl.u32 %v5161, 7
        %v5163 = vsub.s32 0, %v5162
        %v5164 = vrot.slane %v5159, %v5163
        %v5198 = vunpack.c.l.b16 %v5126
        %v5199 = vunpack.c.l.b16 %v5127
        %v5200 = vunpack.c.l.b16 %v5128
        %v5201 = vunpack.c.l.b16 %v5129
        %v5202 = vunpack.c.l.b16 %v5130
        %v5203 = vunpack.c.l.b16 %v5131
        %v5204 = vunpack.c.l.b16 %v5132
        %v5205 = vunpack.c.l.b16 %v5133
        %v5206 = vunpack.c.l.b16 %v5134
        %v5207 = vunpack.c.l.b16 %v5135
        %v5208 = vunpack.c.l.b16 %v5136
        %v5209 = vunpack.c.l.b16 %v5137
        %v5210 = vunpack.c.l.b16 %v5138
        %v5211 = vunpack.c.l.b16 %v5139
        %v5212 = vunpack.c.l.b16 %v5140
        %v5213 = vunpack.c.l.b16 %v5141
        %v5214 = vunpack.c.l.b16 %v5142
        %v5215 = vunpack.c.l.b16 %v5143
        %v5216 = vunpack.c.l.b16 %v5144
        %v5217 = vunpack.c.l.b16 %v5145
        %v5218 = vunpack.c.l.b16 %v5146
        %v5219 = vunpack.c.l.b16 %v5147
        %v5220 = vunpack.c.l.b16 %v5148
        %v5221 = vunpack.c.l.b16 %v5149
        %v5222 = vunpack.c.l.b16 %v5150
        %v5223 = vunpack.c.l.b16 %v5151
        %v5224 = vunpack.c.l.b16 %v5152
        %v5225 = vunpack.c.l.b16 %v5153
        %v5226 = vunpack.c.l.b16 %v5154
        %v5227 = vunpack.c.l.b16 %v5155
        %v5228 = vunpack.c.l.b16 %v5156
        %v5229 = vunpack.c.l.b16 %v5157
        %v5230 = vpack.c.b16 %v5199, %v5198
        %v5231 = vpack.c.b16 %v5201, %v5200
        %v5232 = vpack.c.b16 %v5203, %v5202
        %v5233 = vpack.c.b16 %v5205, %v5204
        %v5234 = vpack.c.b16 %v5207, %v5206
        %v5235 = vpack.c.b16 %v5209, %v5208
        %v5236 = vpack.c.b16 %v5211, %v5210
        %v5237 = vpack.c.b16 %v5213, %v5212
        %v5238 = vpack.c.b16 %v5215, %v5214
        %v5239 = vpack.c.b16 %v5217, %v5216
        %v5240 = vpack.c.b16 %v5219, %v5218
        %v5241 = vpack.c.b16 %v5221, %v5220
        %v5242 = vpack.c.b16 %v5223, %v5222
        %v5243 = vpack.c.b16 %v5225, %v5224
        %v5244 = vpack.c.b16 %v5227, %v5226
        %v5245 = vpack.c.b16 %v5229, %v5228
        %5262 = vmatprep.subr.bf16.mxu0 0
        %5263 = vmatpush1.bf16.msra.mxu0 %v5230
        %5264 = vmatprep.subr.bf16.mxu0 0
        %5265 = vmatpush1.bf16.msra.mxu0 %v5231
        %5266 = vmatprep.subr.bf16.mxu0 0
        %5267 = vmatpush1.bf16.msra.mxu0 %v5232
        %5268 = vmatprep.subr.bf16.mxu0 0
        %5269 = vmatpush1.bf16.msra.mxu0 %v5233
        %5270 = vmatprep.subr.bf16.mxu0 0
        %5271 = vmatpush1.bf16.msra.mxu0 %v5234
        %5272 = vmatprep.subr.bf16.mxu0 0
        %5273 = vmatpush1.bf16.msra.mxu0 %v5235
        %5274 = vmatprep.subr.bf16.mxu0 0
        %5275 = vmatpush1.bf16.msra.mxu0 %v5236
        %5276 = vmatprep.subr.bf16.mxu0 0
        %5277 = vmatpush1.bf16.msra.mxu0 %v5237
        %5278 = vmatprep.subr.bf16.mxu0 0
        %5279 = vmatpush1.bf16.msra.mxu0 %v5238
        %5280 = vmatprep.subr.bf16.mxu0 0
        %5281 = vmatpush1.bf16.msra.mxu0 %v5239
        %5282 = vmatprep.subr.bf16.mxu0 0
        %5283 = vmatpush1.bf16.msra.mxu0 %v5240
        %5284 = vmatprep.subr.bf16.mxu0 0
        %5285 = vmatpush1.bf16.msra.mxu0 %v5241
        %5286 = vmatprep.subr.bf16.mxu0 0
        %5287 = vmatpush1.bf16.msra.mxu0 %v5242
        %5288 = vmatprep.subr.bf16.mxu0 0
        %5289 = vmatpush1.bf16.msra.mxu0 %v5243
        %5290 = vmatprep.subr.bf16.mxu0 0
        %5291 = vmatpush1.bf16.msra.mxu0 %v5244
        %5292 = vmatprep.subr.bf16.mxu0 0
        %5293 = vmatpush1.bf16.msra.mxu0 %v5245
        %5294 = vmatprep.mubr.bf16.mxu0 %v5124
        %5295 = vmatmul.mubr.bf16.gmra.mrb[0].mxu0 %v5123
        %v5296 = vpop.f32.mrb[0].mxu0
        %v5297 = vadd.f32 %v5164, %v5296
        %v5298 = vpop.f32.mrb[0].mxu0
        %v5299 = vpop.f32.mrb[0].mxu0
        %v5300 = vpop.f32.mrb[0].mxu0
        %5301 = vdwg.mxu0
        %5302 = vset.pattern.permute.xlu0 1
        %5303 = vperm.xlu0 %5302, %v4602
        %v5304 = vpop.permute.xlu0 %5303
        %v5306 = vmul.f32 %v5304, %v5297
        %v5307 = vadd.f32 %v4953, %v5306
        %v5308 = vadd.f32 %v4474, %v5307
        %s5309 = scalar_lea.vmem %s1308, 12 [#allocation41]
        %5310 = vst [vmem:[%s5309] sm:$0xf] %v4264
        %s5311 = scalar_lea.vmem %s1315, 12 [#allocation43]
        %5312 = vst [vmem:[%s5311] sm:$0xf] %v4318
        %v5313 = vld [vmem:[#allocation7] sm:$0x3]
        %5314 = vadd.xlane.f32.xlu0 %v5308
        %v5315 = vpop.xlane.xlu0 %5314
        %v5316 = vmul.f32 %v5315, %v1326
        %v5317 = vsub.f32 %v5308, %v5316
        %v5318 = vmul.f32 %v5317, %v5317
        %5319 = vadd.xlane.f32.xlu0 %v5318
        %v5320 = vpop.xlane.xlu0 %5319
        %v5321 = vmul.f32 %v5320, %v1326
        %v5322 = vadd.f32 %v5321, 1e-05
        %v5323 = vrsqrt.pop %v5322
        %v5324 = vmul.f32 %v5317, %v5323
        %v5325 = vlaneseq
        %v5326 = vshrl.u32 %v5325, 7
        %v5327 = vsub.s32 0, %v5326
        %v5328 = vrot.slane %v5313, %v5327
        %v5329 = vmul.f32 %v5324, %v5328
        %v5330 = vlaneseq
        %v5331 = vshrl.u32 %v5330, 7
        %v5332 = vsub.s32 1, %v5331
        %v5333 = vrot.slane %v5313, %v5332
        %v5334 = vadd.f32 %v5329, %v5333
        %5335 = vst [vmem:[%s1301] sm:$0xff] %v5334
        %s5336 = sand.u32 %s718, 1
        %s5337 = scalar_lea.sflag [#allocation4], %s5336
        %s5338 = sand.u32 %s718, 1
        %s5339 = smul.addr %s5338, 8
        %s5340 = scalar_lea.vmem [#allocation40], %s5339
        %s5341 = sand.u32 %s96, 1
        %s5342 = scalar_lea.sflag [#allocation42], %s5341
        %s5343 = sand.u32 %s744, 1
        %s5344 = smul.addr %s5343, 16
        %s5345 = scalar_lea.vmem [#allocation41], %s5344
        %s5346 = sand.u32 %s96, 1
        %s5347 = scalar_lea.sflag [#allocation42], %s5346
        %s5348 = sand.u32 %s770, 1
        %s5349 = smul.addr %s5348, 16
        %s5350 = scalar_lea.vmem [#allocation43], %s5349
        // Predicated region
        $region233: #{tpu_custom_call.1} parent=135 // pred_check
          %p5351 = pneg %p728
        $region234: #{tpu_custom_call.1} parent=135 // pred_check_branch
          %5353 = sbr.rel (%p5351) target = $region236
        $region235: #{tpu_custom_call.1} parent=135 // pred_region
          %s5355 = ssub.s32 128, 128
          %5356 = vsyncadd %s5337, %s5355
          %s5357 = smul.addr %s96, 128
          %s5358 = scalar_lea.hbm %s59, %s5357
          %s5360 = sshll.u32 %s5340, 4
          %s5361 = int_to_ptr.vmem [resolvable:$true] %s5360
          %5363 = dma.vmem_to_hbm [thread:$0]  %s5361, 128, %s5358, %s5337
        $region236: #{tpu_custom_call.1} parent=135 // pred_fallthru
          _
        // Predicated region
        $region237: #{tpu_custom_call.1} parent=135 // pred_check
          %p5364 = pneg %p754
        $region238: #{tpu_custom_call.1} parent=135 // pred_check_branch
          %5366 = sbr.rel (%p5364) target = $region240
        $region239: #{tpu_custom_call.1} parent=135 // pred_region
          %s5368 = ssub.s32 256, 256
          %5369 = vsyncadd %s5342, %s5368
          %s5370 = smul.addr %s96, 64
          %s5371 = scalar_lea.hbm %s61, %s5370
          %s5372 = sshll.u32 %s5345, 4
          %s5373 = int_to_ptr.vmem [resolvable:$true] %s5372
          %5378 = dma.vmem_to_hbm [thread:$0]  %s5373, 256, %s5371, %s5342, 64, 128, 4
        $region240: #{tpu_custom_call.1} parent=135 // pred_fallthru
          _
        // Predicated region
        $region241: #{tpu_custom_call.1} parent=135 // pred_check
          %p5379 = pneg %p780
        $region242: #{tpu_custom_call.1} parent=135 // pred_check_branch
          %5381 = sbr.rel (%p5379) target = $region244
        $region243: #{tpu_custom_call.1} parent=135 // pred_region
          %s5383 = ssub.s32 256, 256
          %5384 = vsyncadd %s5347, %s5383
          %s5385 = smul.addr %s96, 64
          %s5386 = scalar_lea.hbm %s63, %s5385
          %s5387 = sshll.u32 %s5350, 4
          %s5388 = int_to_ptr.vmem [resolvable:$true] %s5387
          %5393 = dma.vmem_to_hbm [thread:$0]  %s5388, 256, %s5386, %s5347, 64, 128, 4
        $region244: #{tpu_custom_call.1} parent=135 // pred_fallthru
          _
      $region136: #{tpu_custom_call.1} parent=5 // pred_fallthru
        _
      %p5394 = scmp.le.s32.totalorder 2, %s91
      // Predicated region
      $region245: #{tpu_custom_call.1} parent=5 // pred_check
        %p5395 = pneg %p5394
      $region246: #{tpu_custom_call.1} parent=5 // pred_check_branch
        %5397 = sbr.rel (%p5395) target = $region248
      $region247: #{tpu_custom_call.1} parent=5 // pred_region
        %s5398 = ssub.s32 %s91, 2
        // Predicated region
        $region249: #{tpu_custom_call.1} parent=247 // pred_check
          %p5399 = pneg %p734
        $region250: #{tpu_custom_call.1} parent=247 // pred_check_branch
          %5401 = sbr.rel (%p5399) target = $region252
        $region251: #{tpu_custom_call.1} parent=247 // pred_region
          %s5402 = sand.u32 %s719, 1
          %s5403 = scalar_lea.sflag [#allocation4], %s5402
          %s5404 = sand.u32 %s719, 1
          %s5405 = smul.addr %s5404, 8
          %s5406 = scalar_lea.vmem [#allocation40], %s5405
          %5407 = dma.done %s5403, 128
        $region252: #{tpu_custom_call.1} parent=247 // pred_fallthru
          _
        // Predicated region
        $region253: #{tpu_custom_call.1} parent=247 // pred_check
          %p5408 = pneg %p760
        $region254: #{tpu_custom_call.1} parent=247 // pred_check_branch
          %5410 = sbr.rel (%p5408) target = $region256
        $region255: #{tpu_custom_call.1} parent=247 // pred_region
          %s5411 = sand.u32 %s97, 1
          %s5412 = scalar_lea.sflag [#allocation42], %s5411
          %s5413 = sand.u32 %s745, 1
          %s5414 = smul.addr %s5413, 16
          %s5415 = scalar_lea.vmem [#allocation41], %s5414
          %5416 = dma.done %s5412, 256
        $region256: #{tpu_custom_call.1} parent=247 // pred_fallthru
          _
        // Predicated region
        $region257: #{tpu_custom_call.1} parent=247 // pred_check
          %p5417 = pneg %p786
        $region258: #{tpu_custom_call.1} parent=247 // pred_check_branch
          %5419 = sbr.rel (%p5417) target = $region260
        $region259: #{tpu_custom_call.1} parent=247 // pred_region
          %s5420 = sand.u32 %s97, 1
          %s5421 = scalar_lea.sflag [#allocation42], %s5420
          %s5422 = sand.u32 %s771, 1
          %s5423 = smul.addr %s5422, 16
          %s5424 = scalar_lea.vmem [#allocation43], %s5423
          %5425 = dma.done %s5421, 256
        $region260: #{tpu_custom_call.1} parent=247 // pred_fallthru
          _
      $region248: #{tpu_custom_call.1} parent=5 // pred_fallthru
        _
    $region6: #{tpu_custom_call.1} parent=1 // loop_footer
      %s95 = sadd.s32 1, %s91
    $region7: #{tpu_custom_call.1} parent=1 // loop_footer_branch
      %90 = sbr.rel target = $region3
    $region8: #{tpu_custom_call.1} parent=1 // loop_exit
      _
    %5426 = vsyncpa [#allocation3], 1
    %s5427 = scalar_lea.sflag [#allocation3], 1
    %5428 = vsyncpa %s5427, 1
    %5429 = vsyncpa [#allocation6], 1
    %5430 = vsyncpa [#allocation9], 1
    %5431 = vsyncpa [#allocation12], 1
    %5432 = vsyncpa [#allocation15], 1
    %5433 = vsyncpa [#allocation18], 1
    %5434 = vsyncpa [#allocation21], 1
    %5435 = vsyncpa [#allocation24], 1
    %5436 = vsyncpa [#allocation27], 1
    %5437 = vsyncpa [#allocation30], 1
    %5438 = vsyncpa [#allocation33], 1
    %5439 = vsyncpa [#allocation36], 1
    %5440 = vsyncpa [#allocation39], 1
    %5441 = vsyncpa [#allocation4], 1
    %s5442 = scalar_lea.sflag [#allocation4], 1
    %5443 = vsyncpa %s5442, 1
    %5444 = vsyncpa [#allocation42], 1
    %s5445 = scalar_lea.sflag [#allocation42], 1
    %5446 = vsyncpa %s5445, 1

</llo_original>
